<compile_context>
chip_gen: v5e
topology: v5e:2x2
jax: 0.10.0
libtpu: 0.0.40
codegen_flags: <defaults>
</compile_context>

<pallas_src>
from functools import partial

import jax
import jax.numpy as jnp
from jax import lax
from jax.experimental import pallas as pl
from jax.experimental.pallas import tpu as pltpu

LN_EPS = 1e-5


# -------------------------------------------------------------------------
# small in-kernel helpers
# -------------------------------------------------------------------------
def _bf16(x):
    return x.astype(jnp.bfloat16)


def _mm(a, w):
    """bf16 MXU matmul with f32 accumulation (w is already bf16)."""
    return jnp.dot(_bf16(a), w, preferred_element_type=jnp.float32)


def _gelu_tanh(x):
    c = 0.7978845608028654  # sqrt(2/pi)
    return 0.5 * x * (1.0 + jnp.tanh(c * (x + 0.044715 * x * x * x)))


def _layernorm(x, g, b, eps=LN_EPS):
    mu = jnp.mean(x, axis=-1, keepdims=True)
    xc = x - mu
    var = jnp.mean(xc * xc, axis=-1, keepdims=True)
    return xc * lax.rsqrt(var + eps) * g + b


def _softmax_lastdim(s):
    m = jnp.max(s, axis=-1, keepdims=True)
    p = jnp.exp(s - m)
    return p / jnp.sum(p, axis=-1, keepdims=True)


def _p(ref, i):
    """Read a (possibly stacked) parameter ref; `i` is a static Python int."""
    return ref[...] if i is None else ref[i]


def _attention(q, k, v, heads, dh):
    """softmax(q k^T) v -> (Nq, heads*dh).  Softmax scale already folded in q."""
    nq, nk = q.shape[0], k.shape[0]
    if heads == 1:
        # No head reshapes / relayouts for the single-head (cross) blocks.
        s = lax.dot_general(_bf16(q), _bf16(k), (((1,), (1,)), ((), ())),
                            preferred_element_type=jnp.float32)          # (Nq, Nk)
        attn = _softmax_lastdim(s)
        return jnp.dot(_bf16(attn), _bf16(v), preferred_element_type=jnp.float32)
    # multi-head: head-leading batched matmuls on the MXU.
    q3 = jnp.swapaxes(_bf16(q).reshape(nq, heads, dh), 0, 1)             # (H, Nq, Dh)
    k3 = jnp.swapaxes(_bf16(k).reshape(nk, heads, dh), 0, 1)
    v3 = jnp.swapaxes(_bf16(v).reshape(nk, heads, dh), 0, 1)
    s = lax.dot_general(q3, k3, (((2,), (2,)), ((0,), (0,))),
                        preferred_element_type=jnp.float32)              # (H, Nq, Nk)
    attn = _softmax_lastdim(s)
    o = lax.dot_general(_bf16(attn), v3, (((2,), (1,)), ((0,), (0,))),
                        preferred_element_type=jnp.float32)              # (H, Nq, Dh)
    return jnp.swapaxes(o, 0, 1).reshape(nq, heads * dh)                 # (Nq, inner)


def _self_block(x, sp, i, heads, dh):
    """Pre-norm self-attention block; ctx == x so a single LN and a fused
    (D, 3*inner) QKV matmul (inner multiple of 128 -> aligned slices)."""
    inner = heads * dh
    xn = _layernorm(x, sp["ln_g"][i], sp["ln_b"][i])
    qkv = _mm(xn, sp["wqkv"][i]) + sp["bqkv"][i]
    o = _attention(qkv[:, :inner], qkv[:, inner:2 * inner], qkv[:, 2 * inner:],
                   heads, dh)
    x1 = x + _mm(o, sp["wo"][i]) + sp["bo"][i]          # single (N,inner)x(inner,D)
    xn2 = _layernorm(x1, sp["lnf_g"][i], sp["lnf_b"][i])
    h = _gelu_tanh(_mm(xn2, sp["w1"][i]) + sp["b1"][i])
    return x1 + _mm(h, sp["w2"][i]) + sp["b2"][i]


def _cross_block(x, ctx, cp, i, heads, dh):
    """Pre-norm cross-attention block.  K/V kept as separate matmuls so the
    H=1 (inner=64) case never splits a vreg at lane 64."""
    xn = _layernorm(x, _p(cp["lnx_g"], i), _p(cp["lnx_b"], i))
    cn = _layernorm(ctx, _p(cp["lnc_g"], i), _p(cp["lnc_b"], i))
    q = _mm(xn, _p(cp["wq"], i)) + _p(cp["bq"], i)       # scale folded into wq/bq
    k = _mm(cn, _p(cp["wk"], i)) + _p(cp["bk"], i)
    v = _mm(cn, _p(cp["wv"], i)) + _p(cp["bv"], i)
    o = _attention(q, k, v, heads, dh)
    x1 = x + _mm(o, _p(cp["wo"], i)) + _p(cp["bo"], i)
    xn2 = _layernorm(x1, _p(cp["lnf_g"], i), _p(cp["lnf_b"], i))
    h = _gelu_tanh(_mm(xn2, _p(cp["w1"], i)) + _p(cp["b1"], i))
    return x1 + _mm(h, _p(cp["w2"], i)) + _p(cp["b2"], i)


# -------------------------------------------------------------------------
# The single fused decoder kernel (one grid step == one batch element)
# -------------------------------------------------------------------------
def _decoder_kernel(ids_ref, latent_ref, *refs, treedef, n_params,
                    heads_latent, dh_latent, heads_cross, dh_cross,
                    num_self, num_cross):
    prm = jax.tree_util.tree_unflatten(treedef, refs[:n_params])
    out_ref = refs[n_params]

    # ---- queries: entity-embedding gather + query MLP (dropout = identity) ----
    # TODO(synk): for large vocab replace the one-hot matmul with a
    # scalar-prefetch DMA gather (embedding table in HBM).
    ids = ids_ref[0]                                        # (Ne, 1) int32
    ne = ids.shape[0]
    vocab = prm["embedding"].shape[0]
    iota = lax.broadcasted_iota(jnp.int32, (ne, vocab), 1)
    onehot = jnp.where(iota == ids, 1.0, 0.0).astype(jnp.bfloat16)
    emb = jnp.dot(onehot, prm["embedding"][...], preferred_element_type=jnp.float32)
    queries = _mm(emb, prm["qmlp_w"][...]) + prm["qmlp_b"][...]          # (Ne, Dq)

    # ---- latent path: self blocks, then cross blocks attending to queries ----
    x = latent_ref[0].astype(jnp.float32)                   # (Nl, Dl)
    for i in range(num_self):
        x = _self_block(x, prm["self_blocks"], i, heads_latent, dh_latent)
    for i in range(num_cross):
        x = _cross_block(x, queries, prm["cross_blocks"], i, heads_cross, dh_cross)

    # ---- output block: queries attend to processed latent ----
    y = _cross_block(queries, x, prm["output_block"], None, heads_cross, dh_cross)

    # ---- fused output heads: concat l1, block-diag l2 padded to 128 lanes ----
    h = _gelu_tanh(_mm(y, prm["out_w1"][...]) + prm["out_b1"][...])
    z = _mm(h, prm["out_w2"][...]) + prm["out_b2"][...]                  # (Ne, OUT_PAD)
    out_ref[0] = z.astype(out_ref.dtype)


def _const_spec(arr):
    """Full-array block with a constant index map (VMEM-resident weight)."""
    nd = arr.ndim
    return pl.BlockSpec(arr.shape, lambda b, _n=nd: (0,) * _n)


def decoder_forward(params, latent, entities, *, output_spec,
                    num_head_cross=1, num_head_latent=4,
                    dim_head_cross=64, dim_head_latent=64):
    B, Nl, Dl = latent.shape
    _, Ne = entities.shape
    flat, treedef = jax.tree_util.tree_flatten(params)
    out_pad = params["out_w2"].shape[1]
    num_self = params["self_blocks"]["wqkv"].shape[0]
    num_cross = params["cross_blocks"]["wq"].shape[0]

    kernel = partial(
        _decoder_kernel, treedef=treedef, n_params=len(flat),
        heads_latent=num_head_latent, dh_latent=dim_head_latent,
        heads_cross=num_head_cross, dh_cross=dim_head_cross,
        num_self=num_self, num_cross=num_cross)

    ids3 = entities.astype(jnp.int32).reshape(B, Ne, 1)

    y = pl.pallas_call(
        kernel,
        out_shape=jax.ShapeDtypeStruct((B, Ne, out_pad), jnp.float32),
        grid=(B,),
        in_specs=[pl.BlockSpec((1, Ne, 1), lambda b: (b, 0, 0)),
                  pl.BlockSpec((1, Nl, Dl), lambda b: (b, 0, 0))]
                 + [_const_spec(w) for w in flat],
        out_specs=pl.BlockSpec((1, Ne, out_pad), lambda b: (b, 0, 0)),
        compiler_params=pltpu.CompilerParams(dimension_semantics=("parallel",)),
        # NOTE: at realistic model dims, also set vmem_limit_bytes here and
        # single-buffer the weight operands (their index maps are constant).
    )(ids3, latent, *flat)

    outputs = {}
    off = 0
    for name, od in output_spec:
        outputs[name] = y[:, :, off:off + od]
        off += od
    return outputs


# -------------------------------------------------------------------------
# Parameter init (deterministic, synthetic) in kernel-ready fused layout
# -------------------------------------------------------------------------
def _init_linear(key, din, dout):
    w = jax.random.normal(key, (din, dout), jnp.float32) * (1.0 / jnp.sqrt(float(din)))
    b = jnp.zeros((dout,), jnp.float32)
    return w, b


def _init_self_block(key, dim, heads, dh, ff_mult=4):
    inner = heads * dh
    scale = float(dh) ** -0.5
    ks = jax.random.split(key, 6)
    wq, bq = _init_linear(ks[0], dim, inner)
    wk, bk = _init_linear(ks[1], dim, inner)
    wv, bv = _init_linear(ks[2], dim, inner)
    wo, bo = _init_linear(ks[3], inner, dim)
    w1, b1 = _init_linear(ks[4], dim, ff_mult * dim)
    w2, b2 = _init_linear(ks[5], ff_mult * dim, dim)
    return {
        "ln_g": jnp.ones((1, dim), jnp.float32), "ln_b": jnp.zeros((1, dim), jnp.float32),
        # softmax scale folded into the q part of the fused QKV weight.
        "wqkv": _bf16(jnp.concatenate([wq * scale, wk, wv], axis=1)),
        "bqkv": jnp.concatenate([bq * scale, bk, bv]).reshape(1, 3 * inner),
        "wo": _bf16(wo), "bo": bo.reshape(1, dim),
        "lnf_g": jnp.ones((1, dim), jnp.float32), "lnf_b": jnp.zeros((1, dim), jnp.float32),
        "w1": _bf16(w1), "b1": b1.reshape(1, -1),
        "w2": _bf16(w2), "b2": b2.reshape(1, -1),
    }


def _init_cross_block(key, dim, context_dim, heads, dh, ff_mult=4):
    inner = heads * dh
    scale = float(dh) ** -0.5
    ks = jax.random.split(key, 6)
    wq, bq = _init_linear(ks[0], dim, inner)
    wk, bk = _init_linear(ks[1], context_dim, inner)
    wv, bv = _init_linear(ks[2], context_dim, inner)
    wo, bo = _init_linear(ks[3], inner, dim)
    w1, b1 = _init_linear(ks[4], dim, ff_mult * dim)
    w2, b2 = _init_linear(ks[5], ff_mult * dim, dim)
    return {
        "lnx_g": jnp.ones((1, dim), jnp.float32), "lnx_b": jnp.zeros((1, dim), jnp.float32),
        "lnc_g": jnp.ones((1, context_dim), jnp.float32),
        "lnc_b": jnp.zeros((1, context_dim), jnp.float32),
        "wq": _bf16(wq * scale), "bq": (bq * scale).reshape(1, inner),
        "wk": _bf16(wk), "bk": bk.reshape(1, inner),
        "wv": _bf16(wv), "bv": bv.reshape(1, inner),
        "wo": _bf16(wo), "bo": bo.reshape(1, dim),
        "lnf_g": jnp.ones((1, dim), jnp.float32), "lnf_b": jnp.zeros((1, dim), jnp.float32),
        "w1": _bf16(w1), "b1": b1.reshape(1, -1),
        "w2": _bf16(w2), "b2": b2.reshape(1, -1),
    }


def init_decoder_params(key, outputs, dim_query, dim_latent, vocab, dim_entity_embedding,
                        dim_head_cross=64, dim_head_latent=64, num_head_cross=1,
                        num_head_latent=4, num_block_cross=2, num_block_attn=4):
    keys = jax.random.split(key, 6)
    embedding = jax.random.normal(keys[0], (vocab, dim_entity_embedding), jnp.float32) * 0.02
    qmlp_w, qmlp_b = _init_linear(keys[1], dim_entity_embedding, dim_query)

    self_blocks = [_init_self_block(k, dim_latent, num_head_latent, dim_head_latent)
                   for k in jax.random.split(keys[2], num_block_attn)]
    cross_blocks = [_init_cross_block(k, dim_latent, dim_query, num_head_cross, dim_head_cross)
                    for k in jax.random.split(keys[3], num_block_cross)]
    output_block = _init_cross_block(keys[4], dim_query, dim_latent,
                                     num_head_cross, dim_head_cross)

    def stack(dicts):
        return jax.tree_util.tree_map(lambda *xs: jnp.stack(xs), *dicts)

    # fused output heads: concat l1; block-diagonal l2 padded to a lane-dense
    # (multiple of 128) output width so the final store is unmasked.
    names = list(outputs.keys())
    n = len(names)
    sum_out = sum(outputs.values())
    out_pad = max(128, ((sum_out + 127) // 128) * 128)
    l1_ws, l1_bs = [], []
    w2_bd = jnp.zeros((n * dim_query, out_pad), jnp.float32)
    b2_cat = jnp.zeros((1, out_pad), jnp.float32)
    off = 0
    for i, name in enumerate(names):
        k1, k2 = jax.random.split(jax.random.fold_in(keys[5], i))
        w1, b1 = _init_linear(k1, dim_query, dim_query)
        w2, b2 = _init_linear(k2, dim_query, outputs[name])
        l1_ws.append(w1)
        l1_bs.append(b1)
        od = outputs[name]
        w2_bd = w2_bd.at[i * dim_query:(i + 1) * dim_query, off:off + od].set(w2)
        b2_cat = b2_cat.at[0, off:off + od].set(b2)
        off += od

    return {
        "embedding": _bf16(embedding),
        "qmlp_w": _bf16(qmlp_w), "qmlp_b": qmlp_b.reshape(1, dim_query),
        "self_blocks": stack(self_blocks),
        "cross_blocks": stack(cross_blocks),
        "output_block": output_block,
        "out_w1": _bf16(jnp.concatenate(l1_ws, axis=1)),
        "out_b1": jnp.concatenate(l1_bs).reshape(1, n * dim_query),
        "out_w2": _bf16(w2_bd),
        "out_b2": b2_cat,
    }


if __name__ == "__main__":
    key = jax.random.PRNGKey(0)
    k_param, k_lat, k_ent = jax.random.split(key, 3)

    outputs_spec = {"position": 3, "logits": 5}
    B, N_latent, dim_latent = 2, 8, 32
    Ne, vocab, dim_emb, dim_query = 8, 10, 16, 32

    params = init_decoder_params(k_param, outputs_spec, dim_query, dim_latent, vocab, dim_emb)
    latent = jax.random.normal(k_lat, (B, N_latent, dim_latent), jnp.float32)
    entities = jax.random.randint(k_ent, (B, Ne), 0, vocab)

    fwd = jax.jit(partial(decoder_forward, output_spec=tuple(outputs_spec.items())))
    outs = jax.block_until_ready(fwd(params, latent, entities))
    for name, out_dim in outputs_spec.items():
        assert outs[name].shape == (B, Ne, out_dim), (name, outs[name].shape)
        assert bool(jnp.all(jnp.isfinite(outs[name])))
    print("KERNEL_OK")
</pallas_src>

<mosaic_0001>
module attributes {stable_mosaic.version = 11 : i64} {
  func.func @_decoder_kernel(%arg0: i32, %arg1: memref<1x8x1xi32, #tpu.memory_space<vmem>>, %arg2: memref<1x8x32xf32, #tpu.memory_space<vmem>>, %arg3: memref<2x1x128xf32, #tpu.memory_space<vmem>>, %arg4: memref<2x1x32xf32, #tpu.memory_space<vmem>>, %arg5: memref<2x1x64xf32, #tpu.memory_space<vmem>>, %arg6: memref<2x1x32xf32, #tpu.memory_space<vmem>>, %arg7: memref<2x1x64xf32, #tpu.memory_space<vmem>>, %arg8: memref<2x1x64xf32, #tpu.memory_space<vmem>>, %arg9: memref<2x1x32xf32, #tpu.memory_space<vmem>>, %arg10: memref<2x1x32xf32, #tpu.memory_space<vmem>>, %arg11: memref<2x1x32xf32, #tpu.memory_space<vmem>>, %arg12: memref<2x1x32xf32, #tpu.memory_space<vmem>>, %arg13: memref<2x1x32xf32, #tpu.memory_space<vmem>>, %arg14: memref<2x1x32xf32, #tpu.memory_space<vmem>>, %arg15: memref<2x32x128xbf16, #tpu.memory_space<vmem>>, %arg16: memref<2x128x32xbf16, #tpu.memory_space<vmem>>, %arg17: memref<2x32x64xbf16, #tpu.memory_space<vmem>>, %arg18: memref<2x64x32xbf16, #tpu.memory_space<vmem>>, %arg19: memref<2x32x64xbf16, #tpu.memory_space<vmem>>, %arg20: memref<2x32x64xbf16, #tpu.memory_space<vmem>>, %arg21: memref<10x16xbf16, #tpu.memory_space<vmem>>, %arg22: memref<1x64xf32, #tpu.memory_space<vmem>>, %arg23: memref<1x128xf32, #tpu.memory_space<vmem>>, %arg24: memref<32x64xbf16, #tpu.memory_space<vmem>>, %arg25: memref<64x128xbf16, #tpu.memory_space<vmem>>, %arg26: memref<1x128xf32, #tpu.memory_space<vmem>>, %arg27: memref<1x32xf32, #tpu.memory_space<vmem>>, %arg28: memref<1x64xf32, #tpu.memory_space<vmem>>, %arg29: memref<1x32xf32, #tpu.memory_space<vmem>>, %arg30: memref<1x64xf32, #tpu.memory_space<vmem>>, %arg31: memref<1x64xf32, #tpu.memory_space<vmem>>, %arg32: memref<1x32xf32, #tpu.memory_space<vmem>>, %arg33: memref<1x32xf32, #tpu.memory_space<vmem>>, %arg34: memref<1x32xf32, #tpu.memory_space<vmem>>, %arg35: memref<1x32xf32, #tpu.memory_space<vmem>>, %arg36: memref<1x32xf32, #tpu.memory_space<vmem>>, %arg37: memref<1x32xf32, #tpu.memory_space<vmem>>, %arg38: memref<32x128xbf16, #tpu.memory_space<vmem>>, %arg39: memref<128x32xbf16, #tpu.memory_space<vmem>>, %arg40: memref<32x64xbf16, #tpu.memory_space<vmem>>, %arg41: memref<64x32xbf16, #tpu.memory_space<vmem>>, %arg42: memref<32x64xbf16, #tpu.memory_space<vmem>>, %arg43: memref<32x64xbf16, #tpu.memory_space<vmem>>, %arg44: memref<1x32xf32, #tpu.memory_space<vmem>>, %arg45: memref<16x32xbf16, #tpu.memory_space<vmem>>, %arg46: memref<4x1x128xf32, #tpu.memory_space<vmem>>, %arg47: memref<4x1x32xf32, #tpu.memory_space<vmem>>, %arg48: memref<4x1x32xf32, #tpu.memory_space<vmem>>, %arg49: memref<4x1x768xf32, #tpu.memory_space<vmem>>, %arg50: memref<4x1x32xf32, #tpu.memory_space<vmem>>, %arg51: memref<4x1x32xf32, #tpu.memory_space<vmem>>, %arg52: memref<4x1x32xf32, #tpu.memory_space<vmem>>, %arg53: memref<4x1x32xf32, #tpu.memory_space<vmem>>, %arg54: memref<4x32x128xbf16, #tpu.memory_space<vmem>>, %arg55: memref<4x128x32xbf16, #tpu.memory_space<vmem>>, %arg56: memref<4x256x32xbf16, #tpu.memory_space<vmem>>, %arg57: memref<4x32x768xbf16, #tpu.memory_space<vmem>>, %arg58: memref<1x8x128xf32, #tpu.memory_space<vmem>>) attributes {dimension_semantics = [#tpu.dimension_semantics<parallel>], iteration_bounds = array<i64: 2>, scalar_prefetch = 0 : i64, scratch_operands = 0 : i64, tpu.core_type = #tpu.core_type<tc>, window_params = [{transform_indices = @transform_0, window_bounds = array<i64: 1, 8, 1>}, {transform_indices = @transform_1, window_bounds = array<i64: 1, 8, 32>}, {pipeline_mode = #tpu.pipeline_mode<synchronous>, transform_indices = @transform_2, window_bounds = array<i64: 2, 1, 128>}, {pipeline_mode = #tpu.pipeline_mode<synchronous>, transform_indices = @transform_3, window_bounds = array<i64: 2, 1, 32>}, {pipeline_mode = #tpu.pipeline_mode<synchronous>, transform_indices = @transform_4, window_bounds = array<i64: 2, 1, 64>}, {pipeline_mode = #tpu.pipeline_mode<synchronous>, transform_indices = @transform_5, window_bounds = array<i64: 2, 1, 32>}, {pipeline_mode = #tpu.pipeline_mode<synchronous>, transform_indices = @transform_6, window_bounds = array<i64: 2, 1, 64>}, {pipeline_mode = #tpu.pipeline_mode<synchronous>, transform_indices = @transform_7, window_bounds = array<i64: 2, 1, 64>}, {pipeline_mode = #tpu.pipeline_mode<synchronous>, transform_indices = @transform_8, window_bounds = array<i64: 2, 1, 32>}, {pipeline_mode = #tpu.pipeline_mode<synchronous>, transform_indices = @transform_9, window_bounds = array<i64: 2, 1, 32>}, {pipeline_mode = #tpu.pipeline_mode<synchronous>, transform_indices = @transform_10, window_bounds = array<i64: 2, 1, 32>}, {pipeline_mode = #tpu.pipeline_mode<synchronous>, transform_indices = @transform_11, window_bounds = array<i64: 2, 1, 32>}, {pipeline_mode = #tpu.pipeline_mode<synchronous>, transform_indices = @transform_12, window_bounds = array<i64: 2, 1, 32>}, {pipeline_mode = #tpu.pipeline_mode<synchronous>, transform_indices = @transform_13, window_bounds = array<i64: 2, 1, 32>}, {pipeline_mode = #tpu.pipeline_mode<synchronous>, transform_indices = @transform_14, window_bounds = array<i64: 2, 32, 128>}, {pipeline_mode = #tpu.pipeline_mode<synchronous>, transform_indices = @transform_15, window_bounds = array<i64: 2, 128, 32>}, {pipeline_mode = #tpu.pipeline_mode<synchronous>, transform_indices = @transform_16, window_bounds = array<i64: 2, 32, 64>}, {pipeline_mode = #tpu.pipeline_mode<synchronous>, transform_indices = @transform_17, window_bounds = array<i64: 2, 64, 32>}, {pipeline_mode = #tpu.pipeline_mode<synchronous>, transform_indices = @transform_18, window_bounds = array<i64: 2, 32, 64>}, {pipeline_mode = #tpu.pipeline_mode<synchronous>, transform_indices = @transform_19, window_bounds = array<i64: 2, 32, 64>}, {pipeline_mode = #tpu.pipeline_mode<synchronous>, transform_indices = @transform_20, window_bounds = array<i64: 10, 16>}, {pipeline_mode = #tpu.pipeline_mode<synchronous>, transform_indices = @transform_21, window_bounds = array<i64: 1, 64>}, {pipeline_mode = #tpu.pipeline_mode<synchronous>, transform_indices = @transform_22, window_bounds = array<i64: 1, 128>}, {pipeline_mode = #tpu.pipeline_mode<synchronous>, transform_indices = @transform_23, window_bounds = array<i64: 32, 64>}, {pipeline_mode = #tpu.pipeline_mode<synchronous>, transform_indices = @transform_24, window_bounds = array<i64: 64, 128>}, {pipeline_mode = #tpu.pipeline_mode<synchronous>, transform_indices = @transform_25, window_bounds = array<i64: 1, 128>}, {pipeline_mode = #tpu.pipeline_mode<synchronous>, transform_indices = @transform_26, window_bounds = array<i64: 1, 32>}, {pipeline_mode = #tpu.pipeline_mode<synchronous>, transform_indices = @transform_27, window_bounds = array<i64: 1, 64>}, {pipeline_mode = #tpu.pipeline_mode<synchronous>, transform_indices = @transform_28, window_bounds = array<i64: 1, 32>}, {pipeline_mode = #tpu.pipeline_mode<synchronous>, transform_indices = @transform_29, window_bounds = array<i64: 1, 64>}, {pipeline_mode = #tpu.pipeline_mode<synchronous>, transform_indices = @transform_30, window_bounds = array<i64: 1, 64>}, {pipeline_mode = #tpu.pipeline_mode<synchronous>, transform_indices = @transform_31, window_bounds = array<i64: 1, 32>}, {pipeline_mode = #tpu.pipeline_mode<synchronous>, transform_indices = @transform_32, window_bounds = array<i64: 1, 32>}, {pipeline_mode = #tpu.pipeline_mode<synchronous>, transform_indices = @transform_33, window_bounds = array<i64: 1, 32>}, {pipeline_mode = #tpu.pipeline_mode<synchronous>, transform_indices = @transform_34, window_bounds = array<i64: 1, 32>}, {pipeline_mode = #tpu.pipeline_mode<synchronous>, transform_indices = @transform_35, window_bounds = array<i64: 1, 32>}, {pipeline_mode = #tpu.pipeline_mode<synchronous>, transform_indices = @transform_36, window_bounds = array<i64: 1, 32>}, {pipeline_mode = #tpu.pipeline_mode<synchronous>, transform_indices = @transform_37, window_bounds = array<i64: 32, 128>}, {pipeline_mode = #tpu.pipeline_mode<synchronous>, transform_indices = @transform_38, window_bounds = array<i64: 128, 32>}, {pipeline_mode = #tpu.pipeline_mode<synchronous>, transform_indices = @transform_39, window_bounds = array<i64: 32, 64>}, {pipeline_mode = #tpu.pipeline_mode<synchronous>, transform_indices = @transform_40, window_bounds = array<i64: 64, 32>}, {pipeline_mode = #tpu.pipeline_mode<synchronous>, transform_indices = @transform_41, window_bounds = array<i64: 32, 64>}, {pipeline_mode = #tpu.pipeline_mode<synchronous>, transform_indices = @transform_42, window_bounds = array<i64: 32, 64>}, {pipeline_mode = #tpu.pipeline_mode<synchronous>, transform_indices = @transform_43, window_bounds = array<i64: 1, 32>}, {pipeline_mode = #tpu.pipeline_mode<synchronous>, transform_indices = @transform_44, window_bounds = array<i64: 16, 32>}, {pipeline_mode = #tpu.pipeline_mode<synchronous>, transform_indices = @transform_45, window_bounds = array<i64: 4, 1, 128>}, {pipeline_mode = #tpu.pipeline_mode<synchronous>, transform_indices = @transform_46, window_bounds = array<i64: 4, 1, 32>}, {pipeline_mode = #tpu.pipeline_mode<synchronous>, transform_indices = @transform_47, window_bounds = array<i64: 4, 1, 32>}, {pipeline_mode = #tpu.pipeline_mode<synchronous>, transform_indices = @transform_48, window_bounds = array<i64: 4, 1, 768>}, {pipeline_mode = #tpu.pipeline_mode<synchronous>, transform_indices = @transform_49, window_bounds = array<i64: 4, 1, 32>}, {pipeline_mode = #tpu.pipeline_mode<synchronous>, transform_indices = @transform_50, window_bounds = array<i64: 4, 1, 32>}, {pipeline_mode = #tpu.pipeline_mode<synchronous>, transform_indices = @transform_51, window_bounds = array<i64: 4, 1, 32>}, {pipeline_mode = #tpu.pipeline_mode<synchronous>, transform_indices = @transform_52, window_bounds = array<i64: 4, 1, 32>}, {pipeline_mode = #tpu.pipeline_mode<synchronous>, transform_indices = @transform_53, window_bounds = array<i64: 4, 32, 128>}, {pipeline_mode = #tpu.pipeline_mode<synchronous>, transform_indices = @transform_54, window_bounds = array<i64: 4, 128, 32>}, {pipeline_mode = #tpu.pipeline_mode<synchronous>, transform_indices = @transform_55, window_bounds = array<i64: 4, 256, 32>}, {pipeline_mode = #tpu.pipeline_mode<synchronous>, transform_indices = @transform_56, window_bounds = array<i64: 4, 32, 768>}, {transform_indices = @transform_57, window_bounds = array<i64: 1, 8, 128>}]} {
    %c0 = arith.constant 0 : index
    %c0_0 = arith.constant 0 : index
    %c0_1 = arith.constant 0 : index
    %0 = vector.load %arg1[%c0, %c0_0, %c0_1] : memref<1x8x1xi32, #tpu.memory_space<vmem>>, vector<1x8x1xi32>
    %1 = vector.shape_cast %0 : vector<1x8x1xi32> to vector<8x1xi32>
    %2 = tpu.iota {dimensions = array<i32: 1>} : vector<8x10xi32>
    %3 = vector.broadcast %1 : vector<8x1xi32> to vector<8x10xi32>
    %4 = arith.cmpi eq, %2, %3 : vector<8x10xi32>
    %cst = arith.constant 1.000000e+00 : f32
    %cst_2 = arith.constant 0.000000e+00 : f32
    %5 = vector.broadcast %cst : f32 to vector<8x10xf32>
    %6 = vector.broadcast %cst_2 : f32 to vector<8x10xf32>
    %7 = arith.select %4, %5, %6 : vector<8x10xi1>, vector<8x10xf32>
    %8 = arith.truncf %7 : vector<8x10xf32> to vector<8x10xbf16>
    %c0_3 = arith.constant 0 : index
    %c0_4 = arith.constant 0 : index
    %9 = vector.load %arg21[%c0_3, %c0_4] : memref<10x16xbf16, #tpu.memory_space<vmem>>, vector<10x16xbf16>
    %cst_5 = arith.constant dense<0.000000e+00> : vector<8x16xf32>
    %10 = tpu.matmul %8, %9, %cst_5 {dimension_numbers = #tpu.dot_dimension_numbers<[1], [0], [0], [1], [0, 0, 1, 1], [], []>} : vector<8x10xbf16>, vector<10x16xbf16>, vector<8x16xf32> -> vector<8x16xf32>
    %c0_6 = arith.constant 0 : index
    %c0_7 = arith.constant 0 : index
    %11 = vector.load %arg45[%c0_6, %c0_7] : memref<16x32xbf16, #tpu.memory_space<vmem>>, vector<16x32xbf16>
    %12 = arith.truncf %10 : vector<8x16xf32> to vector<8x16xbf16>
    %cst_8 = arith.constant dense<0.000000e+00> : vector<8x32xf32>
    %13 = tpu.matmul %12, %11, %cst_8 {dimension_numbers = #tpu.dot_dimension_numbers<[1], [0], [0], [1], [0, 0, 1, 1], [], []>} : vector<8x16xbf16>, vector<16x32xbf16>, vector<8x32xf32> -> vector<8x32xf32>
    %c0_9 = arith.constant 0 : index
    %c0_10 = arith.constant 0 : index
    %14 = vector.load %arg44[%c0_9, %c0_10] : memref<1x32xf32, #tpu.memory_space<vmem>>, vector<1x32xf32>
    %15 = vector.broadcast %14 : vector<1x32xf32> to vector<8x32xf32>
    %16 = arith.addf %13, %15 : vector<8x32xf32>
    %c0_11 = arith.constant 0 : index
    %c0_12 = arith.constant 0 : index
    %c0_13 = arith.constant 0 : index
    %17 = vector.load %arg2[%c0_11, %c0_12, %c0_13] : memref<1x8x32xf32, #tpu.memory_space<vmem>>, vector<1x8x32xf32>
    %18 = vector.shape_cast %17 : vector<1x8x32xf32> to vector<8x32xf32>
    %c0_14 = arith.constant 0 : index
    %c0_15 = arith.constant 0 : index
    %c0_16 = arith.constant 0 : index
    %19 = vector.load %arg51[%c0_14, %c0_15, %c0_16] : memref<4x1x32xf32, #tpu.memory_space<vmem>>, vector<1x1x32xf32>
    %20 = vector.shape_cast %19 : vector<1x1x32xf32> to vector<1x32xf32>
    %c0_17 = arith.constant 0 : index
    %c0_18 = arith.constant 0 : index
    %c0_19 = arith.constant 0 : index
    %21 = vector.load %arg50[%c0_17, %c0_18, %c0_19] : memref<4x1x32xf32, #tpu.memory_space<vmem>>, vector<1x1x32xf32>
    %22 = vector.shape_cast %21 : vector<1x1x32xf32> to vector<1x32xf32>
    %cst_20 = arith.constant dense<0.000000e+00> : vector<8xf32>
    %23 = vector.multi_reduction <add>, %18, %cst_20 [1] : vector<8x32xf32> to vector<8xf32>
    %24 = vector.shape_cast %23 : vector<8xf32> to vector<8x1xf32>
    %cst_21 = arith.constant 3.200000e+01 : f32
    %25 = vector.broadcast %cst_21 : f32 to vector<8x1xf32>
    %26 = arith.divf %24, %25 : vector<8x1xf32>
    %27 = vector.broadcast %26 : vector<8x1xf32> to vector<8x32xf32>
    %28 = arith.subf %18, %27 : vector<8x32xf32>
    %29 = arith.mulf %28, %28 : vector<8x32xf32>
    %cst_22 = arith.constant dense<0.000000e+00> : vector<8xf32>
    %30 = vector.multi_reduction <add>, %29, %cst_22 [1] : vector<8x32xf32> to vector<8xf32>
    %31 = vector.shape_cast %30 : vector<8xf32> to vector<8x1xf32>
    %cst_23 = arith.constant 3.200000e+01 : f32
    %32 = vector.broadcast %cst_23 : f32 to vector<8x1xf32>
    %33 = arith.divf %31, %32 : vector<8x1xf32>
    %cst_24 = arith.constant 9.99999974E-6 : f32
    %34 = vector.broadcast %cst_24 : f32 to vector<8x1xf32>
    %35 = arith.addf %33, %34 : vector<8x1xf32>
    %36 = math.rsqrt %35 : vector<8x1xf32>
    %37 = vector.broadcast %36 : vector<8x1xf32> to vector<8x32xf32>
    %38 = arith.mulf %28, %37 : vector<8x32xf32>
    %39 = vector.broadcast %20 : vector<1x32xf32> to vector<8x32xf32>
    %40 = arith.mulf %38, %39 : vector<8x32xf32>
    %41 = vector.broadcast %22 : vector<1x32xf32> to vector<8x32xf32>
    %42 = arith.addf %40, %41 : vector<8x32xf32>
    %c0_25 = arith.constant 0 : index
    %c0_26 = arith.constant 0 : index
    %c0_27 = arith.constant 0 : index
    %43 = vector.load %arg57[%c0_25, %c0_26, %c0_27] : memref<4x32x768xbf16, #tpu.memory_space<vmem>>, vector<1x32x768xbf16>
    %44 = vector.shape_cast %43 : vector<1x32x768xbf16> to vector<32x768xbf16>
    %45 = arith.truncf %42 : vector<8x32xf32> to vector<8x32xbf16>
    %cst_28 = arith.constant dense<0.000000e+00> : vector<8x768xf32>
    %46 = tpu.matmul %45, %44, %cst_28 {dimension_numbers = #tpu.dot_dimension_numbers<[1], [0], [0], [1], [0, 0, 1, 1], [], []>} : vector<8x32xbf16>, vector<32x768xbf16>, vector<8x768xf32> -> vector<8x768xf32>
    %c0_29 = arith.constant 0 : index
    %c0_30 = arith.constant 0 : index
    %c0_31 = arith.constant 0 : index
    %47 = vector.load %arg49[%c0_29, %c0_30, %c0_31] : memref<4x1x768xf32, #tpu.memory_space<vmem>>, vector<1x1x768xf32>
    %48 = vector.shape_cast %47 : vector<1x1x768xf32> to vector<1x768xf32>
    %49 = vector.broadcast %48 : vector<1x768xf32> to vector<8x768xf32>
    %50 = arith.addf %46, %49 : vector<8x768xf32>
    %51 = vector.extract_strided_slice %50 {offsets = [0, 0], sizes = [8, 256], strides = [1, 1]} : vector<8x768xf32> to vector<8x256xf32>
    %52 = vector.extract_strided_slice %50 {offsets = [0, 256], sizes = [8, 256], strides = [1, 1]} : vector<8x768xf32> to vector<8x256xf32>
    %53 = vector.extract_strided_slice %50 {offsets = [0, 512], sizes = [8, 256], strides = [1, 1]} : vector<8x768xf32> to vector<8x256xf32>
    %54 = arith.truncf %51 : vector<8x256xf32> to vector<8x256xbf16>
    %55 = vector.shape_cast %54 : vector<8x256xbf16> to vector<8x4x64xbf16>
    %56 = tpu.transpose %55, [1, 0, 2] : vector<8x4x64xbf16> -> vector<4x8x64xbf16>
    %57 = arith.truncf %52 : vector<8x256xf32> to vector<8x256xbf16>
    %58 = vector.shape_cast %57 : vector<8x256xbf16> to vector<8x4x64xbf16>
    %59 = tpu.transpose %58, [1, 0, 2] : vector<8x4x64xbf16> -> vector<4x8x64xbf16>
    %60 = arith.truncf %53 : vector<8x256xf32> to vector<8x256xbf16>
    %61 = vector.shape_cast %60 : vector<8x256xbf16> to vector<8x4x64xbf16>
    %62 = tpu.transpose %61, [1, 0, 2] : vector<8x4x64xbf16> -> vector<4x8x64xbf16>
    %cst_32 = arith.constant dense<0.000000e+00> : vector<4x8x8xf32>
    %63 = tpu.matmul %56, %59, %cst_32 {dimension_numbers = #tpu.dot_dimension_numbers<[2], [2], [1], [1], [0, 0, 0, 1, 1, 1], [0], [0]>} : vector<4x8x64xbf16>, vector<4x8x64xbf16>, vector<4x8x8xf32> -> vector<4x8x8xf32>
    %cst_33 = arith.constant dense<0xFF800000> : vector<4x8xf32>
    %64 = vector.multi_reduction <maximumf>, %63, %cst_33 [2] : vector<4x8x8xf32> to vector<4x8xf32>
    %65 = vector.shape_cast %64 : vector<4x8xf32> to vector<4x8x1xf32>
    %66 = vector.broadcast %65 : vector<4x8x1xf32> to vector<4x8x8xf32>
    %67 = arith.subf %63, %66 : vector<4x8x8xf32>
    %68 = math.exp %67 : vector<4x8x8xf32>
    %cst_34 = arith.constant dense<0.000000e+00> : vector<4x8xf32>
    %69 = vector.multi_reduction <add>, %68, %cst_34 [2] : vector<4x8x8xf32> to vector<4x8xf32>
    %70 = vector.shape_cast %69 : vector<4x8xf32> to vector<4x8x1xf32>
    %71 = vector.broadcast %70 : vector<4x8x1xf32> to vector<4x8x8xf32>
    %72 = arith.divf %68, %71 : vector<4x8x8xf32>
    %73 = arith.truncf %72 : vector<4x8x8xf32> to vector<4x8x8xbf16>
    %cst_35 = arith.constant dense<0.000000e+00> : vector<4x8x64xf32>
    %74 = tpu.matmul %73, %62, %cst_35 {dimension_numbers = #tpu.dot_dimension_numbers<[2], [1], [1], [2], [0, 0, 0, 1, 1, 2], [0], [0]>} : vector<4x8x8xbf16>, vector<4x8x64xbf16>, vector<4x8x64xf32> -> vector<4x8x64xf32>
    %75 = tpu.transpose %74, [1, 0, 2] : vector<4x8x64xf32> -> vector<8x4x64xf32>
    %76 = vector.shape_cast %75 : vector<8x4x64xf32> to vector<8x256xf32>
    %c0_36 = arith.constant 0 : index
    %c0_37 = arith.constant 0 : index
    %c0_38 = arith.constant 0 : index
    %77 = vector.load %arg56[%c0_36, %c0_37, %c0_38] : memref<4x256x32xbf16, #tpu.memory_space<vmem>>, vector<1x256x32xbf16>
    %78 = vector.shape_cast %77 : vector<1x256x32xbf16> to vector<256x32xbf16>
    %79 = arith.truncf %76 : vector<8x256xf32> to vector<8x256xbf16>
    %cst_39 = arith.constant dense<0.000000e+00> : vector<8x32xf32>
    %80 = tpu.matmul %79, %78, %cst_39 {dimension_numbers = #tpu.dot_dimension_numbers<[1], [0], [0], [1], [0, 0, 1, 1], [], []>} : vector<8x256xbf16>, vector<256x32xbf16>, vector<8x32xf32> -> vector<8x32xf32>
    %81 = arith.addf %18, %80 : vector<8x32xf32>
    %c0_40 = arith.constant 0 : index
    %c0_41 = arith.constant 0 : index
    %c0_42 = arith.constant 0 : index
    %82 = vector.load %arg48[%c0_40, %c0_41, %c0_42] : memref<4x1x32xf32, #tpu.memory_space<vmem>>, vector<1x1x32xf32>
    %83 = vector.shape_cast %82 : vector<1x1x32xf32> to vector<1x32xf32>
    %84 = vector.broadcast %83 : vector<1x32xf32> to vector<8x32xf32>
    %85 = arith.addf %81, %84 : vector<8x32xf32>
    %c0_43 = arith.constant 0 : index
    %c0_44 = arith.constant 0 : index
    %c0_45 = arith.constant 0 : index
    %86 = vector.load %arg53[%c0_43, %c0_44, %c0_45] : memref<4x1x32xf32, #tpu.memory_space<vmem>>, vector<1x1x32xf32>
    %87 = vector.shape_cast %86 : vector<1x1x32xf32> to vector<1x32xf32>
    %c0_46 = arith.constant 0 : index
    %c0_47 = arith.constant 0 : index
    %c0_48 = arith.constant 0 : index
    %88 = vector.load %arg52[%c0_46, %c0_47, %c0_48] : memref<4x1x32xf32, #tpu.memory_space<vmem>>, vector<1x1x32xf32>
    %89 = vector.shape_cast %88 : vector<1x1x32xf32> to vector<1x32xf32>
    %cst_49 = arith.constant dense<0.000000e+00> : vector<8xf32>
    %90 = vector.multi_reduction <add>, %85, %cst_49 [1] : vector<8x32xf32> to vector<8xf32>
    %91 = vector.shape_cast %90 : vector<8xf32> to vector<8x1xf32>
    %cst_50 = arith.constant 3.200000e+01 : f32
    %92 = vector.broadcast %cst_50 : f32 to vector<8x1xf32>
    %93 = arith.divf %91, %92 : vector<8x1xf32>
    %94 = vector.broadcast %93 : vector<8x1xf32> to vector<8x32xf32>
    %95 = arith.subf %85, %94 : vector<8x32xf32>
    %96 = arith.mulf %95, %95 : vector<8x32xf32>
    %cst_51 = arith.constant dense<0.000000e+00> : vector<8xf32>
    %97 = vector.multi_reduction <add>, %96, %cst_51 [1] : vector<8x32xf32> to vector<8xf32>
    %98 = vector.shape_cast %97 : vector<8xf32> to vector<8x1xf32>
    %cst_52 = arith.constant 3.200000e+01 : f32
    %99 = vector.broadcast %cst_52 : f32 to vector<8x1xf32>
    %100 = arith.divf %98, %99 : vector<8x1xf32>
    %cst_53 = arith.constant 9.99999974E-6 : f32
    %101 = vector.broadcast %cst_53 : f32 to vector<8x1xf32>
    %102 = arith.addf %100, %101 : vector<8x1xf32>
    %103 = math.rsqrt %102 : vector<8x1xf32>
    %104 = vector.broadcast %103 : vector<8x1xf32> to vector<8x32xf32>
    %105 = arith.mulf %95, %104 : vector<8x32xf32>
    %106 = vector.broadcast %87 : vector<1x32xf32> to vector<8x32xf32>
    %107 = arith.mulf %105, %106 : vector<8x32xf32>
    %108 = vector.broadcast %89 : vector<1x32xf32> to vector<8x32xf32>
    %109 = arith.addf %107, %108 : vector<8x32xf32>
    %c0_54 = arith.constant 0 : index
    %c0_55 = arith.constant 0 : index
    %c0_56 = arith.constant 0 : index
    %110 = vector.load %arg54[%c0_54, %c0_55, %c0_56] : memref<4x32x128xbf16, #tpu.memory_space<vmem>>, vector<1x32x128xbf16>
    %111 = vector.shape_cast %110 : vector<1x32x128xbf16> to vector<32x128xbf16>
    %112 = arith.truncf %109 : vector<8x32xf32> to vector<8x32xbf16>
    %cst_57 = arith.constant dense<0.000000e+00> : vector<8x128xf32>
    %113 = tpu.matmul %112, %111, %cst_57 {dimension_numbers = #tpu.dot_dimension_numbers<[1], [0], [0], [1], [0, 0, 1, 1], [], []>} : vector<8x32xbf16>, vector<32x128xbf16>, vector<8x128xf32> -> vector<8x128xf32>
    %c0_58 = arith.constant 0 : index
    %c0_59 = arith.constant 0 : index
    %c0_60 = arith.constant 0 : index
    %114 = vector.load %arg46[%c0_58, %c0_59, %c0_60] : memref<4x1x128xf32, #tpu.memory_space<vmem>>, vector<1x1x128xf32>
    %115 = vector.shape_cast %114 : vector<1x1x128xf32> to vector<1x128xf32>
    %116 = vector.broadcast %115 : vector<1x128xf32> to vector<8x128xf32>
    %117 = arith.addf %113, %116 : vector<8x128xf32>
    %cst_61 = arith.constant 5.000000e-01 : f32
    %118 = vector.broadcast %cst_61 : f32 to vector<8x128xf32>
    %119 = arith.mulf %118, %117 : vector<8x128xf32>
    %cst_62 = arith.constant 4.471500e-02 : f32
    %120 = vector.broadcast %cst_62 : f32 to vector<8x128xf32>
    %121 = arith.mulf %120, %117 : vector<8x128xf32>
    %122 = arith.mulf %121, %117 : vector<8x128xf32>
    %123 = arith.mulf %122, %117 : vector<8x128xf32>
    %124 = arith.addf %117, %123 : vector<8x128xf32>
    %cst_63 = arith.constant 0.797884583 : f32
    %125 = vector.broadcast %cst_63 : f32 to vector<8x128xf32>
    %126 = arith.mulf %125, %124 : vector<8x128xf32>
    %127 = math.tanh %126 : vector<8x128xf32>
    %cst_64 = arith.constant 1.000000e+00 : f32
    %128 = vector.broadcast %cst_64 : f32 to vector<8x128xf32>
    %129 = arith.addf %128, %127 : vector<8x128xf32>
    %130 = arith.mulf %119, %129 : vector<8x128xf32>
    %c0_65 = arith.constant 0 : index
    %c0_66 = arith.constant 0 : index
    %c0_67 = arith.constant 0 : index
    %131 = vector.load %arg55[%c0_65, %c0_66, %c0_67] : memref<4x128x32xbf16, #tpu.memory_space<vmem>>, vector<1x128x32xbf16>
    %132 = vector.shape_cast %131 : vector<1x128x32xbf16> to vector<128x32xbf16>
    %133 = arith.truncf %130 : vector<8x128xf32> to vector<8x128xbf16>
    %cst_68 = arith.constant dense<0.000000e+00> : vector<8x32xf32>
    %134 = tpu.matmul %133, %132, %cst_68 {dimension_numbers = #tpu.dot_dimension_numbers<[1], [0], [0], [1], [0, 0, 1, 1], [], []>} : vector<8x128xbf16>, vector<128x32xbf16>, vector<8x32xf32> -> vector<8x32xf32>
    %135 = arith.addf %85, %134 : vector<8x32xf32>
    %c0_69 = arith.constant 0 : index
    %c0_70 = arith.constant 0 : index
    %c0_71 = arith.constant 0 : index
    %136 = vector.load %arg47[%c0_69, %c0_70, %c0_71] : memref<4x1x32xf32, #tpu.memory_space<vmem>>, vector<1x1x32xf32>
    %137 = vector.shape_cast %136 : vector<1x1x32xf32> to vector<1x32xf32>
    %138 = vector.broadcast %137 : vector<1x32xf32> to vector<8x32xf32>
    %139 = arith.addf %135, %138 : vector<8x32xf32>
    %c1 = arith.constant 1 : index
    %c0_72 = arith.constant 0 : index
    %c0_73 = arith.constant 0 : index
    %140 = vector.load %arg51[%c1, %c0_72, %c0_73] : memref<4x1x32xf32, #tpu.memory_space<vmem>>, vector<1x1x32xf32>
    %141 = vector.shape_cast %140 : vector<1x1x32xf32> to vector<1x32xf32>
    %c1_74 = arith.constant 1 : index
    %c0_75 = arith.constant 0 : index
    %c0_76 = arith.constant 0 : index
    %142 = vector.load %arg50[%c1_74, %c0_75, %c0_76] : memref<4x1x32xf32, #tpu.memory_space<vmem>>, vector<1x1x32xf32>
    %143 = vector.shape_cast %142 : vector<1x1x32xf32> to vector<1x32xf32>
    %cst_77 = arith.constant dense<0.000000e+00> : vector<8xf32>
    %144 = vector.multi_reduction <add>, %139, %cst_77 [1] : vector<8x32xf32> to vector<8xf32>
    %145 = vector.shape_cast %144 : vector<8xf32> to vector<8x1xf32>
    %cst_78 = arith.constant 3.200000e+01 : f32
    %146 = vector.broadcast %cst_78 : f32 to vector<8x1xf32>
    %147 = arith.divf %145, %146 : vector<8x1xf32>
    %148 = vector.broadcast %147 : vector<8x1xf32> to vector<8x32xf32>
    %149 = arith.subf %139, %148 : vector<8x32xf32>
    %150 = arith.mulf %149, %149 : vector<8x32xf32>
    %cst_79 = arith.constant dense<0.000000e+00> : vector<8xf32>
    %151 = vector.multi_reduction <add>, %150, %cst_79 [1] : vector<8x32xf32> to vector<8xf32>
    %152 = vector.shape_cast %151 : vector<8xf32> to vector<8x1xf32>
    %cst_80 = arith.constant 3.200000e+01 : f32
    %153 = vector.broadcast %cst_80 : f32 to vector<8x1xf32>
    %154 = arith.divf %152, %153 : vector<8x1xf32>
    %cst_81 = arith.constant 9.99999974E-6 : f32
    %155 = vector.broadcast %cst_81 : f32 to vector<8x1xf32>
    %156 = arith.addf %154, %155 : vector<8x1xf32>
    %157 = math.rsqrt %156 : vector<8x1xf32>
    %158 = vector.broadcast %157 : vector<8x1xf32> to vector<8x32xf32>
    %159 = arith.mulf %149, %158 : vector<8x32xf32>
    %160 = vector.broadcast %141 : vector<1x32xf32> to vector<8x32xf32>
    %161 = arith.mulf %159, %160 : vector<8x32xf32>
    %162 = vector.broadcast %143 : vector<1x32xf32> to vector<8x32xf32>
    %163 = arith.addf %161, %162 : vector<8x32xf32>
    %c1_82 = arith.constant 1 : index
    %c0_83 = arith.constant 0 : index
    %c0_84 = arith.constant 0 : index
    %164 = vector.load %arg57[%c1_82, %c0_83, %c0_84] : memref<4x32x768xbf16, #tpu.memory_space<vmem>>, vector<1x32x768xbf16>
    %165 = vector.shape_cast %164 : vector<1x32x768xbf16> to vector<32x768xbf16>
    %166 = arith.truncf %163 : vector<8x32xf32> to vector<8x32xbf16>
    %cst_85 = arith.constant dense<0.000000e+00> : vector<8x768xf32>
    %167 = tpu.matmul %166, %165, %cst_85 {dimension_numbers = #tpu.dot_dimension_numbers<[1], [0], [0], [1], [0, 0, 1, 1], [], []>} : vector<8x32xbf16>, vector<32x768xbf16>, vector<8x768xf32> -> vector<8x768xf32>
    %c1_86 = arith.constant 1 : index
    %c0_87 = arith.constant 0 : index
    %c0_88 = arith.constant 0 : index
    %168 = vector.load %arg49[%c1_86, %c0_87, %c0_88] : memref<4x1x768xf32, #tpu.memory_space<vmem>>, vector<1x1x768xf32>
    %169 = vector.shape_cast %168 : vector<1x1x768xf32> to vector<1x768xf32>
    %170 = vector.broadcast %169 : vector<1x768xf32> to vector<8x768xf32>
    %171 = arith.addf %167, %170 : vector<8x768xf32>
    %172 = vector.extract_strided_slice %171 {offsets = [0, 0], sizes = [8, 256], strides = [1, 1]} : vector<8x768xf32> to vector<8x256xf32>
    %173 = vector.extract_strided_slice %171 {offsets = [0, 256], sizes = [8, 256], strides = [1, 1]} : vector<8x768xf32> to vector<8x256xf32>
    %174 = vector.extract_strided_slice %171 {offsets = [0, 512], sizes = [8, 256], strides = [1, 1]} : vector<8x768xf32> to vector<8x256xf32>
    %175 = arith.truncf %172 : vector<8x256xf32> to vector<8x256xbf16>
    %176 = vector.shape_cast %175 : vector<8x256xbf16> to vector<8x4x64xbf16>
    %177 = tpu.transpose %176, [1, 0, 2] : vector<8x4x64xbf16> -> vector<4x8x64xbf16>
    %178 = arith.truncf %173 : vector<8x256xf32> to vector<8x256xbf16>
    %179 = vector.shape_cast %178 : vector<8x256xbf16> to vector<8x4x64xbf16>
    %180 = tpu.transpose %179, [1, 0, 2] : vector<8x4x64xbf16> -> vector<4x8x64xbf16>
    %181 = arith.truncf %174 : vector<8x256xf32> to vector<8x256xbf16>
    %182 = vector.shape_cast %181 : vector<8x256xbf16> to vector<8x4x64xbf16>
    %183 = tpu.transpose %182, [1, 0, 2] : vector<8x4x64xbf16> -> vector<4x8x64xbf16>
    %cst_89 = arith.constant dense<0.000000e+00> : vector<4x8x8xf32>
    %184 = tpu.matmul %177, %180, %cst_89 {dimension_numbers = #tpu.dot_dimension_numbers<[2], [2], [1], [1], [0, 0, 0, 1, 1, 1], [0], [0]>} : vector<4x8x64xbf16>, vector<4x8x64xbf16>, vector<4x8x8xf32> -> vector<4x8x8xf32>
    %cst_90 = arith.constant dense<0xFF800000> : vector<4x8xf32>
    %185 = vector.multi_reduction <maximumf>, %184, %cst_90 [2] : vector<4x8x8xf32> to vector<4x8xf32>
    %186 = vector.shape_cast %185 : vector<4x8xf32> to vector<4x8x1xf32>
    %187 = vector.broadcast %186 : vector<4x8x1xf32> to vector<4x8x8xf32>
    %188 = arith.subf %184, %187 : vector<4x8x8xf32>
    %189 = math.exp %188 : vector<4x8x8xf32>
    %cst_91 = arith.constant dense<0.000000e+00> : vector<4x8xf32>
    %190 = vector.multi_reduction <add>, %189, %cst_91 [2] : vector<4x8x8xf32> to vector<4x8xf32>
    %191 = vector.shape_cast %190 : vector<4x8xf32> to vector<4x8x1xf32>
    %192 = vector.broadcast %191 : vector<4x8x1xf32> to vector<4x8x8xf32>
    %193 = arith.divf %189, %192 : vector<4x8x8xf32>
    %194 = arith.truncf %193 : vector<4x8x8xf32> to vector<4x8x8xbf16>
    %cst_92 = arith.constant dense<0.000000e+00> : vector<4x8x64xf32>
    %195 = tpu.matmul %194, %183, %cst_92 {dimension_numbers = #tpu.dot_dimension_numbers<[2], [1], [1], [2], [0, 0, 0, 1, 1, 2], [0], [0]>} : vector<4x8x8xbf16>, vector<4x8x64xbf16>, vector<4x8x64xf32> -> vector<4x8x64xf32>
    %196 = tpu.transpose %195, [1, 0, 2] : vector<4x8x64xf32> -> vector<8x4x64xf32>
    %197 = vector.shape_cast %196 : vector<8x4x64xf32> to vector<8x256xf32>
    %c1_93 = arith.constant 1 : index
    %c0_94 = arith.constant 0 : index
    %c0_95 = arith.constant 0 : index
    %198 = vector.load %arg56[%c1_93, %c0_94, %c0_95] : memref<4x256x32xbf16, #tpu.memory_space<vmem>>, vector<1x256x32xbf16>
    %199 = vector.shape_cast %198 : vector<1x256x32xbf16> to vector<256x32xbf16>
    %200 = arith.truncf %197 : vector<8x256xf32> to vector<8x256xbf16>
    %cst_96 = arith.constant dense<0.000000e+00> : vector<8x32xf32>
    %201 = tpu.matmul %200, %199, %cst_96 {dimension_numbers = #tpu.dot_dimension_numbers<[1], [0], [0], [1], [0, 0, 1, 1], [], []>} : vector<8x256xbf16>, vector<256x32xbf16>, vector<8x32xf32> -> vector<8x32xf32>
    %202 = arith.addf %139, %201 : vector<8x32xf32>
    %c1_97 = arith.constant 1 : index
    %c0_98 = arith.constant 0 : index
    %c0_99 = arith.constant 0 : index
    %203 = vector.load %arg48[%c1_97, %c0_98, %c0_99] : memref<4x1x32xf32, #tpu.memory_space<vmem>>, vector<1x1x32xf32>
    %204 = vector.shape_cast %203 : vector<1x1x32xf32> to vector<1x32xf32>
    %205 = vector.broadcast %204 : vector<1x32xf32> to vector<8x32xf32>
    %206 = arith.addf %202, %205 : vector<8x32xf32>
    %c1_100 = arith.constant 1 : index
    %c0_101 = arith.constant 0 : index
    %c0_102 = arith.constant 0 : index
    %207 = vector.load %arg53[%c1_100, %c0_101, %c0_102] : memref<4x1x32xf32, #tpu.memory_space<vmem>>, vector<1x1x32xf32>
    %208 = vector.shape_cast %207 : vector<1x1x32xf32> to vector<1x32xf32>
    %c1_103 = arith.constant 1 : index
    %c0_104 = arith.constant 0 : index
    %c0_105 = arith.constant 0 : index
    %209 = vector.load %arg52[%c1_103, %c0_104, %c0_105] : memref<4x1x32xf32, #tpu.memory_space<vmem>>, vector<1x1x32xf32>
    %210 = vector.shape_cast %209 : vector<1x1x32xf32> to vector<1x32xf32>
    %cst_106 = arith.constant dense<0.000000e+00> : vector<8xf32>
    %211 = vector.multi_reduction <add>, %206, %cst_106 [1] : vector<8x32xf32> to vector<8xf32>
    %212 = vector.shape_cast %211 : vector<8xf32> to vector<8x1xf32>
    %cst_107 = arith.constant 3.200000e+01 : f32
    %213 = vector.broadcast %cst_107 : f32 to vector<8x1xf32>
    %214 = arith.divf %212, %213 : vector<8x1xf32>
    %215 = vector.broadcast %214 : vector<8x1xf32> to vector<8x32xf32>
    %216 = arith.subf %206, %215 : vector<8x32xf32>
    %217 = arith.mulf %216, %216 : vector<8x32xf32>
    %cst_108 = arith.constant dense<0.000000e+00> : vector<8xf32>
    %218 = vector.multi_reduction <add>, %217, %cst_108 [1] : vector<8x32xf32> to vector<8xf32>
    %219 = vector.shape_cast %218 : vector<8xf32> to vector<8x1xf32>
    %cst_109 = arith.constant 3.200000e+01 : f32
    %220 = vector.broadcast %cst_109 : f32 to vector<8x1xf32>
    %221 = arith.divf %219, %220 : vector<8x1xf32>
    %cst_110 = arith.constant 9.99999974E-6 : f32
    %222 = vector.broadcast %cst_110 : f32 to vector<8x1xf32>
    %223 = arith.addf %221, %222 : vector<8x1xf32>
    %224 = math.rsqrt %223 : vector<8x1xf32>
    %225 = vector.broadcast %224 : vector<8x1xf32> to vector<8x32xf32>
    %226 = arith.mulf %216, %225 : vector<8x32xf32>
    %227 = vector.broadcast %208 : vector<1x32xf32> to vector<8x32xf32>
    %228 = arith.mulf %226, %227 : vector<8x32xf32>
    %229 = vector.broadcast %210 : vector<1x32xf32> to vector<8x32xf32>
    %230 = arith.addf %228, %229 : vector<8x32xf32>
    %c1_111 = arith.constant 1 : index
    %c0_112 = arith.constant 0 : index
    %c0_113 = arith.constant 0 : index
    %231 = vector.load %arg54[%c1_111, %c0_112, %c0_113] : memref<4x32x128xbf16, #tpu.memory_space<vmem>>, vector<1x32x128xbf16>
    %232 = vector.shape_cast %231 : vector<1x32x128xbf16> to vector<32x128xbf16>
    %233 = arith.truncf %230 : vector<8x32xf32> to vector<8x32xbf16>
    %cst_114 = arith.constant dense<0.000000e+00> : vector<8x128xf32>
    %234 = tpu.matmul %233, %232, %cst_114 {dimension_numbers = #tpu.dot_dimension_numbers<[1], [0], [0], [1], [0, 0, 1, 1], [], []>} : vector<8x32xbf16>, vector<32x128xbf16>, vector<8x128xf32> -> vector<8x128xf32>
    %c1_115 = arith.constant 1 : index
    %c0_116 = arith.constant 0 : index
    %c0_117 = arith.constant 0 : index
    %235 = vector.load %arg46[%c1_115, %c0_116, %c0_117] : memref<4x1x128xf32, #tpu.memory_space<vmem>>, vector<1x1x128xf32>
    %236 = vector.shape_cast %235 : vector<1x1x128xf32> to vector<1x128xf32>
    %237 = vector.broadcast %236 : vector<1x128xf32> to vector<8x128xf32>
    %238 = arith.addf %234, %237 : vector<8x128xf32>
    %cst_118 = arith.constant 5.000000e-01 : f32
    %239 = vector.broadcast %cst_118 : f32 to vector<8x128xf32>
    %240 = arith.mulf %239, %238 : vector<8x128xf32>
    %cst_119 = arith.constant 4.471500e-02 : f32
    %241 = vector.broadcast %cst_119 : f32 to vector<8x128xf32>
    %242 = arith.mulf %241, %238 : vector<8x128xf32>
    %243 = arith.mulf %242, %238 : vector<8x128xf32>
    %244 = arith.mulf %243, %238 : vector<8x128xf32>
    %245 = arith.addf %238, %244 : vector<8x128xf32>
    %cst_120 = arith.constant 0.797884583 : f32
    %246 = vector.broadcast %cst_120 : f32 to vector<8x128xf32>
    %247 = arith.mulf %246, %245 : vector<8x128xf32>
    %248 = math.tanh %247 : vector<8x128xf32>
    %cst_121 = arith.constant 1.000000e+00 : f32
    %249 = vector.broadcast %cst_121 : f32 to vector<8x128xf32>
    %250 = arith.addf %249, %248 : vector<8x128xf32>
    %251 = arith.mulf %240, %250 : vector<8x128xf32>
    %c1_122 = arith.constant 1 : index
    %c0_123 = arith.constant 0 : index
    %c0_124 = arith.constant 0 : index
    %252 = vector.load %arg55[%c1_122, %c0_123, %c0_124] : memref<4x128x32xbf16, #tpu.memory_space<vmem>>, vector<1x128x32xbf16>
    %253 = vector.shape_cast %252 : vector<1x128x32xbf16> to vector<128x32xbf16>
    %254 = arith.truncf %251 : vector<8x128xf32> to vector<8x128xbf16>
    %cst_125 = arith.constant dense<0.000000e+00> : vector<8x32xf32>
    %255 = tpu.matmul %254, %253, %cst_125 {dimension_numbers = #tpu.dot_dimension_numbers<[1], [0], [0], [1], [0, 0, 1, 1], [], []>} : vector<8x128xbf16>, vector<128x32xbf16>, vector<8x32xf32> -> vector<8x32xf32>
    %256 = arith.addf %206, %255 : vector<8x32xf32>
    %c1_126 = arith.constant 1 : index
    %c0_127 = arith.constant 0 : index
    %c0_128 = arith.constant 0 : index
    %257 = vector.load %arg47[%c1_126, %c0_127, %c0_128] : memref<4x1x32xf32, #tpu.memory_space<vmem>>, vector<1x1x32xf32>
    %258 = vector.shape_cast %257 : vector<1x1x32xf32> to vector<1x32xf32>
    %259 = vector.broadcast %258 : vector<1x32xf32> to vector<8x32xf32>
    %260 = arith.addf %256, %259 : vector<8x32xf32>
    %c2 = arith.constant 2 : index
    %c0_129 = arith.constant 0 : index
    %c0_130 = arith.constant 0 : index
    %261 = vector.load %arg51[%c2, %c0_129, %c0_130] : memref<4x1x32xf32, #tpu.memory_space<vmem>>, vector<1x1x32xf32>
    %262 = vector.shape_cast %261 : vector<1x1x32xf32> to vector<1x32xf32>
    %c2_131 = arith.constant 2 : index
    %c0_132 = arith.constant 0 : index
    %c0_133 = arith.constant 0 : index
    %263 = vector.load %arg50[%c2_131, %c0_132, %c0_133] : memref<4x1x32xf32, #tpu.memory_space<vmem>>, vector<1x1x32xf32>
    %264 = vector.shape_cast %263 : vector<1x1x32xf32> to vector<1x32xf32>
    %cst_134 = arith.constant dense<0.000000e+00> : vector<8xf32>
    %265 = vector.multi_reduction <add>, %260, %cst_134 [1] : vector<8x32xf32> to vector<8xf32>
    %266 = vector.shape_cast %265 : vector<8xf32> to vector<8x1xf32>
    %cst_135 = arith.constant 3.200000e+01 : f32
    %267 = vector.broadcast %cst_135 : f32 to vector<8x1xf32>
    %268 = arith.divf %266, %267 : vector<8x1xf32>
    %269 = vector.broadcast %268 : vector<8x1xf32> to vector<8x32xf32>
    %270 = arith.subf %260, %269 : vector<8x32xf32>
    %271 = arith.mulf %270, %270 : vector<8x32xf32>
    %cst_136 = arith.constant dense<0.000000e+00> : vector<8xf32>
    %272 = vector.multi_reduction <add>, %271, %cst_136 [1] : vector<8x32xf32> to vector<8xf32>
    %273 = vector.shape_cast %272 : vector<8xf32> to vector<8x1xf32>
    %cst_137 = arith.constant 3.200000e+01 : f32
    %274 = vector.broadcast %cst_137 : f32 to vector<8x1xf32>
    %275 = arith.divf %273, %274 : vector<8x1xf32>
    %cst_138 = arith.constant 9.99999974E-6 : f32
    %276 = vector.broadcast %cst_138 : f32 to vector<8x1xf32>
    %277 = arith.addf %275, %276 : vector<8x1xf32>
    %278 = math.rsqrt %277 : vector<8x1xf32>
    %279 = vector.broadcast %278 : vector<8x1xf32> to vector<8x32xf32>
    %280 = arith.mulf %270, %279 : vector<8x32xf32>
    %281 = vector.broadcast %262 : vector<1x32xf32> to vector<8x32xf32>
    %282 = arith.mulf %280, %281 : vector<8x32xf32>
    %283 = vector.broadcast %264 : vector<1x32xf32> to vector<8x32xf32>
    %284 = arith.addf %282, %283 : vector<8x32xf32>
    %c2_139 = arith.constant 2 : index
    %c0_140 = arith.constant 0 : index
    %c0_141 = arith.constant 0 : index
    %285 = vector.load %arg57[%c2_139, %c0_140, %c0_141] : memref<4x32x768xbf16, #tpu.memory_space<vmem>>, vector<1x32x768xbf16>
    %286 = vector.shape_cast %285 : vector<1x32x768xbf16> to vector<32x768xbf16>
    %287 = arith.truncf %284 : vector<8x32xf32> to vector<8x32xbf16>
    %cst_142 = arith.constant dense<0.000000e+00> : vector<8x768xf32>
    %288 = tpu.matmul %287, %286, %cst_142 {dimension_numbers = #tpu.dot_dimension_numbers<[1], [0], [0], [1], [0, 0, 1, 1], [], []>} : vector<8x32xbf16>, vector<32x768xbf16>, vector<8x768xf32> -> vector<8x768xf32>
    %c2_143 = arith.constant 2 : index
    %c0_144 = arith.constant 0 : index
    %c0_145 = arith.constant 0 : index
    %289 = vector.load %arg49[%c2_143, %c0_144, %c0_145] : memref<4x1x768xf32, #tpu.memory_space<vmem>>, vector<1x1x768xf32>
    %290 = vector.shape_cast %289 : vector<1x1x768xf32> to vector<1x768xf32>
    %291 = vector.broadcast %290 : vector<1x768xf32> to vector<8x768xf32>
    %292 = arith.addf %288, %291 : vector<8x768xf32>
    %293 = vector.extract_strided_slice %292 {offsets = [0, 0], sizes = [8, 256], strides = [1, 1]} : vector<8x768xf32> to vector<8x256xf32>
    %294 = vector.extract_strided_slice %292 {offsets = [0, 256], sizes = [8, 256], strides = [1, 1]} : vector<8x768xf32> to vector<8x256xf32>
    %295 = vector.extract_strided_slice %292 {offsets = [0, 512], sizes = [8, 256], strides = [1, 1]} : vector<8x768xf32> to vector<8x256xf32>
    %296 = arith.truncf %293 : vector<8x256xf32> to vector<8x256xbf16>
    %297 = vector.shape_cast %296 : vector<8x256xbf16> to vector<8x4x64xbf16>
    %298 = tpu.transpose %297, [1, 0, 2] : vector<8x4x64xbf16> -> vector<4x8x64xbf16>
    %299 = arith.truncf %294 : vector<8x256xf32> to vector<8x256xbf16>
    %300 = vector.shape_cast %299 : vector<8x256xbf16> to vector<8x4x64xbf16>
    %301 = tpu.transpose %300, [1, 0, 2] : vector<8x4x64xbf16> -> vector<4x8x64xbf16>
    %302 = arith.truncf %295 : vector<8x256xf32> to vector<8x256xbf16>
    %303 = vector.shape_cast %302 : vector<8x256xbf16> to vector<8x4x64xbf16>
    %304 = tpu.transpose %303, [1, 0, 2] : vector<8x4x64xbf16> -> vector<4x8x64xbf16>
    %cst_146 = arith.constant dense<0.000000e+00> : vector<4x8x8xf32>
    %305 = tpu.matmul %298, %301, %cst_146 {dimension_numbers = #tpu.dot_dimension_numbers<[2], [2], [1], [1], [0, 0, 0, 1, 1, 1], [0], [0]>} : vector<4x8x64xbf16>, vector<4x8x64xbf16>, vector<4x8x8xf32> -> vector<4x8x8xf32>
    %cst_147 = arith.constant dense<0xFF800000> : vector<4x8xf32>
    %306 = vector.multi_reduction <maximumf>, %305, %cst_147 [2] : vector<4x8x8xf32> to vector<4x8xf32>
    %307 = vector.shape_cast %306 : vector<4x8xf32> to vector<4x8x1xf32>
    %308 = vector.broadcast %307 : vector<4x8x1xf32> to vector<4x8x8xf32>
    %309 = arith.subf %305, %308 : vector<4x8x8xf32>
    %310 = math.exp %309 : vector<4x8x8xf32>
    %cst_148 = arith.constant dense<0.000000e+00> : vector<4x8xf32>
    %311 = vector.multi_reduction <add>, %310, %cst_148 [2] : vector<4x8x8xf32> to vector<4x8xf32>
    %312 = vector.shape_cast %311 : vector<4x8xf32> to vector<4x8x1xf32>
    %313 = vector.broadcast %312 : vector<4x8x1xf32> to vector<4x8x8xf32>
    %314 = arith.divf %310, %313 : vector<4x8x8xf32>
    %315 = arith.truncf %314 : vector<4x8x8xf32> to vector<4x8x8xbf16>
    %cst_149 = arith.constant dense<0.000000e+00> : vector<4x8x64xf32>
    %316 = tpu.matmul %315, %304, %cst_149 {dimension_numbers = #tpu.dot_dimension_numbers<[2], [1], [1], [2], [0, 0, 0, 1, 1, 2], [0], [0]>} : vector<4x8x8xbf16>, vector<4x8x64xbf16>, vector<4x8x64xf32> -> vector<4x8x64xf32>
    %317 = tpu.transpose %316, [1, 0, 2] : vector<4x8x64xf32> -> vector<8x4x64xf32>
    %318 = vector.shape_cast %317 : vector<8x4x64xf32> to vector<8x256xf32>
    %c2_150 = arith.constant 2 : index
    %c0_151 = arith.constant 0 : index
    %c0_152 = arith.constant 0 : index
    %319 = vector.load %arg56[%c2_150, %c0_151, %c0_152] : memref<4x256x32xbf16, #tpu.memory_space<vmem>>, vector<1x256x32xbf16>
    %320 = vector.shape_cast %319 : vector<1x256x32xbf16> to vector<256x32xbf16>
    %321 = arith.truncf %318 : vector<8x256xf32> to vector<8x256xbf16>
    %cst_153 = arith.constant dense<0.000000e+00> : vector<8x32xf32>
    %322 = tpu.matmul %321, %320, %cst_153 {dimension_numbers = #tpu.dot_dimension_numbers<[1], [0], [0], [1], [0, 0, 1, 1], [], []>} : vector<8x256xbf16>, vector<256x32xbf16>, vector<8x32xf32> -> vector<8x32xf32>
    %323 = arith.addf %260, %322 : vector<8x32xf32>
    %c2_154 = arith.constant 2 : index
    %c0_155 = arith.constant 0 : index
    %c0_156 = arith.constant 0 : index
    %324 = vector.load %arg48[%c2_154, %c0_155, %c0_156] : memref<4x1x32xf32, #tpu.memory_space<vmem>>, vector<1x1x32xf32>
    %325 = vector.shape_cast %324 : vector<1x1x32xf32> to vector<1x32xf32>
    %326 = vector.broadcast %325 : vector<1x32xf32> to vector<8x32xf32>
    %327 = arith.addf %323, %326 : vector<8x32xf32>
    %c2_157 = arith.constant 2 : index
    %c0_158 = arith.constant 0 : index
    %c0_159 = arith.constant 0 : index
    %328 = vector.load %arg53[%c2_157, %c0_158, %c0_159] : memref<4x1x32xf32, #tpu.memory_space<vmem>>, vector<1x1x32xf32>
    %329 = vector.shape_cast %328 : vector<1x1x32xf32> to vector<1x32xf32>
    %c2_160 = arith.constant 2 : index
    %c0_161 = arith.constant 0 : index
    %c0_162 = arith.constant 0 : index
    %330 = vector.load %arg52[%c2_160, %c0_161, %c0_162] : memref<4x1x32xf32, #tpu.memory_space<vmem>>, vector<1x1x32xf32>
    %331 = vector.shape_cast %330 : vector<1x1x32xf32> to vector<1x32xf32>
    %cst_163 = arith.constant dense<0.000000e+00> : vector<8xf32>
    %332 = vector.multi_reduction <add>, %327, %cst_163 [1] : vector<8x32xf32> to vector<8xf32>
    %333 = vector.shape_cast %332 : vector<8xf32> to vector<8x1xf32>
    %cst_164 = arith.constant 3.200000e+01 : f32
    %334 = vector.broadcast %cst_164 : f32 to vector<8x1xf32>
    %335 = arith.divf %333, %334 : vector<8x1xf32>
    %336 = vector.broadcast %335 : vector<8x1xf32> to vector<8x32xf32>
    %337 = arith.subf %327, %336 : vector<8x32xf32>
    %338 = arith.mulf %337, %337 : vector<8x32xf32>
    %cst_165 = arith.constant dense<0.000000e+00> : vector<8xf32>
    %339 = vector.multi_reduction <add>, %338, %cst_165 [1] : vector<8x32xf32> to vector<8xf32>
    %340 = vector.shape_cast %339 : vector<8xf32> to vector<8x1xf32>
    %cst_166 = arith.constant 3.200000e+01 : f32
    %341 = vector.broadcast %cst_166 : f32 to vector<8x1xf32>
    %342 = arith.divf %340, %341 : vector<8x1xf32>
    %cst_167 = arith.constant 9.99999974E-6 : f32
    %343 = vector.broadcast %cst_167 : f32 to vector<8x1xf32>
    %344 = arith.addf %342, %343 : vector<8x1xf32>
    %345 = math.rsqrt %344 : vector<8x1xf32>
    %346 = vector.broadcast %345 : vector<8x1xf32> to vector<8x32xf32>
    %347 = arith.mulf %337, %346 : vector<8x32xf32>
    %348 = vector.broadcast %329 : vector<1x32xf32> to vector<8x32xf32>
    %349 = arith.mulf %347, %348 : vector<8x32xf32>
    %350 = vector.broadcast %331 : vector<1x32xf32> to vector<8x32xf32>
    %351 = arith.addf %349, %350 : vector<8x32xf32>
    %c2_168 = arith.constant 2 : index
    %c0_169 = arith.constant 0 : index
    %c0_170 = arith.constant 0 : index
    %352 = vector.load %arg54[%c2_168, %c0_169, %c0_170] : memref<4x32x128xbf16, #tpu.memory_space<vmem>>, vector<1x32x128xbf16>
    %353 = vector.shape_cast %352 : vector<1x32x128xbf16> to vector<32x128xbf16>
    %354 = arith.truncf %351 : vector<8x32xf32> to vector<8x32xbf16>
    %cst_171 = arith.constant dense<0.000000e+00> : vector<8x128xf32>
    %355 = tpu.matmul %354, %353, %cst_171 {dimension_numbers = #tpu.dot_dimension_numbers<[1], [0], [0], [1], [0, 0, 1, 1], [], []>} : vector<8x32xbf16>, vector<32x128xbf16>, vector<8x128xf32> -> vector<8x128xf32>
    %c2_172 = arith.constant 2 : index
    %c0_173 = arith.constant 0 : index
    %c0_174 = arith.constant 0 : index
    %356 = vector.load %arg46[%c2_172, %c0_173, %c0_174] : memref<4x1x128xf32, #tpu.memory_space<vmem>>, vector<1x1x128xf32>
    %357 = vector.shape_cast %356 : vector<1x1x128xf32> to vector<1x128xf32>
    %358 = vector.broadcast %357 : vector<1x128xf32> to vector<8x128xf32>
    %359 = arith.addf %355, %358 : vector<8x128xf32>
    %cst_175 = arith.constant 5.000000e-01 : f32
    %360 = vector.broadcast %cst_175 : f32 to vector<8x128xf32>
    %361 = arith.mulf %360, %359 : vector<8x128xf32>
    %cst_176 = arith.constant 4.471500e-02 : f32
    %362 = vector.broadcast %cst_176 : f32 to vector<8x128xf32>
    %363 = arith.mulf %362, %359 : vector<8x128xf32>
    %364 = arith.mulf %363, %359 : vector<8x128xf32>
    %365 = arith.mulf %364, %359 : vector<8x128xf32>
    %366 = arith.addf %359, %365 : vector<8x128xf32>
    %cst_177 = arith.constant 0.797884583 : f32
    %367 = vector.broadcast %cst_177 : f32 to vector<8x128xf32>
    %368 = arith.mulf %367, %366 : vector<8x128xf32>
    %369 = math.tanh %368 : vector<8x128xf32>
    %cst_178 = arith.constant 1.000000e+00 : f32
    %370 = vector.broadcast %cst_178 : f32 to vector<8x128xf32>
    %371 = arith.addf %370, %369 : vector<8x128xf32>
    %372 = arith.mulf %361, %371 : vector<8x128xf32>
    %c2_179 = arith.constant 2 : index
    %c0_180 = arith.constant 0 : index
    %c0_181 = arith.constant 0 : index
    %373 = vector.load %arg55[%c2_179, %c0_180, %c0_181] : memref<4x128x32xbf16, #tpu.memory_space<vmem>>, vector<1x128x32xbf16>
    %374 = vector.shape_cast %373 : vector<1x128x32xbf16> to vector<128x32xbf16>
    %375 = arith.truncf %372 : vector<8x128xf32> to vector<8x128xbf16>
    %cst_182 = arith.constant dense<0.000000e+00> : vector<8x32xf32>
    %376 = tpu.matmul %375, %374, %cst_182 {dimension_numbers = #tpu.dot_dimension_numbers<[1], [0], [0], [1], [0, 0, 1, 1], [], []>} : vector<8x128xbf16>, vector<128x32xbf16>, vector<8x32xf32> -> vector<8x32xf32>
    %377 = arith.addf %327, %376 : vector<8x32xf32>
    %c2_183 = arith.constant 2 : index
    %c0_184 = arith.constant 0 : index
    %c0_185 = arith.constant 0 : index
    %378 = vector.load %arg47[%c2_183, %c0_184, %c0_185] : memref<4x1x32xf32, #tpu.memory_space<vmem>>, vector<1x1x32xf32>
    %379 = vector.shape_cast %378 : vector<1x1x32xf32> to vector<1x32xf32>
    %380 = vector.broadcast %379 : vector<1x32xf32> to vector<8x32xf32>
    %381 = arith.addf %377, %380 : vector<8x32xf32>
    %c3 = arith.constant 3 : index
    %c0_186 = arith.constant 0 : index
    %c0_187 = arith.constant 0 : index
    %382 = vector.load %arg51[%c3, %c0_186, %c0_187] : memref<4x1x32xf32, #tpu.memory_space<vmem>>, vector<1x1x32xf32>
    %383 = vector.shape_cast %382 : vector<1x1x32xf32> to vector<1x32xf32>
    %c3_188 = arith.constant 3 : index
    %c0_189 = arith.constant 0 : index
    %c0_190 = arith.constant 0 : index
    %384 = vector.load %arg50[%c3_188, %c0_189, %c0_190] : memref<4x1x32xf32, #tpu.memory_space<vmem>>, vector<1x1x32xf32>
    %385 = vector.shape_cast %384 : vector<1x1x32xf32> to vector<1x32xf32>
    %cst_191 = arith.constant dense<0.000000e+00> : vector<8xf32>
    %386 = vector.multi_reduction <add>, %381, %cst_191 [1] : vector<8x32xf32> to vector<8xf32>
    %387 = vector.shape_cast %386 : vector<8xf32> to vector<8x1xf32>
    %cst_192 = arith.constant 3.200000e+01 : f32
    %388 = vector.broadcast %cst_192 : f32 to vector<8x1xf32>
    %389 = arith.divf %387, %388 : vector<8x1xf32>
    %390 = vector.broadcast %389 : vector<8x1xf32> to vector<8x32xf32>
    %391 = arith.subf %381, %390 : vector<8x32xf32>
    %392 = arith.mulf %391, %391 : vector<8x32xf32>
    %cst_193 = arith.constant dense<0.000000e+00> : vector<8xf32>
    %393 = vector.multi_reduction <add>, %392, %cst_193 [1] : vector<8x32xf32> to vector<8xf32>
    %394 = vector.shape_cast %393 : vector<8xf32> to vector<8x1xf32>
    %cst_194 = arith.constant 3.200000e+01 : f32
    %395 = vector.broadcast %cst_194 : f32 to vector<8x1xf32>
    %396 = arith.divf %394, %395 : vector<8x1xf32>
    %cst_195 = arith.constant 9.99999974E-6 : f32
    %397 = vector.broadcast %cst_195 : f32 to vector<8x1xf32>
    %398 = arith.addf %396, %397 : vector<8x1xf32>
    %399 = math.rsqrt %398 : vector<8x1xf32>
    %400 = vector.broadcast %399 : vector<8x1xf32> to vector<8x32xf32>
    %401 = arith.mulf %391, %400 : vector<8x32xf32>
    %402 = vector.broadcast %383 : vector<1x32xf32> to vector<8x32xf32>
    %403 = arith.mulf %401, %402 : vector<8x32xf32>
    %404 = vector.broadcast %385 : vector<1x32xf32> to vector<8x32xf32>
    %405 = arith.addf %403, %404 : vector<8x32xf32>
    %c3_196 = arith.constant 3 : index
    %c0_197 = arith.constant 0 : index
    %c0_198 = arith.constant 0 : index
    %406 = vector.load %arg57[%c3_196, %c0_197, %c0_198] : memref<4x32x768xbf16, #tpu.memory_space<vmem>>, vector<1x32x768xbf16>
    %407 = vector.shape_cast %406 : vector<1x32x768xbf16> to vector<32x768xbf16>
    %408 = arith.truncf %405 : vector<8x32xf32> to vector<8x32xbf16>
    %cst_199 = arith.constant dense<0.000000e+00> : vector<8x768xf32>
    %409 = tpu.matmul %408, %407, %cst_199 {dimension_numbers = #tpu.dot_dimension_numbers<[1], [0], [0], [1], [0, 0, 1, 1], [], []>} : vector<8x32xbf16>, vector<32x768xbf16>, vector<8x768xf32> -> vector<8x768xf32>
    %c3_200 = arith.constant 3 : index
    %c0_201 = arith.constant 0 : index
    %c0_202 = arith.constant 0 : index
    %410 = vector.load %arg49[%c3_200, %c0_201, %c0_202] : memref<4x1x768xf32, #tpu.memory_space<vmem>>, vector<1x1x768xf32>
    %411 = vector.shape_cast %410 : vector<1x1x768xf32> to vector<1x768xf32>
    %412 = vector.broadcast %411 : vector<1x768xf32> to vector<8x768xf32>
    %413 = arith.addf %409, %412 : vector<8x768xf32>
    %414 = vector.extract_strided_slice %413 {offsets = [0, 0], sizes = [8, 256], strides = [1, 1]} : vector<8x768xf32> to vector<8x256xf32>
    %415 = vector.extract_strided_slice %413 {offsets = [0, 256], sizes = [8, 256], strides = [1, 1]} : vector<8x768xf32> to vector<8x256xf32>
    %416 = vector.extract_strided_slice %413 {offsets = [0, 512], sizes = [8, 256], strides = [1, 1]} : vector<8x768xf32> to vector<8x256xf32>
    %417 = arith.truncf %414 : vector<8x256xf32> to vector<8x256xbf16>
    %418 = vector.shape_cast %417 : vector<8x256xbf16> to vector<8x4x64xbf16>
    %419 = tpu.transpose %418, [1, 0, 2] : vector<8x4x64xbf16> -> vector<4x8x64xbf16>
    %420 = arith.truncf %415 : vector<8x256xf32> to vector<8x256xbf16>
    %421 = vector.shape_cast %420 : vector<8x256xbf16> to vector<8x4x64xbf16>
    %422 = tpu.transpose %421, [1, 0, 2] : vector<8x4x64xbf16> -> vector<4x8x64xbf16>
    %423 = arith.truncf %416 : vector<8x256xf32> to vector<8x256xbf16>
    %424 = vector.shape_cast %423 : vector<8x256xbf16> to vector<8x4x64xbf16>
    %425 = tpu.transpose %424, [1, 0, 2] : vector<8x4x64xbf16> -> vector<4x8x64xbf16>
    %cst_203 = arith.constant dense<0.000000e+00> : vector<4x8x8xf32>
    %426 = tpu.matmul %419, %422, %cst_203 {dimension_numbers = #tpu.dot_dimension_numbers<[2], [2], [1], [1], [0, 0, 0, 1, 1, 1], [0], [0]>} : vector<4x8x64xbf16>, vector<4x8x64xbf16>, vector<4x8x8xf32> -> vector<4x8x8xf32>
    %cst_204 = arith.constant dense<0xFF800000> : vector<4x8xf32>
    %427 = vector.multi_reduction <maximumf>, %426, %cst_204 [2] : vector<4x8x8xf32> to vector<4x8xf32>
    %428 = vector.shape_cast %427 : vector<4x8xf32> to vector<4x8x1xf32>
    %429 = vector.broadcast %428 : vector<4x8x1xf32> to vector<4x8x8xf32>
    %430 = arith.subf %426, %429 : vector<4x8x8xf32>
    %431 = math.exp %430 : vector<4x8x8xf32>
    %cst_205 = arith.constant dense<0.000000e+00> : vector<4x8xf32>
    %432 = vector.multi_reduction <add>, %431, %cst_205 [2] : vector<4x8x8xf32> to vector<4x8xf32>
    %433 = vector.shape_cast %432 : vector<4x8xf32> to vector<4x8x1xf32>
    %434 = vector.broadcast %433 : vector<4x8x1xf32> to vector<4x8x8xf32>
    %435 = arith.divf %431, %434 : vector<4x8x8xf32>
    %436 = arith.truncf %435 : vector<4x8x8xf32> to vector<4x8x8xbf16>
    %cst_206 = arith.constant dense<0.000000e+00> : vector<4x8x64xf32>
    %437 = tpu.matmul %436, %425, %cst_206 {dimension_numbers = #tpu.dot_dimension_numbers<[2], [1], [1], [2], [0, 0, 0, 1, 1, 2], [0], [0]>} : vector<4x8x8xbf16>, vector<4x8x64xbf16>, vector<4x8x64xf32> -> vector<4x8x64xf32>
    %438 = tpu.transpose %437, [1, 0, 2] : vector<4x8x64xf32> -> vector<8x4x64xf32>
    %439 = vector.shape_cast %438 : vector<8x4x64xf32> to vector<8x256xf32>
    %c3_207 = arith.constant 3 : index
    %c0_208 = arith.constant 0 : index
    %c0_209 = arith.constant 0 : index
    %440 = vector.load %arg56[%c3_207, %c0_208, %c0_209] : memref<4x256x32xbf16, #tpu.memory_space<vmem>>, vector<1x256x32xbf16>
    %441 = vector.shape_cast %440 : vector<1x256x32xbf16> to vector<256x32xbf16>
    %442 = arith.truncf %439 : vector<8x256xf32> to vector<8x256xbf16>
    %cst_210 = arith.constant dense<0.000000e+00> : vector<8x32xf32>
    %443 = tpu.matmul %442, %441, %cst_210 {dimension_numbers = #tpu.dot_dimension_numbers<[1], [0], [0], [1], [0, 0, 1, 1], [], []>} : vector<8x256xbf16>, vector<256x32xbf16>, vector<8x32xf32> -> vector<8x32xf32>
    %444 = arith.addf %381, %443 : vector<8x32xf32>
    %c3_211 = arith.constant 3 : index
    %c0_212 = arith.constant 0 : index
    %c0_213 = arith.constant 0 : index
    %445 = vector.load %arg48[%c3_211, %c0_212, %c0_213] : memref<4x1x32xf32, #tpu.memory_space<vmem>>, vector<1x1x32xf32>
    %446 = vector.shape_cast %445 : vector<1x1x32xf32> to vector<1x32xf32>
    %447 = vector.broadcast %446 : vector<1x32xf32> to vector<8x32xf32>
    %448 = arith.addf %444, %447 : vector<8x32xf32>
    %c3_214 = arith.constant 3 : index
    %c0_215 = arith.constant 0 : index
    %c0_216 = arith.constant 0 : index
    %449 = vector.load %arg53[%c3_214, %c0_215, %c0_216] : memref<4x1x32xf32, #tpu.memory_space<vmem>>, vector<1x1x32xf32>
    %450 = vector.shape_cast %449 : vector<1x1x32xf32> to vector<1x32xf32>
    %c3_217 = arith.constant 3 : index
    %c0_218 = arith.constant 0 : index
    %c0_219 = arith.constant 0 : index
    %451 = vector.load %arg52[%c3_217, %c0_218, %c0_219] : memref<4x1x32xf32, #tpu.memory_space<vmem>>, vector<1x1x32xf32>
    %452 = vector.shape_cast %451 : vector<1x1x32xf32> to vector<1x32xf32>
    %cst_220 = arith.constant dense<0.000000e+00> : vector<8xf32>
    %453 = vector.multi_reduction <add>, %448, %cst_220 [1] : vector<8x32xf32> to vector<8xf32>
    %454 = vector.shape_cast %453 : vector<8xf32> to vector<8x1xf32>
    %cst_221 = arith.constant 3.200000e+01 : f32
    %455 = vector.broadcast %cst_221 : f32 to vector<8x1xf32>
    %456 = arith.divf %454, %455 : vector<8x1xf32>
    %457 = vector.broadcast %456 : vector<8x1xf32> to vector<8x32xf32>
    %458 = arith.subf %448, %457 : vector<8x32xf32>
    %459 = arith.mulf %458, %458 : vector<8x32xf32>
    %cst_222 = arith.constant dense<0.000000e+00> : vector<8xf32>
    %460 = vector.multi_reduction <add>, %459, %cst_222 [1] : vector<8x32xf32> to vector<8xf32>
    %461 = vector.shape_cast %460 : vector<8xf32> to vector<8x1xf32>
    %cst_223 = arith.constant 3.200000e+01 : f32
    %462 = vector.broadcast %cst_223 : f32 to vector<8x1xf32>
    %463 = arith.divf %461, %462 : vector<8x1xf32>
    %cst_224 = arith.constant 9.99999974E-6 : f32
    %464 = vector.broadcast %cst_224 : f32 to vector<8x1xf32>
    %465 = arith.addf %463, %464 : vector<8x1xf32>
    %466 = math.rsqrt %465 : vector<8x1xf32>
    %467 = vector.broadcast %466 : vector<8x1xf32> to vector<8x32xf32>
    %468 = arith.mulf %458, %467 : vector<8x32xf32>
    %469 = vector.broadcast %450 : vector<1x32xf32> to vector<8x32xf32>
    %470 = arith.mulf %468, %469 : vector<8x32xf32>
    %471 = vector.broadcast %452 : vector<1x32xf32> to vector<8x32xf32>
    %472 = arith.addf %470, %471 : vector<8x32xf32>
    %c3_225 = arith.constant 3 : index
    %c0_226 = arith.constant 0 : index
    %c0_227 = arith.constant 0 : index
    %473 = vector.load %arg54[%c3_225, %c0_226, %c0_227] : memref<4x32x128xbf16, #tpu.memory_space<vmem>>, vector<1x32x128xbf16>
    %474 = vector.shape_cast %473 : vector<1x32x128xbf16> to vector<32x128xbf16>
    %475 = arith.truncf %472 : vector<8x32xf32> to vector<8x32xbf16>
    %cst_228 = arith.constant dense<0.000000e+00> : vector<8x128xf32>
    %476 = tpu.matmul %475, %474, %cst_228 {dimension_numbers = #tpu.dot_dimension_numbers<[1], [0], [0], [1], [0, 0, 1, 1], [], []>} : vector<8x32xbf16>, vector<32x128xbf16>, vector<8x128xf32> -> vector<8x128xf32>
    %c3_229 = arith.constant 3 : index
    %c0_230 = arith.constant 0 : index
    %c0_231 = arith.constant 0 : index
    %477 = vector.load %arg46[%c3_229, %c0_230, %c0_231] : memref<4x1x128xf32, #tpu.memory_space<vmem>>, vector<1x1x128xf32>
    %478 = vector.shape_cast %477 : vector<1x1x128xf32> to vector<1x128xf32>
    %479 = vector.broadcast %478 : vector<1x128xf32> to vector<8x128xf32>
    %480 = arith.addf %476, %479 : vector<8x128xf32>
    %cst_232 = arith.constant 5.000000e-01 : f32
    %481 = vector.broadcast %cst_232 : f32 to vector<8x128xf32>
    %482 = arith.mulf %481, %480 : vector<8x128xf32>
    %cst_233 = arith.constant 4.471500e-02 : f32
    %483 = vector.broadcast %cst_233 : f32 to vector<8x128xf32>
    %484 = arith.mulf %483, %480 : vector<8x128xf32>
    %485 = arith.mulf %484, %480 : vector<8x128xf32>
    %486 = arith.mulf %485, %480 : vector<8x128xf32>
    %487 = arith.addf %480, %486 : vector<8x128xf32>
    %cst_234 = arith.constant 0.797884583 : f32
    %488 = vector.broadcast %cst_234 : f32 to vector<8x128xf32>
    %489 = arith.mulf %488, %487 : vector<8x128xf32>
    %490 = math.tanh %489 : vector<8x128xf32>
    %cst_235 = arith.constant 1.000000e+00 : f32
    %491 = vector.broadcast %cst_235 : f32 to vector<8x128xf32>
    %492 = arith.addf %491, %490 : vector<8x128xf32>
    %493 = arith.mulf %482, %492 : vector<8x128xf32>
    %c3_236 = arith.constant 3 : index
    %c0_237 = arith.constant 0 : index
    %c0_238 = arith.constant 0 : index
    %494 = vector.load %arg55[%c3_236, %c0_237, %c0_238] : memref<4x128x32xbf16, #tpu.memory_space<vmem>>, vector<1x128x32xbf16>
    %495 = vector.shape_cast %494 : vector<1x128x32xbf16> to vector<128x32xbf16>
    %496 = arith.truncf %493 : vector<8x128xf32> to vector<8x128xbf16>
    %cst_239 = arith.constant dense<0.000000e+00> : vector<8x32xf32>
    %497 = tpu.matmul %496, %495, %cst_239 {dimension_numbers = #tpu.dot_dimension_numbers<[1], [0], [0], [1], [0, 0, 1, 1], [], []>} : vector<8x128xbf16>, vector<128x32xbf16>, vector<8x32xf32> -> vector<8x32xf32>
    %498 = arith.addf %448, %497 : vector<8x32xf32>
    %c3_240 = arith.constant 3 : index
    %c0_241 = arith.constant 0 : index
    %c0_242 = arith.constant 0 : index
    %499 = vector.load %arg47[%c3_240, %c0_241, %c0_242] : memref<4x1x32xf32, #tpu.memory_space<vmem>>, vector<1x1x32xf32>
    %500 = vector.shape_cast %499 : vector<1x1x32xf32> to vector<1x32xf32>
    %501 = vector.broadcast %500 : vector<1x32xf32> to vector<8x32xf32>
    %502 = arith.addf %498, %501 : vector<8x32xf32>
    %c0_243 = arith.constant 0 : index
    %c0_244 = arith.constant 0 : index
    %c0_245 = arith.constant 0 : index
    %503 = vector.load %arg14[%c0_243, %c0_244, %c0_245] : memref<2x1x32xf32, #tpu.memory_space<vmem>>, vector<1x1x32xf32>
    %504 = vector.shape_cast %503 : vector<1x1x32xf32> to vector<1x32xf32>
    %c0_246 = arith.constant 0 : index
    %c0_247 = arith.constant 0 : index
    %c0_248 = arith.constant 0 : index
    %505 = vector.load %arg13[%c0_246, %c0_247, %c0_248] : memref<2x1x32xf32, #tpu.memory_space<vmem>>, vector<1x1x32xf32>
    %506 = vector.shape_cast %505 : vector<1x1x32xf32> to vector<1x32xf32>
    %cst_249 = arith.constant dense<0.000000e+00> : vector<8xf32>
    %507 = vector.multi_reduction <add>, %502, %cst_249 [1] : vector<8x32xf32> to vector<8xf32>
    %508 = vector.shape_cast %507 : vector<8xf32> to vector<8x1xf32>
    %cst_250 = arith.constant 3.200000e+01 : f32
    %509 = vector.broadcast %cst_250 : f32 to vector<8x1xf32>
    %510 = arith.divf %508, %509 : vector<8x1xf32>
    %511 = vector.broadcast %510 : vector<8x1xf32> to vector<8x32xf32>
    %512 = arith.subf %502, %511 : vector<8x32xf32>
    %513 = arith.mulf %512, %512 : vector<8x32xf32>
    %cst_251 = arith.constant dense<0.000000e+00> : vector<8xf32>
    %514 = vector.multi_reduction <add>, %513, %cst_251 [1] : vector<8x32xf32> to vector<8xf32>
    %515 = vector.shape_cast %514 : vector<8xf32> to vector<8x1xf32>
    %cst_252 = arith.constant 3.200000e+01 : f32
    %516 = vector.broadcast %cst_252 : f32 to vector<8x1xf32>
    %517 = arith.divf %515, %516 : vector<8x1xf32>
    %cst_253 = arith.constant 9.99999974E-6 : f32
    %518 = vector.broadcast %cst_253 : f32 to vector<8x1xf32>
    %519 = arith.addf %517, %518 : vector<8x1xf32>
    %520 = math.rsqrt %519 : vector<8x1xf32>
    %521 = vector.broadcast %520 : vector<8x1xf32> to vector<8x32xf32>
    %522 = arith.mulf %512, %521 : vector<8x32xf32>
    %523 = vector.broadcast %504 : vector<1x32xf32> to vector<8x32xf32>
    %524 = arith.mulf %522, %523 : vector<8x32xf32>
    %525 = vector.broadcast %506 : vector<1x32xf32> to vector<8x32xf32>
    %526 = arith.addf %524, %525 : vector<8x32xf32>
    %c0_254 = arith.constant 0 : index
    %c0_255 = arith.constant 0 : index
    %c0_256 = arith.constant 0 : index
    %527 = vector.load %arg10[%c0_254, %c0_255, %c0_256] : memref<2x1x32xf32, #tpu.memory_space<vmem>>, vector<1x1x32xf32>
    %528 = vector.shape_cast %527 : vector<1x1x32xf32> to vector<1x32xf32>
    %c0_257 = arith.constant 0 : index
    %c0_258 = arith.constant 0 : index
    %c0_259 = arith.constant 0 : index
    %529 = vector.load %arg9[%c0_257, %c0_258, %c0_259] : memref<2x1x32xf32, #tpu.memory_space<vmem>>, vector<1x1x32xf32>
    %530 = vector.shape_cast %529 : vector<1x1x32xf32> to vector<1x32xf32>
    %cst_260 = arith.constant dense<0.000000e+00> : vector<8xf32>
    %531 = vector.multi_reduction <add>, %16, %cst_260 [1] : vector<8x32xf32> to vector<8xf32>
    %532 = vector.shape_cast %531 : vector<8xf32> to vector<8x1xf32>
    %cst_261 = arith.constant 3.200000e+01 : f32
    %533 = vector.broadcast %cst_261 : f32 to vector<8x1xf32>
    %534 = arith.divf %532, %533 : vector<8x1xf32>
    %535 = vector.broadcast %534 : vector<8x1xf32> to vector<8x32xf32>
    %536 = arith.subf %16, %535 : vector<8x32xf32>
    %537 = arith.mulf %536, %536 : vector<8x32xf32>
    %cst_262 = arith.constant dense<0.000000e+00> : vector<8xf32>
    %538 = vector.multi_reduction <add>, %537, %cst_262 [1] : vector<8x32xf32> to vector<8xf32>
    %539 = vector.shape_cast %538 : vector<8xf32> to vector<8x1xf32>
    %cst_263 = arith.constant 3.200000e+01 : f32
    %540 = vector.broadcast %cst_263 : f32 to vector<8x1xf32>
    %541 = arith.divf %539, %540 : vector<8x1xf32>
    %cst_264 = arith.constant 9.99999974E-6 : f32
    %542 = vector.broadcast %cst_264 : f32 to vector<8x1xf32>
    %543 = arith.addf %541, %542 : vector<8x1xf32>
    %544 = math.rsqrt %543 : vector<8x1xf32>
    %545 = vector.broadcast %544 : vector<8x1xf32> to vector<8x32xf32>
    %546 = arith.mulf %536, %545 : vector<8x32xf32>
    %547 = vector.broadcast %528 : vector<1x32xf32> to vector<8x32xf32>
    %548 = arith.mulf %546, %547 : vector<8x32xf32>
    %549 = vector.broadcast %530 : vector<1x32xf32> to vector<8x32xf32>
    %550 = arith.addf %548, %549 : vector<8x32xf32>
    %c0_265 = arith.constant 0 : index
    %c0_266 = arith.constant 0 : index
    %c0_267 = arith.constant 0 : index
    %551 = vector.load %arg19[%c0_265, %c0_266, %c0_267] : memref<2x32x64xbf16, #tpu.memory_space<vmem>>, vector<1x32x64xbf16>
    %552 = vector.shape_cast %551 : vector<1x32x64xbf16> to vector<32x64xbf16>
    %553 = arith.truncf %526 : vector<8x32xf32> to vector<8x32xbf16>
    %cst_268 = arith.constant dense<0.000000e+00> : vector<8x64xf32>
    %554 = tpu.matmul %553, %552, %cst_268 {dimension_numbers = #tpu.dot_dimension_numbers<[1], [0], [0], [1], [0, 0, 1, 1], [], []>} : vector<8x32xbf16>, vector<32x64xbf16>, vector<8x64xf32> -> vector<8x64xf32>
    %c0_269 = arith.constant 0 : index
    %c0_270 = arith.constant 0 : index
    %c0_271 = arith.constant 0 : index
    %555 = vector.load %arg7[%c0_269, %c0_270, %c0_271] : memref<2x1x64xf32, #tpu.memory_space<vmem>>, vector<1x1x64xf32>
    %556 = vector.shape_cast %555 : vector<1x1x64xf32> to vector<1x64xf32>
    %557 = vector.broadcast %556 : vector<1x64xf32> to vector<8x64xf32>
    %558 = arith.addf %554, %557 : vector<8x64xf32>
    %c0_272 = arith.constant 0 : index
    %c0_273 = arith.constant 0 : index
    %c0_274 = arith.constant 0 : index
    %559 = vector.load %arg17[%c0_272, %c0_273, %c0_274] : memref<2x32x64xbf16, #tpu.memory_space<vmem>>, vector<1x32x64xbf16>
    %560 = vector.shape_cast %559 : vector<1x32x64xbf16> to vector<32x64xbf16>
    %561 = arith.truncf %550 : vector<8x32xf32> to vector<8x32xbf16>
    %cst_275 = arith.constant dense<0.000000e+00> : vector<8x64xf32>
    %562 = tpu.matmul %561, %560, %cst_275 {dimension_numbers = #tpu.dot_dimension_numbers<[1], [0], [0], [1], [0, 0, 1, 1], [], []>} : vector<8x32xbf16>, vector<32x64xbf16>, vector<8x64xf32> -> vector<8x64xf32>
    %c0_276 = arith.constant 0 : index
    %c0_277 = arith.constant 0 : index
    %c0_278 = arith.constant 0 : index
    %563 = vector.load %arg5[%c0_276, %c0_277, %c0_278] : memref<2x1x64xf32, #tpu.memory_space<vmem>>, vector<1x1x64xf32>
    %564 = vector.shape_cast %563 : vector<1x1x64xf32> to vector<1x64xf32>
    %565 = vector.broadcast %564 : vector<1x64xf32> to vector<8x64xf32>
    %566 = arith.addf %562, %565 : vector<8x64xf32>
    %c0_279 = arith.constant 0 : index
    %c0_280 = arith.constant 0 : index
    %c0_281 = arith.constant 0 : index
    %567 = vector.load %arg20[%c0_279, %c0_280, %c0_281] : memref<2x32x64xbf16, #tpu.memory_space<vmem>>, vector<1x32x64xbf16>
    %568 = vector.shape_cast %567 : vector<1x32x64xbf16> to vector<32x64xbf16>
    %569 = arith.truncf %550 : vector<8x32xf32> to vector<8x32xbf16>
    %cst_282 = arith.constant dense<0.000000e+00> : vector<8x64xf32>
    %570 = tpu.matmul %569, %568, %cst_282 {dimension_numbers = #tpu.dot_dimension_numbers<[1], [0], [0], [1], [0, 0, 1, 1], [], []>} : vector<8x32xbf16>, vector<32x64xbf16>, vector<8x64xf32> -> vector<8x64xf32>
    %c0_283 = arith.constant 0 : index
    %c0_284 = arith.constant 0 : index
    %c0_285 = arith.constant 0 : index
    %571 = vector.load %arg8[%c0_283, %c0_284, %c0_285] : memref<2x1x64xf32, #tpu.memory_space<vmem>>, vector<1x1x64xf32>
    %572 = vector.shape_cast %571 : vector<1x1x64xf32> to vector<1x64xf32>
    %573 = vector.broadcast %572 : vector<1x64xf32> to vector<8x64xf32>
    %574 = arith.addf %570, %573 : vector<8x64xf32>
    %575 = arith.truncf %558 : vector<8x64xf32> to vector<8x64xbf16>
    %576 = arith.truncf %566 : vector<8x64xf32> to vector<8x64xbf16>
    %cst_286 = arith.constant dense<0.000000e+00> : vector<8x8xf32>
    %577 = tpu.matmul %575, %576, %cst_286 {dimension_numbers = #tpu.dot_dimension_numbers<[1], [1], [0], [0], [0, 0, 1, 0], [], []>} : vector<8x64xbf16>, vector<8x64xbf16>, vector<8x8xf32> -> vector<8x8xf32>
    %cst_287 = arith.constant dense<0xFF800000> : vector<8xf32>
    %578 = vector.multi_reduction <maximumf>, %577, %cst_287 [1] : vector<8x8xf32> to vector<8xf32>
    %579 = vector.shape_cast %578 : vector<8xf32> to vector<8x1xf32>
    %580 = vector.broadcast %579 : vector<8x1xf32> to vector<8x8xf32>
    %581 = arith.subf %577, %580 : vector<8x8xf32>
    %582 = math.exp %581 : vector<8x8xf32>
    %cst_288 = arith.constant dense<0.000000e+00> : vector<8xf32>
    %583 = vector.multi_reduction <add>, %582, %cst_288 [1] : vector<8x8xf32> to vector<8xf32>
    %584 = vector.shape_cast %583 : vector<8xf32> to vector<8x1xf32>
    %585 = vector.broadcast %584 : vector<8x1xf32> to vector<8x8xf32>
    %586 = arith.divf %582, %585 : vector<8x8xf32>
    %587 = arith.truncf %586 : vector<8x8xf32> to vector<8x8xbf16>
    %588 = arith.truncf %574 : vector<8x64xf32> to vector<8x64xbf16>
    %cst_289 = arith.constant dense<0.000000e+00> : vector<8x64xf32>
    %589 = tpu.matmul %587, %588, %cst_289 {dimension_numbers = #tpu.dot_dimension_numbers<[1], [0], [0], [1], [0, 0, 1, 1], [], []>} : vector<8x8xbf16>, vector<8x64xbf16>, vector<8x64xf32> -> vector<8x64xf32>
    %c0_290 = arith.constant 0 : index
    %c0_291 = arith.constant 0 : index
    %c0_292 = arith.constant 0 : index
    %590 = vector.load %arg18[%c0_290, %c0_291, %c0_292] : memref<2x64x32xbf16, #tpu.memory_space<vmem>>, vector<1x64x32xbf16>
    %591 = vector.shape_cast %590 : vector<1x64x32xbf16> to vector<64x32xbf16>
    %592 = arith.truncf %589 : vector<8x64xf32> to vector<8x64xbf16>
    %cst_293 = arith.constant dense<0.000000e+00> : vector<8x32xf32>
    %593 = tpu.matmul %592, %591, %cst_293 {dimension_numbers = #tpu.dot_dimension_numbers<[1], [0], [0], [1], [0, 0, 1, 1], [], []>} : vector<8x64xbf16>, vector<64x32xbf16>, vector<8x32xf32> -> vector<8x32xf32>
    %594 = arith.addf %502, %593 : vector<8x32xf32>
    %c0_294 = arith.constant 0 : index
    %c0_295 = arith.constant 0 : index
    %c0_296 = arith.constant 0 : index
    %595 = vector.load %arg6[%c0_294, %c0_295, %c0_296] : memref<2x1x32xf32, #tpu.memory_space<vmem>>, vector<1x1x32xf32>
    %596 = vector.shape_cast %595 : vector<1x1x32xf32> to vector<1x32xf32>
    %597 = vector.broadcast %596 : vector<1x32xf32> to vector<8x32xf32>
    %598 = arith.addf %594, %597 : vector<8x32xf32>
    %c0_297 = arith.constant 0 : index
    %c0_298 = arith.constant 0 : index
    %c0_299 = arith.constant 0 : index
    %599 = vector.load %arg12[%c0_297, %c0_298, %c0_299] : memref<2x1x32xf32, #tpu.memory_space<vmem>>, vector<1x1x32xf32>
    %600 = vector.shape_cast %599 : vector<1x1x32xf32> to vector<1x32xf32>
    %c0_300 = arith.constant 0 : index
    %c0_301 = arith.constant 0 : index
    %c0_302 = arith.constant 0 : index
    %601 = vector.load %arg11[%c0_300, %c0_301, %c0_302] : memref<2x1x32xf32, #tpu.memory_space<vmem>>, vector<1x1x32xf32>
    %602 = vector.shape_cast %601 : vector<1x1x32xf32> to vector<1x32xf32>
    %cst_303 = arith.constant dense<0.000000e+00> : vector<8xf32>
    %603 = vector.multi_reduction <add>, %598, %cst_303 [1] : vector<8x32xf32> to vector<8xf32>
    %604 = vector.shape_cast %603 : vector<8xf32> to vector<8x1xf32>
    %cst_304 = arith.constant 3.200000e+01 : f32
    %605 = vector.broadcast %cst_304 : f32 to vector<8x1xf32>
    %606 = arith.divf %604, %605 : vector<8x1xf32>
    %607 = vector.broadcast %606 : vector<8x1xf32> to vector<8x32xf32>
    %608 = arith.subf %598, %607 : vector<8x32xf32>
    %609 = arith.mulf %608, %608 : vector<8x32xf32>
    %cst_305 = arith.constant dense<0.000000e+00> : vector<8xf32>
    %610 = vector.multi_reduction <add>, %609, %cst_305 [1] : vector<8x32xf32> to vector<8xf32>
    %611 = vector.shape_cast %610 : vector<8xf32> to vector<8x1xf32>
    %cst_306 = arith.constant 3.200000e+01 : f32
    %612 = vector.broadcast %cst_306 : f32 to vector<8x1xf32>
    %613 = arith.divf %611, %612 : vector<8x1xf32>
    %cst_307 = arith.constant 9.99999974E-6 : f32
    %614 = vector.broadcast %cst_307 : f32 to vector<8x1xf32>
    %615 = arith.addf %613, %614 : vector<8x1xf32>
    %616 = math.rsqrt %615 : vector<8x1xf32>
    %617 = vector.broadcast %616 : vector<8x1xf32> to vector<8x32xf32>
    %618 = arith.mulf %608, %617 : vector<8x32xf32>
    %619 = vector.broadcast %600 : vector<1x32xf32> to vector<8x32xf32>
    %620 = arith.mulf %618, %619 : vector<8x32xf32>
    %621 = vector.broadcast %602 : vector<1x32xf32> to vector<8x32xf32>
    %622 = arith.addf %620, %621 : vector<8x32xf32>
    %c0_308 = arith.constant 0 : index
    %c0_309 = arith.constant 0 : index
    %c0_310 = arith.constant 0 : index
    %623 = vector.load %arg15[%c0_308, %c0_309, %c0_310] : memref<2x32x128xbf16, #tpu.memory_space<vmem>>, vector<1x32x128xbf16>
    %624 = vector.shape_cast %623 : vector<1x32x128xbf16> to vector<32x128xbf16>
    %625 = arith.truncf %622 : vector<8x32xf32> to vector<8x32xbf16>
    %cst_311 = arith.constant dense<0.000000e+00> : vector<8x128xf32>
    %626 = tpu.matmul %625, %624, %cst_311 {dimension_numbers = #tpu.dot_dimension_numbers<[1], [0], [0], [1], [0, 0, 1, 1], [], []>} : vector<8x32xbf16>, vector<32x128xbf16>, vector<8x128xf32> -> vector<8x128xf32>
    %c0_312 = arith.constant 0 : index
    %c0_313 = arith.constant 0 : index
    %c0_314 = arith.constant 0 : index
    %627 = vector.load %arg3[%c0_312, %c0_313, %c0_314] : memref<2x1x128xf32, #tpu.memory_space<vmem>>, vector<1x1x128xf32>
    %628 = vector.shape_cast %627 : vector<1x1x128xf32> to vector<1x128xf32>
    %629 = vector.broadcast %628 : vector<1x128xf32> to vector<8x128xf32>
    %630 = arith.addf %626, %629 : vector<8x128xf32>
    %cst_315 = arith.constant 5.000000e-01 : f32
    %631 = vector.broadcast %cst_315 : f32 to vector<8x128xf32>
    %632 = arith.mulf %631, %630 : vector<8x128xf32>
    %cst_316 = arith.constant 4.471500e-02 : f32
    %633 = vector.broadcast %cst_316 : f32 to vector<8x128xf32>
    %634 = arith.mulf %633, %630 : vector<8x128xf32>
    %635 = arith.mulf %634, %630 : vector<8x128xf32>
    %636 = arith.mulf %635, %630 : vector<8x128xf32>
    %637 = arith.addf %630, %636 : vector<8x128xf32>
    %cst_317 = arith.constant 0.797884583 : f32
    %638 = vector.broadcast %cst_317 : f32 to vector<8x128xf32>
    %639 = arith.mulf %638, %637 : vector<8x128xf32>
    %640 = math.tanh %639 : vector<8x128xf32>
    %cst_318 = arith.constant 1.000000e+00 : f32
    %641 = vector.broadcast %cst_318 : f32 to vector<8x128xf32>
    %642 = arith.addf %641, %640 : vector<8x128xf32>
    %643 = arith.mulf %632, %642 : vector<8x128xf32>
    %c0_319 = arith.constant 0 : index
    %c0_320 = arith.constant 0 : index
    %c0_321 = arith.constant 0 : index
    %644 = vector.load %arg16[%c0_319, %c0_320, %c0_321] : memref<2x128x32xbf16, #tpu.memory_space<vmem>>, vector<1x128x32xbf16>
    %645 = vector.shape_cast %644 : vector<1x128x32xbf16> to vector<128x32xbf16>
    %646 = arith.truncf %643 : vector<8x128xf32> to vector<8x128xbf16>
    %cst_322 = arith.constant dense<0.000000e+00> : vector<8x32xf32>
    %647 = tpu.matmul %646, %645, %cst_322 {dimension_numbers = #tpu.dot_dimension_numbers<[1], [0], [0], [1], [0, 0, 1, 1], [], []>} : vector<8x128xbf16>, vector<128x32xbf16>, vector<8x32xf32> -> vector<8x32xf32>
    %648 = arith.addf %598, %647 : vector<8x32xf32>
    %c0_323 = arith.constant 0 : index
    %c0_324 = arith.constant 0 : index
    %c0_325 = arith.constant 0 : index
    %649 = vector.load %arg4[%c0_323, %c0_324, %c0_325] : memref<2x1x32xf32, #tpu.memory_space<vmem>>, vector<1x1x32xf32>
    %650 = vector.shape_cast %649 : vector<1x1x32xf32> to vector<1x32xf32>
    %651 = vector.broadcast %650 : vector<1x32xf32> to vector<8x32xf32>
    %652 = arith.addf %648, %651 : vector<8x32xf32>
    %c1_326 = arith.constant 1 : index
    %c0_327 = arith.constant 0 : index
    %c0_328 = arith.constant 0 : index
    %653 = vector.load %arg14[%c1_326, %c0_327, %c0_328] : memref<2x1x32xf32, #tpu.memory_space<vmem>>, vector<1x1x32xf32>
    %654 = vector.shape_cast %653 : vector<1x1x32xf32> to vector<1x32xf32>
    %c1_329 = arith.constant 1 : index
    %c0_330 = arith.constant 0 : index
    %c0_331 = arith.constant 0 : index
    %655 = vector.load %arg13[%c1_329, %c0_330, %c0_331] : memref<2x1x32xf32, #tpu.memory_space<vmem>>, vector<1x1x32xf32>
    %656 = vector.shape_cast %655 : vector<1x1x32xf32> to vector<1x32xf32>
    %cst_332 = arith.constant dense<0.000000e+00> : vector<8xf32>
    %657 = vector.multi_reduction <add>, %652, %cst_332 [1] : vector<8x32xf32> to vector<8xf32>
    %658 = vector.shape_cast %657 : vector<8xf32> to vector<8x1xf32>
    %cst_333 = arith.constant 3.200000e+01 : f32
    %659 = vector.broadcast %cst_333 : f32 to vector<8x1xf32>
    %660 = arith.divf %658, %659 : vector<8x1xf32>
    %661 = vector.broadcast %660 : vector<8x1xf32> to vector<8x32xf32>
    %662 = arith.subf %652, %661 : vector<8x32xf32>
    %663 = arith.mulf %662, %662 : vector<8x32xf32>
    %cst_334 = arith.constant dense<0.000000e+00> : vector<8xf32>
    %664 = vector.multi_reduction <add>, %663, %cst_334 [1] : vector<8x32xf32> to vector<8xf32>
    %665 = vector.shape_cast %664 : vector<8xf32> to vector<8x1xf32>
    %cst_335 = arith.constant 3.200000e+01 : f32
    %666 = vector.broadcast %cst_335 : f32 to vector<8x1xf32>
    %667 = arith.divf %665, %666 : vector<8x1xf32>
    %cst_336 = arith.constant 9.99999974E-6 : f32
    %668 = vector.broadcast %cst_336 : f32 to vector<8x1xf32>
    %669 = arith.addf %667, %668 : vector<8x1xf32>
    %670 = math.rsqrt %669 : vector<8x1xf32>
    %671 = vector.broadcast %670 : vector<8x1xf32> to vector<8x32xf32>
    %672 = arith.mulf %662, %671 : vector<8x32xf32>
    %673 = vector.broadcast %654 : vector<1x32xf32> to vector<8x32xf32>
    %674 = arith.mulf %672, %673 : vector<8x32xf32>
    %675 = vector.broadcast %656 : vector<1x32xf32> to vector<8x32xf32>
    %676 = arith.addf %674, %675 : vector<8x32xf32>
    %c1_337 = arith.constant 1 : index
    %c0_338 = arith.constant 0 : index
    %c0_339 = arith.constant 0 : index
    %677 = vector.load %arg10[%c1_337, %c0_338, %c0_339] : memref<2x1x32xf32, #tpu.memory_space<vmem>>, vector<1x1x32xf32>
    %678 = vector.shape_cast %677 : vector<1x1x32xf32> to vector<1x32xf32>
    %c1_340 = arith.constant 1 : index
    %c0_341 = arith.constant 0 : index
    %c0_342 = arith.constant 0 : index
    %679 = vector.load %arg9[%c1_340, %c0_341, %c0_342] : memref<2x1x32xf32, #tpu.memory_space<vmem>>, vector<1x1x32xf32>
    %680 = vector.shape_cast %679 : vector<1x1x32xf32> to vector<1x32xf32>
    %cst_343 = arith.constant dense<0.000000e+00> : vector<8xf32>
    %681 = vector.multi_reduction <add>, %16, %cst_343 [1] : vector<8x32xf32> to vector<8xf32>
    %682 = vector.shape_cast %681 : vector<8xf32> to vector<8x1xf32>
    %cst_344 = arith.constant 3.200000e+01 : f32
    %683 = vector.broadcast %cst_344 : f32 to vector<8x1xf32>
    %684 = arith.divf %682, %683 : vector<8x1xf32>
    %685 = vector.broadcast %684 : vector<8x1xf32> to vector<8x32xf32>
    %686 = arith.subf %16, %685 : vector<8x32xf32>
    %687 = arith.mulf %686, %686 : vector<8x32xf32>
    %cst_345 = arith.constant dense<0.000000e+00> : vector<8xf32>
    %688 = vector.multi_reduction <add>, %687, %cst_345 [1] : vector<8x32xf32> to vector<8xf32>
    %689 = vector.shape_cast %688 : vector<8xf32> to vector<8x1xf32>
    %cst_346 = arith.constant 3.200000e+01 : f32
    %690 = vector.broadcast %cst_346 : f32 to vector<8x1xf32>
    %691 = arith.divf %689, %690 : vector<8x1xf32>
    %cst_347 = arith.constant 9.99999974E-6 : f32
    %692 = vector.broadcast %cst_347 : f32 to vector<8x1xf32>
    %693 = arith.addf %691, %692 : vector<8x1xf32>
    %694 = math.rsqrt %693 : vector<8x1xf32>
    %695 = vector.broadcast %694 : vector<8x1xf32> to vector<8x32xf32>
    %696 = arith.mulf %686, %695 : vector<8x32xf32>
    %697 = vector.broadcast %678 : vector<1x32xf32> to vector<8x32xf32>
    %698 = arith.mulf %696, %697 : vector<8x32xf32>
    %699 = vector.broadcast %680 : vector<1x32xf32> to vector<8x32xf32>
    %700 = arith.addf %698, %699 : vector<8x32xf32>
    %c1_348 = arith.constant 1 : index
    %c0_349 = arith.constant 0 : index
    %c0_350 = arith.constant 0 : index
    %701 = vector.load %arg19[%c1_348, %c0_349, %c0_350] : memref<2x32x64xbf16, #tpu.memory_space<vmem>>, vector<1x32x64xbf16>
    %702 = vector.shape_cast %701 : vector<1x32x64xbf16> to vector<32x64xbf16>
    %703 = arith.truncf %676 : vector<8x32xf32> to vector<8x32xbf16>
    %cst_351 = arith.constant dense<0.000000e+00> : vector<8x64xf32>
    %704 = tpu.matmul %703, %702, %cst_351 {dimension_numbers = #tpu.dot_dimension_numbers<[1], [0], [0], [1], [0, 0, 1, 1], [], []>} : vector<8x32xbf16>, vector<32x64xbf16>, vector<8x64xf32> -> vector<8x64xf32>
    %c1_352 = arith.constant 1 : index
    %c0_353 = arith.constant 0 : index
    %c0_354 = arith.constant 0 : index
    %705 = vector.load %arg7[%c1_352, %c0_353, %c0_354] : memref<2x1x64xf32, #tpu.memory_space<vmem>>, vector<1x1x64xf32>
    %706 = vector.shape_cast %705 : vector<1x1x64xf32> to vector<1x64xf32>
    %707 = vector.broadcast %706 : vector<1x64xf32> to vector<8x64xf32>
    %708 = arith.addf %704, %707 : vector<8x64xf32>
    %c1_355 = arith.constant 1 : index
    %c0_356 = arith.constant 0 : index
    %c0_357 = arith.constant 0 : index
    %709 = vector.load %arg17[%c1_355, %c0_356, %c0_357] : memref<2x32x64xbf16, #tpu.memory_space<vmem>>, vector<1x32x64xbf16>
    %710 = vector.shape_cast %709 : vector<1x32x64xbf16> to vector<32x64xbf16>
    %711 = arith.truncf %700 : vector<8x32xf32> to vector<8x32xbf16>
    %cst_358 = arith.constant dense<0.000000e+00> : vector<8x64xf32>
    %712 = tpu.matmul %711, %710, %cst_358 {dimension_numbers = #tpu.dot_dimension_numbers<[1], [0], [0], [1], [0, 0, 1, 1], [], []>} : vector<8x32xbf16>, vector<32x64xbf16>, vector<8x64xf32> -> vector<8x64xf32>
    %c1_359 = arith.constant 1 : index
    %c0_360 = arith.constant 0 : index
    %c0_361 = arith.constant 0 : index
    %713 = vector.load %arg5[%c1_359, %c0_360, %c0_361] : memref<2x1x64xf32, #tpu.memory_space<vmem>>, vector<1x1x64xf32>
    %714 = vector.shape_cast %713 : vector<1x1x64xf32> to vector<1x64xf32>
    %715 = vector.broadcast %714 : vector<1x64xf32> to vector<8x64xf32>
    %716 = arith.addf %712, %715 : vector<8x64xf32>
    %c1_362 = arith.constant 1 : index
    %c0_363 = arith.constant 0 : index
    %c0_364 = arith.constant 0 : index
    %717 = vector.load %arg20[%c1_362, %c0_363, %c0_364] : memref<2x32x64xbf16, #tpu.memory_space<vmem>>, vector<1x32x64xbf16>
    %718 = vector.shape_cast %717 : vector<1x32x64xbf16> to vector<32x64xbf16>
    %719 = arith.truncf %700 : vector<8x32xf32> to vector<8x32xbf16>
    %cst_365 = arith.constant dense<0.000000e+00> : vector<8x64xf32>
    %720 = tpu.matmul %719, %718, %cst_365 {dimension_numbers = #tpu.dot_dimension_numbers<[1], [0], [0], [1], [0, 0, 1, 1], [], []>} : vector<8x32xbf16>, vector<32x64xbf16>, vector<8x64xf32> -> vector<8x64xf32>
    %c1_366 = arith.constant 1 : index
    %c0_367 = arith.constant 0 : index
    %c0_368 = arith.constant 0 : index
    %721 = vector.load %arg8[%c1_366, %c0_367, %c0_368] : memref<2x1x64xf32, #tpu.memory_space<vmem>>, vector<1x1x64xf32>
    %722 = vector.shape_cast %721 : vector<1x1x64xf32> to vector<1x64xf32>
    %723 = vector.broadcast %722 : vector<1x64xf32> to vector<8x64xf32>
    %724 = arith.addf %720, %723 : vector<8x64xf32>
    %725 = arith.truncf %708 : vector<8x64xf32> to vector<8x64xbf16>
    %726 = arith.truncf %716 : vector<8x64xf32> to vector<8x64xbf16>
    %cst_369 = arith.constant dense<0.000000e+00> : vector<8x8xf32>
    %727 = tpu.matmul %725, %726, %cst_369 {dimension_numbers = #tpu.dot_dimension_numbers<[1], [1], [0], [0], [0, 0, 1, 0], [], []>} : vector<8x64xbf16>, vector<8x64xbf16>, vector<8x8xf32> -> vector<8x8xf32>
    %cst_370 = arith.constant dense<0xFF800000> : vector<8xf32>
    %728 = vector.multi_reduction <maximumf>, %727, %cst_370 [1] : vector<8x8xf32> to vector<8xf32>
    %729 = vector.shape_cast %728 : vector<8xf32> to vector<8x1xf32>
    %730 = vector.broadcast %729 : vector<8x1xf32> to vector<8x8xf32>
    %731 = arith.subf %727, %730 : vector<8x8xf32>
    %732 = math.exp %731 : vector<8x8xf32>
    %cst_371 = arith.constant dense<0.000000e+00> : vector<8xf32>
    %733 = vector.multi_reduction <add>, %732, %cst_371 [1] : vector<8x8xf32> to vector<8xf32>
    %734 = vector.shape_cast %733 : vector<8xf32> to vector<8x1xf32>
    %735 = vector.broadcast %734 : vector<8x1xf32> to vector<8x8xf32>
    %736 = arith.divf %732, %735 : vector<8x8xf32>
    %737 = arith.truncf %736 : vector<8x8xf32> to vector<8x8xbf16>
    %738 = arith.truncf %724 : vector<8x64xf32> to vector<8x64xbf16>
    %cst_372 = arith.constant dense<0.000000e+00> : vector<8x64xf32>
    %739 = tpu.matmul %737, %738, %cst_372 {dimension_numbers = #tpu.dot_dimension_numbers<[1], [0], [0], [1], [0, 0, 1, 1], [], []>} : vector<8x8xbf16>, vector<8x64xbf16>, vector<8x64xf32> -> vector<8x64xf32>
    %c1_373 = arith.constant 1 : index
    %c0_374 = arith.constant 0 : index
    %c0_375 = arith.constant 0 : index
    %740 = vector.load %arg18[%c1_373, %c0_374, %c0_375] : memref<2x64x32xbf16, #tpu.memory_space<vmem>>, vector<1x64x32xbf16>
    %741 = vector.shape_cast %740 : vector<1x64x32xbf16> to vector<64x32xbf16>
    %742 = arith.truncf %739 : vector<8x64xf32> to vector<8x64xbf16>
    %cst_376 = arith.constant dense<0.000000e+00> : vector<8x32xf32>
    %743 = tpu.matmul %742, %741, %cst_376 {dimension_numbers = #tpu.dot_dimension_numbers<[1], [0], [0], [1], [0, 0, 1, 1], [], []>} : vector<8x64xbf16>, vector<64x32xbf16>, vector<8x32xf32> -> vector<8x32xf32>
    %744 = arith.addf %652, %743 : vector<8x32xf32>
    %c1_377 = arith.constant 1 : index
    %c0_378 = arith.constant 0 : index
    %c0_379 = arith.constant 0 : index
    %745 = vector.load %arg6[%c1_377, %c0_378, %c0_379] : memref<2x1x32xf32, #tpu.memory_space<vmem>>, vector<1x1x32xf32>
    %746 = vector.shape_cast %745 : vector<1x1x32xf32> to vector<1x32xf32>
    %747 = vector.broadcast %746 : vector<1x32xf32> to vector<8x32xf32>
    %748 = arith.addf %744, %747 : vector<8x32xf32>
    %c1_380 = arith.constant 1 : index
    %c0_381 = arith.constant 0 : index
    %c0_382 = arith.constant 0 : index
    %749 = vector.load %arg12[%c1_380, %c0_381, %c0_382] : memref<2x1x32xf32, #tpu.memory_space<vmem>>, vector<1x1x32xf32>
    %750 = vector.shape_cast %749 : vector<1x1x32xf32> to vector<1x32xf32>
    %c1_383 = arith.constant 1 : index
    %c0_384 = arith.constant 0 : index
    %c0_385 = arith.constant 0 : index
    %751 = vector.load %arg11[%c1_383, %c0_384, %c0_385] : memref<2x1x32xf32, #tpu.memory_space<vmem>>, vector<1x1x32xf32>
    %752 = vector.shape_cast %751 : vector<1x1x32xf32> to vector<1x32xf32>
    %cst_386 = arith.constant dense<0.000000e+00> : vector<8xf32>
    %753 = vector.multi_reduction <add>, %748, %cst_386 [1] : vector<8x32xf32> to vector<8xf32>
    %754 = vector.shape_cast %753 : vector<8xf32> to vector<8x1xf32>
    %cst_387 = arith.constant 3.200000e+01 : f32
    %755 = vector.broadcast %cst_387 : f32 to vector<8x1xf32>
    %756 = arith.divf %754, %755 : vector<8x1xf32>
    %757 = vector.broadcast %756 : vector<8x1xf32> to vector<8x32xf32>
    %758 = arith.subf %748, %757 : vector<8x32xf32>
    %759 = arith.mulf %758, %758 : vector<8x32xf32>
    %cst_388 = arith.constant dense<0.000000e+00> : vector<8xf32>
    %760 = vector.multi_reduction <add>, %759, %cst_388 [1] : vector<8x32xf32> to vector<8xf32>
    %761 = vector.shape_cast %760 : vector<8xf32> to vector<8x1xf32>
    %cst_389 = arith.constant 3.200000e+01 : f32
    %762 = vector.broadcast %cst_389 : f32 to vector<8x1xf32>
    %763 = arith.divf %761, %762 : vector<8x1xf32>
    %cst_390 = arith.constant 9.99999974E-6 : f32
    %764 = vector.broadcast %cst_390 : f32 to vector<8x1xf32>
    %765 = arith.addf %763, %764 : vector<8x1xf32>
    %766 = math.rsqrt %765 : vector<8x1xf32>
    %767 = vector.broadcast %766 : vector<8x1xf32> to vector<8x32xf32>
    %768 = arith.mulf %758, %767 : vector<8x32xf32>
    %769 = vector.broadcast %750 : vector<1x32xf32> to vector<8x32xf32>
    %770 = arith.mulf %768, %769 : vector<8x32xf32>
    %771 = vector.broadcast %752 : vector<1x32xf32> to vector<8x32xf32>
    %772 = arith.addf %770, %771 : vector<8x32xf32>
    %c1_391 = arith.constant 1 : index
    %c0_392 = arith.constant 0 : index
    %c0_393 = arith.constant 0 : index
    %773 = vector.load %arg15[%c1_391, %c0_392, %c0_393] : memref<2x32x128xbf16, #tpu.memory_space<vmem>>, vector<1x32x128xbf16>
    %774 = vector.shape_cast %773 : vector<1x32x128xbf16> to vector<32x128xbf16>
    %775 = arith.truncf %772 : vector<8x32xf32> to vector<8x32xbf16>
    %cst_394 = arith.constant dense<0.000000e+00> : vector<8x128xf32>
    %776 = tpu.matmul %775, %774, %cst_394 {dimension_numbers = #tpu.dot_dimension_numbers<[1], [0], [0], [1], [0, 0, 1, 1], [], []>} : vector<8x32xbf16>, vector<32x128xbf16>, vector<8x128xf32> -> vector<8x128xf32>
    %c1_395 = arith.constant 1 : index
    %c0_396 = arith.constant 0 : index
    %c0_397 = arith.constant 0 : index
    %777 = vector.load %arg3[%c1_395, %c0_396, %c0_397] : memref<2x1x128xf32, #tpu.memory_space<vmem>>, vector<1x1x128xf32>
    %778 = vector.shape_cast %777 : vector<1x1x128xf32> to vector<1x128xf32>
    %779 = vector.broadcast %778 : vector<1x128xf32> to vector<8x128xf32>
    %780 = arith.addf %776, %779 : vector<8x128xf32>
    %cst_398 = arith.constant 5.000000e-01 : f32
    %781 = vector.broadcast %cst_398 : f32 to vector<8x128xf32>
    %782 = arith.mulf %781, %780 : vector<8x128xf32>
    %cst_399 = arith.constant 4.471500e-02 : f32
    %783 = vector.broadcast %cst_399 : f32 to vector<8x128xf32>
    %784 = arith.mulf %783, %780 : vector<8x128xf32>
    %785 = arith.mulf %784, %780 : vector<8x128xf32>
    %786 = arith.mulf %785, %780 : vector<8x128xf32>
    %787 = arith.addf %780, %786 : vector<8x128xf32>
    %cst_400 = arith.constant 0.797884583 : f32
    %788 = vector.broadcast %cst_400 : f32 to vector<8x128xf32>
    %789 = arith.mulf %788, %787 : vector<8x128xf32>
    %790 = math.tanh %789 : vector<8x128xf32>
    %cst_401 = arith.constant 1.000000e+00 : f32
    %791 = vector.broadcast %cst_401 : f32 to vector<8x128xf32>
    %792 = arith.addf %791, %790 : vector<8x128xf32>
    %793 = arith.mulf %782, %792 : vector<8x128xf32>
    %c1_402 = arith.constant 1 : index
    %c0_403 = arith.constant 0 : index
    %c0_404 = arith.constant 0 : index
    %794 = vector.load %arg16[%c1_402, %c0_403, %c0_404] : memref<2x128x32xbf16, #tpu.memory_space<vmem>>, vector<1x128x32xbf16>
    %795 = vector.shape_cast %794 : vector<1x128x32xbf16> to vector<128x32xbf16>
    %796 = arith.truncf %793 : vector<8x128xf32> to vector<8x128xbf16>
    %cst_405 = arith.constant dense<0.000000e+00> : vector<8x32xf32>
    %797 = tpu.matmul %796, %795, %cst_405 {dimension_numbers = #tpu.dot_dimension_numbers<[1], [0], [0], [1], [0, 0, 1, 1], [], []>} : vector<8x128xbf16>, vector<128x32xbf16>, vector<8x32xf32> -> vector<8x32xf32>
    %798 = arith.addf %748, %797 : vector<8x32xf32>
    %c1_406 = arith.constant 1 : index
    %c0_407 = arith.constant 0 : index
    %c0_408 = arith.constant 0 : index
    %799 = vector.load %arg4[%c1_406, %c0_407, %c0_408] : memref<2x1x32xf32, #tpu.memory_space<vmem>>, vector<1x1x32xf32>
    %800 = vector.shape_cast %799 : vector<1x1x32xf32> to vector<1x32xf32>
    %801 = vector.broadcast %800 : vector<1x32xf32> to vector<8x32xf32>
    %802 = arith.addf %798, %801 : vector<8x32xf32>
    %c0_409 = arith.constant 0 : index
    %c0_410 = arith.constant 0 : index
    %803 = vector.load %arg37[%c0_409, %c0_410] : memref<1x32xf32, #tpu.memory_space<vmem>>, vector<1x32xf32>
    %c0_411 = arith.constant 0 : index
    %c0_412 = arith.constant 0 : index
    %804 = vector.load %arg36[%c0_411, %c0_412] : memref<1x32xf32, #tpu.memory_space<vmem>>, vector<1x32xf32>
    %cst_413 = arith.constant dense<0.000000e+00> : vector<8xf32>
    %805 = vector.multi_reduction <add>, %16, %cst_413 [1] : vector<8x32xf32> to vector<8xf32>
    %806 = vector.shape_cast %805 : vector<8xf32> to vector<8x1xf32>
    %cst_414 = arith.constant 3.200000e+01 : f32
    %807 = vector.broadcast %cst_414 : f32 to vector<8x1xf32>
    %808 = arith.divf %806, %807 : vector<8x1xf32>
    %809 = vector.broadcast %808 : vector<8x1xf32> to vector<8x32xf32>
    %810 = arith.subf %16, %809 : vector<8x32xf32>
    %811 = arith.mulf %810, %810 : vector<8x32xf32>
    %cst_415 = arith.constant dense<0.000000e+00> : vector<8xf32>
    %812 = vector.multi_reduction <add>, %811, %cst_415 [1] : vector<8x32xf32> to vector<8xf32>
    %813 = vector.shape_cast %812 : vector<8xf32> to vector<8x1xf32>
    %cst_416 = arith.constant 3.200000e+01 : f32
    %814 = vector.broadcast %cst_416 : f32 to vector<8x1xf32>
    %815 = arith.divf %813, %814 : vector<8x1xf32>
    %cst_417 = arith.constant 9.99999974E-6 : f32
    %816 = vector.broadcast %cst_417 : f32 to vector<8x1xf32>
    %817 = arith.addf %815, %816 : vector<8x1xf32>
    %818 = math.rsqrt %817 : vector<8x1xf32>
    %819 = vector.broadcast %818 : vector<8x1xf32> to vector<8x32xf32>
    %820 = arith.mulf %810, %819 : vector<8x32xf32>
    %821 = vector.broadcast %803 : vector<1x32xf32> to vector<8x32xf32>
    %822 = arith.mulf %820, %821 : vector<8x32xf32>
    %823 = vector.broadcast %804 : vector<1x32xf32> to vector<8x32xf32>
    %824 = arith.addf %822, %823 : vector<8x32xf32>
    %c0_418 = arith.constant 0 : index
    %c0_419 = arith.constant 0 : index
    %825 = vector.load %arg33[%c0_418, %c0_419] : memref<1x32xf32, #tpu.memory_space<vmem>>, vector<1x32xf32>
    %c0_420 = arith.constant 0 : index
    %c0_421 = arith.constant 0 : index
    %826 = vector.load %arg32[%c0_420, %c0_421] : memref<1x32xf32, #tpu.memory_space<vmem>>, vector<1x32xf32>
    %cst_422 = arith.constant dense<0.000000e+00> : vector<8xf32>
    %827 = vector.multi_reduction <add>, %802, %cst_422 [1] : vector<8x32xf32> to vector<8xf32>
    %828 = vector.shape_cast %827 : vector<8xf32> to vector<8x1xf32>
    %cst_423 = arith.constant 3.200000e+01 : f32
    %829 = vector.broadcast %cst_423 : f32 to vector<8x1xf32>
    %830 = arith.divf %828, %829 : vector<8x1xf32>
    %831 = vector.broadcast %830 : vector<8x1xf32> to vector<8x32xf32>
    %832 = arith.subf %802, %831 : vector<8x32xf32>
    %833 = arith.mulf %832, %832 : vector<8x32xf32>
    %cst_424 = arith.constant dense<0.000000e+00> : vector<8xf32>
    %834 = vector.multi_reduction <add>, %833, %cst_424 [1] : vector<8x32xf32> to vector<8xf32>
    %835 = vector.shape_cast %834 : vector<8xf32> to vector<8x1xf32>
    %cst_425 = arith.constant 3.200000e+01 : f32
    %836 = vector.broadcast %cst_425 : f32 to vector<8x1xf32>
    %837 = arith.divf %835, %836 : vector<8x1xf32>
    %cst_426 = arith.constant 9.99999974E-6 : f32
    %838 = vector.broadcast %cst_426 : f32 to vector<8x1xf32>
    %839 = arith.addf %837, %838 : vector<8x1xf32>
    %840 = math.rsqrt %839 : vector<8x1xf32>
    %841 = vector.broadcast %840 : vector<8x1xf32> to vector<8x32xf32>
    %842 = arith.mulf %832, %841 : vector<8x32xf32>
    %843 = vector.broadcast %825 : vector<1x32xf32> to vector<8x32xf32>
    %844 = arith.mulf %842, %843 : vector<8x32xf32>
    %845 = vector.broadcast %826 : vector<1x32xf32> to vector<8x32xf32>
    %846 = arith.addf %844, %845 : vector<8x32xf32>
    %c0_427 = arith.constant 0 : index
    %c0_428 = arith.constant 0 : index
    %847 = vector.load %arg42[%c0_427, %c0_428] : memref<32x64xbf16, #tpu.memory_space<vmem>>, vector<32x64xbf16>
    %848 = arith.truncf %824 : vector<8x32xf32> to vector<8x32xbf16>
    %cst_429 = arith.constant dense<0.000000e+00> : vector<8x64xf32>
    %849 = tpu.matmul %848, %847, %cst_429 {dimension_numbers = #tpu.dot_dimension_numbers<[1], [0], [0], [1], [0, 0, 1, 1], [], []>} : vector<8x32xbf16>, vector<32x64xbf16>, vector<8x64xf32> -> vector<8x64xf32>
    %c0_430 = arith.constant 0 : index
    %c0_431 = arith.constant 0 : index
    %850 = vector.load %arg30[%c0_430, %c0_431] : memref<1x64xf32, #tpu.memory_space<vmem>>, vector<1x64xf32>
    %851 = vector.broadcast %850 : vector<1x64xf32> to vector<8x64xf32>
    %852 = arith.addf %849, %851 : vector<8x64xf32>
    %c0_432 = arith.constant 0 : index
    %c0_433 = arith.constant 0 : index
    %853 = vector.load %arg40[%c0_432, %c0_433] : memref<32x64xbf16, #tpu.memory_space<vmem>>, vector<32x64xbf16>
    %854 = arith.truncf %846 : vector<8x32xf32> to vector<8x32xbf16>
    %cst_434 = arith.constant dense<0.000000e+00> : vector<8x64xf32>
    %855 = tpu.matmul %854, %853, %cst_434 {dimension_numbers = #tpu.dot_dimension_numbers<[1], [0], [0], [1], [0, 0, 1, 1], [], []>} : vector<8x32xbf16>, vector<32x64xbf16>, vector<8x64xf32> -> vector<8x64xf32>
    %c0_435 = arith.constant 0 : index
    %c0_436 = arith.constant 0 : index
    %856 = vector.load %arg28[%c0_435, %c0_436] : memref<1x64xf32, #tpu.memory_space<vmem>>, vector<1x64xf32>
    %857 = vector.broadcast %856 : vector<1x64xf32> to vector<8x64xf32>
    %858 = arith.addf %855, %857 : vector<8x64xf32>
    %c0_437 = arith.constant 0 : index
    %c0_438 = arith.constant 0 : index
    %859 = vector.load %arg43[%c0_437, %c0_438] : memref<32x64xbf16, #tpu.memory_space<vmem>>, vector<32x64xbf16>
    %860 = arith.truncf %846 : vector<8x32xf32> to vector<8x32xbf16>
    %cst_439 = arith.constant dense<0.000000e+00> : vector<8x64xf32>
    %861 = tpu.matmul %860, %859, %cst_439 {dimension_numbers = #tpu.dot_dimension_numbers<[1], [0], [0], [1], [0, 0, 1, 1], [], []>} : vector<8x32xbf16>, vector<32x64xbf16>, vector<8x64xf32> -> vector<8x64xf32>
    %c0_440 = arith.constant 0 : index
    %c0_441 = arith.constant 0 : index
    %862 = vector.load %arg31[%c0_440, %c0_441] : memref<1x64xf32, #tpu.memory_space<vmem>>, vector<1x64xf32>
    %863 = vector.broadcast %862 : vector<1x64xf32> to vector<8x64xf32>
    %864 = arith.addf %861, %863 : vector<8x64xf32>
    %865 = arith.truncf %852 : vector<8x64xf32> to vector<8x64xbf16>
    %866 = arith.truncf %858 : vector<8x64xf32> to vector<8x64xbf16>
    %cst_442 = arith.constant dense<0.000000e+00> : vector<8x8xf32>
    %867 = tpu.matmul %865, %866, %cst_442 {dimension_numbers = #tpu.dot_dimension_numbers<[1], [1], [0], [0], [0, 0, 1, 0], [], []>} : vector<8x64xbf16>, vector<8x64xbf16>, vector<8x8xf32> -> vector<8x8xf32>
    %cst_443 = arith.constant dense<0xFF800000> : vector<8xf32>
    %868 = vector.multi_reduction <maximumf>, %867, %cst_443 [1] : vector<8x8xf32> to vector<8xf32>
    %869 = vector.shape_cast %868 : vector<8xf32> to vector<8x1xf32>
    %870 = vector.broadcast %869 : vector<8x1xf32> to vector<8x8xf32>
    %871 = arith.subf %867, %870 : vector<8x8xf32>
    %872 = math.exp %871 : vector<8x8xf32>
    %cst_444 = arith.constant dense<0.000000e+00> : vector<8xf32>
    %873 = vector.multi_reduction <add>, %872, %cst_444 [1] : vector<8x8xf32> to vector<8xf32>
    %874 = vector.shape_cast %873 : vector<8xf32> to vector<8x1xf32>
    %875 = vector.broadcast %874 : vector<8x1xf32> to vector<8x8xf32>
    %876 = arith.divf %872, %875 : vector<8x8xf32>
    %877 = arith.truncf %876 : vector<8x8xf32> to vector<8x8xbf16>
    %878 = arith.truncf %864 : vector<8x64xf32> to vector<8x64xbf16>
    %cst_445 = arith.constant dense<0.000000e+00> : vector<8x64xf32>
    %879 = tpu.matmul %877, %878, %cst_445 {dimension_numbers = #tpu.dot_dimension_numbers<[1], [0], [0], [1], [0, 0, 1, 1], [], []>} : vector<8x8xbf16>, vector<8x64xbf16>, vector<8x64xf32> -> vector<8x64xf32>
    %c0_446 = arith.constant 0 : index
    %c0_447 = arith.constant 0 : index
    %880 = vector.load %arg41[%c0_446, %c0_447] : memref<64x32xbf16, #tpu.memory_space<vmem>>, vector<64x32xbf16>
    %881 = arith.truncf %879 : vector<8x64xf32> to vector<8x64xbf16>
    %cst_448 = arith.constant dense<0.000000e+00> : vector<8x32xf32>
    %882 = tpu.matmul %881, %880, %cst_448 {dimension_numbers = #tpu.dot_dimension_numbers<[1], [0], [0], [1], [0, 0, 1, 1], [], []>} : vector<8x64xbf16>, vector<64x32xbf16>, vector<8x32xf32> -> vector<8x32xf32>
    %883 = arith.addf %16, %882 : vector<8x32xf32>
    %c0_449 = arith.constant 0 : index
    %c0_450 = arith.constant 0 : index
    %884 = vector.load %arg29[%c0_449, %c0_450] : memref<1x32xf32, #tpu.memory_space<vmem>>, vector<1x32xf32>
    %885 = vector.broadcast %884 : vector<1x32xf32> to vector<8x32xf32>
    %886 = arith.addf %883, %885 : vector<8x32xf32>
    %c0_451 = arith.constant 0 : index
    %c0_452 = arith.constant 0 : index
    %887 = vector.load %arg35[%c0_451, %c0_452] : memref<1x32xf32, #tpu.memory_space<vmem>>, vector<1x32xf32>
    %c0_453 = arith.constant 0 : index
    %c0_454 = arith.constant 0 : index
    %888 = vector.load %arg34[%c0_453, %c0_454] : memref<1x32xf32, #tpu.memory_space<vmem>>, vector<1x32xf32>
    %cst_455 = arith.constant dense<0.000000e+00> : vector<8xf32>
    %889 = vector.multi_reduction <add>, %886, %cst_455 [1] : vector<8x32xf32> to vector<8xf32>
    %890 = vector.shape_cast %889 : vector<8xf32> to vector<8x1xf32>
    %cst_456 = arith.constant 3.200000e+01 : f32
    %891 = vector.broadcast %cst_456 : f32 to vector<8x1xf32>
    %892 = arith.divf %890, %891 : vector<8x1xf32>
    %893 = vector.broadcast %892 : vector<8x1xf32> to vector<8x32xf32>
    %894 = arith.subf %886, %893 : vector<8x32xf32>
    %895 = arith.mulf %894, %894 : vector<8x32xf32>
    %cst_457 = arith.constant dense<0.000000e+00> : vector<8xf32>
    %896 = vector.multi_reduction <add>, %895, %cst_457 [1] : vector<8x32xf32> to vector<8xf32>
    %897 = vector.shape_cast %896 : vector<8xf32> to vector<8x1xf32>
    %cst_458 = arith.constant 3.200000e+01 : f32
    %898 = vector.broadcast %cst_458 : f32 to vector<8x1xf32>
    %899 = arith.divf %897, %898 : vector<8x1xf32>
    %cst_459 = arith.constant 9.99999974E-6 : f32
    %900 = vector.broadcast %cst_459 : f32 to vector<8x1xf32>
    %901 = arith.addf %899, %900 : vector<8x1xf32>
    %902 = math.rsqrt %901 : vector<8x1xf32>
    %903 = vector.broadcast %902 : vector<8x1xf32> to vector<8x32xf32>
    %904 = arith.mulf %894, %903 : vector<8x32xf32>
    %905 = vector.broadcast %887 : vector<1x32xf32> to vector<8x32xf32>
    %906 = arith.mulf %904, %905 : vector<8x32xf32>
    %907 = vector.broadcast %888 : vector<1x32xf32> to vector<8x32xf32>
    %908 = arith.addf %906, %907 : vector<8x32xf32>
    %c0_460 = arith.constant 0 : index
    %c0_461 = arith.constant 0 : index
    %909 = vector.load %arg38[%c0_460, %c0_461] : memref<32x128xbf16, #tpu.memory_space<vmem>>, vector<32x128xbf16>
    %910 = arith.truncf %908 : vector<8x32xf32> to vector<8x32xbf16>
    %cst_462 = arith.constant dense<0.000000e+00> : vector<8x128xf32>
    %911 = tpu.matmul %910, %909, %cst_462 {dimension_numbers = #tpu.dot_dimension_numbers<[1], [0], [0], [1], [0, 0, 1, 1], [], []>} : vector<8x32xbf16>, vector<32x128xbf16>, vector<8x128xf32> -> vector<8x128xf32>
    %c0_463 = arith.constant 0 : index
    %c0_464 = arith.constant 0 : index
    %912 = vector.load %arg26[%c0_463, %c0_464] : memref<1x128xf32, #tpu.memory_space<vmem>>, vector<1x128xf32>
    %913 = vector.broadcast %912 : vector<1x128xf32> to vector<8x128xf32>
    %914 = arith.addf %911, %913 : vector<8x128xf32>
    %cst_465 = arith.constant 5.000000e-01 : f32
    %915 = vector.broadcast %cst_465 : f32 to vector<8x128xf32>
    %916 = arith.mulf %915, %914 : vector<8x128xf32>
    %cst_466 = arith.constant 4.471500e-02 : f32
    %917 = vector.broadcast %cst_466 : f32 to vector<8x128xf32>
    %918 = arith.mulf %917, %914 : vector<8x128xf32>
    %919 = arith.mulf %918, %914 : vector<8x128xf32>
    %920 = arith.mulf %919, %914 : vector<8x128xf32>
    %921 = arith.addf %914, %920 : vector<8x128xf32>
    %cst_467 = arith.constant 0.797884583 : f32
    %922 = vector.broadcast %cst_467 : f32 to vector<8x128xf32>
    %923 = arith.mulf %922, %921 : vector<8x128xf32>
    %924 = math.tanh %923 : vector<8x128xf32>
    %cst_468 = arith.constant 1.000000e+00 : f32
    %925 = vector.broadcast %cst_468 : f32 to vector<8x128xf32>
    %926 = arith.addf %925, %924 : vector<8x128xf32>
    %927 = arith.mulf %916, %926 : vector<8x128xf32>
    %c0_469 = arith.constant 0 : index
    %c0_470 = arith.constant 0 : index
    %928 = vector.load %arg39[%c0_469, %c0_470] : memref<128x32xbf16, #tpu.memory_space<vmem>>, vector<128x32xbf16>
    %929 = arith.truncf %927 : vector<8x128xf32> to vector<8x128xbf16>
    %cst_471 = arith.constant dense<0.000000e+00> : vector<8x32xf32>
    %930 = tpu.matmul %929, %928, %cst_471 {dimension_numbers = #tpu.dot_dimension_numbers<[1], [0], [0], [1], [0, 0, 1, 1], [], []>} : vector<8x128xbf16>, vector<128x32xbf16>, vector<8x32xf32> -> vector<8x32xf32>
    %931 = arith.addf %886, %930 : vector<8x32xf32>
    %c0_472 = arith.constant 0 : index
    %c0_473 = arith.constant 0 : index
    %932 = vector.load %arg27[%c0_472, %c0_473] : memref<1x32xf32, #tpu.memory_space<vmem>>, vector<1x32xf32>
    %933 = vector.broadcast %932 : vector<1x32xf32> to vector<8x32xf32>
    %934 = arith.addf %931, %933 : vector<8x32xf32>
    %c0_474 = arith.constant 0 : index
    %c0_475 = arith.constant 0 : index
    %935 = vector.load %arg24[%c0_474, %c0_475] : memref<32x64xbf16, #tpu.memory_space<vmem>>, vector<32x64xbf16>
    %936 = arith.truncf %934 : vector<8x32xf32> to vector<8x32xbf16>
    %cst_476 = arith.constant dense<0.000000e+00> : vector<8x64xf32>
    %937 = tpu.matmul %936, %935, %cst_476 {dimension_numbers = #tpu.dot_dimension_numbers<[1], [0], [0], [1], [0, 0, 1, 1], [], []>} : vector<8x32xbf16>, vector<32x64xbf16>, vector<8x64xf32> -> vector<8x64xf32>
    %c0_477 = arith.constant 0 : index
    %c0_478 = arith.constant 0 : index
    %938 = vector.load %arg22[%c0_477, %c0_478] : memref<1x64xf32, #tpu.memory_space<vmem>>, vector<1x64xf32>
    %939 = vector.broadcast %938 : vector<1x64xf32> to vector<8x64xf32>
    %940 = arith.addf %937, %939 : vector<8x64xf32>
    %cst_479 = arith.constant 5.000000e-01 : f32
    %941 = vector.broadcast %cst_479 : f32 to vector<8x64xf32>
    %942 = arith.mulf %941, %940 : vector<8x64xf32>
    %cst_480 = arith.constant 4.471500e-02 : f32
    %943 = vector.broadcast %cst_480 : f32 to vector<8x64xf32>
    %944 = arith.mulf %943, %940 : vector<8x64xf32>
    %945 = arith.mulf %944, %940 : vector<8x64xf32>
    %946 = arith.mulf %945, %940 : vector<8x64xf32>
    %947 = arith.addf %940, %946 : vector<8x64xf32>
    %cst_481 = arith.constant 0.797884583 : f32
    %948 = vector.broadcast %cst_481 : f32 to vector<8x64xf32>
    %949 = arith.mulf %948, %947 : vector<8x64xf32>
    %950 = math.tanh %949 : vector<8x64xf32>
    %cst_482 = arith.constant 1.000000e+00 : f32
    %951 = vector.broadcast %cst_482 : f32 to vector<8x64xf32>
    %952 = arith.addf %951, %950 : vector<8x64xf32>
    %953 = arith.mulf %942, %952 : vector<8x64xf32>
    %c0_483 = arith.constant 0 : index
    %c0_484 = arith.constant 0 : index
    %954 = vector.load %arg25[%c0_483, %c0_484] : memref<64x128xbf16, #tpu.memory_space<vmem>>, vector<64x128xbf16>
    %955 = arith.truncf %953 : vector<8x64xf32> to vector<8x64xbf16>
    %cst_485 = arith.constant dense<0.000000e+00> : vector<8x128xf32>
    %956 = tpu.matmul %955, %954, %cst_485 {dimension_numbers = #tpu.dot_dimension_numbers<[1], [0], [0], [1], [0, 0, 1, 1], [], []>} : vector<8x64xbf16>, vector<64x128xbf16>, vector<8x128xf32> -> vector<8x128xf32>
    %c0_486 = arith.constant 0 : index
    %c0_487 = arith.constant 0 : index
    %957 = vector.load %arg23[%c0_486, %c0_487] : memref<1x128xf32, #tpu.memory_space<vmem>>, vector<1x128xf32>
    %958 = vector.broadcast %957 : vector<1x128xf32> to vector<8x128xf32>
    %959 = arith.addf %956, %958 : vector<8x128xf32>
    %c0_488 = arith.constant 0 : index
    %c0_489 = arith.constant 0 : index
    %c0_490 = arith.constant 0 : index
    %960 = vector.load %arg58[%c0_488, %c0_489, %c0_490] : memref<1x8x128xf32, #tpu.memory_space<vmem>>, vector<1x8x128xf32>
    %961 = vector.shape_cast %960 : vector<1x8x128xf32> to vector<8x128xf32>
    %962 = vector.shape_cast %959 : vector<8x128xf32> to vector<1x8x128xf32>
    tpu.vector_store %arg58[%c0_488, %c0_489, %c0_490], %962 {strides = array<i32>} : memref<1x8x128xf32, #tpu.memory_space<vmem>>, vector<1x8x128xf32>,
    return
  }
  func.func @transform_0(%arg0: i32) -> (i32, i32, i32) {
    %c0_i32 = arith.constant 0 : i32
    %c0_i32_0 = arith.constant 0 : i32
    %c0_i32_1 = arith.constant 0 : i32
    return %arg0, %c0_i32, %c0_i32_0 : i32, i32, i32
  }
  func.func @transform_1(%arg0: i32) -> (i32, i32, i32) {
    %c0_i32 = arith.constant 0 : i32
    %c0_i32_0 = arith.constant 0 : i32
    %c0_i32_1 = arith.constant 0 : i32
    return %arg0, %c0_i32, %c0_i32_0 : i32, i32, i32
  }
  func.func @transform_2(%arg0: i32) -> (i32, i32, i32) {
    %c0_i32 = arith.constant 0 : i32
    %c0_i32_0 = arith.constant 0 : i32
    %c0_i32_1 = arith.constant 0 : i32
    %c0_i32_2 = arith.constant 0 : i32
    return %c0_i32, %c0_i32_0, %c0_i32_1 : i32, i32, i32
  }
  func.func @transform_3(%arg0: i32) -> (i32, i32, i32) {
    %c0_i32 = arith.constant 0 : i32
    %c0_i32_0 = arith.constant 0 : i32
    %c0_i32_1 = arith.constant 0 : i32
    %c0_i32_2 = arith.constant 0 : i32
    return %c0_i32, %c0_i32_0, %c0_i32_1 : i32, i32, i32
  }
  func.func @transform_4(%arg0: i32) -> (i32, i32, i32) {
    %c0_i32 = arith.constant 0 : i32
    %c0_i32_0 = arith.constant 0 : i32
    %c0_i32_1 = arith.constant 0 : i32
    %c0_i32_2 = arith.constant 0 : i32
    return %c0_i32, %c0_i32_0, %c0_i32_1 : i32, i32, i32
  }
  func.func @transform_5(%arg0: i32) -> (i32, i32, i32) {
    %c0_i32 = arith.constant 0 : i32
    %c0_i32_0 = arith.constant 0 : i32
    %c0_i32_1 = arith.constant 0 : i32
    %c0_i32_2 = arith.constant 0 : i32
    return %c0_i32, %c0_i32_0, %c0_i32_1 : i32, i32, i32
  }
  func.func @transform_6(%arg0: i32) -> (i32, i32, i32) {
    %c0_i32 = arith.constant 0 : i32
    %c0_i32_0 = arith.constant 0 : i32
    %c0_i32_1 = arith.constant 0 : i32
    %c0_i32_2 = arith.constant 0 : i32
    return %c0_i32, %c0_i32_0, %c0_i32_1 : i32, i32, i32
  }
  func.func @transform_7(%arg0: i32) -> (i32, i32, i32) {
    %c0_i32 = arith.constant 0 : i32
    %c0_i32_0 = arith.constant 0 : i32
    %c0_i32_1 = arith.constant 0 : i32
    %c0_i32_2 = arith.constant 0 : i32
    return %c0_i32, %c0_i32_0, %c0_i32_1 : i32, i32, i32
  }
  func.func @transform_8(%arg0: i32) -> (i32, i32, i32) {
    %c0_i32 = arith.constant 0 : i32
    %c0_i32_0 = arith.constant 0 : i32
    %c0_i32_1 = arith.constant 0 : i32
    %c0_i32_2 = arith.constant 0 : i32
    return %c0_i32, %c0_i32_0, %c0_i32_1 : i32, i32, i32
  }
  func.func @transform_9(%arg0: i32) -> (i32, i32, i32) {
    %c0_i32 = arith.constant 0 : i32
    %c0_i32_0 = arith.constant 0 : i32
    %c0_i32_1 = arith.constant 0 : i32
    %c0_i32_2 = arith.constant 0 : i32
    return %c0_i32, %c0_i32_0, %c0_i32_1 : i32, i32, i32
  }
  func.func @transform_10(%arg0: i32) -> (i32, i32, i32) {
    %c0_i32 = arith.constant 0 : i32
    %c0_i32_0 = arith.constant 0 : i32
    %c0_i32_1 = arith.constant 0 : i32
    %c0_i32_2 = arith.constant 0 : i32
    return %c0_i32, %c0_i32_0, %c0_i32_1 : i32, i32, i32
  }
  func.func @transform_11(%arg0: i32) -> (i32, i32, i32) {
    %c0_i32 = arith.constant 0 : i32
    %c0_i32_0 = arith.constant 0 : i32
    %c0_i32_1 = arith.constant 0 : i32
    %c0_i32_2 = arith.constant 0 : i32
    return %c0_i32, %c0_i32_0, %c0_i32_1 : i32, i32, i32
  }
  func.func @transform_12(%arg0: i32) -> (i32, i32, i32) {
    %c0_i32 = arith.constant 0 : i32
    %c0_i32_0 = arith.constant 0 : i32
    %c0_i32_1 = arith.constant 0 : i32
    %c0_i32_2 = arith.constant 0 : i32
    return %c0_i32, %c0_i32_0, %c0_i32_1 : i32, i32, i32
  }
  func.func @transform_13(%arg0: i32) -> (i32, i32, i32) {
    %c0_i32 = arith.constant 0 : i32
    %c0_i32_0 = arith.constant 0 : i32
    %c0_i32_1 = arith.constant 0 : i32
    %c0_i32_2 = arith.constant 0 : i32
    return %c0_i32, %c0_i32_0, %c0_i32_1 : i32, i32, i32
  }
  func.func @transform_14(%arg0: i32) -> (i32, i32, i32) {
    %c0_i32 = arith.constant 0 : i32
    %c0_i32_0 = arith.constant 0 : i32
    %c0_i32_1 = arith.constant 0 : i32
    %c0_i32_2 = arith.constant 0 : i32
    return %c0_i32, %c0_i32_0, %c0_i32_1 : i32, i32, i32
  }
  func.func @transform_15(%arg0: i32) -> (i32, i32, i32) {
    %c0_i32 = arith.constant 0 : i32
    %c0_i32_0 = arith.constant 0 : i32
    %c0_i32_1 = arith.constant 0 : i32
    %c0_i32_2 = arith.constant 0 : i32
    return %c0_i32, %c0_i32_0, %c0_i32_1 : i32, i32, i32
  }
  func.func @transform_16(%arg0: i32) -> (i32, i32, i32) {
    %c0_i32 = arith.constant 0 : i32
    %c0_i32_0 = arith.constant 0 : i32
    %c0_i32_1 = arith.constant 0 : i32
    %c0_i32_2 = arith.constant 0 : i32
    return %c0_i32, %c0_i32_0, %c0_i32_1 : i32, i32, i32
  }
  func.func @transform_17(%arg0: i32) -> (i32, i32, i32) {
    %c0_i32 = arith.constant 0 : i32
    %c0_i32_0 = arith.constant 0 : i32
    %c0_i32_1 = arith.constant 0 : i32
    %c0_i32_2 = arith.constant 0 : i32
    return %c0_i32, %c0_i32_0, %c0_i32_1 : i32, i32, i32
  }
  func.func @transform_18(%arg0: i32) -> (i32, i32, i32) {
    %c0_i32 = arith.constant 0 : i32
    %c0_i32_0 = arith.constant 0 : i32
    %c0_i32_1 = arith.constant 0 : i32
    %c0_i32_2 = arith.constant 0 : i32
    return %c0_i32, %c0_i32_0, %c0_i32_1 : i32, i32, i32
  }
  func.func @transform_19(%arg0: i32) -> (i32, i32, i32) {
    %c0_i32 = arith.constant 0 : i32
    %c0_i32_0 = arith.constant 0 : i32
    %c0_i32_1 = arith.constant 0 : i32
    %c0_i32_2 = arith.constant 0 : i32
    return %c0_i32, %c0_i32_0, %c0_i32_1 : i32, i32, i32
  }
  func.func @transform_20(%arg0: i32) -> (i32, i32) {
    %c0_i32 = arith.constant 0 : i32
    %c0_i32_0 = arith.constant 0 : i32
    %c0_i32_1 = arith.constant 0 : i32
    return %c0_i32, %c0_i32_0 : i32, i32
  }
  func.func @transform_21(%arg0: i32) -> (i32, i32) {
    %c0_i32 = arith.constant 0 : i32
    %c0_i32_0 = arith.constant 0 : i32
    %c0_i32_1 = arith.constant 0 : i32
    return %c0_i32, %c0_i32_0 : i32, i32
  }
  func.func @transform_22(%arg0: i32) -> (i32, i32) {
    %c0_i32 = arith.constant 0 : i32
    %c0_i32_0 = arith.constant 0 : i32
    %c0_i32_1 = arith.constant 0 : i32
    return %c0_i32, %c0_i32_0 : i32, i32
  }
  func.func @transform_23(%arg0: i32) -> (i32, i32) {
    %c0_i32 = arith.constant 0 : i32
    %c0_i32_0 = arith.constant 0 : i32
    %c0_i32_1 = arith.constant 0 : i32
    return %c0_i32, %c0_i32_0 : i32, i32
  }
  func.func @transform_24(%arg0: i32) -> (i32, i32) {
    %c0_i32 = arith.constant 0 : i32
    %c0_i32_0 = arith.constant 0 : i32
    %c0_i32_1 = arith.constant 0 : i32
    return %c0_i32, %c0_i32_0 : i32, i32
  }
  func.func @transform_25(%arg0: i32) -> (i32, i32) {
    %c0_i32 = arith.constant 0 : i32
    %c0_i32_0 = arith.constant 0 : i32
    %c0_i32_1 = arith.constant 0 : i32
    return %c0_i32, %c0_i32_0 : i32, i32
  }
  func.func @transform_26(%arg0: i32) -> (i32, i32) {
    %c0_i32 = arith.constant 0 : i32
    %c0_i32_0 = arith.constant 0 : i32
    %c0_i32_1 = arith.constant 0 : i32
    return %c0_i32, %c0_i32_0 : i32, i32
  }
  func.func @transform_27(%arg0: i32) -> (i32, i32) {
    %c0_i32 = arith.constant 0 : i32
    %c0_i32_0 = arith.constant 0 : i32
    %c0_i32_1 = arith.constant 0 : i32
    return %c0_i32, %c0_i32_0 : i32, i32
  }
  func.func @transform_28(%arg0: i32) -> (i32, i32) {
    %c0_i32 = arith.constant 0 : i32
    %c0_i32_0 = arith.constant 0 : i32
    %c0_i32_1 = arith.constant 0 : i32
    return %c0_i32, %c0_i32_0 : i32, i32
  }
  func.func @transform_29(%arg0: i32) -> (i32, i32) {
    %c0_i32 = arith.constant 0 : i32
    %c0_i32_0 = arith.constant 0 : i32
    %c0_i32_1 = arith.constant 0 : i32
    return %c0_i32, %c0_i32_0 : i32, i32
  }
  func.func @transform_30(%arg0: i32) -> (i32, i32) {
    %c0_i32 = arith.constant 0 : i32
    %c0_i32_0 = arith.constant 0 : i32
    %c0_i32_1 = arith.constant 0 : i32
    return %c0_i32, %c0_i32_0 : i32, i32
  }
  func.func @transform_31(%arg0: i32) -> (i32, i32) {
    %c0_i32 = arith.constant 0 : i32
    %c0_i32_0 = arith.constant 0 : i32
    %c0_i32_1 = arith.constant 0 : i32
    return %c0_i32, %c0_i32_0 : i32, i32
  }
  func.func @transform_32(%arg0: i32) -> (i32, i32) {
    %c0_i32 = arith.constant 0 : i32
    %c0_i32_0 = arith.constant 0 : i32
    %c0_i32_1 = arith.constant 0 : i32
    return %c0_i32, %c0_i32_0 : i32, i32
  }
  func.func @transform_33(%arg0: i32) -> (i32, i32) {
    %c0_i32 = arith.constant 0 : i32
    %c0_i32_0 = arith.constant 0 : i32
    %c0_i32_1 = arith.constant 0 : i32
    return %c0_i32, %c0_i32_0 : i32, i32
  }
  func.func @transform_34(%arg0: i32) -> (i32, i32) {
    %c0_i32 = arith.constant 0 : i32
    %c0_i32_0 = arith.constant 0 : i32
    %c0_i32_1 = arith.constant 0 : i32
    return %c0_i32, %c0_i32_0 : i32, i32
  }
  func.func @transform_35(%arg0: i32) -> (i32, i32) {
    %c0_i32 = arith.constant 0 : i32
    %c0_i32_0 = arith.constant 0 : i32
    %c0_i32_1 = arith.constant 0 : i32
    return %c0_i32, %c0_i32_0 : i32, i32
  }
  func.func @transform_36(%arg0: i32) -> (i32, i32) {
    %c0_i32 = arith.constant 0 : i32
    %c0_i32_0 = arith.constant 0 : i32
    %c0_i32_1 = arith.constant 0 : i32
    return %c0_i32, %c0_i32_0 : i32, i32
  }
  func.func @transform_37(%arg0: i32) -> (i32, i32) {
    %c0_i32 = arith.constant 0 : i32
    %c0_i32_0 = arith.constant 0 : i32
    %c0_i32_1 = arith.constant 0 : i32
    return %c0_i32, %c0_i32_0 : i32, i32
  }
  func.func @transform_38(%arg0: i32) -> (i32, i32) {
    %c0_i32 = arith.constant 0 : i32
    %c0_i32_0 = arith.constant 0 : i32
    %c0_i32_1 = arith.constant 0 : i32
    return %c0_i32, %c0_i32_0 : i32, i32
  }
  func.func @transform_39(%arg0: i32) -> (i32, i32) {
    %c0_i32 = arith.constant 0 : i32
    %c0_i32_0 = arith.constant 0 : i32
    %c0_i32_1 = arith.constant 0 : i32
    return %c0_i32, %c0_i32_0 : i32, i32
  }
  func.func @transform_40(%arg0: i32) -> (i32, i32) {
    %c0_i32 = arith.constant 0 : i32
    %c0_i32_0 = arith.constant 0 : i32
    %c0_i32_1 = arith.constant 0 : i32
    return %c0_i32, %c0_i32_0 : i32, i32
  }
  func.func @transform_41(%arg0: i32) -> (i32, i32) {
    %c0_i32 = arith.constant 0 : i32
    %c0_i32_0 = arith.constant 0 : i32
    %c0_i32_1 = arith.constant 0 : i32
    return %c0_i32, %c0_i32_0 : i32, i32
  }
  func.func @transform_42(%arg0: i32) -> (i32, i32) {
    %c0_i32 = arith.constant 0 : i32
    %c0_i32_0 = arith.constant 0 : i32
    %c0_i32_1 = arith.constant 0 : i32
    return %c0_i32, %c0_i32_0 : i32, i32
  }
  func.func @transform_43(%arg0: i32) -> (i32, i32) {
    %c0_i32 = arith.constant 0 : i32
    %c0_i32_0 = arith.constant 0 : i32
    %c0_i32_1 = arith.constant 0 : i32
    return %c0_i32, %c0_i32_0 : i32, i32
  }
  func.func @transform_44(%arg0: i32) -> (i32, i32) {
    %c0_i32 = arith.constant 0 : i32
    %c0_i32_0 = arith.constant 0 : i32
    %c0_i32_1 = arith.constant 0 : i32
    return %c0_i32, %c0_i32_0 : i32, i32
  }
  func.func @transform_45(%arg0: i32) -> (i32, i32, i32) {
    %c0_i32 = arith.constant 0 : i32
    %c0_i32_0 = arith.constant 0 : i32
    %c0_i32_1 = arith.constant 0 : i32
    %c0_i32_2 = arith.constant 0 : i32
    return %c0_i32, %c0_i32_0, %c0_i32_1 : i32, i32, i32
  }
  func.func @transform_46(%arg0: i32) -> (i32, i32, i32) {
    %c0_i32 = arith.constant 0 : i32
    %c0_i32_0 = arith.constant 0 : i32
    %c0_i32_1 = arith.constant 0 : i32
    %c0_i32_2 = arith.constant 0 : i32
    return %c0_i32, %c0_i32_0, %c0_i32_1 : i32, i32, i32
  }
  func.func @transform_47(%arg0: i32) -> (i32, i32, i32) {
    %c0_i32 = arith.constant 0 : i32
    %c0_i32_0 = arith.constant 0 : i32
    %c0_i32_1 = arith.constant 0 : i32
    %c0_i32_2 = arith.constant 0 : i32
    return %c0_i32, %c0_i32_0, %c0_i32_1 : i32, i32, i32
  }
  func.func @transform_48(%arg0: i32) -> (i32, i32, i32) {
    %c0_i32 = arith.constant 0 : i32
    %c0_i32_0 = arith.constant 0 : i32
    %c0_i32_1 = arith.constant 0 : i32
    %c0_i32_2 = arith.constant 0 : i32
    return %c0_i32, %c0_i32_0, %c0_i32_1 : i32, i32, i32
  }
  func.func @transform_49(%arg0: i32) -> (i32, i32, i32) {
    %c0_i32 = arith.constant 0 : i32
    %c0_i32_0 = arith.constant 0 : i32
    %c0_i32_1 = arith.constant 0 : i32
    %c0_i32_2 = arith.constant 0 : i32
    return %c0_i32, %c0_i32_0, %c0_i32_1 : i32, i32, i32
  }
  func.func @transform_50(%arg0: i32) -> (i32, i32, i32) {
    %c0_i32 = arith.constant 0 : i32
    %c0_i32_0 = arith.constant 0 : i32
    %c0_i32_1 = arith.constant 0 : i32
    %c0_i32_2 = arith.constant 0 : i32
    return %c0_i32, %c0_i32_0, %c0_i32_1 : i32, i32, i32
  }
  func.func @transform_51(%arg0: i32) -> (i32, i32, i32) {
    %c0_i32 = arith.constant 0 : i32
    %c0_i32_0 = arith.constant 0 : i32
    %c0_i32_1 = arith.constant 0 : i32
    %c0_i32_2 = arith.constant 0 : i32
    return %c0_i32, %c0_i32_0, %c0_i32_1 : i32, i32, i32
  }
  func.func @transform_52(%arg0: i32) -> (i32, i32, i32) {
    %c0_i32 = arith.constant 0 : i32
    %c0_i32_0 = arith.constant 0 : i32
    %c0_i32_1 = arith.constant 0 : i32
    %c0_i32_2 = arith.constant 0 : i32
    return %c0_i32, %c0_i32_0, %c0_i32_1 : i32, i32, i32
  }
  func.func @transform_53(%arg0: i32) -> (i32, i32, i32) {
    %c0_i32 = arith.constant 0 : i32
    %c0_i32_0 = arith.constant 0 : i32
    %c0_i32_1 = arith.constant 0 : i32
    %c0_i32_2 = arith.constant 0 : i32
    return %c0_i32, %c0_i32_0, %c0_i32_1 : i32, i32, i32
  }
  func.func @transform_54(%arg0: i32) -> (i32, i32, i32) {
    %c0_i32 = arith.constant 0 : i32
    %c0_i32_0 = arith.constant 0 : i32
    %c0_i32_1 = arith.constant 0 : i32
    %c0_i32_2 = arith.constant 0 : i32
    return %c0_i32, %c0_i32_0, %c0_i32_1 : i32, i32, i32
  }
  func.func @transform_55(%arg0: i32) -> (i32, i32, i32) {
    %c0_i32 = arith.constant 0 : i32
    %c0_i32_0 = arith.constant 0 : i32
    %c0_i32_1 = arith.constant 0 : i32
    %c0_i32_2 = arith.constant 0 : i32
    return %c0_i32, %c0_i32_0, %c0_i32_1 : i32, i32, i32
  }
  func.func @transform_56(%arg0: i32) -> (i32, i32, i32) {
    %c0_i32 = arith.constant 0 : i32
    %c0_i32_0 = arith.constant 0 : i32
    %c0_i32_1 = arith.constant 0 : i32
    %c0_i32_2 = arith.constant 0 : i32
    return %c0_i32, %c0_i32_0, %c0_i32_1 : i32, i32, i32
  }
  func.func @transform_57(%arg0: i32) -> (i32, i32, i32) {
    %c0_i32 = arith.constant 0 : i32
    %c0_i32_0 = arith.constant 0 : i32
    %c0_i32_1 = arith.constant 0 : i32
    return %arg0, %c0_i32, %c0_i32_0 : i32, i32, i32
  }
}

</mosaic_0001>

<llo_original>
// kernel: decoder_forward.1
$region0: #{decoder_forward.1}
  #allocation0 [shape = 'u32[]', space=smem, size = 0x4, offset = 0x4, fixed_abs, tag = 'smem constant byte address 0x4 - core index']
  #allocation1 [shape = 'u32[72,128]{1,0:T(1,128)}', space=vmem, size = 0x9000, scoped, tag = 'internal scratch']
  %s0 = inlined_call_operand.smem [shape: u32[58], index: -1, kind: input, shape index: {}]
  %s1 = sld [smem:[%s0]]
  %s2 = scalar_lea.smem %s0, 1
  %s3 = sld [smem:[%s2]]
  %s4 = scalar_lea.smem %s0, 2
  %s5 = sld [smem:[%s4]]
  %s6 = scalar_lea.smem %s0, 3
  %s7 = sld [smem:[%s6]]
  %s8 = scalar_lea.smem %s0, 4
  %s9 = sld [smem:[%s8]]
  %s10 = scalar_lea.smem %s0, 5
  %s11 = sld [smem:[%s10]]
  %s12 = scalar_lea.smem %s0, 6
  %s13 = sld [smem:[%s12]]
  %s14 = scalar_lea.smem %s0, 7
  %s15 = sld [smem:[%s14]]
  %s16 = scalar_lea.smem %s0, 8
  %s17 = sld [smem:[%s16]]
  %s18 = scalar_lea.smem %s0, 9
  %s19 = sld [smem:[%s18]]
  %s20 = scalar_lea.smem %s0, 10
  %s21 = sld [smem:[%s20]]
  %s22 = scalar_lea.smem %s0, 11
  %s23 = sld [smem:[%s22]]
  %s24 = scalar_lea.smem %s0, 12
  %s25 = sld [smem:[%s24]]
  %s26 = scalar_lea.smem %s0, 13
  %s27 = sld [smem:[%s26]]
  %s28 = scalar_lea.smem %s0, 14
  %s29 = sld [smem:[%s28]]
  %s30 = scalar_lea.smem %s0, 15
  %s31 = sld [smem:[%s30]]
  %s32 = scalar_lea.smem %s0, 16
  %s33 = sld [smem:[%s32]]
  %s34 = scalar_lea.smem %s0, 17
  %s35 = sld [smem:[%s34]]
  %s36 = scalar_lea.smem %s0, 18
  %s37 = sld [smem:[%s36]]
  %s38 = scalar_lea.smem %s0, 19
  %s39 = sld [smem:[%s38]]
  %s40 = scalar_lea.smem %s0, 20
  %s41 = sld [smem:[%s40]]
  %s42 = scalar_lea.smem %s0, 21
  %s43 = sld [smem:[%s42]]
  %s44 = scalar_lea.smem %s0, 22
  %s45 = sld [smem:[%s44]]
  %s46 = scalar_lea.smem %s0, 23
  %s47 = sld [smem:[%s46]]
  %s48 = scalar_lea.smem %s0, 24
  %s49 = sld [smem:[%s48]]
  %s50 = scalar_lea.smem %s0, 25
  %s51 = sld [smem:[%s50]]
  %s52 = scalar_lea.smem %s0, 26
  %s53 = sld [smem:[%s52]]
  %s54 = scalar_lea.smem %s0, 27
  %s55 = sld [smem:[%s54]]
  %s56 = scalar_lea.smem %s0, 28
  %s57 = sld [smem:[%s56]]
  %s58 = scalar_lea.smem %s0, 29
  %s59 = sld [smem:[%s58]]
  %s60 = scalar_lea.smem %s0, 30
  %s61 = sld [smem:[%s60]]
  %s62 = scalar_lea.smem %s0, 31
  %s63 = sld [smem:[%s62]]
  %s64 = scalar_lea.smem %s0, 32
  %s65 = sld [smem:[%s64]]
  %s66 = scalar_lea.smem %s0, 33
  %s67 = sld [smem:[%s66]]
  %s68 = scalar_lea.smem %s0, 34
  %s69 = sld [smem:[%s68]]
  %s70 = scalar_lea.smem %s0, 35
  %s71 = sld [smem:[%s70]]
  %s72 = scalar_lea.smem %s0, 36
  %s73 = sld [smem:[%s72]]
  %s74 = scalar_lea.smem %s0, 37
  %s75 = sld [smem:[%s74]]
  %s76 = scalar_lea.smem %s0, 38
  %s77 = sld [smem:[%s76]]
  %s78 = scalar_lea.smem %s0, 39
  %s79 = sld [smem:[%s78]]
  %s80 = scalar_lea.smem %s0, 40
  %s81 = sld [smem:[%s80]]
  %s82 = scalar_lea.smem %s0, 41
  %s83 = sld [smem:[%s82]]
  %s84 = scalar_lea.smem %s0, 42
  %s85 = sld [smem:[%s84]]
  %s86 = scalar_lea.smem %s0, 43
  %s87 = sld [smem:[%s86]]
  %s88 = scalar_lea.smem %s0, 44
  %s89 = sld [smem:[%s88]]
  %s90 = scalar_lea.smem %s0, 45
  %s91 = sld [smem:[%s90]]
  %s92 = scalar_lea.smem %s0, 46
  %s93 = sld [smem:[%s92]]
  %s94 = scalar_lea.smem %s0, 47
  %s95 = sld [smem:[%s94]]
  %s96 = scalar_lea.smem %s0, 48
  %s97 = sld [smem:[%s96]]
  %s98 = scalar_lea.smem %s0, 49
  %s99 = sld [smem:[%s98]]
  %s100 = scalar_lea.smem %s0, 50
  %s101 = sld [smem:[%s100]]
  %s102 = scalar_lea.smem %s0, 51
  %s103 = sld [smem:[%s102]]
  %s104 = scalar_lea.smem %s0, 52
  %s105 = sld [smem:[%s104]]
  %s106 = scalar_lea.smem %s0, 53
  %s107 = sld [smem:[%s106]]
  %s108 = scalar_lea.smem %s0, 54
  %s109 = sld [smem:[%s108]]
  %s110 = scalar_lea.smem %s0, 55
  %s111 = sld [smem:[%s110]]
  %s112 = scalar_lea.smem %s0, 56
  %s113 = sld [smem:[%s112]]
  %s114 = scalar_lea.smem %s0, 57
  %s115 = sld [smem:[%s114]]
  %s116 = sld [smem:[#allocation0]]
  $region313: #{decoder_forward.1} parent=0
    _
  %s118 = ssub.s32 1, %s116
  %s119 = scalar_select 0, %s118, %s116
  $region1: #{decoder_forward.1} parent=0
    #allocation2 [shape = 'u8[512]{0}', space=vmem, size = 0x400, scoped, tag = 'input window, operand 25, single buffered']
    #allocation3 [shape = 's32[2]{0}', space=sflag, size = 0x8, scoped, tag = 'scoped memory for decoder_forward.1']
    #allocation4 [shape = 'u8[512]{0}', space=vmem, size = 0x400, scoped, tag = 'input window, operand 26, single buffered']
    #allocation5 [shape = 's32[1]{0}', space=sflag, size = 0x4, scoped, tag = 'scoped memory for decoder_forward.1']
    #allocation6 [shape = 'u8[512]{0}', space=vmem, size = 0x400, scoped, tag = 'input window, operand 27, single buffered']
    #allocation7 [shape = 'u8[512]{0}', space=vmem, size = 0x400, scoped, tag = 'input window, operand 28, single buffered']
    #allocation8 [shape = 's32[1]{0}', space=sflag, size = 0x4, scoped, tag = 'scoped memory for decoder_forward.1']
    #allocation9 [shape = 'u8[512]{0}', space=vmem, size = 0x400, scoped, tag = 'input window, operand 29, single buffered']
    #allocation10 [shape = 'u8[512]{0}', space=vmem, size = 0x400, scoped, tag = 'input window, operand 30, single buffered']
    #allocation11 [shape = 's32[1]{0}', space=sflag, size = 0x4, scoped, tag = 'scoped memory for decoder_forward.1']
    #allocation12 [shape = 'u8[512]{0}', space=vmem, size = 0x400, scoped, tag = 'input window, operand 31, single buffered']
    #allocation13 [shape = 'u8[512]{0}', space=vmem, size = 0x400, scoped, tag = 'input window, operand 32, single buffered']
    #allocation14 [shape = 's32[1]{0}', space=sflag, size = 0x4, scoped, tag = 'scoped memory for decoder_forward.1']
    #allocation15 [shape = 'u8[512]{0}', space=vmem, size = 0x400, scoped, tag = 'input window, operand 33, single buffered']
    #allocation16 [shape = 'u8[512]{0}', space=vmem, size = 0x400, scoped, tag = 'input window, operand 34, single buffered']
    #allocation17 [shape = 's32[1]{0}', space=sflag, size = 0x4, scoped, tag = 'scoped memory for decoder_forward.1']
    #allocation18 [shape = 'u8[512]{0}', space=vmem, size = 0x400, scoped, tag = 'input window, operand 35, single buffered']
    #allocation19 [shape = 'u8[512]{0}', space=vmem, size = 0x400, scoped, tag = 'input window, operand 36, single buffered']
    #allocation20 [shape = 's32[1]{0}', space=sflag, size = 0x4, scoped, tag = 'scoped memory for decoder_forward.1']
    #allocation21 [shape = 'u8[512]{0}', space=vmem, size = 0x400, scoped, tag = 'input window, operand 43, single buffered']
    %120 = vsyncpa [#allocation3], 0
    %121 = vsyncpa [#allocation5], 0
    %122 = vsyncpa [#allocation8], 0
    %123 = vsyncpa [#allocation11], 0
    %124 = vsyncpa [#allocation14], 0
    %125 = vsyncpa [#allocation17], 0
    %126 = vsyncpa [#allocation20], 0
    loop: start=0, step=1, limit=4
    $region2: #{decoder_forward.1} parent=1 // loop_pre_header
      _
    $region3: #{decoder_forward.1} parent=1 // loop_header
      %s128 = sphi 0, %s132
      %p129 = scmp.ge.s32.totalorder %s128, 4
      %s138 = sphi 0, %s140
      %s141 = sphi 0, %s138
      %s142 = sphi 0, %s141
      %s158 = sphi 0, %s142
      %s164 = sphi 0, %s166
      %s167 = sphi 0, %s164
      %s168 = sphi 0, %s167
      %s184 = sphi 0, %s168
      %s188 = sphi 0, %s188
      %s190 = sphi 0, %s188
      %s191 = sphi 0, %s190
      %s205 = sphi 0, %s191
      %s209 = sphi 0, %s209
      %s211 = sphi 0, %s209
      %s212 = sphi 0, %s211
      %s226 = sphi 0, %s212
      %s230 = sphi 0, %s230
      %s232 = sphi 0, %s230
      %s233 = sphi 0, %s232
      %s247 = sphi 0, %s233
      %s251 = sphi 0, %s251
      %s253 = sphi 0, %s251
      %s254 = sphi 0, %s253
      %s268 = sphi 0, %s254
      %s272 = sphi 0, %s272
      %s274 = sphi 0, %s272
      %s275 = sphi 0, %s274
      %s289 = sphi 0, %s275
      %s293 = sphi 0, %s293
      %s295 = sphi 0, %s293
      %s296 = sphi 0, %s295
      %s310 = sphi 0, %s296
      %s314 = sphi 0, %s314
      %s316 = sphi 0, %s314
      %s317 = sphi 0, %s316
      %s331 = sphi 0, %s317
      %s335 = sphi 0, %s335
      %s337 = sphi 0, %s335
      %s338 = sphi 0, %s337
      %s352 = sphi 0, %s338
      %s356 = sphi 0, %s356
      %s358 = sphi 0, %s356
      %s359 = sphi 0, %s358
      %s373 = sphi 0, %s359
      %s377 = sphi 0, %s377
      %s379 = sphi 0, %s377
      %s380 = sphi 0, %s379
      %s394 = sphi 0, %s380
      %s398 = sphi 0, %s398
      %s400 = sphi 0, %s398
      %s401 = sphi 0, %s400
      %s415 = sphi 0, %s401
      %s419 = sphi 0, %s419
      %s421 = sphi 0, %s419
      %s422 = sphi 0, %s421
      %s436 = sphi 0, %s422
      %s440 = sphi 0, %s440
      %s442 = sphi 0, %s440
      %s443 = sphi 0, %s442
      %s457 = sphi 0, %s443
      %s461 = sphi 0, %s461
      %s463 = sphi 0, %s461
      %s464 = sphi 0, %s463
      %s478 = sphi 0, %s464
      %s482 = sphi 0, %s482
      %s484 = sphi 0, %s482
      %s485 = sphi 0, %s484
      %s499 = sphi 0, %s485
      %s503 = sphi 0, %s503
      %s505 = sphi 0, %s503
      %s506 = sphi 0, %s505
      %s520 = sphi 0, %s506
      %s524 = sphi 0, %s524
      %s526 = sphi 0, %s524
      %s527 = sphi 0, %s526
      %s541 = sphi 0, %s527
      %s545 = sphi 0, %s545
      %s547 = sphi 0, %s545
      %s548 = sphi 0, %s547
      %s562 = sphi 0, %s548
      %s566 = sphi 0, %s566
      %s568 = sphi 0, %s566
      %s569 = sphi 0, %s568
      %s583 = sphi 0, %s569
      %s587 = sphi 0, %s587
      %s589 = sphi 0, %s587
      %s590 = sphi 0, %s589
      %s604 = sphi 0, %s590
      %s608 = sphi 0, %s608
      %s610 = sphi 0, %s608
      %s611 = sphi 0, %s610
      %s625 = sphi 0, %s611
      %s629 = sphi 0, %s629
      %s631 = sphi 0, %s629
      %s632 = sphi 0, %s631
      %s646 = sphi 0, %s632
      %s650 = sphi 0, %s650
      %s652 = sphi 0, %s650
      %s653 = sphi 0, %s652
      %s667 = sphi 0, %s653
      %s671 = sphi 0, %s671
      %s673 = sphi 0, %s671
      %s674 = sphi 0, %s673
      %s688 = sphi 0, %s674
      %s692 = sphi 0, %s692
      %s694 = sphi 0, %s692
      %s695 = sphi 0, %s694
      %s709 = sphi 0, %s695
      %s713 = sphi 0, %s713
      %s715 = sphi 0, %s713
      %s716 = sphi 0, %s715
      %s730 = sphi 0, %s716
      %s734 = sphi 0, %s734
      %s736 = sphi 0, %s734
      %s737 = sphi 0, %s736
      %s751 = sphi 0, %s737
      %s755 = sphi 0, %s755
      %s757 = sphi 0, %s755
      %s758 = sphi 0, %s757
      %s772 = sphi 0, %s758
      %s776 = sphi 0, %s776
      %s778 = sphi 0, %s776
      %s779 = sphi 0, %s778
      %s793 = sphi 0, %s779
      %s797 = sphi 0, %s797
      %s799 = sphi 0, %s797
      %s800 = sphi 0, %s799
      %s814 = sphi 0, %s800
      %s818 = sphi 0, %s818
      %s820 = sphi 0, %s818
      %s821 = sphi 0, %s820
      %s835 = sphi 0, %s821
      %s839 = sphi 0, %s839
      %s841 = sphi 0, %s839
      %s842 = sphi 0, %s841
      %s856 = sphi 0, %s842
      %s860 = sphi 0, %s860
      %s862 = sphi 0, %s860
      %s863 = sphi 0, %s862
      %s877 = sphi 0, %s863
      %s881 = sphi 0, %s881
      %s883 = sphi 0, %s881
      %s884 = sphi 0, %s883
      %s898 = sphi 0, %s884
      %s902 = sphi 0, %s902
      %s904 = sphi 0, %s902
      %s905 = sphi 0, %s904
      %s919 = sphi 0, %s905
      %s923 = sphi 0, %s923
      %s925 = sphi 0, %s923
      %s926 = sphi 0, %s925
      %s940 = sphi 0, %s926
      %s944 = sphi 0, %s944
      %s946 = sphi 0, %s944
      %s947 = sphi 0, %s946
      %s961 = sphi 0, %s947
      %s965 = sphi 0, %s965
      %s967 = sphi 0, %s965
      %s968 = sphi 0, %s967
      %s982 = sphi 0, %s968
      %s986 = sphi 0, %s986
      %s988 = sphi 0, %s986
      %s989 = sphi 0, %s988
      %s1003 = sphi 0, %s989
      %s1007 = sphi 0, %s1007
      %s1009 = sphi 0, %s1007
      %s1010 = sphi 0, %s1009
      %s1024 = sphi 0, %s1010
      %s1028 = sphi 0, %s1028
      %s1030 = sphi 0, %s1028
      %s1031 = sphi 0, %s1030
      %s1045 = sphi 0, %s1031
      %s1049 = sphi 0, %s1049
      %s1051 = sphi 0, %s1049
      %s1052 = sphi 0, %s1051
      %s1066 = sphi 0, %s1052
      %s1070 = sphi 0, %s1070
      %s1072 = sphi 0, %s1070
      %s1073 = sphi 0, %s1072
      %s1087 = sphi 0, %s1073
      %s1091 = sphi 0, %s1091
      %s1093 = sphi 0, %s1091
      %s1094 = sphi 0, %s1093
      %s1108 = sphi 0, %s1094
      %s1112 = sphi 0, %s1112
      %s1114 = sphi 0, %s1112
      %s1115 = sphi 0, %s1114
      %s1129 = sphi 0, %s1115
      %s1133 = sphi 0, %s1133
      %s1135 = sphi 0, %s1133
      %s1136 = sphi 0, %s1135
      %s1150 = sphi 0, %s1136
      %s1154 = sphi 0, %s1154
      %s1156 = sphi 0, %s1154
      %s1157 = sphi 0, %s1156
      %s1171 = sphi 0, %s1157
      %s1175 = sphi 0, %s1175
      %s1177 = sphi 0, %s1175
      %s1178 = sphi 0, %s1177
      %s1192 = sphi 0, %s1178
      %s1196 = sphi 0, %s1196
      %s1198 = sphi 0, %s1196
      %s1199 = sphi 0, %s1198
      %s1213 = sphi 0, %s1199
      %s1217 = sphi 0, %s1217
      %s1219 = sphi 0, %s1217
      %s1220 = sphi 0, %s1219
      %s1234 = sphi 0, %s1220
      %s1238 = sphi 0, %s1238
      %s1240 = sphi 0, %s1238
      %s1241 = sphi 0, %s1240
      %s1255 = sphi 0, %s1241
      %s1259 = sphi 0, %s1259
      %s1261 = sphi 0, %s1259
      %s1262 = sphi 0, %s1261
      %s1276 = sphi 0, %s1262
      %s1280 = sphi 0, %s1280
      %s1282 = sphi 0, %s1280
      %s1283 = sphi 0, %s1282
      %s1297 = sphi 0, %s1283
      %s1301 = sphi 0, %s1301
      %s1303 = sphi 0, %s1301
      %s1304 = sphi 0, %s1303
      %s1318 = sphi 0, %s1304
      %s1322 = sphi 0, %s1322
      %s1324 = sphi 0, %s1322
      %s1325 = sphi 0, %s1324
      %s1339 = sphi 0, %s1325
      %s1345 = sphi 0, %s1347
      %s1348 = sphi 0, %s1345
      %s1349 = sphi 0, %s1348
      %s1365 = sphi 0, %s1349
    $region4: #{decoder_forward.1} parent=1 // loop_header_branch
      %131 = sbr.rel (%p129) target = $region8
    $region5: #{decoder_forward.1} parent=1 // loop_body
      %s133 = ssub.s32 %s128, 1
      %s134 = ssub.s32 %s128, 2
      %s135 = sadd.s32 %s128, 1
      %s136 = ssub.s32 %s128, %s135
      %p137 = scmp.eq.s32.totalorder %s136, 0
      %s139 = sadd.s32 %s138, 1
      %s140 = scalar_select %p137, %s138, %s139
      %p143 = pneg %p137
      %p144 = scmp.eq.s32.totalorder %s128, 1
      %p145 = por %p143, %p144
      %p146 = scmp.ne.s32.totalorder %s138, %s141
      %p147 = scmp.eq.s32.totalorder %s128, 0
      %p148 = por %p146, %p147
      %p149 = scmp.ne.s32.totalorder %s138, %s141
      %p150 = scmp.eq.s32.totalorder %s133, 1
      %p151 = por %p149, %p150
      %p152 = scmp.ne.s32.totalorder %s141, %s142
      %p153 = scmp.eq.s32.totalorder %s133, 0
      %p154 = por %p152, %p153
      %p155 = scmp.ne.s32.totalorder %s141, %s142
      %p156 = scmp.eq.s32.totalorder %s134, 1
      %p157 = por %p155, %p156
      %p159 = scmp.ne.s32.totalorder %s142, %s158
      %p160 = scmp.eq.s32.totalorder %s134, 0
      %p161 = por %p159, %p160
      %s162 = ssub.s32 %s128, %s135
      %p163 = scmp.eq.s32.totalorder %s162, 0
      %s165 = sadd.s32 %s164, 1
      %s166 = scalar_select %p163, %s164, %s165
      %p169 = pneg %p163
      %p170 = scmp.eq.s32.totalorder %s128, 1
      %p171 = por %p169, %p170
      %p172 = scmp.ne.s32.totalorder %s164, %s167
      %p173 = scmp.eq.s32.totalorder %s128, 0
      %p174 = por %p172, %p173
      %p175 = scmp.ne.s32.totalorder %s164, %s167
      %p176 = scmp.eq.s32.totalorder %s133, 1
      %p177 = por %p175, %p176
      %p178 = scmp.ne.s32.totalorder %s167, %s168
      %p179 = scmp.eq.s32.totalorder %s133, 0
      %p180 = por %p178, %p179
      %p181 = scmp.ne.s32.totalorder %s167, %s168
      %p182 = scmp.eq.s32.totalorder %s134, 1
      %p183 = por %p181, %p182
      %p185 = scmp.ne.s32.totalorder %s168, %s184
      %p186 = scmp.eq.s32.totalorder %s134, 0
      %p187 = por %p185, %p186
      %s189 = sadd.s32 %s188, 1
      %p192 = scmp.eq.s32.totalorder %s128, 1
      %p193 = scmp.ne.s32.totalorder %s188, %s190
      %p194 = scmp.eq.s32.totalorder %s128, 0
      %p195 = por %p193, %p194
      %p196 = scmp.ne.s32.totalorder %s188, %s190
      %p197 = scmp.eq.s32.totalorder %s133, 1
      %p198 = por %p196, %p197
      %p199 = scmp.ne.s32.totalorder %s190, %s191
      %p200 = scmp.eq.s32.totalorder %s133, 0
      %p201 = por %p199, %p200
      %p202 = scmp.ne.s32.totalorder %s190, %s191
      %p203 = scmp.eq.s32.totalorder %s134, 1
      %p204 = por %p202, %p203
      %p206 = scmp.ne.s32.totalorder %s191, %s205
      %p207 = scmp.eq.s32.totalorder %s134, 0
      %p208 = por %p206, %p207
      %s210 = sadd.s32 %s209, 1
      %p213 = scmp.eq.s32.totalorder %s128, 1
      %p214 = scmp.ne.s32.totalorder %s209, %s211
      %p215 = scmp.eq.s32.totalorder %s128, 0
      %p216 = por %p214, %p215
      %p217 = scmp.ne.s32.totalorder %s209, %s211
      %p218 = scmp.eq.s32.totalorder %s133, 1
      %p219 = por %p217, %p218
      %p220 = scmp.ne.s32.totalorder %s211, %s212
      %p221 = scmp.eq.s32.totalorder %s133, 0
      %p222 = por %p220, %p221
      %p223 = scmp.ne.s32.totalorder %s211, %s212
      %p224 = scmp.eq.s32.totalorder %s134, 1
      %p225 = por %p223, %p224
      %p227 = scmp.ne.s32.totalorder %s212, %s226
      %p228 = scmp.eq.s32.totalorder %s134, 0
      %p229 = por %p227, %p228
      %s231 = sadd.s32 %s230, 1
      %p234 = scmp.eq.s32.totalorder %s128, 1
      %p235 = scmp.ne.s32.totalorder %s230, %s232
      %p236 = scmp.eq.s32.totalorder %s128, 0
      %p237 = por %p235, %p236
      %p238 = scmp.ne.s32.totalorder %s230, %s232
      %p239 = scmp.eq.s32.totalorder %s133, 1
      %p240 = por %p238, %p239
      %p241 = scmp.ne.s32.totalorder %s232, %s233
      %p242 = scmp.eq.s32.totalorder %s133, 0
      %p243 = por %p241, %p242
      %p244 = scmp.ne.s32.totalorder %s232, %s233
      %p245 = scmp.eq.s32.totalorder %s134, 1
      %p246 = por %p244, %p245
      %p248 = scmp.ne.s32.totalorder %s233, %s247
      %p249 = scmp.eq.s32.totalorder %s134, 0
      %p250 = por %p248, %p249
      %s252 = sadd.s32 %s251, 1
      %p255 = scmp.eq.s32.totalorder %s128, 1
      %p256 = scmp.ne.s32.totalorder %s251, %s253
      %p257 = scmp.eq.s32.totalorder %s128, 0
      %p258 = por %p256, %p257
      %p259 = scmp.ne.s32.totalorder %s251, %s253
      %p260 = scmp.eq.s32.totalorder %s133, 1
      %p261 = por %p259, %p260
      %p262 = scmp.ne.s32.totalorder %s253, %s254
      %p263 = scmp.eq.s32.totalorder %s133, 0
      %p264 = por %p262, %p263
      %p265 = scmp.ne.s32.totalorder %s253, %s254
      %p266 = scmp.eq.s32.totalorder %s134, 1
      %p267 = por %p265, %p266
      %p269 = scmp.ne.s32.totalorder %s254, %s268
      %p270 = scmp.eq.s32.totalorder %s134, 0
      %p271 = por %p269, %p270
      %s273 = sadd.s32 %s272, 1
      %p276 = scmp.eq.s32.totalorder %s128, 1
      %p277 = scmp.ne.s32.totalorder %s272, %s274
      %p278 = scmp.eq.s32.totalorder %s128, 0
      %p279 = por %p277, %p278
      %p280 = scmp.ne.s32.totalorder %s272, %s274
      %p281 = scmp.eq.s32.totalorder %s133, 1
      %p282 = por %p280, %p281
      %p283 = scmp.ne.s32.totalorder %s274, %s275
      %p284 = scmp.eq.s32.totalorder %s133, 0
      %p285 = por %p283, %p284
      %p286 = scmp.ne.s32.totalorder %s274, %s275
      %p287 = scmp.eq.s32.totalorder %s134, 1
      %p288 = por %p286, %p287
      %p290 = scmp.ne.s32.totalorder %s275, %s289
      %p291 = scmp.eq.s32.totalorder %s134, 0
      %p292 = por %p290, %p291
      %s294 = sadd.s32 %s293, 1
      %p297 = scmp.eq.s32.totalorder %s128, 1
      %p298 = scmp.ne.s32.totalorder %s293, %s295
      %p299 = scmp.eq.s32.totalorder %s128, 0
      %p300 = por %p298, %p299
      %p301 = scmp.ne.s32.totalorder %s293, %s295
      %p302 = scmp.eq.s32.totalorder %s133, 1
      %p303 = por %p301, %p302
      %p304 = scmp.ne.s32.totalorder %s295, %s296
      %p305 = scmp.eq.s32.totalorder %s133, 0
      %p306 = por %p304, %p305
      %p307 = scmp.ne.s32.totalorder %s295, %s296
      %p308 = scmp.eq.s32.totalorder %s134, 1
      %p309 = por %p307, %p308
      %p311 = scmp.ne.s32.totalorder %s296, %s310
      %p312 = scmp.eq.s32.totalorder %s134, 0
      %p313 = por %p311, %p312
      %s315 = sadd.s32 %s314, 1
      %p318 = scmp.eq.s32.totalorder %s128, 1
      %p319 = scmp.ne.s32.totalorder %s314, %s316
      %p320 = scmp.eq.s32.totalorder %s128, 0
      %p321 = por %p319, %p320
      %p322 = scmp.ne.s32.totalorder %s314, %s316
      %p323 = scmp.eq.s32.totalorder %s133, 1
      %p324 = por %p322, %p323
      %p325 = scmp.ne.s32.totalorder %s316, %s317
      %p326 = scmp.eq.s32.totalorder %s133, 0
      %p327 = por %p325, %p326
      %p328 = scmp.ne.s32.totalorder %s316, %s317
      %p329 = scmp.eq.s32.totalorder %s134, 1
      %p330 = por %p328, %p329
      %p332 = scmp.ne.s32.totalorder %s317, %s331
      %p333 = scmp.eq.s32.totalorder %s134, 0
      %p334 = por %p332, %p333
      %s336 = sadd.s32 %s335, 1
      %p339 = scmp.eq.s32.totalorder %s128, 1
      %p340 = scmp.ne.s32.totalorder %s335, %s337
      %p341 = scmp.eq.s32.totalorder %s128, 0
      %p342 = por %p340, %p341
      %p343 = scmp.ne.s32.totalorder %s335, %s337
      %p344 = scmp.eq.s32.totalorder %s133, 1
      %p345 = por %p343, %p344
      %p346 = scmp.ne.s32.totalorder %s337, %s338
      %p347 = scmp.eq.s32.totalorder %s133, 0
      %p348 = por %p346, %p347
      %p349 = scmp.ne.s32.totalorder %s337, %s338
      %p350 = scmp.eq.s32.totalorder %s134, 1
      %p351 = por %p349, %p350
      %p353 = scmp.ne.s32.totalorder %s338, %s352
      %p354 = scmp.eq.s32.totalorder %s134, 0
      %p355 = por %p353, %p354
      %s357 = sadd.s32 %s356, 1
      %p360 = scmp.eq.s32.totalorder %s128, 1
      %p361 = scmp.ne.s32.totalorder %s356, %s358
      %p362 = scmp.eq.s32.totalorder %s128, 0
      %p363 = por %p361, %p362
      %p364 = scmp.ne.s32.totalorder %s356, %s358
      %p365 = scmp.eq.s32.totalorder %s133, 1
      %p366 = por %p364, %p365
      %p367 = scmp.ne.s32.totalorder %s358, %s359
      %p368 = scmp.eq.s32.totalorder %s133, 0
      %p369 = por %p367, %p368
      %p370 = scmp.ne.s32.totalorder %s358, %s359
      %p371 = scmp.eq.s32.totalorder %s134, 1
      %p372 = por %p370, %p371
      %p374 = scmp.ne.s32.totalorder %s359, %s373
      %p375 = scmp.eq.s32.totalorder %s134, 0
      %p376 = por %p374, %p375
      %s378 = sadd.s32 %s377, 1
      %p381 = scmp.eq.s32.totalorder %s128, 1
      %p382 = scmp.ne.s32.totalorder %s377, %s379
      %p383 = scmp.eq.s32.totalorder %s128, 0
      %p384 = por %p382, %p383
      %p385 = scmp.ne.s32.totalorder %s377, %s379
      %p386 = scmp.eq.s32.totalorder %s133, 1
      %p387 = por %p385, %p386
      %p388 = scmp.ne.s32.totalorder %s379, %s380
      %p389 = scmp.eq.s32.totalorder %s133, 0
      %p390 = por %p388, %p389
      %p391 = scmp.ne.s32.totalorder %s379, %s380
      %p392 = scmp.eq.s32.totalorder %s134, 1
      %p393 = por %p391, %p392
      %p395 = scmp.ne.s32.totalorder %s380, %s394
      %p396 = scmp.eq.s32.totalorder %s134, 0
      %p397 = por %p395, %p396
      %s399 = sadd.s32 %s398, 1
      %p402 = scmp.eq.s32.totalorder %s128, 1
      %p403 = scmp.ne.s32.totalorder %s398, %s400
      %p404 = scmp.eq.s32.totalorder %s128, 0
      %p405 = por %p403, %p404
      %p406 = scmp.ne.s32.totalorder %s398, %s400
      %p407 = scmp.eq.s32.totalorder %s133, 1
      %p408 = por %p406, %p407
      %p409 = scmp.ne.s32.totalorder %s400, %s401
      %p410 = scmp.eq.s32.totalorder %s133, 0
      %p411 = por %p409, %p410
      %p412 = scmp.ne.s32.totalorder %s400, %s401
      %p413 = scmp.eq.s32.totalorder %s134, 1
      %p414 = por %p412, %p413
      %p416 = scmp.ne.s32.totalorder %s401, %s415
      %p417 = scmp.eq.s32.totalorder %s134, 0
      %p418 = por %p416, %p417
      %s420 = sadd.s32 %s419, 1
      %p423 = scmp.eq.s32.totalorder %s128, 1
      %p424 = scmp.ne.s32.totalorder %s419, %s421
      %p425 = scmp.eq.s32.totalorder %s128, 0
      %p426 = por %p424, %p425
      %p427 = scmp.ne.s32.totalorder %s419, %s421
      %p428 = scmp.eq.s32.totalorder %s133, 1
      %p429 = por %p427, %p428
      %p430 = scmp.ne.s32.totalorder %s421, %s422
      %p431 = scmp.eq.s32.totalorder %s133, 0
      %p432 = por %p430, %p431
      %p433 = scmp.ne.s32.totalorder %s421, %s422
      %p434 = scmp.eq.s32.totalorder %s134, 1
      %p435 = por %p433, %p434
      %p437 = scmp.ne.s32.totalorder %s422, %s436
      %p438 = scmp.eq.s32.totalorder %s134, 0
      %p439 = por %p437, %p438
      %s441 = sadd.s32 %s440, 1
      %p444 = scmp.eq.s32.totalorder %s128, 1
      %p445 = scmp.ne.s32.totalorder %s440, %s442
      %p446 = scmp.eq.s32.totalorder %s128, 0
      %p447 = por %p445, %p446
      %p448 = scmp.ne.s32.totalorder %s440, %s442
      %p449 = scmp.eq.s32.totalorder %s133, 1
      %p450 = por %p448, %p449
      %p451 = scmp.ne.s32.totalorder %s442, %s443
      %p452 = scmp.eq.s32.totalorder %s133, 0
      %p453 = por %p451, %p452
      %p454 = scmp.ne.s32.totalorder %s442, %s443
      %p455 = scmp.eq.s32.totalorder %s134, 1
      %p456 = por %p454, %p455
      %p458 = scmp.ne.s32.totalorder %s443, %s457
      %p459 = scmp.eq.s32.totalorder %s134, 0
      %p460 = por %p458, %p459
      %s462 = sadd.s32 %s461, 1
      %p465 = scmp.eq.s32.totalorder %s128, 1
      %p466 = scmp.ne.s32.totalorder %s461, %s463
      %p467 = scmp.eq.s32.totalorder %s128, 0
      %p468 = por %p466, %p467
      %p469 = scmp.ne.s32.totalorder %s461, %s463
      %p470 = scmp.eq.s32.totalorder %s133, 1
      %p471 = por %p469, %p470
      %p472 = scmp.ne.s32.totalorder %s463, %s464
      %p473 = scmp.eq.s32.totalorder %s133, 0
      %p474 = por %p472, %p473
      %p475 = scmp.ne.s32.totalorder %s463, %s464
      %p476 = scmp.eq.s32.totalorder %s134, 1
      %p477 = por %p475, %p476
      %p479 = scmp.ne.s32.totalorder %s464, %s478
      %p480 = scmp.eq.s32.totalorder %s134, 0
      %p481 = por %p479, %p480
      %s483 = sadd.s32 %s482, 1
      %p486 = scmp.eq.s32.totalorder %s128, 1
      %p487 = scmp.ne.s32.totalorder %s482, %s484
      %p488 = scmp.eq.s32.totalorder %s128, 0
      %p489 = por %p487, %p488
      %p490 = scmp.ne.s32.totalorder %s482, %s484
      %p491 = scmp.eq.s32.totalorder %s133, 1
      %p492 = por %p490, %p491
      %p493 = scmp.ne.s32.totalorder %s484, %s485
      %p494 = scmp.eq.s32.totalorder %s133, 0
      %p495 = por %p493, %p494
      %p496 = scmp.ne.s32.totalorder %s484, %s485
      %p497 = scmp.eq.s32.totalorder %s134, 1
      %p498 = por %p496, %p497
      %p500 = scmp.ne.s32.totalorder %s485, %s499
      %p501 = scmp.eq.s32.totalorder %s134, 0
      %p502 = por %p500, %p501
      %s504 = sadd.s32 %s503, 1
      %p507 = scmp.eq.s32.totalorder %s128, 1
      %p508 = scmp.ne.s32.totalorder %s503, %s505
      %p509 = scmp.eq.s32.totalorder %s128, 0
      %p510 = por %p508, %p509
      %p511 = scmp.ne.s32.totalorder %s503, %s505
      %p512 = scmp.eq.s32.totalorder %s133, 1
      %p513 = por %p511, %p512
      %p514 = scmp.ne.s32.totalorder %s505, %s506
      %p515 = scmp.eq.s32.totalorder %s133, 0
      %p516 = por %p514, %p515
      %p517 = scmp.ne.s32.totalorder %s505, %s506
      %p518 = scmp.eq.s32.totalorder %s134, 1
      %p519 = por %p517, %p518
      %p521 = scmp.ne.s32.totalorder %s506, %s520
      %p522 = scmp.eq.s32.totalorder %s134, 0
      %p523 = por %p521, %p522
      %s525 = sadd.s32 %s524, 1
      %p528 = scmp.eq.s32.totalorder %s128, 1
      %p529 = scmp.ne.s32.totalorder %s524, %s526
      %p530 = scmp.eq.s32.totalorder %s128, 0
      %p531 = por %p529, %p530
      %p532 = scmp.ne.s32.totalorder %s524, %s526
      %p533 = scmp.eq.s32.totalorder %s133, 1
      %p534 = por %p532, %p533
      %p535 = scmp.ne.s32.totalorder %s526, %s527
      %p536 = scmp.eq.s32.totalorder %s133, 0
      %p537 = por %p535, %p536
      %p538 = scmp.ne.s32.totalorder %s526, %s527
      %p539 = scmp.eq.s32.totalorder %s134, 1
      %p540 = por %p538, %p539
      %p542 = scmp.ne.s32.totalorder %s527, %s541
      %p543 = scmp.eq.s32.totalorder %s134, 0
      %p544 = por %p542, %p543
      %s546 = sadd.s32 %s545, 1
      %p549 = scmp.eq.s32.totalorder %s128, 1
      %p550 = scmp.ne.s32.totalorder %s545, %s547
      %p551 = scmp.eq.s32.totalorder %s128, 0
      %p552 = por %p550, %p551
      %p553 = scmp.ne.s32.totalorder %s545, %s547
      %p554 = scmp.eq.s32.totalorder %s133, 1
      %p555 = por %p553, %p554
      %p556 = scmp.ne.s32.totalorder %s547, %s548
      %p557 = scmp.eq.s32.totalorder %s133, 0
      %p558 = por %p556, %p557
      %p559 = scmp.ne.s32.totalorder %s547, %s548
      %p560 = scmp.eq.s32.totalorder %s134, 1
      %p561 = por %p559, %p560
      %p563 = scmp.ne.s32.totalorder %s548, %s562
      %p564 = scmp.eq.s32.totalorder %s134, 0
      %p565 = por %p563, %p564
      %s567 = sadd.s32 %s566, 1
      %p570 = scmp.eq.s32.totalorder %s128, 1
      %p571 = scmp.ne.s32.totalorder %s566, %s568
      %p572 = scmp.eq.s32.totalorder %s128, 0
      %p573 = por %p571, %p572
      %p574 = scmp.ne.s32.totalorder %s566, %s568
      %p575 = scmp.eq.s32.totalorder %s133, 1
      %p576 = por %p574, %p575
      %p577 = scmp.ne.s32.totalorder %s568, %s569
      %p578 = scmp.eq.s32.totalorder %s133, 0
      %p579 = por %p577, %p578
      %p580 = scmp.ne.s32.totalorder %s568, %s569
      %p581 = scmp.eq.s32.totalorder %s134, 1
      %p582 = por %p580, %p581
      %p584 = scmp.ne.s32.totalorder %s569, %s583
      %p585 = scmp.eq.s32.totalorder %s134, 0
      %p586 = por %p584, %p585
      %s588 = sadd.s32 %s587, 1
      %p591 = scmp.eq.s32.totalorder %s128, 1
      %p592 = scmp.ne.s32.totalorder %s587, %s589
      %p593 = scmp.eq.s32.totalorder %s128, 0
      %p594 = por %p592, %p593
      %p595 = scmp.ne.s32.totalorder %s587, %s589
      %p596 = scmp.eq.s32.totalorder %s133, 1
      %p597 = por %p595, %p596
      %p598 = scmp.ne.s32.totalorder %s589, %s590
      %p599 = scmp.eq.s32.totalorder %s133, 0
      %p600 = por %p598, %p599
      %p601 = scmp.ne.s32.totalorder %s589, %s590
      %p602 = scmp.eq.s32.totalorder %s134, 1
      %p603 = por %p601, %p602
      %p605 = scmp.ne.s32.totalorder %s590, %s604
      %p606 = scmp.eq.s32.totalorder %s134, 0
      %p607 = por %p605, %p606
      %s609 = sadd.s32 %s608, 1
      %p612 = scmp.eq.s32.totalorder %s128, 1
      %p613 = scmp.ne.s32.totalorder %s608, %s610
      %p614 = scmp.eq.s32.totalorder %s128, 0
      %p615 = por %p613, %p614
      %p616 = scmp.ne.s32.totalorder %s608, %s610
      %p617 = scmp.eq.s32.totalorder %s133, 1
      %p618 = por %p616, %p617
      %p619 = scmp.ne.s32.totalorder %s610, %s611
      %p620 = scmp.eq.s32.totalorder %s133, 0
      %p621 = por %p619, %p620
      %p622 = scmp.ne.s32.totalorder %s610, %s611
      %p623 = scmp.eq.s32.totalorder %s134, 1
      %p624 = por %p622, %p623
      %p626 = scmp.ne.s32.totalorder %s611, %s625
      %p627 = scmp.eq.s32.totalorder %s134, 0
      %p628 = por %p626, %p627
      %s630 = sadd.s32 %s629, 1
      %p633 = scmp.eq.s32.totalorder %s128, 1
      %p634 = scmp.ne.s32.totalorder %s629, %s631
      %p635 = scmp.eq.s32.totalorder %s128, 0
      %p636 = por %p634, %p635
      %p637 = scmp.ne.s32.totalorder %s629, %s631
      %p638 = scmp.eq.s32.totalorder %s133, 1
      %p639 = por %p637, %p638
      %p640 = scmp.ne.s32.totalorder %s631, %s632
      %p641 = scmp.eq.s32.totalorder %s133, 0
      %p642 = por %p640, %p641
      %p643 = scmp.ne.s32.totalorder %s631, %s632
      %p644 = scmp.eq.s32.totalorder %s134, 1
      %p645 = por %p643, %p644
      %p647 = scmp.ne.s32.totalorder %s632, %s646
      %p648 = scmp.eq.s32.totalorder %s134, 0
      %p649 = por %p647, %p648
      %s651 = sadd.s32 %s650, 1
      %p654 = scmp.eq.s32.totalorder %s128, 1
      %p655 = scmp.ne.s32.totalorder %s650, %s652
      %p656 = scmp.eq.s32.totalorder %s128, 0
      %p657 = por %p655, %p656
      %p658 = scmp.ne.s32.totalorder %s650, %s652
      %p659 = scmp.eq.s32.totalorder %s133, 1
      %p660 = por %p658, %p659
      %p661 = scmp.ne.s32.totalorder %s652, %s653
      %p662 = scmp.eq.s32.totalorder %s133, 0
      %p663 = por %p661, %p662
      %p664 = scmp.ne.s32.totalorder %s652, %s653
      %p665 = scmp.eq.s32.totalorder %s134, 1
      %p666 = por %p664, %p665
      %p668 = scmp.ne.s32.totalorder %s653, %s667
      %p669 = scmp.eq.s32.totalorder %s134, 0
      %p670 = por %p668, %p669
      %s672 = sadd.s32 %s671, 1
      %p675 = scmp.eq.s32.totalorder %s128, 1
      %p676 = scmp.ne.s32.totalorder %s671, %s673
      %p677 = scmp.eq.s32.totalorder %s128, 0
      %p678 = por %p676, %p677
      %p679 = scmp.ne.s32.totalorder %s671, %s673
      %p680 = scmp.eq.s32.totalorder %s133, 1
      %p681 = por %p679, %p680
      %p682 = scmp.ne.s32.totalorder %s673, %s674
      %p683 = scmp.eq.s32.totalorder %s133, 0
      %p684 = por %p682, %p683
      %p685 = scmp.ne.s32.totalorder %s673, %s674
      %p686 = scmp.eq.s32.totalorder %s134, 1
      %p687 = por %p685, %p686
      %p689 = scmp.ne.s32.totalorder %s674, %s688
      %p690 = scmp.eq.s32.totalorder %s134, 0
      %p691 = por %p689, %p690
      %s693 = sadd.s32 %s692, 1
      %p696 = scmp.eq.s32.totalorder %s128, 1
      %p697 = scmp.ne.s32.totalorder %s692, %s694
      %p698 = scmp.eq.s32.totalorder %s128, 0
      %p699 = por %p697, %p698
      %p700 = scmp.ne.s32.totalorder %s692, %s694
      %p701 = scmp.eq.s32.totalorder %s133, 1
      %p702 = por %p700, %p701
      %p703 = scmp.ne.s32.totalorder %s694, %s695
      %p704 = scmp.eq.s32.totalorder %s133, 0
      %p705 = por %p703, %p704
      %p706 = scmp.ne.s32.totalorder %s694, %s695
      %p707 = scmp.eq.s32.totalorder %s134, 1
      %p708 = por %p706, %p707
      %p710 = scmp.ne.s32.totalorder %s695, %s709
      %p711 = scmp.eq.s32.totalorder %s134, 0
      %p712 = por %p710, %p711
      %s714 = sadd.s32 %s713, 1
      %p717 = scmp.eq.s32.totalorder %s128, 1
      %p718 = scmp.ne.s32.totalorder %s713, %s715
      %p719 = scmp.eq.s32.totalorder %s128, 0
      %p720 = por %p718, %p719
      %p721 = scmp.ne.s32.totalorder %s713, %s715
      %p722 = scmp.eq.s32.totalorder %s133, 1
      %p723 = por %p721, %p722
      %p724 = scmp.ne.s32.totalorder %s715, %s716
      %p725 = scmp.eq.s32.totalorder %s133, 0
      %p726 = por %p724, %p725
      %p727 = scmp.ne.s32.totalorder %s715, %s716
      %p728 = scmp.eq.s32.totalorder %s134, 1
      %p729 = por %p727, %p728
      %p731 = scmp.ne.s32.totalorder %s716, %s730
      %p732 = scmp.eq.s32.totalorder %s134, 0
      %p733 = por %p731, %p732
      %s735 = sadd.s32 %s734, 1
      %p738 = scmp.eq.s32.totalorder %s128, 1
      %p739 = scmp.ne.s32.totalorder %s734, %s736
      %p740 = scmp.eq.s32.totalorder %s128, 0
      %p741 = por %p739, %p740
      %p742 = scmp.ne.s32.totalorder %s734, %s736
      %p743 = scmp.eq.s32.totalorder %s133, 1
      %p744 = por %p742, %p743
      %p745 = scmp.ne.s32.totalorder %s736, %s737
      %p746 = scmp.eq.s32.totalorder %s133, 0
      %p747 = por %p745, %p746
      %p748 = scmp.ne.s32.totalorder %s736, %s737
      %p749 = scmp.eq.s32.totalorder %s134, 1
      %p750 = por %p748, %p749
      %p752 = scmp.ne.s32.totalorder %s737, %s751
      %p753 = scmp.eq.s32.totalorder %s134, 0
      %p754 = por %p752, %p753
      %s756 = sadd.s32 %s755, 1
      %p759 = scmp.eq.s32.totalorder %s128, 1
      %p760 = scmp.ne.s32.totalorder %s755, %s757
      %p761 = scmp.eq.s32.totalorder %s128, 0
      %p762 = por %p760, %p761
      %p763 = scmp.ne.s32.totalorder %s755, %s757
      %p764 = scmp.eq.s32.totalorder %s133, 1
      %p765 = por %p763, %p764
      %p766 = scmp.ne.s32.totalorder %s757, %s758
      %p767 = scmp.eq.s32.totalorder %s133, 0
      %p768 = por %p766, %p767
      %p769 = scmp.ne.s32.totalorder %s757, %s758
      %p770 = scmp.eq.s32.totalorder %s134, 1
      %p771 = por %p769, %p770
      %p773 = scmp.ne.s32.totalorder %s758, %s772
      %p774 = scmp.eq.s32.totalorder %s134, 0
      %p775 = por %p773, %p774
      %s777 = sadd.s32 %s776, 1
      %p780 = scmp.eq.s32.totalorder %s128, 1
      %p781 = scmp.ne.s32.totalorder %s776, %s778
      %p782 = scmp.eq.s32.totalorder %s128, 0
      %p783 = por %p781, %p782
      %p784 = scmp.ne.s32.totalorder %s776, %s778
      %p785 = scmp.eq.s32.totalorder %s133, 1
      %p786 = por %p784, %p785
      %p787 = scmp.ne.s32.totalorder %s778, %s779
      %p788 = scmp.eq.s32.totalorder %s133, 0
      %p789 = por %p787, %p788
      %p790 = scmp.ne.s32.totalorder %s778, %s779
      %p791 = scmp.eq.s32.totalorder %s134, 1
      %p792 = por %p790, %p791
      %p794 = scmp.ne.s32.totalorder %s779, %s793
      %p795 = scmp.eq.s32.totalorder %s134, 0
      %p796 = por %p794, %p795
      %s798 = sadd.s32 %s797, 1
      %p801 = scmp.eq.s32.totalorder %s128, 1
      %p802 = scmp.ne.s32.totalorder %s797, %s799
      %p803 = scmp.eq.s32.totalorder %s128, 0
      %p804 = por %p802, %p803
      %p805 = scmp.ne.s32.totalorder %s797, %s799
      %p806 = scmp.eq.s32.totalorder %s133, 1
      %p807 = por %p805, %p806
      %p808 = scmp.ne.s32.totalorder %s799, %s800
      %p809 = scmp.eq.s32.totalorder %s133, 0
      %p810 = por %p808, %p809
      %p811 = scmp.ne.s32.totalorder %s799, %s800
      %p812 = scmp.eq.s32.totalorder %s134, 1
      %p813 = por %p811, %p812
      %p815 = scmp.ne.s32.totalorder %s800, %s814
      %p816 = scmp.eq.s32.totalorder %s134, 0
      %p817 = por %p815, %p816
      %s819 = sadd.s32 %s818, 1
      %p822 = scmp.eq.s32.totalorder %s128, 1
      %p823 = scmp.ne.s32.totalorder %s818, %s820
      %p824 = scmp.eq.s32.totalorder %s128, 0
      %p825 = por %p823, %p824
      %p826 = scmp.ne.s32.totalorder %s818, %s820
      %p827 = scmp.eq.s32.totalorder %s133, 1
      %p828 = por %p826, %p827
      %p829 = scmp.ne.s32.totalorder %s820, %s821
      %p830 = scmp.eq.s32.totalorder %s133, 0
      %p831 = por %p829, %p830
      %p832 = scmp.ne.s32.totalorder %s820, %s821
      %p833 = scmp.eq.s32.totalorder %s134, 1
      %p834 = por %p832, %p833
      %p836 = scmp.ne.s32.totalorder %s821, %s835
      %p837 = scmp.eq.s32.totalorder %s134, 0
      %p838 = por %p836, %p837
      %s840 = sadd.s32 %s839, 1
      %p843 = scmp.eq.s32.totalorder %s128, 1
      %p844 = scmp.ne.s32.totalorder %s839, %s841
      %p845 = scmp.eq.s32.totalorder %s128, 0
      %p846 = por %p844, %p845
      %p847 = scmp.ne.s32.totalorder %s839, %s841
      %p848 = scmp.eq.s32.totalorder %s133, 1
      %p849 = por %p847, %p848
      %p850 = scmp.ne.s32.totalorder %s841, %s842
      %p851 = scmp.eq.s32.totalorder %s133, 0
      %p852 = por %p850, %p851
      %p853 = scmp.ne.s32.totalorder %s841, %s842
      %p854 = scmp.eq.s32.totalorder %s134, 1
      %p855 = por %p853, %p854
      %p857 = scmp.ne.s32.totalorder %s842, %s856
      %p858 = scmp.eq.s32.totalorder %s134, 0
      %p859 = por %p857, %p858
      %s861 = sadd.s32 %s860, 1
      %p864 = scmp.eq.s32.totalorder %s128, 1
      %p865 = scmp.ne.s32.totalorder %s860, %s862
      %p866 = scmp.eq.s32.totalorder %s128, 0
      %p867 = por %p865, %p866
      %p868 = scmp.ne.s32.totalorder %s860, %s862
      %p869 = scmp.eq.s32.totalorder %s133, 1
      %p870 = por %p868, %p869
      %p871 = scmp.ne.s32.totalorder %s862, %s863
      %p872 = scmp.eq.s32.totalorder %s133, 0
      %p873 = por %p871, %p872
      %p874 = scmp.ne.s32.totalorder %s862, %s863
      %p875 = scmp.eq.s32.totalorder %s134, 1
      %p876 = por %p874, %p875
      %p878 = scmp.ne.s32.totalorder %s863, %s877
      %p879 = scmp.eq.s32.totalorder %s134, 0
      %p880 = por %p878, %p879
      %s882 = sadd.s32 %s881, 1
      %p885 = scmp.eq.s32.totalorder %s128, 1
      %p886 = scmp.ne.s32.totalorder %s881, %s883
      %p887 = scmp.eq.s32.totalorder %s128, 0
      %p888 = por %p886, %p887
      %p889 = scmp.ne.s32.totalorder %s881, %s883
      %p890 = scmp.eq.s32.totalorder %s133, 1
      %p891 = por %p889, %p890
      %p892 = scmp.ne.s32.totalorder %s883, %s884
      %p893 = scmp.eq.s32.totalorder %s133, 0
      %p894 = por %p892, %p893
      %p895 = scmp.ne.s32.totalorder %s883, %s884
      %p896 = scmp.eq.s32.totalorder %s134, 1
      %p897 = por %p895, %p896
      %p899 = scmp.ne.s32.totalorder %s884, %s898
      %p900 = scmp.eq.s32.totalorder %s134, 0
      %p901 = por %p899, %p900
      %s903 = sadd.s32 %s902, 1
      %p906 = scmp.eq.s32.totalorder %s128, 1
      %p907 = scmp.ne.s32.totalorder %s902, %s904
      %p908 = scmp.eq.s32.totalorder %s128, 0
      %p909 = por %p907, %p908
      %p910 = scmp.ne.s32.totalorder %s902, %s904
      %p911 = scmp.eq.s32.totalorder %s133, 1
      %p912 = por %p910, %p911
      %p913 = scmp.ne.s32.totalorder %s904, %s905
      %p914 = scmp.eq.s32.totalorder %s133, 0
      %p915 = por %p913, %p914
      %p916 = scmp.ne.s32.totalorder %s904, %s905
      %p917 = scmp.eq.s32.totalorder %s134, 1
      %p918 = por %p916, %p917
      %p920 = scmp.ne.s32.totalorder %s905, %s919
      %p921 = scmp.eq.s32.totalorder %s134, 0
      %p922 = por %p920, %p921
      %s924 = sadd.s32 %s923, 1
      %p927 = scmp.eq.s32.totalorder %s128, 1
      %p928 = scmp.ne.s32.totalorder %s923, %s925
      %p929 = scmp.eq.s32.totalorder %s128, 0
      %p930 = por %p928, %p929
      %p931 = scmp.ne.s32.totalorder %s923, %s925
      %p932 = scmp.eq.s32.totalorder %s133, 1
      %p933 = por %p931, %p932
      %p934 = scmp.ne.s32.totalorder %s925, %s926
      %p935 = scmp.eq.s32.totalorder %s133, 0
      %p936 = por %p934, %p935
      %p937 = scmp.ne.s32.totalorder %s925, %s926
      %p938 = scmp.eq.s32.totalorder %s134, 1
      %p939 = por %p937, %p938
      %p941 = scmp.ne.s32.totalorder %s926, %s940
      %p942 = scmp.eq.s32.totalorder %s134, 0
      %p943 = por %p941, %p942
      %s945 = sadd.s32 %s944, 1
      %p948 = scmp.eq.s32.totalorder %s128, 1
      %p949 = scmp.ne.s32.totalorder %s944, %s946
      %p950 = scmp.eq.s32.totalorder %s128, 0
      %p951 = por %p949, %p950
      %p952 = scmp.ne.s32.totalorder %s944, %s946
      %p953 = scmp.eq.s32.totalorder %s133, 1
      %p954 = por %p952, %p953
      %p955 = scmp.ne.s32.totalorder %s946, %s947
      %p956 = scmp.eq.s32.totalorder %s133, 0
      %p957 = por %p955, %p956
      %p958 = scmp.ne.s32.totalorder %s946, %s947
      %p959 = scmp.eq.s32.totalorder %s134, 1
      %p960 = por %p958, %p959
      %p962 = scmp.ne.s32.totalorder %s947, %s961
      %p963 = scmp.eq.s32.totalorder %s134, 0
      %p964 = por %p962, %p963
      %s966 = sadd.s32 %s965, 1
      %p969 = scmp.eq.s32.totalorder %s128, 1
      %p970 = scmp.ne.s32.totalorder %s965, %s967
      %p971 = scmp.eq.s32.totalorder %s128, 0
      %p972 = por %p970, %p971
      %p973 = scmp.ne.s32.totalorder %s965, %s967
      %p974 = scmp.eq.s32.totalorder %s133, 1
      %p975 = por %p973, %p974
      %p976 = scmp.ne.s32.totalorder %s967, %s968
      %p977 = scmp.eq.s32.totalorder %s133, 0
      %p978 = por %p976, %p977
      %p979 = scmp.ne.s32.totalorder %s967, %s968
      %p980 = scmp.eq.s32.totalorder %s134, 1
      %p981 = por %p979, %p980
      %p983 = scmp.ne.s32.totalorder %s968, %s982
      %p984 = scmp.eq.s32.totalorder %s134, 0
      %p985 = por %p983, %p984
      %s987 = sadd.s32 %s986, 1
      %p990 = scmp.eq.s32.totalorder %s128, 1
      %p991 = scmp.ne.s32.totalorder %s986, %s988
      %p992 = scmp.eq.s32.totalorder %s128, 0
      %p993 = por %p991, %p992
      %p994 = scmp.ne.s32.totalorder %s986, %s988
      %p995 = scmp.eq.s32.totalorder %s133, 1
      %p996 = por %p994, %p995
      %p997 = scmp.ne.s32.totalorder %s988, %s989
      %p998 = scmp.eq.s32.totalorder %s133, 0
      %p999 = por %p997, %p998
      %p1000 = scmp.ne.s32.totalorder %s988, %s989
      %p1001 = scmp.eq.s32.totalorder %s134, 1
      %p1002 = por %p1000, %p1001
      %p1004 = scmp.ne.s32.totalorder %s989, %s1003
      %p1005 = scmp.eq.s32.totalorder %s134, 0
      %p1006 = por %p1004, %p1005
      %s1008 = sadd.s32 %s1007, 1
      %p1011 = scmp.eq.s32.totalorder %s128, 1
      %p1012 = scmp.ne.s32.totalorder %s1007, %s1009
      %p1013 = scmp.eq.s32.totalorder %s128, 0
      %p1014 = por %p1012, %p1013
      %p1015 = scmp.ne.s32.totalorder %s1007, %s1009
      %p1016 = scmp.eq.s32.totalorder %s133, 1
      %p1017 = por %p1015, %p1016
      %p1018 = scmp.ne.s32.totalorder %s1009, %s1010
      %p1019 = scmp.eq.s32.totalorder %s133, 0
      %p1020 = por %p1018, %p1019
      %p1021 = scmp.ne.s32.totalorder %s1009, %s1010
      %p1022 = scmp.eq.s32.totalorder %s134, 1
      %p1023 = por %p1021, %p1022
      %p1025 = scmp.ne.s32.totalorder %s1010, %s1024
      %p1026 = scmp.eq.s32.totalorder %s134, 0
      %p1027 = por %p1025, %p1026
      %s1029 = sadd.s32 %s1028, 1
      %p1032 = scmp.eq.s32.totalorder %s128, 1
      %p1033 = scmp.ne.s32.totalorder %s1028, %s1030
      %p1034 = scmp.eq.s32.totalorder %s128, 0
      %p1035 = por %p1033, %p1034
      %p1036 = scmp.ne.s32.totalorder %s1028, %s1030
      %p1037 = scmp.eq.s32.totalorder %s133, 1
      %p1038 = por %p1036, %p1037
      %p1039 = scmp.ne.s32.totalorder %s1030, %s1031
      %p1040 = scmp.eq.s32.totalorder %s133, 0
      %p1041 = por %p1039, %p1040
      %p1042 = scmp.ne.s32.totalorder %s1030, %s1031
      %p1043 = scmp.eq.s32.totalorder %s134, 1
      %p1044 = por %p1042, %p1043
      %p1046 = scmp.ne.s32.totalorder %s1031, %s1045
      %p1047 = scmp.eq.s32.totalorder %s134, 0
      %p1048 = por %p1046, %p1047
      %s1050 = sadd.s32 %s1049, 1
      %p1053 = scmp.eq.s32.totalorder %s128, 1
      %p1054 = scmp.ne.s32.totalorder %s1049, %s1051
      %p1055 = scmp.eq.s32.totalorder %s128, 0
      %p1056 = por %p1054, %p1055
      %p1057 = scmp.ne.s32.totalorder %s1049, %s1051
      %p1058 = scmp.eq.s32.totalorder %s133, 1
      %p1059 = por %p1057, %p1058
      %p1060 = scmp.ne.s32.totalorder %s1051, %s1052
      %p1061 = scmp.eq.s32.totalorder %s133, 0
      %p1062 = por %p1060, %p1061
      %p1063 = scmp.ne.s32.totalorder %s1051, %s1052
      %p1064 = scmp.eq.s32.totalorder %s134, 1
      %p1065 = por %p1063, %p1064
      %p1067 = scmp.ne.s32.totalorder %s1052, %s1066
      %p1068 = scmp.eq.s32.totalorder %s134, 0
      %p1069 = por %p1067, %p1068
      %s1071 = sadd.s32 %s1070, 1
      %p1074 = scmp.eq.s32.totalorder %s128, 1
      %p1075 = scmp.ne.s32.totalorder %s1070, %s1072
      %p1076 = scmp.eq.s32.totalorder %s128, 0
      %p1077 = por %p1075, %p1076
      %p1078 = scmp.ne.s32.totalorder %s1070, %s1072
      %p1079 = scmp.eq.s32.totalorder %s133, 1
      %p1080 = por %p1078, %p1079
      %p1081 = scmp.ne.s32.totalorder %s1072, %s1073
      %p1082 = scmp.eq.s32.totalorder %s133, 0
      %p1083 = por %p1081, %p1082
      %p1084 = scmp.ne.s32.totalorder %s1072, %s1073
      %p1085 = scmp.eq.s32.totalorder %s134, 1
      %p1086 = por %p1084, %p1085
      %p1088 = scmp.ne.s32.totalorder %s1073, %s1087
      %p1089 = scmp.eq.s32.totalorder %s134, 0
      %p1090 = por %p1088, %p1089
      %s1092 = sadd.s32 %s1091, 1
      %p1095 = scmp.eq.s32.totalorder %s128, 1
      %p1096 = scmp.ne.s32.totalorder %s1091, %s1093
      %p1097 = scmp.eq.s32.totalorder %s128, 0
      %p1098 = por %p1096, %p1097
      %p1099 = scmp.ne.s32.totalorder %s1091, %s1093
      %p1100 = scmp.eq.s32.totalorder %s133, 1
      %p1101 = por %p1099, %p1100
      %p1102 = scmp.ne.s32.totalorder %s1093, %s1094
      %p1103 = scmp.eq.s32.totalorder %s133, 0
      %p1104 = por %p1102, %p1103
      %p1105 = scmp.ne.s32.totalorder %s1093, %s1094
      %p1106 = scmp.eq.s32.totalorder %s134, 1
      %p1107 = por %p1105, %p1106
      %p1109 = scmp.ne.s32.totalorder %s1094, %s1108
      %p1110 = scmp.eq.s32.totalorder %s134, 0
      %p1111 = por %p1109, %p1110
      %s1113 = sadd.s32 %s1112, 1
      %p1116 = scmp.eq.s32.totalorder %s128, 1
      %p1117 = scmp.ne.s32.totalorder %s1112, %s1114
      %p1118 = scmp.eq.s32.totalorder %s128, 0
      %p1119 = por %p1117, %p1118
      %p1120 = scmp.ne.s32.totalorder %s1112, %s1114
      %p1121 = scmp.eq.s32.totalorder %s133, 1
      %p1122 = por %p1120, %p1121
      %p1123 = scmp.ne.s32.totalorder %s1114, %s1115
      %p1124 = scmp.eq.s32.totalorder %s133, 0
      %p1125 = por %p1123, %p1124
      %p1126 = scmp.ne.s32.totalorder %s1114, %s1115
      %p1127 = scmp.eq.s32.totalorder %s134, 1
      %p1128 = por %p1126, %p1127
      %p1130 = scmp.ne.s32.totalorder %s1115, %s1129
      %p1131 = scmp.eq.s32.totalorder %s134, 0
      %p1132 = por %p1130, %p1131
      %s1134 = sadd.s32 %s1133, 1
      %p1137 = scmp.eq.s32.totalorder %s128, 1
      %p1138 = scmp.ne.s32.totalorder %s1133, %s1135
      %p1139 = scmp.eq.s32.totalorder %s128, 0
      %p1140 = por %p1138, %p1139
      %p1141 = scmp.ne.s32.totalorder %s1133, %s1135
      %p1142 = scmp.eq.s32.totalorder %s133, 1
      %p1143 = por %p1141, %p1142
      %p1144 = scmp.ne.s32.totalorder %s1135, %s1136
      %p1145 = scmp.eq.s32.totalorder %s133, 0
      %p1146 = por %p1144, %p1145
      %p1147 = scmp.ne.s32.totalorder %s1135, %s1136
      %p1148 = scmp.eq.s32.totalorder %s134, 1
      %p1149 = por %p1147, %p1148
      %p1151 = scmp.ne.s32.totalorder %s1136, %s1150
      %p1152 = scmp.eq.s32.totalorder %s134, 0
      %p1153 = por %p1151, %p1152
      %s1155 = sadd.s32 %s1154, 1
      %p1158 = scmp.eq.s32.totalorder %s128, 1
      %p1159 = scmp.ne.s32.totalorder %s1154, %s1156
      %p1160 = scmp.eq.s32.totalorder %s128, 0
      %p1161 = por %p1159, %p1160
      %p1162 = scmp.ne.s32.totalorder %s1154, %s1156
      %p1163 = scmp.eq.s32.totalorder %s133, 1
      %p1164 = por %p1162, %p1163
      %p1165 = scmp.ne.s32.totalorder %s1156, %s1157
      %p1166 = scmp.eq.s32.totalorder %s133, 0
      %p1167 = por %p1165, %p1166
      %p1168 = scmp.ne.s32.totalorder %s1156, %s1157
      %p1169 = scmp.eq.s32.totalorder %s134, 1
      %p1170 = por %p1168, %p1169
      %p1172 = scmp.ne.s32.totalorder %s1157, %s1171
      %p1173 = scmp.eq.s32.totalorder %s134, 0
      %p1174 = por %p1172, %p1173
      %s1176 = sadd.s32 %s1175, 1
      %p1179 = scmp.eq.s32.totalorder %s128, 1
      %p1180 = scmp.ne.s32.totalorder %s1175, %s1177
      %p1181 = scmp.eq.s32.totalorder %s128, 0
      %p1182 = por %p1180, %p1181
      %p1183 = scmp.ne.s32.totalorder %s1175, %s1177
      %p1184 = scmp.eq.s32.totalorder %s133, 1
      %p1185 = por %p1183, %p1184
      %p1186 = scmp.ne.s32.totalorder %s1177, %s1178
      %p1187 = scmp.eq.s32.totalorder %s133, 0
      %p1188 = por %p1186, %p1187
      %p1189 = scmp.ne.s32.totalorder %s1177, %s1178
      %p1190 = scmp.eq.s32.totalorder %s134, 1
      %p1191 = por %p1189, %p1190
      %p1193 = scmp.ne.s32.totalorder %s1178, %s1192
      %p1194 = scmp.eq.s32.totalorder %s134, 0
      %p1195 = por %p1193, %p1194
      %s1197 = sadd.s32 %s1196, 1
      %p1200 = scmp.eq.s32.totalorder %s128, 1
      %p1201 = scmp.ne.s32.totalorder %s1196, %s1198
      %p1202 = scmp.eq.s32.totalorder %s128, 0
      %p1203 = por %p1201, %p1202
      %p1204 = scmp.ne.s32.totalorder %s1196, %s1198
      %p1205 = scmp.eq.s32.totalorder %s133, 1
      %p1206 = por %p1204, %p1205
      %p1207 = scmp.ne.s32.totalorder %s1198, %s1199
      %p1208 = scmp.eq.s32.totalorder %s133, 0
      %p1209 = por %p1207, %p1208
      %p1210 = scmp.ne.s32.totalorder %s1198, %s1199
      %p1211 = scmp.eq.s32.totalorder %s134, 1
      %p1212 = por %p1210, %p1211
      %p1214 = scmp.ne.s32.totalorder %s1199, %s1213
      %p1215 = scmp.eq.s32.totalorder %s134, 0
      %p1216 = por %p1214, %p1215
      %s1218 = sadd.s32 %s1217, 1
      %p1221 = scmp.eq.s32.totalorder %s128, 1
      %p1222 = scmp.ne.s32.totalorder %s1217, %s1219
      %p1223 = scmp.eq.s32.totalorder %s128, 0
      %p1224 = por %p1222, %p1223
      %p1225 = scmp.ne.s32.totalorder %s1217, %s1219
      %p1226 = scmp.eq.s32.totalorder %s133, 1
      %p1227 = por %p1225, %p1226
      %p1228 = scmp.ne.s32.totalorder %s1219, %s1220
      %p1229 = scmp.eq.s32.totalorder %s133, 0
      %p1230 = por %p1228, %p1229
      %p1231 = scmp.ne.s32.totalorder %s1219, %s1220
      %p1232 = scmp.eq.s32.totalorder %s134, 1
      %p1233 = por %p1231, %p1232
      %p1235 = scmp.ne.s32.totalorder %s1220, %s1234
      %p1236 = scmp.eq.s32.totalorder %s134, 0
      %p1237 = por %p1235, %p1236
      %s1239 = sadd.s32 %s1238, 1
      %p1242 = scmp.eq.s32.totalorder %s128, 1
      %p1243 = scmp.ne.s32.totalorder %s1238, %s1240
      %p1244 = scmp.eq.s32.totalorder %s128, 0
      %p1245 = por %p1243, %p1244
      %p1246 = scmp.ne.s32.totalorder %s1238, %s1240
      %p1247 = scmp.eq.s32.totalorder %s133, 1
      %p1248 = por %p1246, %p1247
      %p1249 = scmp.ne.s32.totalorder %s1240, %s1241
      %p1250 = scmp.eq.s32.totalorder %s133, 0
      %p1251 = por %p1249, %p1250
      %p1252 = scmp.ne.s32.totalorder %s1240, %s1241
      %p1253 = scmp.eq.s32.totalorder %s134, 1
      %p1254 = por %p1252, %p1253
      %p1256 = scmp.ne.s32.totalorder %s1241, %s1255
      %p1257 = scmp.eq.s32.totalorder %s134, 0
      %p1258 = por %p1256, %p1257
      %s1260 = sadd.s32 %s1259, 1
      %p1263 = scmp.eq.s32.totalorder %s128, 1
      %p1264 = scmp.ne.s32.totalorder %s1259, %s1261
      %p1265 = scmp.eq.s32.totalorder %s128, 0
      %p1266 = por %p1264, %p1265
      %p1267 = scmp.ne.s32.totalorder %s1259, %s1261
      %p1268 = scmp.eq.s32.totalorder %s133, 1
      %p1269 = por %p1267, %p1268
      %p1270 = scmp.ne.s32.totalorder %s1261, %s1262
      %p1271 = scmp.eq.s32.totalorder %s133, 0
      %p1272 = por %p1270, %p1271
      %p1273 = scmp.ne.s32.totalorder %s1261, %s1262
      %p1274 = scmp.eq.s32.totalorder %s134, 1
      %p1275 = por %p1273, %p1274
      %p1277 = scmp.ne.s32.totalorder %s1262, %s1276
      %p1278 = scmp.eq.s32.totalorder %s134, 0
      %p1279 = por %p1277, %p1278
      %s1281 = sadd.s32 %s1280, 1
      %p1284 = scmp.eq.s32.totalorder %s128, 1
      %p1285 = scmp.ne.s32.totalorder %s1280, %s1282
      %p1286 = scmp.eq.s32.totalorder %s128, 0
      %p1287 = por %p1285, %p1286
      %p1288 = scmp.ne.s32.totalorder %s1280, %s1282
      %p1289 = scmp.eq.s32.totalorder %s133, 1
      %p1290 = por %p1288, %p1289
      %p1291 = scmp.ne.s32.totalorder %s1282, %s1283
      %p1292 = scmp.eq.s32.totalorder %s133, 0
      %p1293 = por %p1291, %p1292
      %p1294 = scmp.ne.s32.totalorder %s1282, %s1283
      %p1295 = scmp.eq.s32.totalorder %s134, 1
      %p1296 = por %p1294, %p1295
      %p1298 = scmp.ne.s32.totalorder %s1283, %s1297
      %p1299 = scmp.eq.s32.totalorder %s134, 0
      %p1300 = por %p1298, %p1299
      %s1302 = sadd.s32 %s1301, 1
      %p1305 = scmp.eq.s32.totalorder %s128, 1
      %p1306 = scmp.ne.s32.totalorder %s1301, %s1303
      %p1307 = scmp.eq.s32.totalorder %s128, 0
      %p1308 = por %p1306, %p1307
      %p1309 = scmp.ne.s32.totalorder %s1301, %s1303
      %p1310 = scmp.eq.s32.totalorder %s133, 1
      %p1311 = por %p1309, %p1310
      %p1312 = scmp.ne.s32.totalorder %s1303, %s1304
      %p1313 = scmp.eq.s32.totalorder %s133, 0
      %p1314 = por %p1312, %p1313
      %p1315 = scmp.ne.s32.totalorder %s1303, %s1304
      %p1316 = scmp.eq.s32.totalorder %s134, 1
      %p1317 = por %p1315, %p1316
      %p1319 = scmp.ne.s32.totalorder %s1304, %s1318
      %p1320 = scmp.eq.s32.totalorder %s134, 0
      %p1321 = por %p1319, %p1320
      %s1323 = sadd.s32 %s1322, 1
      %p1326 = scmp.eq.s32.totalorder %s128, 1
      %p1327 = scmp.ne.s32.totalorder %s1322, %s1324
      %p1328 = scmp.eq.s32.totalorder %s128, 0
      %p1329 = por %p1327, %p1328
      %p1330 = scmp.ne.s32.totalorder %s1322, %s1324
      %p1331 = scmp.eq.s32.totalorder %s133, 1
      %p1332 = por %p1330, %p1331
      %p1333 = scmp.ne.s32.totalorder %s1324, %s1325
      %p1334 = scmp.eq.s32.totalorder %s133, 0
      %p1335 = por %p1333, %p1334
      %p1336 = scmp.ne.s32.totalorder %s1324, %s1325
      %p1337 = scmp.eq.s32.totalorder %s134, 1
      %p1338 = por %p1336, %p1337
      %p1340 = scmp.ne.s32.totalorder %s1325, %s1339
      %p1341 = scmp.eq.s32.totalorder %s134, 0
      %p1342 = por %p1340, %p1341
      %s1343 = ssub.s32 %s128, %s135
      %p1344 = scmp.eq.s32.totalorder %s1343, 0
      %s1346 = sadd.s32 %s1345, 1
      %s1347 = scalar_select %p1344, %s1345, %s1346
      %p1350 = pneg %p1344
      %p1351 = scmp.eq.s32.totalorder %s128, 1
      %p1352 = por %p1350, %p1351
      %p1353 = scmp.ne.s32.totalorder %s1345, %s1348
      %p1354 = scmp.eq.s32.totalorder %s128, 0
      %p1355 = por %p1353, %p1354
      %p1356 = scmp.ne.s32.totalorder %s1345, %s1348
      %p1357 = scmp.eq.s32.totalorder %s133, 1
      %p1358 = por %p1356, %p1357
      %p1359 = scmp.ne.s32.totalorder %s1348, %s1349
      %p1360 = scmp.eq.s32.totalorder %s133, 0
      %p1361 = por %p1359, %p1360
      %p1362 = scmp.ne.s32.totalorder %s1348, %s1349
      %p1363 = scmp.eq.s32.totalorder %s134, 1
      %p1364 = por %p1362, %p1363
      %p1366 = scmp.ne.s32.totalorder %s1349, %s1365
      %p1367 = scmp.eq.s32.totalorder %s134, 0
      %p1368 = por %p1366, %p1367
      %p1369 = scmp.le.s32.totalorder 1, %s128
      %p1370 = scmp.lt.s32.totalorder %s128, 3
      %p1371 = pnand %p1369, %p1370
      %p1372 = pneg %p1371
      // Predicated region
      $region9: #{decoder_forward.1} parent=5 // pred_check
        _
      $region10: #{decoder_forward.1} parent=5 // pred_check_branch
        %1374 = sbr.rel (%p1371) target = $region12
      $region11: #{decoder_forward.1} parent=5 // pred_region
        %s1375 = ssub.s32 %s128, 1
        // Predicated region
        $region13: #{decoder_forward.1} parent=11 // pred_check
          %p1376 = pneg %p201
        $region14: #{decoder_forward.1} parent=11 // pred_check_branch
          %1378 = sbr.rel (%p1376) target = $region16
        $region15: #{decoder_forward.1} parent=11 // pred_region
          _
        $region16: #{decoder_forward.1} parent=11 // pred_fallthru
          _
        // Predicated region
        $region17: #{decoder_forward.1} parent=11 // pred_check
          %p1379 = pneg %p222
        $region18: #{decoder_forward.1} parent=11 // pred_check_branch
          %1381 = sbr.rel (%p1379) target = $region20
        $region19: #{decoder_forward.1} parent=11 // pred_region
          _
        $region20: #{decoder_forward.1} parent=11 // pred_fallthru
          _
        // Predicated region
        $region21: #{decoder_forward.1} parent=11 // pred_check
          %p1382 = pneg %p243
        $region22: #{decoder_forward.1} parent=11 // pred_check_branch
          %1384 = sbr.rel (%p1382) target = $region24
        $region23: #{decoder_forward.1} parent=11 // pred_region
          _
        $region24: #{decoder_forward.1} parent=11 // pred_fallthru
          _
        // Predicated region
        $region25: #{decoder_forward.1} parent=11 // pred_check
          %p1385 = pneg %p264
        $region26: #{decoder_forward.1} parent=11 // pred_check_branch
          %1387 = sbr.rel (%p1385) target = $region28
        $region27: #{decoder_forward.1} parent=11 // pred_region
          _
        $region28: #{decoder_forward.1} parent=11 // pred_fallthru
          _
        // Predicated region
        $region29: #{decoder_forward.1} parent=11 // pred_check
          %p1388 = pneg %p285
        $region30: #{decoder_forward.1} parent=11 // pred_check_branch
          %1390 = sbr.rel (%p1388) target = $region32
        $region31: #{decoder_forward.1} parent=11 // pred_region
          _
        $region32: #{decoder_forward.1} parent=11 // pred_fallthru
          _
        // Predicated region
        $region33: #{decoder_forward.1} parent=11 // pred_check
          %p1391 = pneg %p306
        $region34: #{decoder_forward.1} parent=11 // pred_check_branch
          %1393 = sbr.rel (%p1391) target = $region36
        $region35: #{decoder_forward.1} parent=11 // pred_region
          _
        $region36: #{decoder_forward.1} parent=11 // pred_fallthru
          _
        // Predicated region
        $region37: #{decoder_forward.1} parent=11 // pred_check
          %p1394 = pneg %p327
        $region38: #{decoder_forward.1} parent=11 // pred_check_branch
          %1396 = sbr.rel (%p1394) target = $region40
        $region39: #{decoder_forward.1} parent=11 // pred_region
          _
        $region40: #{decoder_forward.1} parent=11 // pred_fallthru
          _
        // Predicated region
        $region41: #{decoder_forward.1} parent=11 // pred_check
          %p1397 = pneg %p348
        $region42: #{decoder_forward.1} parent=11 // pred_check_branch
          %1399 = sbr.rel (%p1397) target = $region44
        $region43: #{decoder_forward.1} parent=11 // pred_region
          _
        $region44: #{decoder_forward.1} parent=11 // pred_fallthru
          _
        // Predicated region
        $region45: #{decoder_forward.1} parent=11 // pred_check
          %p1400 = pneg %p369
        $region46: #{decoder_forward.1} parent=11 // pred_check_branch
          %1402 = sbr.rel (%p1400) target = $region48
        $region47: #{decoder_forward.1} parent=11 // pred_region
          _
        $region48: #{decoder_forward.1} parent=11 // pred_fallthru
          _
        // Predicated region
        $region49: #{decoder_forward.1} parent=11 // pred_check
          %p1403 = pneg %p390
        $region50: #{decoder_forward.1} parent=11 // pred_check_branch
          %1405 = sbr.rel (%p1403) target = $region52
        $region51: #{decoder_forward.1} parent=11 // pred_region
          _
        $region52: #{decoder_forward.1} parent=11 // pred_fallthru
          _
        // Predicated region
        $region53: #{decoder_forward.1} parent=11 // pred_check
          %p1406 = pneg %p411
        $region54: #{decoder_forward.1} parent=11 // pred_check_branch
          %1408 = sbr.rel (%p1406) target = $region56
        $region55: #{decoder_forward.1} parent=11 // pred_region
          _
        $region56: #{decoder_forward.1} parent=11 // pred_fallthru
          _
        // Predicated region
        $region57: #{decoder_forward.1} parent=11 // pred_check
          %p1409 = pneg %p432
        $region58: #{decoder_forward.1} parent=11 // pred_check_branch
          %1411 = sbr.rel (%p1409) target = $region60
        $region59: #{decoder_forward.1} parent=11 // pred_region
          _
        $region60: #{decoder_forward.1} parent=11 // pred_fallthru
          _
        // Predicated region
        $region61: #{decoder_forward.1} parent=11 // pred_check
          %p1412 = pneg %p453
        $region62: #{decoder_forward.1} parent=11 // pred_check_branch
          %1414 = sbr.rel (%p1412) target = $region64
        $region63: #{decoder_forward.1} parent=11 // pred_region
          _
        $region64: #{decoder_forward.1} parent=11 // pred_fallthru
          _
        // Predicated region
        $region65: #{decoder_forward.1} parent=11 // pred_check
          %p1415 = pneg %p474
        $region66: #{decoder_forward.1} parent=11 // pred_check_branch
          %1417 = sbr.rel (%p1415) target = $region68
        $region67: #{decoder_forward.1} parent=11 // pred_region
          _
        $region68: #{decoder_forward.1} parent=11 // pred_fallthru
          _
        // Predicated region
        $region69: #{decoder_forward.1} parent=11 // pred_check
          %p1418 = pneg %p495
        $region70: #{decoder_forward.1} parent=11 // pred_check_branch
          %1420 = sbr.rel (%p1418) target = $region72
        $region71: #{decoder_forward.1} parent=11 // pred_region
          _
        $region72: #{decoder_forward.1} parent=11 // pred_fallthru
          _
        // Predicated region
        $region73: #{decoder_forward.1} parent=11 // pred_check
          %p1421 = pneg %p516
        $region74: #{decoder_forward.1} parent=11 // pred_check_branch
          %1423 = sbr.rel (%p1421) target = $region76
        $region75: #{decoder_forward.1} parent=11 // pred_region
          _
        $region76: #{decoder_forward.1} parent=11 // pred_fallthru
          _
        // Predicated region
        $region77: #{decoder_forward.1} parent=11 // pred_check
          %p1424 = pneg %p537
        $region78: #{decoder_forward.1} parent=11 // pred_check_branch
          %1426 = sbr.rel (%p1424) target = $region80
        $region79: #{decoder_forward.1} parent=11 // pred_region
          _
        $region80: #{decoder_forward.1} parent=11 // pred_fallthru
          _
        // Predicated region
        $region81: #{decoder_forward.1} parent=11 // pred_check
          %p1427 = pneg %p558
        $region82: #{decoder_forward.1} parent=11 // pred_check_branch
          %1429 = sbr.rel (%p1427) target = $region84
        $region83: #{decoder_forward.1} parent=11 // pred_region
          _
        $region84: #{decoder_forward.1} parent=11 // pred_fallthru
          _
        // Predicated region
        $region85: #{decoder_forward.1} parent=11 // pred_check
          %p1430 = pneg %p579
        $region86: #{decoder_forward.1} parent=11 // pred_check_branch
          %1432 = sbr.rel (%p1430) target = $region88
        $region87: #{decoder_forward.1} parent=11 // pred_region
          _
        $region88: #{decoder_forward.1} parent=11 // pred_fallthru
          _
        // Predicated region
        $region89: #{decoder_forward.1} parent=11 // pred_check
          %p1433 = pneg %p600
        $region90: #{decoder_forward.1} parent=11 // pred_check_branch
          %1435 = sbr.rel (%p1433) target = $region92
        $region91: #{decoder_forward.1} parent=11 // pred_region
          _
        $region92: #{decoder_forward.1} parent=11 // pred_fallthru
          _
        // Predicated region
        $region93: #{decoder_forward.1} parent=11 // pred_check
          %p1436 = pneg %p621
        $region94: #{decoder_forward.1} parent=11 // pred_check_branch
          %1438 = sbr.rel (%p1436) target = $region96
        $region95: #{decoder_forward.1} parent=11 // pred_region
          _
        $region96: #{decoder_forward.1} parent=11 // pred_fallthru
          _
        // Predicated region
        $region97: #{decoder_forward.1} parent=11 // pred_check
          %p1439 = pneg %p642
        $region98: #{decoder_forward.1} parent=11 // pred_check_branch
          %1441 = sbr.rel (%p1439) target = $region100
        $region99: #{decoder_forward.1} parent=11 // pred_region
          _
        $region100: #{decoder_forward.1} parent=11 // pred_fallthru
          _
        // Predicated region
        $region101: #{decoder_forward.1} parent=11 // pred_check
          %p1442 = pneg %p663
        $region102: #{decoder_forward.1} parent=11 // pred_check_branch
          %1444 = sbr.rel (%p1442) target = $region104
        $region103: #{decoder_forward.1} parent=11 // pred_region
          _
        $region104: #{decoder_forward.1} parent=11 // pred_fallthru
          _
        // Predicated region
        $region105: #{decoder_forward.1} parent=11 // pred_check
          %p1445 = pneg %p684
        $region106: #{decoder_forward.1} parent=11 // pred_check_branch
          %1447 = sbr.rel (%p1445) target = $region108
        $region107: #{decoder_forward.1} parent=11 // pred_region
          %1449 = vsyncadd [#allocation3], 0
          %s1451 = sshll.u32 %s51, 4
          %s1452 = int_to_ptr.hbm [resolvable:$true] %s1451
          %s1453 = sshll.u32 [#allocation2], 4
          %s1454 = int_to_ptr.vmem [resolvable:$true] %s1453
          %1456 = dma.hbm_to_vmem [thread:$0]  %s1452, 16, %s1454, [#allocation3]
        $region108: #{decoder_forward.1} parent=11 // pred_fallthru
          _
        // Predicated region
        $region109: #{decoder_forward.1} parent=11 // pred_check
          %p1457 = pneg %p705
        $region110: #{decoder_forward.1} parent=11 // pred_check_branch
          %1459 = sbr.rel (%p1457) target = $region112
        $region111: #{decoder_forward.1} parent=11 // pred_region
          %1461 = vsyncadd [#allocation5], 0
          %s1463 = sshll.u32 %s53, 4
          %s1464 = int_to_ptr.hbm [resolvable:$true] %s1463
          %s1465 = sshll.u32 [#allocation4], 4
          %s1466 = int_to_ptr.vmem [resolvable:$true] %s1465
          %1468 = dma.hbm_to_vmem [thread:$0]  %s1464, 16, %s1466, [#allocation5]
        $region112: #{decoder_forward.1} parent=11 // pred_fallthru
          _
        // Predicated region
        $region113: #{decoder_forward.1} parent=11 // pred_check
          %p1469 = pneg %p726
        $region114: #{decoder_forward.1} parent=11 // pred_check_branch
          %1471 = sbr.rel (%p1469) target = $region116
        $region115: #{decoder_forward.1} parent=11 // pred_region
          %1473 = vsyncadd [#allocation5], 0
          %s1475 = sshll.u32 %s55, 4
          %s1476 = int_to_ptr.hbm [resolvable:$true] %s1475
          %s1477 = sshll.u32 [#allocation6], 4
          %s1478 = int_to_ptr.vmem [resolvable:$true] %s1477
          %1480 = dma.hbm_to_vmem [thread:$0]  %s1476, 16, %s1478, [#allocation5]
        $region116: #{decoder_forward.1} parent=11 // pred_fallthru
          _
        // Predicated region
        $region117: #{decoder_forward.1} parent=11 // pred_check
          %p1481 = pneg %p747
        $region118: #{decoder_forward.1} parent=11 // pred_check_branch
          %1483 = sbr.rel (%p1481) target = $region120
        $region119: #{decoder_forward.1} parent=11 // pred_region
          %1485 = vsyncadd [#allocation8], 0
          %s1487 = sshll.u32 %s57, 4
          %s1488 = int_to_ptr.hbm [resolvable:$true] %s1487
          %s1489 = sshll.u32 [#allocation7], 4
          %s1490 = int_to_ptr.vmem [resolvable:$true] %s1489
          %1492 = dma.hbm_to_vmem [thread:$0]  %s1488, 16, %s1490, [#allocation8]
        $region120: #{decoder_forward.1} parent=11 // pred_fallthru
          _
        // Predicated region
        $region121: #{decoder_forward.1} parent=11 // pred_check
          %p1493 = pneg %p768
        $region122: #{decoder_forward.1} parent=11 // pred_check_branch
          %1495 = sbr.rel (%p1493) target = $region124
        $region123: #{decoder_forward.1} parent=11 // pred_region
          %1497 = vsyncadd [#allocation8], 0
          %s1499 = sshll.u32 %s59, 4
          %s1500 = int_to_ptr.hbm [resolvable:$true] %s1499
          %s1501 = sshll.u32 [#allocation9], 4
          %s1502 = int_to_ptr.vmem [resolvable:$true] %s1501
          %1504 = dma.hbm_to_vmem [thread:$0]  %s1500, 16, %s1502, [#allocation8]
        $region124: #{decoder_forward.1} parent=11 // pred_fallthru
          _
        // Predicated region
        $region125: #{decoder_forward.1} parent=11 // pred_check
          %p1505 = pneg %p789
        $region126: #{decoder_forward.1} parent=11 // pred_check_branch
          %1507 = sbr.rel (%p1505) target = $region128
        $region127: #{decoder_forward.1} parent=11 // pred_region
          %1509 = vsyncadd [#allocation11], 0
          %s1511 = sshll.u32 %s61, 4
          %s1512 = int_to_ptr.hbm [resolvable:$true] %s1511
          %s1513 = sshll.u32 [#allocation10], 4
          %s1514 = int_to_ptr.vmem [resolvable:$true] %s1513
          %1516 = dma.hbm_to_vmem [thread:$0]  %s1512, 16, %s1514, [#allocation11]
        $region128: #{decoder_forward.1} parent=11 // pred_fallthru
          _
        // Predicated region
        $region129: #{decoder_forward.1} parent=11 // pred_check
          %p1517 = pneg %p810
        $region130: #{decoder_forward.1} parent=11 // pred_check_branch
          %1519 = sbr.rel (%p1517) target = $region132
        $region131: #{decoder_forward.1} parent=11 // pred_region
          %1521 = vsyncadd [#allocation11], 0
          %s1523 = sshll.u32 %s63, 4
          %s1524 = int_to_ptr.hbm [resolvable:$true] %s1523
          %s1525 = sshll.u32 [#allocation12], 4
          %s1526 = int_to_ptr.vmem [resolvable:$true] %s1525
          %1528 = dma.hbm_to_vmem [thread:$0]  %s1524, 16, %s1526, [#allocation11]
        $region132: #{decoder_forward.1} parent=11 // pred_fallthru
          _
        // Predicated region
        $region133: #{decoder_forward.1} parent=11 // pred_check
          %p1529 = pneg %p831
        $region134: #{decoder_forward.1} parent=11 // pred_check_branch
          %1531 = sbr.rel (%p1529) target = $region136
        $region135: #{decoder_forward.1} parent=11 // pred_region
          %1533 = vsyncadd [#allocation14], 0
          %s1535 = sshll.u32 %s65, 4
          %s1536 = int_to_ptr.hbm [resolvable:$true] %s1535
          %s1537 = sshll.u32 [#allocation13], 4
          %s1538 = int_to_ptr.vmem [resolvable:$true] %s1537
          %1540 = dma.hbm_to_vmem [thread:$0]  %s1536, 16, %s1538, [#allocation14]
        $region136: #{decoder_forward.1} parent=11 // pred_fallthru
          _
        // Predicated region
        $region137: #{decoder_forward.1} parent=11 // pred_check
          %p1541 = pneg %p852
        $region138: #{decoder_forward.1} parent=11 // pred_check_branch
          %1543 = sbr.rel (%p1541) target = $region140
        $region139: #{decoder_forward.1} parent=11 // pred_region
          %1545 = vsyncadd [#allocation14], 0
          %s1547 = sshll.u32 %s67, 4
          %s1548 = int_to_ptr.hbm [resolvable:$true] %s1547
          %s1549 = sshll.u32 [#allocation15], 4
          %s1550 = int_to_ptr.vmem [resolvable:$true] %s1549
          %1552 = dma.hbm_to_vmem [thread:$0]  %s1548, 16, %s1550, [#allocation14]
        $region140: #{decoder_forward.1} parent=11 // pred_fallthru
          _
        // Predicated region
        $region141: #{decoder_forward.1} parent=11 // pred_check
          %p1553 = pneg %p873
        $region142: #{decoder_forward.1} parent=11 // pred_check_branch
          %1555 = sbr.rel (%p1553) target = $region144
        $region143: #{decoder_forward.1} parent=11 // pred_region
          %1557 = vsyncadd [#allocation17], 0
          %s1559 = sshll.u32 %s69, 4
          %s1560 = int_to_ptr.hbm [resolvable:$true] %s1559
          %s1561 = sshll.u32 [#allocation16], 4
          %s1562 = int_to_ptr.vmem [resolvable:$true] %s1561
          %1564 = dma.hbm_to_vmem [thread:$0]  %s1560, 16, %s1562, [#allocation17]
        $region144: #{decoder_forward.1} parent=11 // pred_fallthru
          _
        // Predicated region
        $region145: #{decoder_forward.1} parent=11 // pred_check
          %p1565 = pneg %p894
        $region146: #{decoder_forward.1} parent=11 // pred_check_branch
          %1567 = sbr.rel (%p1565) target = $region148
        $region147: #{decoder_forward.1} parent=11 // pred_region
          %1569 = vsyncadd [#allocation17], 0
          %s1571 = sshll.u32 %s71, 4
          %s1572 = int_to_ptr.hbm [resolvable:$true] %s1571
          %s1573 = sshll.u32 [#allocation18], 4
          %s1574 = int_to_ptr.vmem [resolvable:$true] %s1573
          %1576 = dma.hbm_to_vmem [thread:$0]  %s1572, 16, %s1574, [#allocation17]
        $region148: #{decoder_forward.1} parent=11 // pred_fallthru
          _
        // Predicated region
        $region149: #{decoder_forward.1} parent=11 // pred_check
          %p1577 = pneg %p915
        $region150: #{decoder_forward.1} parent=11 // pred_check_branch
          %1579 = sbr.rel (%p1577) target = $region152
        $region151: #{decoder_forward.1} parent=11 // pred_region
          %1581 = vsyncadd [#allocation20], 0
          %s1583 = sshll.u32 %s73, 4
          %s1584 = int_to_ptr.hbm [resolvable:$true] %s1583
          %s1585 = sshll.u32 [#allocation19], 4
          %s1586 = int_to_ptr.vmem [resolvable:$true] %s1585
          %1588 = dma.hbm_to_vmem [thread:$0]  %s1584, 16, %s1586, [#allocation20]
        $region152: #{decoder_forward.1} parent=11 // pred_fallthru
          _
        // Predicated region
        $region153: #{decoder_forward.1} parent=11 // pred_check
          %p1589 = pneg %p936
        $region154: #{decoder_forward.1} parent=11 // pred_check_branch
          %1591 = sbr.rel (%p1589) target = $region156
        $region155: #{decoder_forward.1} parent=11 // pred_region
          _
        $region156: #{decoder_forward.1} parent=11 // pred_fallthru
          _
        // Predicated region
        $region157: #{decoder_forward.1} parent=11 // pred_check
          %p1592 = pneg %p957
        $region158: #{decoder_forward.1} parent=11 // pred_check_branch
          %1594 = sbr.rel (%p1592) target = $region160
        $region159: #{decoder_forward.1} parent=11 // pred_region
          _
        $region160: #{decoder_forward.1} parent=11 // pred_fallthru
          _
        // Predicated region
        $region161: #{decoder_forward.1} parent=11 // pred_check
          %p1595 = pneg %p978
        $region162: #{decoder_forward.1} parent=11 // pred_check_branch
          %1597 = sbr.rel (%p1595) target = $region164
        $region163: #{decoder_forward.1} parent=11 // pred_region
          _
        $region164: #{decoder_forward.1} parent=11 // pred_fallthru
          _
        // Predicated region
        $region165: #{decoder_forward.1} parent=11 // pred_check
          %p1598 = pneg %p999
        $region166: #{decoder_forward.1} parent=11 // pred_check_branch
          %1600 = sbr.rel (%p1598) target = $region168
        $region167: #{decoder_forward.1} parent=11 // pred_region
          _
        $region168: #{decoder_forward.1} parent=11 // pred_fallthru
          _
        // Predicated region
        $region169: #{decoder_forward.1} parent=11 // pred_check
          %p1601 = pneg %p1020
        $region170: #{decoder_forward.1} parent=11 // pred_check_branch
          %1603 = sbr.rel (%p1601) target = $region172
        $region171: #{decoder_forward.1} parent=11 // pred_region
          _
        $region172: #{decoder_forward.1} parent=11 // pred_fallthru
          _
        // Predicated region
        $region173: #{decoder_forward.1} parent=11 // pred_check
          %p1604 = pneg %p1041
        $region174: #{decoder_forward.1} parent=11 // pred_check_branch
          %1606 = sbr.rel (%p1604) target = $region176
        $region175: #{decoder_forward.1} parent=11 // pred_region
          _
        $region176: #{decoder_forward.1} parent=11 // pred_fallthru
          _
        // Predicated region
        $region177: #{decoder_forward.1} parent=11 // pred_check
          %p1607 = pneg %p1062
        $region178: #{decoder_forward.1} parent=11 // pred_check_branch
          %1609 = sbr.rel (%p1607) target = $region180
        $region179: #{decoder_forward.1} parent=11 // pred_region
          %1611 = vsyncadd [#allocation20], 0
          %s1613 = sshll.u32 %s87, 4
          %s1614 = int_to_ptr.hbm [resolvable:$true] %s1613
          %s1615 = sshll.u32 [#allocation21], 4
          %s1616 = int_to_ptr.vmem [resolvable:$true] %s1615
          %1618 = dma.hbm_to_vmem [thread:$0]  %s1614, 16, %s1616, [#allocation20]
        $region180: #{decoder_forward.1} parent=11 // pred_fallthru
          _
        // Predicated region
        $region181: #{decoder_forward.1} parent=11 // pred_check
          %p1619 = pneg %p1083
        $region182: #{decoder_forward.1} parent=11 // pred_check_branch
          %1621 = sbr.rel (%p1619) target = $region184
        $region183: #{decoder_forward.1} parent=11 // pred_region
          _
        $region184: #{decoder_forward.1} parent=11 // pred_fallthru
          _
        // Predicated region
        $region185: #{decoder_forward.1} parent=11 // pred_check
          %p1622 = pneg %p1104
        $region186: #{decoder_forward.1} parent=11 // pred_check_branch
          %1624 = sbr.rel (%p1622) target = $region188
        $region187: #{decoder_forward.1} parent=11 // pred_region
          _
        $region188: #{decoder_forward.1} parent=11 // pred_fallthru
          _
        // Predicated region
        $region189: #{decoder_forward.1} parent=11 // pred_check
          %p1625 = pneg %p1125
        $region190: #{decoder_forward.1} parent=11 // pred_check_branch
          %1627 = sbr.rel (%p1625) target = $region192
        $region191: #{decoder_forward.1} parent=11 // pred_region
          _
        $region192: #{decoder_forward.1} parent=11 // pred_fallthru
          _
        // Predicated region
        $region193: #{decoder_forward.1} parent=11 // pred_check
          %p1628 = pneg %p1146
        $region194: #{decoder_forward.1} parent=11 // pred_check_branch
          %1630 = sbr.rel (%p1628) target = $region196
        $region195: #{decoder_forward.1} parent=11 // pred_region
          _
        $region196: #{decoder_forward.1} parent=11 // pred_fallthru
          _
        // Predicated region
        $region197: #{decoder_forward.1} parent=11 // pred_check
          %p1631 = pneg %p1167
        $region198: #{decoder_forward.1} parent=11 // pred_check_branch
          %1633 = sbr.rel (%p1631) target = $region200
        $region199: #{decoder_forward.1} parent=11 // pred_region
          _
        $region200: #{decoder_forward.1} parent=11 // pred_fallthru
          _
        // Predicated region
        $region201: #{decoder_forward.1} parent=11 // pred_check
          %p1634 = pneg %p1188
        $region202: #{decoder_forward.1} parent=11 // pred_check_branch
          %1636 = sbr.rel (%p1634) target = $region204
        $region203: #{decoder_forward.1} parent=11 // pred_region
          _
        $region204: #{decoder_forward.1} parent=11 // pred_fallthru
          _
        // Predicated region
        $region205: #{decoder_forward.1} parent=11 // pred_check
          %p1637 = pneg %p1209
        $region206: #{decoder_forward.1} parent=11 // pred_check_branch
          %1639 = sbr.rel (%p1637) target = $region208
        $region207: #{decoder_forward.1} parent=11 // pred_region
          _
        $region208: #{decoder_forward.1} parent=11 // pred_fallthru
          _
        // Predicated region
        $region209: #{decoder_forward.1} parent=11 // pred_check
          %p1640 = pneg %p1230
        $region210: #{decoder_forward.1} parent=11 // pred_check_branch
          %1642 = sbr.rel (%p1640) target = $region212
        $region211: #{decoder_forward.1} parent=11 // pred_region
          _
        $region212: #{decoder_forward.1} parent=11 // pred_fallthru
          _
        // Predicated region
        $region213: #{decoder_forward.1} parent=11 // pred_check
          %p1643 = pneg %p1251
        $region214: #{decoder_forward.1} parent=11 // pred_check_branch
          %1645 = sbr.rel (%p1643) target = $region216
        $region215: #{decoder_forward.1} parent=11 // pred_region
          _
        $region216: #{decoder_forward.1} parent=11 // pred_fallthru
          _
        // Predicated region
        $region217: #{decoder_forward.1} parent=11 // pred_check
          %p1646 = pneg %p1272
        $region218: #{decoder_forward.1} parent=11 // pred_check_branch
          %1648 = sbr.rel (%p1646) target = $region220
        $region219: #{decoder_forward.1} parent=11 // pred_region
          _
        $region220: #{decoder_forward.1} parent=11 // pred_fallthru
          _
        // Predicated region
        $region221: #{decoder_forward.1} parent=11 // pred_check
          %p1649 = pneg %p1293
        $region222: #{decoder_forward.1} parent=11 // pred_check_branch
          %1651 = sbr.rel (%p1649) target = $region224
        $region223: #{decoder_forward.1} parent=11 // pred_region
          _
        $region224: #{decoder_forward.1} parent=11 // pred_fallthru
          _
        // Predicated region
        $region225: #{decoder_forward.1} parent=11 // pred_check
          %p1652 = pneg %p1314
        $region226: #{decoder_forward.1} parent=11 // pred_check_branch
          %1654 = sbr.rel (%p1652) target = $region228
        $region227: #{decoder_forward.1} parent=11 // pred_region
          _
        $region228: #{decoder_forward.1} parent=11 // pred_fallthru
          _
        // Predicated region
        $region229: #{decoder_forward.1} parent=11 // pred_check
          %p1655 = pneg %p1335
        $region230: #{decoder_forward.1} parent=11 // pred_check_branch
          %1657 = sbr.rel (%p1655) target = $region232
        $region231: #{decoder_forward.1} parent=11 // pred_region
          _
        $region232: #{decoder_forward.1} parent=11 // pred_fallthru
          _
      $region12: #{decoder_forward.1} parent=5 // pred_fallthru
        _
      %p1658 = scmp.lt.s32.totalorder %s128, 2
      // Predicated region
      $region233: #{decoder_forward.1} parent=5 // pred_check
        %p1659 = pneg %p1658
      $region234: #{decoder_forward.1} parent=5 // pred_check_branch
        %1661 = sbr.rel (%p1659) target = $region236
      $region235: #{decoder_forward.1} parent=5 // pred_region
        // Predicated region
        $region237: #{decoder_forward.1} parent=235 // pred_check
          %p1662 = pneg %p148
        $region238: #{decoder_forward.1} parent=235 // pred_check_branch
          %1664 = sbr.rel (%p1662) target = $region240
        $region239: #{decoder_forward.1} parent=235 // pred_region
          %p1665 = scmp.lt.s32.totalorder %s128, 1
          %s1666 = scalar_select %p1665, %s128, 1
          %s1667 = smul.addr %s1666, 8
          %s1668 = scalar_lea.vmem %s1, %s1667
        $region240: #{decoder_forward.1} parent=235 // pred_fallthru
          _
        // Predicated region
        $region241: #{decoder_forward.1} parent=235 // pred_check
          %p1669 = pneg %p174
        $region242: #{decoder_forward.1} parent=235 // pred_check_branch
          %1671 = sbr.rel (%p1669) target = $region244
        $region243: #{decoder_forward.1} parent=235 // pred_region
          %p1672 = scmp.lt.s32.totalorder %s128, 1
          %s1673 = scalar_select %p1672, %s128, 1
          %s1674 = smul.addr %s1673, 8
          %s1675 = scalar_lea.vmem %s3, %s1674
        $region244: #{decoder_forward.1} parent=235 // pred_fallthru
          _
      $region236: #{decoder_forward.1} parent=5 // pred_fallthru
        _
      %p1676 = scmp.le.s32.totalorder 1, %s128
      %p1677 = scmp.lt.s32.totalorder %s128, 3
      %p1678 = pnand %p1676, %p1677
      %p1679 = pneg %p1678
      // Predicated region
      $region245: #{decoder_forward.1} parent=5 // pred_check
        _
      $region246: #{decoder_forward.1} parent=5 // pred_check_branch
        %1681 = sbr.rel (%p1678) target = $region248
      $region247: #{decoder_forward.1} parent=5 // pred_region
        %s1682 = ssub.s32 %s128, 1
        // Predicated region
        $region249: #{decoder_forward.1} parent=247 // pred_check
          %p1683 = pneg %p684
        $region250: #{decoder_forward.1} parent=247 // pred_check_branch
          %1685 = sbr.rel (%p1683) target = $region252
        $region251: #{decoder_forward.1} parent=247 // pred_region
          %1687 = dma.done [#allocation3], 16
        $region252: #{decoder_forward.1} parent=247 // pred_fallthru
          _
        // Predicated region
        $region253: #{decoder_forward.1} parent=247 // pred_check
          %p1688 = pneg %p705
        $region254: #{decoder_forward.1} parent=247 // pred_check_branch
          %1690 = sbr.rel (%p1688) target = $region256
        $region255: #{decoder_forward.1} parent=247 // pred_region
          %1692 = dma.done [#allocation5], 16
        $region256: #{decoder_forward.1} parent=247 // pred_fallthru
          _
        // Predicated region
        $region257: #{decoder_forward.1} parent=247 // pred_check
          %p1693 = pneg %p726
        $region258: #{decoder_forward.1} parent=247 // pred_check_branch
          %1695 = sbr.rel (%p1693) target = $region260
        $region259: #{decoder_forward.1} parent=247 // pred_region
          %1697 = dma.done [#allocation5], 16
        $region260: #{decoder_forward.1} parent=247 // pred_fallthru
          _
        // Predicated region
        $region261: #{decoder_forward.1} parent=247 // pred_check
          %p1698 = pneg %p747
        $region262: #{decoder_forward.1} parent=247 // pred_check_branch
          %1700 = sbr.rel (%p1698) target = $region264
        $region263: #{decoder_forward.1} parent=247 // pred_region
          %1702 = dma.done [#allocation8], 16
        $region264: #{decoder_forward.1} parent=247 // pred_fallthru
          _
        // Predicated region
        $region265: #{decoder_forward.1} parent=247 // pred_check
          %p1703 = pneg %p768
        $region266: #{decoder_forward.1} parent=247 // pred_check_branch
          %1705 = sbr.rel (%p1703) target = $region268
        $region267: #{decoder_forward.1} parent=247 // pred_region
          %1707 = dma.done [#allocation8], 16
        $region268: #{decoder_forward.1} parent=247 // pred_fallthru
          _
        // Predicated region
        $region269: #{decoder_forward.1} parent=247 // pred_check
          %p1708 = pneg %p789
        $region270: #{decoder_forward.1} parent=247 // pred_check_branch
          %1710 = sbr.rel (%p1708) target = $region272
        $region271: #{decoder_forward.1} parent=247 // pred_region
          %1712 = dma.done [#allocation11], 16
        $region272: #{decoder_forward.1} parent=247 // pred_fallthru
          _
        // Predicated region
        $region273: #{decoder_forward.1} parent=247 // pred_check
          %p1713 = pneg %p810
        $region274: #{decoder_forward.1} parent=247 // pred_check_branch
          %1715 = sbr.rel (%p1713) target = $region276
        $region275: #{decoder_forward.1} parent=247 // pred_region
          %1717 = dma.done [#allocation11], 16
        $region276: #{decoder_forward.1} parent=247 // pred_fallthru
          _
        // Predicated region
        $region277: #{decoder_forward.1} parent=247 // pred_check
          %p1718 = pneg %p831
        $region278: #{decoder_forward.1} parent=247 // pred_check_branch
          %1720 = sbr.rel (%p1718) target = $region280
        $region279: #{decoder_forward.1} parent=247 // pred_region
          %1722 = dma.done [#allocation14], 16
        $region280: #{decoder_forward.1} parent=247 // pred_fallthru
          _
        // Predicated region
        $region281: #{decoder_forward.1} parent=247 // pred_check
          %p1723 = pneg %p852
        $region282: #{decoder_forward.1} parent=247 // pred_check_branch
          %1725 = sbr.rel (%p1723) target = $region284
        $region283: #{decoder_forward.1} parent=247 // pred_region
          %1727 = dma.done [#allocation14], 16
        $region284: #{decoder_forward.1} parent=247 // pred_fallthru
          _
        // Predicated region
        $region285: #{decoder_forward.1} parent=247 // pred_check
          %p1728 = pneg %p873
        $region286: #{decoder_forward.1} parent=247 // pred_check_branch
          %1730 = sbr.rel (%p1728) target = $region288
        $region287: #{decoder_forward.1} parent=247 // pred_region
          %1732 = dma.done [#allocation17], 16
        $region288: #{decoder_forward.1} parent=247 // pred_fallthru
          _
        // Predicated region
        $region289: #{decoder_forward.1} parent=247 // pred_check
          %p1733 = pneg %p894
        $region290: #{decoder_forward.1} parent=247 // pred_check_branch
          %1735 = sbr.rel (%p1733) target = $region292
        $region291: #{decoder_forward.1} parent=247 // pred_region
          %1737 = dma.done [#allocation17], 16
        $region292: #{decoder_forward.1} parent=247 // pred_fallthru
          _
        // Predicated region
        $region293: #{decoder_forward.1} parent=247 // pred_check
          %p1738 = pneg %p915
        $region294: #{decoder_forward.1} parent=247 // pred_check_branch
          %1740 = sbr.rel (%p1738) target = $region296
        $region295: #{decoder_forward.1} parent=247 // pred_region
          %1742 = dma.done [#allocation20], 16
        $region296: #{decoder_forward.1} parent=247 // pred_fallthru
          _
        // Predicated region
        $region297: #{decoder_forward.1} parent=247 // pred_check
          %p1743 = pneg %p1062
        $region298: #{decoder_forward.1} parent=247 // pred_check_branch
          %1745 = sbr.rel (%p1743) target = $region300
        $region299: #{decoder_forward.1} parent=247 // pred_region
          %1747 = dma.done [#allocation20], 16
        $region300: #{decoder_forward.1} parent=247 // pred_fallthru
          _
        %p1748 = scmp.lt.s32.totalorder %s133, 1
        %s1749 = scalar_select %p1748, %s133, 1
        %s1750 = smul.addr %s1749, 8
        %s1751 = scalar_lea.vmem %s1, %s1750
        %p1752 = pneg %p154
        %p1753 = pneg %p151
        %p1754 = scmp.lt.s32.totalorder %s133, 1
        %s1755 = scalar_select %p1754, %s133, 1
        %s1756 = smul.addr %s1755, 8
        %s1757 = scalar_lea.vmem %s3, %s1756
        %p1758 = pneg %p180
        %p1759 = pneg %p177
        %p1760 = pneg %p201
        %p1761 = pneg %p198
        %p1762 = pneg %p222
        %p1763 = pneg %p219
        %p1764 = pneg %p243
        %p1765 = pneg %p240
        %p1766 = pneg %p264
        %p1767 = pneg %p261
        %p1768 = pneg %p285
        %p1769 = pneg %p282
        %p1770 = pneg %p306
        %p1771 = pneg %p303
        %p1772 = pneg %p327
        %p1773 = pneg %p324
        %p1774 = pneg %p348
        %p1775 = pneg %p345
        %p1776 = pneg %p369
        %p1777 = pneg %p366
        %p1778 = pneg %p390
        %p1779 = pneg %p387
        %p1780 = pneg %p411
        %p1781 = pneg %p408
        %p1782 = pneg %p432
        %p1783 = pneg %p429
        %p1784 = pneg %p453
        %p1785 = pneg %p450
        %p1786 = pneg %p474
        %p1787 = pneg %p471
        %p1788 = pneg %p495
        %p1789 = pneg %p492
        %p1790 = pneg %p516
        %p1791 = pneg %p513
        %p1792 = pneg %p537
        %p1793 = pneg %p534
        %p1794 = pneg %p558
        %p1795 = pneg %p555
        %p1796 = pneg %p579
        %p1797 = pneg %p576
        %p1798 = pneg %p600
        %p1799 = pneg %p597
        %p1800 = pneg %p621
        %p1801 = pneg %p618
        %p1802 = pneg %p642
        %p1803 = pneg %p639
        %p1804 = pneg %p663
        %p1805 = pneg %p660
        %p1806 = pneg %p684
        %p1807 = pneg %p681
        %p1808 = pneg %p705
        %p1809 = pneg %p702
        %p1810 = pneg %p726
        %p1811 = pneg %p723
        %p1812 = pneg %p747
        %p1813 = pneg %p744
        %p1814 = pneg %p768
        %p1815 = pneg %p765
        %p1816 = pneg %p789
        %p1817 = pneg %p786
        %p1818 = pneg %p810
        %p1819 = pneg %p807
        %p1820 = pneg %p831
        %p1821 = pneg %p828
        %p1822 = pneg %p852
        %p1823 = pneg %p849
        %p1824 = pneg %p873
        %p1825 = pneg %p870
        %p1826 = pneg %p894
        %p1827 = pneg %p891
        %p1828 = pneg %p915
        %p1829 = pneg %p912
        %p1830 = pneg %p936
        %p1831 = pneg %p933
        %p1832 = pneg %p957
        %p1833 = pneg %p954
        %p1834 = pneg %p978
        %p1835 = pneg %p975
        %p1836 = pneg %p999
        %p1837 = pneg %p996
        %p1838 = pneg %p1020
        %p1839 = pneg %p1017
        %p1840 = pneg %p1041
        %p1841 = pneg %p1038
        %p1842 = pneg %p1062
        %p1843 = pneg %p1059
        %p1844 = pneg %p1083
        %p1845 = pneg %p1080
        %p1846 = pneg %p1104
        %p1847 = pneg %p1101
        %p1848 = pneg %p1125
        %p1849 = pneg %p1122
        %p1850 = pneg %p1146
        %p1851 = pneg %p1143
        %p1852 = pneg %p1167
        %p1853 = pneg %p1164
        %p1854 = pneg %p1188
        %p1855 = pneg %p1185
        %p1856 = pneg %p1209
        %p1857 = pneg %p1206
        %p1858 = pneg %p1230
        %p1859 = pneg %p1227
        %p1860 = pneg %p1251
        %p1861 = pneg %p1248
        %p1862 = pneg %p1272
        %p1863 = pneg %p1269
        %p1864 = pneg %p1293
        %p1865 = pneg %p1290
        %p1866 = pneg %p1314
        %p1867 = pneg %p1311
        %p1868 = pneg %p1335
        %p1869 = pneg %p1332
        %p1870 = pneg %p1361
        %p1871 = pneg %p1358
        %p1872 = scmp.lt.s32.totalorder %s133, 1
        %s1873 = scalar_select %p1872, %s133, 1
        %s1874 = smul.addr %s1873, 8
        %s1875 = scalar_lea.vmem %s115, %s1874
        %p1876 = scmp.lt.s32.totalorder %s133, 1
        %s1877 = scalar_select %p1876, %s133, 1
        %s1878 = smul.addr %s1877, 8
        %s1879 = scalar_lea.vmem %s1, %s1878
        %p1880 = scmp.lt.s32.totalorder %s133, 1
        %s1881 = scalar_select %p1880, %s133, 1
        %s1882 = smul.addr %s1881, 8
        %s1883 = scalar_lea.vmem %s3, %s1882
        %p1884 = scmp.lt.s32.totalorder %s133, 1
        %s1885 = scalar_select %p1884, %s133, 1
        %s1886 = smul.addr %s1885, 8
        %s1887 = scalar_lea.vmem %s115, %s1886
        %v1889 = vld [vmem:[%s1879] sm:$0xff]
        %v1890 = vlaneseq
        %v1891 = vand.u32 %v1890, 127
        %1892 = vset.pattern.permute.xlu0 0
        %1893 = vperm.xlu0 %1892, %v1889
        %v1894 = vpop.permute.xlu0 %1893
        %vm1895 = vcmp.eq.s32.totalorder %v1891, %v1894
        %v1896 = vsel %vm1895, 1.0, 0.0
        %v1897 = vpack.c.bf16 %v1896, %v1896
        %v1898 = vld [vmem:[%s41] sm:$0xf]
        %v1899 = vld [vmem:[%s41 + $0x4] sm:$0x1]
        %v1902 = vunpack.c.l.b16 %v1898
        %v1903 = vunpack.c.l.b16 %v1899
        %v1904 = vpack.c.b16 %v1903, %v1902
        %vm1905 = vcmask 80896
        %v1907 = vsel %vm1905, %v1897, 0
        %vm1909 = vcmask 1044480
        %v1911 = vsel %vm1909, %v1904, 0
        %1913 = vmatpush.bf16.msra.mxu0 0
        %1914 = vmatpush.bf16.msra.mxu0 0
        %1915 = vmatpush.bf16.msra.mxu0 0
        %1916 = vmatpush.bf16.msra.mxu0 0
        %1917 = vmatpush.bf16.msra.mxu0 0
        %1918 = vmatpush.bf16.msra.mxu0 0
        %1919 = vmatpush.bf16.msra.mxu0 0
        %1920 = vmatpush.bf16.msra.mxu0 %v1911
        %1921 = vmatmul.bf16.gmra.mxu0 %v1907
        %v1922 = vpop.f32.mrf.mxu0
        %v1923 = vadd.f32 0.0, %v1922
        %v1924 = vpop.f32.mrf.mxu0
        %1925 = vdwg.mxu0
        %v1926 = vld [vmem:[%s89] sm:$0xf]
        %v1927 = vld [vmem:[%s89 + $0x4] sm:$0xf]
        %v1928 = vpack.c.bf16 %v1923, %v1923
        %v1929 = vld [vmem:[#allocation21] sm:$0x1]
        %v1931 = vperm.slane %v1929, 0
        %v1935 = vunpack.c.l.b16 %v1926
        %v1936 = vunpack.c.l.b16 %v1927
        %v1937 = vpack.c.b16 %v1936, %v1935
        %vm1939 = vcmask 130048
        %v1941 = vsel %vm1939, %v1928, 0
        %1943 = vmatpush.bf16.msra.mxu0 0
        %1944 = vmatpush.bf16.msra.mxu0 0
        %1945 = vmatpush.bf16.msra.mxu0 0
        %1946 = vmatpush.bf16.msra.mxu0 0
        %1947 = vmatpush.bf16.msra.mxu0 0
        %1948 = vmatpush.bf16.msra.mxu0 0
        %1949 = vmatpush.bf16.msra.mxu0 0
        %1950 = vmatpush.bf16.msra.mxu0 %v1937
        %1951 = vmatmul.bf16.gmra.mxu0 %v1941
        %v1952 = vpop.f32.mrf.mxu0
        %v1953 = vadd.f32 %v1931, %v1952
        %v1954 = vpop.f32.mrf.mxu0
        %1955 = vdwg.mxu0
        %v1956 = vld [vmem:[%s1883] sm:$0xff]
        %v1957 = vld [vmem:[%s101] sm:$0x1]
        %v1958 = vld [vmem:[%s99] sm:$0x1]
        %vm1959 = vcmask 261120
        %v1960 = vsel %vm1959, %v1956, 0.0
        %1961 = vadd.xlane.f32.xlu0 %v1960
        %v1962 = vpop.xlane.xlu0 %1961
        %v1963 = vrcp.pop 32.0
        %v1964 = vmul.f32 32.0, %v1963
        %v1965 = vsub.f32 1.0, %v1964
        %v1966 = vmul.f32 %v1963, %v1965
        %v1967 = vadd.f32 %v1963, %v1966
        %vm1968 = vweird.f32 %v1963
        %v1969 = vsel %vm1968, %v1963, %v1967
        %v1970 = vmul.f32 %v1962, %v1969
        %v1971 = vsub.f32 %v1956, %v1970
        %v1972 = vmul.f32 %v1971, %v1971
        %v1973 = vsel %vm1959, %v1972, 0.0
        %1974 = vadd.xlane.f32.xlu0 %v1973
        %v1975 = vpop.xlane.xlu0 %1974
        %v1976 = vmul.f32 %v1975, %v1969
        %v1977 = vadd.f32 %v1976, 1e-05
        %v1978 = vrsqrt.pop %v1977
        %v1979 = vmul.f32 %v1978, %v1977
        %v1980 = vmul.f32 %v1979, %v1978
        %v1981 = vmul.f32 0.5, %v1980
        %v1982 = vsub.f32 1.5, %v1981
        %v1983 = vmul.f32 %v1978, %v1982
        %vm1984 = vweird.f32 %v1977
        %vm1985 = vweird.f32 %v1978
        %vm1986 = vmor %vm1984, %vm1985
        %v1987 = vsel %vm1986, %v1978, %v1983
        %v1988 = vmul.f32 %v1971, %v1987
        %v1990 = vperm.slane %v1957, 0
        %v1992 = vmul.f32 %v1988, %v1990
        %v1994 = vperm.slane %v1958, 0
        %v1996 = vadd.f32 %v1992, %v1994
        %v1997 = vld [vmem:[%s113] sm:$0xff]
        %v1998 = vld [vmem:[%s113 + $0x8] sm:$0xff]
        %v1999 = vld [vmem:[%s113 + $0x10] sm:$0xff]
        %v2000 = vld [vmem:[%s113 + $0x18] sm:$0xff]
        %v2001 = vld [vmem:[%s113 + $0x20] sm:$0xff]
        %v2002 = vld [vmem:[%s113 + $0x28] sm:$0xff]
        %v2003 = vld [vmem:[%s113 + $0x30] sm:$0xff]
        %v2004 = vld [vmem:[%s113 + $0x38] sm:$0xff]
        %v2005 = vld [vmem:[%s113 + $0x40] sm:$0xff]
        %v2006 = vld [vmem:[%s113 + $0x48] sm:$0xff]
        %v2007 = vld [vmem:[%s113 + $0x50] sm:$0xff]
        %v2008 = vld [vmem:[%s113 + $0x58] sm:$0xff]
        %v2009 = vpack.c.bf16 %v1996, %v1996
        %v2010 = vld [vmem:[%s97] sm:$0x3f]
        %v2012 = vperm.slane %v2010, 0
        %v2013 = vperm.slane %v2010, 1
        %v2014 = vperm.slane %v2010, 2
        %v2015 = vperm.slane %v2010, 3
        %v2016 = vperm.slane %v2010, 4
        %v2017 = vperm.slane %v2010, 5
        %v2036 = vunpack.c.l.b16 %v1997
        %v2037 = vunpack.c.h.b16 %v1997
        %v2038 = vunpack.c.l.b16 %v1998
        %v2039 = vunpack.c.h.b16 %v1998
        %v2040 = vunpack.c.l.b16 %v1999
        %v2041 = vunpack.c.h.b16 %v1999
        %v2042 = vunpack.c.l.b16 %v2000
        %v2043 = vunpack.c.h.b16 %v2000
        %v2044 = vunpack.c.l.b16 %v2001
        %v2045 = vunpack.c.h.b16 %v2001
        %v2046 = vunpack.c.l.b16 %v2002
        %v2047 = vunpack.c.h.b16 %v2002
        %v2048 = vunpack.c.l.b16 %v2003
        %v2049 = vunpack.c.h.b16 %v2003
        %v2050 = vunpack.c.l.b16 %v2004
        %v2051 = vunpack.c.h.b16 %v2004
        %v2052 = vunpack.c.l.b16 %v2005
        %v2053 = vunpack.c.h.b16 %v2005
        %v2054 = vunpack.c.l.b16 %v2006
        %v2055 = vunpack.c.h.b16 %v2006
        %v2056 = vunpack.c.l.b16 %v2007
        %v2057 = vunpack.c.h.b16 %v2007
        %v2058 = vunpack.c.l.b16 %v2008
        %v2059 = vunpack.c.h.b16 %v2008
        %v2060 = vpack.c.b16 %v2042, %v2036
        %v2061 = vpack.c.b16 %v2043, %v2037
        %v2062 = vpack.c.b16 %v2044, %v2038
        %v2063 = vpack.c.b16 %v2045, %v2039
        %v2064 = vpack.c.b16 %v2046, %v2040
        %v2065 = vpack.c.b16 %v2047, %v2041
        %v2066 = vpack.c.b16 %v2054, %v2048
        %v2067 = vpack.c.b16 %v2055, %v2049
        %v2068 = vpack.c.b16 %v2056, %v2050
        %v2069 = vpack.c.b16 %v2057, %v2051
        %v2070 = vpack.c.b16 %v2058, %v2052
        %v2071 = vpack.c.b16 %v2059, %v2053
        %v2085 = vsel %vm1959, %v2009, 0
        %2087 = vmatpush.bf16.msra.mxu0 0
        %2088 = vmatpush.bf16.msra.mxu0 0
        %2089 = vmatpush.bf16.msra.mxu0 0
        %2090 = vmatpush.bf16.msra.mxu0 0
        %2091 = vmatpush.bf16.msra.mxu0 0
        %2092 = vmatpush.bf16.msra.mxu0 0
        %2093 = vmatpush.bf16.msra.mxu0 %v2066
        %2094 = vmatpush.bf16.msra.mxu0 %v2060
        %2095 = vmatmul.bf16.gmra.mxu0 %v2085
        %v2096 = vpop.f32.mrf.mxu0
        %v2097 = vadd.f32 %v2012, %v2096
        %v2098 = vpop.f32.mrf.mxu0
        %2099 = vdwg.mxu0
        %2100 = vmatpush.bf16.msra.mxu0 0
        %2101 = vmatpush.bf16.msra.mxu0 0
        %2102 = vmatpush.bf16.msra.mxu0 0
        %2103 = vmatpush.bf16.msra.mxu0 0
        %2104 = vmatpush.bf16.msra.mxu0 0
        %2105 = vmatpush.bf16.msra.mxu0 0
        %2106 = vmatpush.bf16.msra.mxu0 %v2067
        %2107 = vmatpush.bf16.msra.mxu0 %v2061
        %2108 = vmatmul.bf16.gmra.mxu0 %v2085
        %v2109 = vpop.f32.mrf.mxu0
        %v2110 = vadd.f32 %v2013, %v2109
        %v2111 = vpop.f32.mrf.mxu0
        %2112 = vdwg.mxu0
        %2113 = vmatpush.bf16.msra.mxu0 0
        %2114 = vmatpush.bf16.msra.mxu0 0
        %2115 = vmatpush.bf16.msra.mxu0 0
        %2116 = vmatpush.bf16.msra.mxu0 0
        %2117 = vmatpush.bf16.msra.mxu0 0
        %2118 = vmatpush.bf16.msra.mxu0 0
        %2119 = vmatpush.bf16.msra.mxu0 %v2068
        %2120 = vmatpush.bf16.msra.mxu0 %v2062
        %2121 = vmatmul.bf16.gmra.mxu0 %v2085
        %v2122 = vpop.f32.mrf.mxu0
        %v2123 = vadd.f32 %v2014, %v2122
        %v2124 = vpop.f32.mrf.mxu0
        %2125 = vdwg.mxu0
        %2126 = vmatpush.bf16.msra.mxu0 0
        %2127 = vmatpush.bf16.msra.mxu0 0
        %2128 = vmatpush.bf16.msra.mxu0 0
        %2129 = vmatpush.bf16.msra.mxu0 0
        %2130 = vmatpush.bf16.msra.mxu0 0
        %2131 = vmatpush.bf16.msra.mxu0 0
        %2132 = vmatpush.bf16.msra.mxu0 %v2069
        %2133 = vmatpush.bf16.msra.mxu0 %v2063
        %2134 = vmatmul.bf16.gmra.mxu0 %v2085
        %v2135 = vpop.f32.mrf.mxu0
        %v2136 = vadd.f32 %v2015, %v2135
        %v2137 = vpop.f32.mrf.mxu0
        %2138 = vdwg.mxu0
        %2139 = vmatpush.bf16.msra.mxu0 0
        %2140 = vmatpush.bf16.msra.mxu0 0
        %2141 = vmatpush.bf16.msra.mxu0 0
        %2142 = vmatpush.bf16.msra.mxu0 0
        %2143 = vmatpush.bf16.msra.mxu0 0
        %2144 = vmatpush.bf16.msra.mxu0 0
        %2145 = vmatpush.bf16.msra.mxu0 %v2070
        %2146 = vmatpush.bf16.msra.mxu0 %v2064
        %2147 = vmatmul.bf16.gmra.mxu0 %v2085
        %v2148 = vpop.f32.mrf.mxu0
        %v2149 = vadd.f32 %v2016, %v2148
        %v2150 = vpop.f32.mrf.mxu0
        %2151 = vdwg.mxu0
        %2152 = vmatpush.bf16.msra.mxu0 0
        %2153 = vmatpush.bf16.msra.mxu0 0
        %2154 = vmatpush.bf16.msra.mxu0 0
        %2155 = vmatpush.bf16.msra.mxu0 0
        %2156 = vmatpush.bf16.msra.mxu0 0
        %2157 = vmatpush.bf16.msra.mxu0 0
        %2158 = vmatpush.bf16.msra.mxu0 %v2071
        %2159 = vmatpush.bf16.msra.mxu0 %v2065
        %2160 = vmatmul.bf16.gmra.mxu0 %v2085
        %v2161 = vpop.f32.mrf.mxu0
        %v2162 = vadd.f32 %v2017, %v2161
        %v2163 = vpop.f32.mrf.mxu0
        %2164 = vdwg.mxu0
        %v2165 = vpack.c.bf16 %v2110, %v2097
        %v2167 = vrot.slane %v2165, 4
        %2168 = vrot.lane.b32.xlu0 %v2165, 64
        %v2169 = vpop.permute.xlu0 %2168
        %v2170 = vrot.slane %v2169, 4
        %v2173 = vpack.i.b16 %v2169, %v2165
        %v2174 = vshrl.u32 %v2165, 16
        %v2175 = vshrl.u32 %v2169, 16
        %v2176 = vpack.i.b16 %v2175, %v2174
        %v2179 = vpack.i.b16 %v2170, %v2167
        %v2180 = vshrl.u32 %v2167, 16
        %v2181 = vshrl.u32 %v2170, 16
        %v2182 = vpack.i.b16 %v2181, %v2180
        %v2185 = vunpack.c.l.s4 1983009808
        %v2186 = vunpack.c.0.s8 %v2185
        %v2187 = vperm.slane %v2173, %v2186
        %v2190 = vunpack.c.l.s4 1983009808
        %v2191 = vunpack.c.0.s8 %v2190
        %v2192 = vperm.slane %v2179, %v2191
        %v2193 = vrot.slane %v2192, 4
        %vm2194 = vcmask 1047556
        %v2195 = vsel %vm2194, %v2193, %v2187
        %v2196 = vrot.slane %v2187, 4
        %v2197 = vsel %vm2194, %v2192, %v2196
        %v2199 = vunpack.c.l.s4 1934713408
        %v2200 = vunpack.c.0.s8 %v2199
        %v2201 = vperm.slane %v2195, %v2200
        %v2203 = vunpack.c.l.s4 1934713408
        %v2204 = vunpack.c.0.s8 %v2203
        %v2205 = vperm.slane %v2197, %v2204
        %v2206 = vrot.slane %v2201, 4
        %v2207 = vsel %vm2194, 0, %v2206
        %v2208 = vrot.slane %v2205, 4
        %v2209 = vsel %vm2194, 0, %v2208
        %v2212 = vunpack.c.l.s4 1983009808
        %v2213 = vunpack.c.0.s8 %v2212
        %v2214 = vperm.slane %v2176, %v2213
        %v2217 = vunpack.c.l.s4 1983009808
        %v2218 = vunpack.c.0.s8 %v2217
        %v2219 = vperm.slane %v2182, %v2218
        %v2220 = vrot.slane %v2219, 4
        %v2221 = vsel %vm2194, %v2220, %v2214
        %v2222 = vrot.slane %v2214, 4
        %v2223 = vsel %vm2194, %v2219, %v2222
        %v2225 = vunpack.c.l.s4 1934713408
        %v2226 = vunpack.c.0.s8 %v2225
        %v2227 = vperm.slane %v2221, %v2226
        %v2229 = vunpack.c.l.s4 1934713408
        %v2230 = vunpack.c.0.s8 %v2229
        %v2231 = vperm.slane %v2223, %v2230
        %v2232 = vrot.slane %v2227, 4
        %v2233 = vsel %vm2194, 0, %v2232
        %v2234 = vrot.slane %v2231, 4
        %v2235 = vsel %vm2194, 0, %v2234
        %v2236 = vsel %vm2194, %v2208, %v2201
        %v2238 = vunpack.c.l.s4 1983009808
        %v2239 = vunpack.c.0.s8 %v2238
        %v2240 = vperm.slane %v2236, %v2239
        %v2241 = vrot.slane %v2209, 4
        %v2242 = vsel %vm2194, %v2241, %v2207
        %v2244 = vunpack.c.l.s4 1983009808
        %v2245 = vunpack.c.0.s8 %v2244
        %v2246 = vperm.slane %v2242, %v2245
        %v2247 = vrot.slane %v2246, 4
        %v2248 = vsel %vm2194, %v2247, %v2240
        %v2250 = vunpack.c.l.s4 1934713408
        %v2251 = vunpack.c.0.s8 %v2250
        %v2252 = vperm.slane %v2248, %v2251
        %v2253 = vrot.slane %v2252, 4
        %v2254 = vsel %vm2194, 0, %v2253
        %v2255 = vsel %vm2194, %v2234, %v2227
        %v2257 = vunpack.c.l.s4 1983009808
        %v2258 = vunpack.c.0.s8 %v2257
        %v2259 = vperm.slane %v2255, %v2258
        %v2260 = vrot.slane %v2235, 4
        %v2261 = vsel %vm2194, %v2260, %v2233
        %v2263 = vunpack.c.l.s4 1983009808
        %v2264 = vunpack.c.0.s8 %v2263
        %v2265 = vperm.slane %v2261, %v2264
        %v2266 = vrot.slane %v2265, 4
        %v2267 = vsel %vm2194, %v2266, %v2259
        %v2269 = vunpack.c.l.s4 1934713408
        %v2270 = vunpack.c.0.s8 %v2269
        %v2271 = vperm.slane %v2267, %v2270
        %v2272 = vrot.slane %v2271, 4
        %v2273 = vsel %vm2194, 0, %v2272
        %v2276 = vpack.i.b16 %v2271, %v2252
        %v2277 = vshrl.u32 %v2252, 16
        %v2278 = vshrl.u32 %v2271, 16
        %v2279 = vpack.i.b16 %v2278, %v2277
        %v2282 = vpack.i.b16 %v2273, %v2254
        %v2283 = vshrl.u32 %v2254, 16
        %v2284 = vshrl.u32 %v2273, 16
        %v2285 = vpack.i.b16 %v2284, %v2283
        %v2286 = vpack.c.bf16 %v2136, %v2123
        %v2288 = vrot.slane %v2286, 4
        %2289 = vrot.lane.b32.xlu0 %v2286, 64
        %v2290 = vpop.permute.xlu0 %2289
        %v2291 = vrot.slane %v2290, 4
        %v2294 = vpack.i.b16 %v2290, %v2286
        %v2295 = vshrl.u32 %v2286, 16
        %v2296 = vshrl.u32 %v2290, 16
        %v2297 = vpack.i.b16 %v2296, %v2295
        %v2300 = vpack.i.b16 %v2291, %v2288
        %v2301 = vshrl.u32 %v2288, 16
        %v2302 = vshrl.u32 %v2291, 16
        %v2303 = vpack.i.b16 %v2302, %v2301
        %v2306 = vunpack.c.l.s4 1983009808
        %v2307 = vunpack.c.0.s8 %v2306
        %v2308 = vperm.slane %v2294, %v2307
        %v2311 = vunpack.c.l.s4 1983009808
        %v2312 = vunpack.c.0.s8 %v2311
        %v2313 = vperm.slane %v2300, %v2312
        %v2314 = vrot.slane %v2313, 4
        %v2315 = vsel %vm2194, %v2314, %v2308
        %v2316 = vrot.slane %v2308, 4
        %v2317 = vsel %vm2194, %v2313, %v2316
        %v2319 = vunpack.c.l.s4 1934713408
        %v2320 = vunpack.c.0.s8 %v2319
        %v2321 = vperm.slane %v2315, %v2320
        %v2323 = vunpack.c.l.s4 1934713408
        %v2324 = vunpack.c.0.s8 %v2323
        %v2325 = vperm.slane %v2317, %v2324
        %v2326 = vrot.slane %v2321, 4
        %v2327 = vsel %vm2194, 0, %v2326
        %v2328 = vrot.slane %v2325, 4
        %v2329 = vsel %vm2194, 0, %v2328
        %v2332 = vunpack.c.l.s4 1983009808
        %v2333 = vunpack.c.0.s8 %v2332
        %v2334 = vperm.slane %v2297, %v2333
        %v2337 = vunpack.c.l.s4 1983009808
        %v2338 = vunpack.c.0.s8 %v2337
        %v2339 = vperm.slane %v2303, %v2338
        %v2340 = vrot.slane %v2339, 4
        %v2341 = vsel %vm2194, %v2340, %v2334
        %v2342 = vrot.slane %v2334, 4
        %v2343 = vsel %vm2194, %v2339, %v2342
        %v2345 = vunpack.c.l.s4 1934713408
        %v2346 = vunpack.c.0.s8 %v2345
        %v2347 = vperm.slane %v2341, %v2346
        %v2349 = vunpack.c.l.s4 1934713408
        %v2350 = vunpack.c.0.s8 %v2349
        %v2351 = vperm.slane %v2343, %v2350
        %v2352 = vrot.slane %v2347, 4
        %v2353 = vsel %vm2194, 0, %v2352
        %v2354 = vrot.slane %v2351, 4
        %v2355 = vsel %vm2194, 0, %v2354
        %v2356 = vsel %vm2194, %v2328, %v2321
        %v2358 = vunpack.c.l.s4 1983009808
        %v2359 = vunpack.c.0.s8 %v2358
        %v2360 = vperm.slane %v2356, %v2359
        %v2361 = vrot.slane %v2329, 4
        %v2362 = vsel %vm2194, %v2361, %v2327
        %v2364 = vunpack.c.l.s4 1983009808
        %v2365 = vunpack.c.0.s8 %v2364
        %v2366 = vperm.slane %v2362, %v2365
        %v2367 = vrot.slane %v2366, 4
        %v2368 = vsel %vm2194, %v2367, %v2360
        %v2370 = vunpack.c.l.s4 1934713408
        %v2371 = vunpack.c.0.s8 %v2370
        %v2372 = vperm.slane %v2368, %v2371
        %v2373 = vrot.slane %v2372, 4
        %v2374 = vsel %vm2194, 0, %v2373
        %v2375 = vsel %vm2194, %v2354, %v2347
        %v2377 = vunpack.c.l.s4 1983009808
        %v2378 = vunpack.c.0.s8 %v2377
        %v2379 = vperm.slane %v2375, %v2378
        %v2380 = vrot.slane %v2355, 4
        %v2381 = vsel %vm2194, %v2380, %v2353
        %v2383 = vunpack.c.l.s4 1983009808
        %v2384 = vunpack.c.0.s8 %v2383
        %v2385 = vperm.slane %v2381, %v2384
        %v2386 = vrot.slane %v2385, 4
        %v2387 = vsel %vm2194, %v2386, %v2379
        %v2389 = vunpack.c.l.s4 1934713408
        %v2390 = vunpack.c.0.s8 %v2389
        %v2391 = vperm.slane %v2387, %v2390
        %v2392 = vrot.slane %v2391, 4
        %v2393 = vsel %vm2194, 0, %v2392
        %v2396 = vpack.i.b16 %v2391, %v2372
        %v2397 = vshrl.u32 %v2372, 16
        %v2398 = vshrl.u32 %v2391, 16
        %v2399 = vpack.i.b16 %v2398, %v2397
        %v2402 = vpack.i.b16 %v2393, %v2374
        %v2403 = vshrl.u32 %v2374, 16
        %v2404 = vshrl.u32 %v2393, 16
        %v2405 = vpack.i.b16 %v2404, %v2403
        %v2406 = vpack.c.bf16 %v2162, %v2149
        %v2408 = vrot.slane %v2406, 4
        %2409 = vrot.lane.b32.xlu0 %v2406, 64
        %v2410 = vpop.permute.xlu0 %2409
        %v2411 = vrot.slane %v2410, 4
        %v2414 = vpack.i.b16 %v2410, %v2406
        %v2415 = vshrl.u32 %v2406, 16
        %v2416 = vshrl.u32 %v2410, 16
        %v2417 = vpack.i.b16 %v2416, %v2415
        %v2420 = vpack.i.b16 %v2411, %v2408
        %v2421 = vshrl.u32 %v2408, 16
        %v2422 = vshrl.u32 %v2411, 16
        %v2423 = vpack.i.b16 %v2422, %v2421
        %v2426 = vunpack.c.l.s4 1983009808
        %v2427 = vunpack.c.0.s8 %v2426
        %v2428 = vperm.slane %v2414, %v2427
        %v2431 = vunpack.c.l.s4 1983009808
        %v2432 = vunpack.c.0.s8 %v2431
        %v2433 = vperm.slane %v2420, %v2432
        %v2434 = vrot.slane %v2433, 4
        %v2435 = vsel %vm2194, %v2434, %v2428
        %v2436 = vrot.slane %v2428, 4
        %v2437 = vsel %vm2194, %v2433, %v2436
        %v2439 = vunpack.c.l.s4 1934713408
        %v2440 = vunpack.c.0.s8 %v2439
        %v2441 = vperm.slane %v2435, %v2440
        %v2443 = vunpack.c.l.s4 1934713408
        %v2444 = vunpack.c.0.s8 %v2443
        %v2445 = vperm.slane %v2437, %v2444
        %v2446 = vrot.slane %v2441, 4
        %v2447 = vsel %vm2194, 0, %v2446
        %v2448 = vrot.slane %v2445, 4
        %v2449 = vsel %vm2194, 0, %v2448
        %v2452 = vunpack.c.l.s4 1983009808
        %v2453 = vunpack.c.0.s8 %v2452
        %v2454 = vperm.slane %v2417, %v2453
        %v2457 = vunpack.c.l.s4 1983009808
        %v2458 = vunpack.c.0.s8 %v2457
        %v2459 = vperm.slane %v2423, %v2458
        %v2460 = vrot.slane %v2459, 4
        %v2461 = vsel %vm2194, %v2460, %v2454
        %v2462 = vrot.slane %v2454, 4
        %v2463 = vsel %vm2194, %v2459, %v2462
        %v2465 = vunpack.c.l.s4 1934713408
        %v2466 = vunpack.c.0.s8 %v2465
        %v2467 = vperm.slane %v2461, %v2466
        %v2469 = vunpack.c.l.s4 1934713408
        %v2470 = vunpack.c.0.s8 %v2469
        %v2471 = vperm.slane %v2463, %v2470
        %v2472 = vrot.slane %v2467, 4
        %v2473 = vsel %vm2194, 0, %v2472
        %v2474 = vrot.slane %v2471, 4
        %v2475 = vsel %vm2194, 0, %v2474
        %v2476 = vsel %vm2194, %v2448, %v2441
        %v2478 = vunpack.c.l.s4 1983009808
        %v2479 = vunpack.c.0.s8 %v2478
        %v2480 = vperm.slane %v2476, %v2479
        %v2481 = vrot.slane %v2449, 4
        %v2482 = vsel %vm2194, %v2481, %v2447
        %v2484 = vunpack.c.l.s4 1983009808
        %v2485 = vunpack.c.0.s8 %v2484
        %v2486 = vperm.slane %v2482, %v2485
        %v2487 = vrot.slane %v2486, 4
        %v2488 = vsel %vm2194, %v2487, %v2480
        %v2490 = vunpack.c.l.s4 1934713408
        %v2491 = vunpack.c.0.s8 %v2490
        %v2492 = vperm.slane %v2488, %v2491
        %v2493 = vrot.slane %v2492, 4
        %v2494 = vsel %vm2194, 0, %v2493
        %v2495 = vsel %vm2194, %v2474, %v2467
        %v2497 = vunpack.c.l.s4 1983009808
        %v2498 = vunpack.c.0.s8 %v2497
        %v2499 = vperm.slane %v2495, %v2498
        %v2500 = vrot.slane %v2475, 4
        %v2501 = vsel %vm2194, %v2500, %v2473
        %v2503 = vunpack.c.l.s4 1983009808
        %v2504 = vunpack.c.0.s8 %v2503
        %v2505 = vperm.slane %v2501, %v2504
        %v2506 = vrot.slane %v2505, 4
        %v2507 = vsel %vm2194, %v2506, %v2499
        %v2509 = vunpack.c.l.s4 1934713408
        %v2510 = vunpack.c.0.s8 %v2509
        %v2511 = vperm.slane %v2507, %v2510
        %v2512 = vrot.slane %v2511, 4
        %v2513 = vsel %vm2194, 0, %v2512
        %v2516 = vpack.i.b16 %v2511, %v2492
        %v2517 = vshrl.u32 %v2492, 16
        %v2518 = vshrl.u32 %v2511, 16
        %v2519 = vpack.i.b16 %v2518, %v2517
        %v2522 = vpack.i.b16 %v2513, %v2494
        %v2523 = vshrl.u32 %v2494, 16
        %v2524 = vshrl.u32 %v2513, 16
        %v2525 = vpack.i.b16 %v2524, %v2523
        %vm2526 = vcmask 523264
        %v2528 = vsel %vm2526, %v2276, 0
        %v2531 = vsel %vm2526, %v2396, 0
        %2533 = vmatpush.bf16.xpose.msra.mxu0 0
        %2534 = vmatpush.bf16.xpose.msra.mxu0 0
        %2535 = vmatpush.bf16.xpose.msra.mxu0 0
        %2536 = vmatpush.bf16.xpose.msra.mxu0 0
        %2537 = vmatpush.bf16.xpose.msra.mxu0 0
        %2538 = vmatpush.bf16.xpose.msra.mxu0 0
        %2539 = vmatpush.bf16.xpose.msra.mxu0 0
        %2540 = vmatpush.bf16.xpose.msra.mxu0 %v2531
        %2541 = vmatmul.bf16.gmra.mxu0 %v2528
        %v2542 = vpop.f32.mrf.mxu0
        %v2543 = vadd.f32 0.0, %v2542
        %v2544 = vpop.f32.mrf.mxu0
        %2545 = vdwg.mxu0
        %v2547 = vsel %vm2526, %v2279, 0
        %v2550 = vsel %vm2526, %v2399, 0
        %2552 = vmatpush.bf16.xpose.msra.mxu0 0
        %2553 = vmatpush.bf16.xpose.msra.mxu0 0
        %2554 = vmatpush.bf16.xpose.msra.mxu0 0
        %2555 = vmatpush.bf16.xpose.msra.mxu0 0
        %2556 = vmatpush.bf16.xpose.msra.mxu0 0
        %2557 = vmatpush.bf16.xpose.msra.mxu0 0
        %2558 = vmatpush.bf16.xpose.msra.mxu0 0
        %2559 = vmatpush.bf16.xpose.msra.mxu0 %v2550
        %2560 = vmatmul.bf16.gmra.mxu0 %v2547
        %v2561 = vpop.f32.mrf.mxu0
        %v2562 = vadd.f32 0.0, %v2561
        %v2563 = vpop.f32.mrf.mxu0
        %2564 = vdwg.mxu0
        %v2566 = vsel %vm2526, %v2282, 0
        %v2569 = vsel %vm2526, %v2402, 0
        %2571 = vmatpush.bf16.xpose.msra.mxu0 0
        %2572 = vmatpush.bf16.xpose.msra.mxu0 0
        %2573 = vmatpush.bf16.xpose.msra.mxu0 0
        %2574 = vmatpush.bf16.xpose.msra.mxu0 0
        %2575 = vmatpush.bf16.xpose.msra.mxu0 0
        %2576 = vmatpush.bf16.xpose.msra.mxu0 0
        %2577 = vmatpush.bf16.xpose.msra.mxu0 0
        %2578 = vmatpush.bf16.xpose.msra.mxu0 %v2569
        %2579 = vmatmul.bf16.gmra.mxu0 %v2566
        %v2580 = vpop.f32.mrf.mxu0
        %v2581 = vadd.f32 0.0, %v2580
        %v2582 = vpop.f32.mrf.mxu0
        %2583 = vdwg.mxu0
        %v2585 = vsel %vm2526, %v2285, 0
        %v2588 = vsel %vm2526, %v2405, 0
        %2590 = vmatpush.bf16.xpose.msra.mxu0 0
        %2591 = vmatpush.bf16.xpose.msra.mxu0 0
        %2592 = vmatpush.bf16.xpose.msra.mxu0 0
        %2593 = vmatpush.bf16.xpose.msra.mxu0 0
        %2594 = vmatpush.bf16.xpose.msra.mxu0 0
        %2595 = vmatpush.bf16.xpose.msra.mxu0 0
        %2596 = vmatpush.bf16.xpose.msra.mxu0 0
        %2597 = vmatpush.bf16.xpose.msra.mxu0 %v2588
        %2598 = vmatmul.bf16.gmra.mxu0 %v2585
        %v2599 = vpop.f32.mrf.mxu0
        %v2600 = vadd.f32 0.0, %v2599
        %v2601 = vpop.f32.mrf.mxu0
        %2602 = vdwg.mxu0
        %vm2603 = vcmask 64512
        %v2604 = vsel %vm2603, %v2543, -inf
        %2605 = vmax.xlane.f32.xlu0 %v2604
        %v2606 = vpop.xlane.xlu0 %2605
        %v2607 = vsel %vm2603, %v2562, -inf
        %2608 = vmax.xlane.f32.xlu0 %v2607
        %v2609 = vpop.xlane.xlu0 %2608
        %v2610 = vsel %vm2603, %v2581, -inf
        %2611 = vmax.xlane.f32.xlu0 %v2610
        %v2612 = vpop.xlane.xlu0 %2611
        %v2613 = vsel %vm2603, %v2600, -inf
        %2614 = vmax.xlane.f32.xlu0 %v2613
        %v2615 = vpop.xlane.xlu0 %2614
        %v2616 = vsub.f32 %v2543, %v2606
        %v2617 = vsub.f32 %v2562, %v2609
        %v2618 = vsub.f32 %v2581, %v2612
        %v2619 = vsub.f32 %v2600, %v2615
        %v2620 = vmul.f32 %v2616, 1.442695
        %v2621 = vpow.pop %v2620
        %v2622 = vmul.f32 %v2617, 1.442695
        %v2623 = vpow.pop %v2622
        %v2624 = vmul.f32 %v2618, 1.442695
        %v2625 = vpow.pop %v2624
        %v2626 = vmul.f32 %v2619, 1.442695
        %v2627 = vpow.pop %v2626
        %v2628 = vsel %vm2603, %v2621, 0.0
        %2629 = vadd.xlane.f32.xlu0 %v2628
        %v2630 = vpop.xlane.xlu0 %2629
        %v2631 = vsel %vm2603, %v2623, 0.0
        %2632 = vadd.xlane.f32.xlu0 %v2631
        %v2633 = vpop.xlane.xlu0 %2632
        %v2634 = vsel %vm2603, %v2625, 0.0
        %2635 = vadd.xlane.f32.xlu0 %v2634
        %v2636 = vpop.xlane.xlu0 %2635
        %v2637 = vsel %vm2603, %v2627, 0.0
        %2638 = vadd.xlane.f32.xlu0 %v2637
        %v2639 = vpop.xlane.xlu0 %2638
        %v2640 = vrcp.pop %v2630
        %v2641 = vmul.f32 %v2630, %v2640
        %v2642 = vsub.f32 1.0, %v2641
        %v2643 = vmul.f32 %v2640, %v2642
        %v2644 = vadd.f32 %v2640, %v2643
        %vm2645 = vweird.f32 %v2630
        %vm2646 = vweird.f32 %v2640
        %vm2647 = vmor %vm2645, %vm2646
        %v2648 = vsel %vm2647, %v2640, %v2644
        %v2649 = vand.u32 2147483647, %v2630
        %vm2650 = vcmp.eq.f32.partialorder %v2649, 8.507059e+37
        %v2651 = vand.u32 %v2630, 2147483648
        %v2652 = vor.u32 1.1754944e-38, %v2651
        %v2653 = vsel %vm2650, %v2652, %v2648
        %v2654 = vmul.f32 %v2621, %v2653
        %v2655 = vrcp.pop %v2633
        %v2656 = vmul.f32 %v2633, %v2655
        %v2657 = vsub.f32 1.0, %v2656
        %v2658 = vmul.f32 %v2655, %v2657
        %v2659 = vadd.f32 %v2655, %v2658
        %vm2660 = vweird.f32 %v2633
        %vm2661 = vweird.f32 %v2655
        %vm2662 = vmor %vm2660, %vm2661
        %v2663 = vsel %vm2662, %v2655, %v2659
        %v2664 = vand.u32 2147483647, %v2633
        %vm2665 = vcmp.eq.f32.partialorder %v2664, 8.507059e+37
        %v2666 = vand.u32 %v2633, 2147483648
        %v2667 = vor.u32 1.1754944e-38, %v2666
        %v2668 = vsel %vm2665, %v2667, %v2663
        %v2669 = vmul.f32 %v2623, %v2668
        %v2670 = vrcp.pop %v2636
        %v2671 = vmul.f32 %v2636, %v2670
        %v2672 = vsub.f32 1.0, %v2671
        %v2673 = vmul.f32 %v2670, %v2672
        %v2674 = vadd.f32 %v2670, %v2673
        %vm2675 = vweird.f32 %v2636
        %vm2676 = vweird.f32 %v2670
        %vm2677 = vmor %vm2675, %vm2676
        %v2678 = vsel %vm2677, %v2670, %v2674
        %v2679 = vand.u32 2147483647, %v2636
        %vm2680 = vcmp.eq.f32.partialorder %v2679, 8.507059e+37
        %v2681 = vand.u32 %v2636, 2147483648
        %v2682 = vor.u32 1.1754944e-38, %v2681
        %v2683 = vsel %vm2680, %v2682, %v2678
        %v2684 = vmul.f32 %v2625, %v2683
        %v2685 = vrcp.pop %v2639
        %v2686 = vmul.f32 %v2639, %v2685
        %v2687 = vsub.f32 1.0, %v2686
        %v2688 = vmul.f32 %v2685, %v2687
        %v2689 = vadd.f32 %v2685, %v2688
        %vm2690 = vweird.f32 %v2639
        %vm2691 = vweird.f32 %v2685
        %vm2692 = vmor %vm2690, %vm2691
        %v2693 = vsel %vm2692, %v2685, %v2689
        %v2694 = vand.u32 2147483647, %v2639
        %vm2695 = vcmp.eq.f32.partialorder %v2694, 8.507059e+37
        %v2696 = vand.u32 %v2639, 2147483648
        %v2697 = vor.u32 1.1754944e-38, %v2696
        %v2698 = vsel %vm2695, %v2697, %v2693
        %v2699 = vmul.f32 %v2627, %v2698
        %v2700 = vpack.c.bf16 %v2654, %v2654
        %v2701 = vpack.c.bf16 %v2669, %v2669
        %v2702 = vpack.c.bf16 %v2684, %v2684
        %v2703 = vpack.c.bf16 %v2699, %v2699
        %v2705 = vsel %vm2603, %v2700, 0
        %vm2707 = vcmask 1043456
        %v2709 = vsel %vm2707, %v2516, 0
        %2711 = vmatpush.bf16.msra.mxu0 0
        %2712 = vmatpush.bf16.msra.mxu0 0
        %2713 = vmatpush.bf16.msra.mxu0 0
        %2714 = vmatpush.bf16.msra.mxu0 0
        %2715 = vmatpush.bf16.msra.mxu0 0
        %2716 = vmatpush.bf16.msra.mxu0 0
        %2717 = vmatpush.bf16.msra.mxu0 0
        %2718 = vmatpush.bf16.msra.mxu0 %v2709
        %2719 = vmatmul.bf16.gmra.mxu0 %v2705
        %v2720 = vpop.f32.mrf.mxu0
        %v2721 = vadd.f32 0.0, %v2720
        %v2722 = vpop.f32.mrf.mxu0
        %2723 = vdwg.mxu0
        %v2725 = vsel %vm2603, %v2701, 0
        %v2728 = vsel %vm2707, %v2519, 0
        %2730 = vmatpush.bf16.msra.mxu0 0
        %2731 = vmatpush.bf16.msra.mxu0 0
        %2732 = vmatpush.bf16.msra.mxu0 0
        %2733 = vmatpush.bf16.msra.mxu0 0
        %2734 = vmatpush.bf16.msra.mxu0 0
        %2735 = vmatpush.bf16.msra.mxu0 0
        %2736 = vmatpush.bf16.msra.mxu0 0
        %2737 = vmatpush.bf16.msra.mxu0 %v2728
        %2738 = vmatmul.bf16.gmra.mxu0 %v2725
        %v2739 = vpop.f32.mrf.mxu0
        %v2740 = vadd.f32 0.0, %v2739
        %v2741 = vpop.f32.mrf.mxu0
        %2742 = vdwg.mxu0
        %v2744 = vsel %vm2603, %v2702, 0
        %v2747 = vsel %vm2707, %v2522, 0
        %2749 = vmatpush.bf16.msra.mxu0 0
        %2750 = vmatpush.bf16.msra.mxu0 0
        %2751 = vmatpush.bf16.msra.mxu0 0
        %2752 = vmatpush.bf16.msra.mxu0 0
        %2753 = vmatpush.bf16.msra.mxu0 0
        %2754 = vmatpush.bf16.msra.mxu0 0
        %2755 = vmatpush.bf16.msra.mxu0 0
        %2756 = vmatpush.bf16.msra.mxu0 %v2747
        %2757 = vmatmul.bf16.gmra.mxu0 %v2744
        %v2758 = vpop.f32.mrf.mxu0
        %v2759 = vadd.f32 0.0, %v2758
        %v2760 = vpop.f32.mrf.mxu0
        %2761 = vdwg.mxu0
        %v2763 = vsel %vm2603, %v2703, 0
        %v2766 = vsel %vm2707, %v2525, 0
        %2768 = vmatpush.bf16.msra.mxu0 0
        %2769 = vmatpush.bf16.msra.mxu0 0
        %2770 = vmatpush.bf16.msra.mxu0 0
        %2771 = vmatpush.bf16.msra.mxu0 0
        %2772 = vmatpush.bf16.msra.mxu0 0
        %2773 = vmatpush.bf16.msra.mxu0 0
        %2774 = vmatpush.bf16.msra.mxu0 0
        %2775 = vmatpush.bf16.msra.mxu0 %v2766
        %2776 = vmatmul.bf16.gmra.mxu0 %v2763
        %v2777 = vpop.f32.mrf.mxu0
        %v2778 = vadd.f32 0.0, %v2777
        %v2779 = vpop.f32.mrf.mxu0
        %2780 = vdwg.mxu0
        %v2781 = vrot.slane %v2759, 4
        %vm2782 = vcmask 1047556
        %v2783 = vsel %vm2782, %v2781, %v2721
        %v2784 = vrot.slane %v2721, 4
        %v2785 = vsel %vm2782, %v2759, %v2784
        %v2787 = vunpack.c.l.s4 1983009808
        %v2788 = vunpack.c.0.s8 %v2787
        %v2789 = vperm.slane %v2783, %v2788
        %v2791 = vunpack.c.l.s4 1983009808
        %v2792 = vunpack.c.0.s8 %v2791
        %v2793 = vperm.slane %v2785, %v2792
        %v2794 = vrot.slane %v2778, 4
        %v2795 = vsel %vm2782, %v2794, %v2740
        %v2796 = vrot.slane %v2740, 4
        %v2797 = vsel %vm2782, %v2778, %v2796
        %v2799 = vunpack.c.l.s4 1983009808
        %v2800 = vunpack.c.0.s8 %v2799
        %v2801 = vperm.slane %v2795, %v2800
        %v2803 = vunpack.c.l.s4 1983009808
        %v2804 = vunpack.c.0.s8 %v2803
        %v2805 = vperm.slane %v2797, %v2804
        %v2806 = vrot.slane %v2801, 4
        %v2807 = vsel %vm2782, %v2806, %v2789
        %v2808 = vrot.slane %v2789, 4
        %v2809 = vsel %vm2782, %v2801, %v2808
        %v2811 = vunpack.c.l.s4 1934713408
        %v2812 = vunpack.c.0.s8 %v2811
        %v2813 = vperm.slane %v2807, %v2812
        %v2815 = vunpack.c.l.s4 1934713408
        %v2816 = vunpack.c.0.s8 %v2815
        %v2817 = vperm.slane %v2809, %v2816
        %v2818 = vrot.slane %v2805, 4
        %v2819 = vsel %vm2782, %v2818, %v2793
        %v2820 = vrot.slane %v2793, 4
        %v2821 = vsel %vm2782, %v2805, %v2820
        %v2823 = vunpack.c.l.s4 1934713408
        %v2824 = vunpack.c.0.s8 %v2823
        %v2825 = vperm.slane %v2819, %v2824
        %v2827 = vunpack.c.l.s4 1934713408
        %v2828 = vunpack.c.0.s8 %v2827
        %v2829 = vperm.slane %v2821, %v2828
        %v2830 = vrot.slane %v2813, 4
        %v2831 = vsel %vm2782, 0.0, %v2830
        %v2832 = vrot.slane %v2817, 4
        %v2833 = vsel %vm2782, 0.0, %v2832
        %v2834 = vrot.slane %v2825, 4
        %v2835 = vsel %vm2782, 0.0, %v2834
        %v2836 = vrot.slane %v2829, 4
        %v2837 = vsel %vm2782, 0.0, %v2836
        %v2838 = vsel %vm2782, %v2832, %v2813
        %v2840 = vunpack.c.l.s4 1983009808
        %v2841 = vunpack.c.0.s8 %v2840
        %v2842 = vperm.slane %v2838, %v2841
        %v2843 = vrot.slane %v2833, 4
        %v2844 = vsel %vm2782, %v2843, %v2831
        %v2846 = vunpack.c.l.s4 1983009808
        %v2847 = vunpack.c.0.s8 %v2846
        %v2848 = vperm.slane %v2844, %v2847
        %v2849 = vsel %vm2782, %v2836, %v2825
        %v2851 = vunpack.c.l.s4 1983009808
        %v2852 = vunpack.c.0.s8 %v2851
        %v2853 = vperm.slane %v2849, %v2852
        %v2854 = vrot.slane %v2837, 4
        %v2855 = vsel %vm2782, %v2854, %v2835
        %v2857 = vunpack.c.l.s4 1983009808
        %v2858 = vunpack.c.0.s8 %v2857
        %v2859 = vperm.slane %v2855, %v2858
        %v2860 = vrot.slane %v2848, 4
        %v2861 = vsel %vm2782, %v2860, %v2842
        %v2862 = vrot.slane %v2842, 4
        %v2863 = vsel %vm2782, %v2848, %v2862
        %v2865 = vunpack.c.l.s4 1934713408
        %v2866 = vunpack.c.0.s8 %v2865
        %v2867 = vperm.slane %v2861, %v2866
        %v2869 = vunpack.c.l.s4 1934713408
        %v2870 = vunpack.c.0.s8 %v2869
        %v2871 = vperm.slane %v2863, %v2870
        %v2872 = vrot.slane %v2859, 4
        %v2873 = vsel %vm2782, %v2872, %v2853
        %v2874 = vrot.slane %v2853, 4
        %v2875 = vsel %vm2782, %v2859, %v2874
        %v2877 = vunpack.c.l.s4 1934713408
        %v2878 = vunpack.c.0.s8 %v2877
        %v2879 = vperm.slane %v2873, %v2878
        %v2881 = vunpack.c.l.s4 1934713408
        %v2882 = vunpack.c.0.s8 %v2881
        %v2883 = vperm.slane %v2875, %v2882
        %v2884 = vrot.slane %v2879, 4
        %v2885 = vsel %vm2782, %v2884, %v2867
        %v2886 = vrot.slane %v2867, 4
        %v2887 = vsel %vm2782, %v2879, %v2886
        %v2888 = vrot.slane %v2883, 4
        %v2889 = vsel %vm2782, %v2888, %v2871
        %v2890 = vrot.slane %v2871, 4
        %v2891 = vsel %vm2782, %v2883, %v2890
        %2893 = vrot.lane.b32.xlu0 %v2887, 64
        %v2894 = vpop.permute.xlu0 %2893
        %2897 = vrot.lane.b32.xlu0 %v2891, 64
        %v2898 = vpop.permute.xlu0 %2897
        %v2900 = vsel %vm2526, %v2885, %v2894
        %v2901 = vsel %vm2526, %v2889, %v2898
        %v2902 = vld [vmem:[%s111] sm:$0xf]
        %v2903 = vld [vmem:[%s111 + $0x4] sm:$0xf]
        %v2904 = vld [vmem:[%s111 + $0x8] sm:$0xf]
        %v2905 = vld [vmem:[%s111 + $0xc] sm:$0xf]
        %v2906 = vld [vmem:[%s111 + $0x10] sm:$0xf]
        %v2907 = vld [vmem:[%s111 + $0x14] sm:$0xf]
        %v2908 = vld [vmem:[%s111 + $0x18] sm:$0xf]
        %v2909 = vld [vmem:[%s111 + $0x1c] sm:$0xf]
        %v2910 = vld [vmem:[%s111 + $0x20] sm:$0xf]
        %v2911 = vld [vmem:[%s111 + $0x24] sm:$0xf]
        %v2912 = vld [vmem:[%s111 + $0x28] sm:$0xf]
        %v2913 = vld [vmem:[%s111 + $0x2c] sm:$0xf]
        %v2914 = vld [vmem:[%s111 + $0x30] sm:$0xf]
        %v2915 = vld [vmem:[%s111 + $0x34] sm:$0xf]
        %v2916 = vld [vmem:[%s111 + $0x38] sm:$0xf]
        %v2917 = vld [vmem:[%s111 + $0x3c] sm:$0xf]
        %v2918 = vld [vmem:[%s111 + $0x40] sm:$0xf]
        %v2919 = vld [vmem:[%s111 + $0x44] sm:$0xf]
        %v2920 = vld [vmem:[%s111 + $0x48] sm:$0xf]
        %v2921 = vld [vmem:[%s111 + $0x4c] sm:$0xf]
        %v2922 = vld [vmem:[%s111 + $0x50] sm:$0xf]
        %v2923 = vld [vmem:[%s111 + $0x54] sm:$0xf]
        %v2924 = vld [vmem:[%s111 + $0x58] sm:$0xf]
        %v2925 = vld [vmem:[%s111 + $0x5c] sm:$0xf]
        %v2926 = vld [vmem:[%s111 + $0x60] sm:$0xf]
        %v2927 = vld [vmem:[%s111 + $0x64] sm:$0xf]
        %v2928 = vld [vmem:[%s111 + $0x68] sm:$0xf]
        %v2929 = vld [vmem:[%s111 + $0x6c] sm:$0xf]
        %v2930 = vld [vmem:[%s111 + $0x70] sm:$0xf]
        %v2931 = vld [vmem:[%s111 + $0x74] sm:$0xf]
        %v2932 = vld [vmem:[%s111 + $0x78] sm:$0xf]
        %v2933 = vld [vmem:[%s111 + $0x7c] sm:$0xf]
        %v2934 = vpack.c.bf16 %v2900, %v2900
        %v2935 = vpack.c.bf16 %v2901, %v2901
        %v2968 = vunpack.c.l.b16 %v2902
        %v2969 = vunpack.c.l.b16 %v2903
        %v2970 = vunpack.c.l.b16 %v2904
        %v2971 = vunpack.c.l.b16 %v2905
        %v2972 = vunpack.c.l.b16 %v2906
        %v2973 = vunpack.c.l.b16 %v2907
        %v2974 = vunpack.c.l.b16 %v2908
        %v2975 = vunpack.c.l.b16 %v2909
        %v2976 = vunpack.c.l.b16 %v2910
        %v2977 = vunpack.c.l.b16 %v2911
        %v2978 = vunpack.c.l.b16 %v2912
        %v2979 = vunpack.c.l.b16 %v2913
        %v2980 = vunpack.c.l.b16 %v2914
        %v2981 = vunpack.c.l.b16 %v2915
        %v2982 = vunpack.c.l.b16 %v2916
        %v2983 = vunpack.c.l.b16 %v2917
        %v2984 = vunpack.c.l.b16 %v2918
        %v2985 = vunpack.c.l.b16 %v2919
        %v2986 = vunpack.c.l.b16 %v2920
        %v2987 = vunpack.c.l.b16 %v2921
        %v2988 = vunpack.c.l.b16 %v2922
        %v2989 = vunpack.c.l.b16 %v2923
        %v2990 = vunpack.c.l.b16 %v2924
        %v2991 = vunpack.c.l.b16 %v2925
        %v2992 = vunpack.c.l.b16 %v2926
        %v2993 = vunpack.c.l.b16 %v2927
        %v2994 = vunpack.c.l.b16 %v2928
        %v2995 = vunpack.c.l.b16 %v2929
        %v2996 = vunpack.c.l.b16 %v2930
        %v2997 = vunpack.c.l.b16 %v2931
        %v2998 = vunpack.c.l.b16 %v2932
        %v2999 = vunpack.c.l.b16 %v2933
        %v3000 = vpack.c.b16 %v2969, %v2968
        %v3001 = vpack.c.b16 %v2971, %v2970
        %v3002 = vpack.c.b16 %v2973, %v2972
        %v3003 = vpack.c.b16 %v2975, %v2974
        %v3004 = vpack.c.b16 %v2977, %v2976
        %v3005 = vpack.c.b16 %v2979, %v2978
        %v3006 = vpack.c.b16 %v2981, %v2980
        %v3007 = vpack.c.b16 %v2983, %v2982
        %v3008 = vpack.c.b16 %v2985, %v2984
        %v3009 = vpack.c.b16 %v2987, %v2986
        %v3010 = vpack.c.b16 %v2989, %v2988
        %v3011 = vpack.c.b16 %v2991, %v2990
        %v3012 = vpack.c.b16 %v2993, %v2992
        %v3013 = vpack.c.b16 %v2995, %v2994
        %v3014 = vpack.c.b16 %v2997, %v2996
        %v3015 = vpack.c.b16 %v2999, %v2998
        %3032 = vmatpush.bf16.msra.mxu0 %v3007
        %3033 = vmatpush.bf16.msra.mxu0 %v3006
        %3034 = vmatpush.bf16.msra.mxu0 %v3005
        %3035 = vmatpush.bf16.msra.mxu0 %v3004
        %3036 = vmatpush.bf16.msra.mxu0 %v3003
        %3037 = vmatpush.bf16.msra.mxu0 %v3002
        %3038 = vmatpush.bf16.msra.mxu0 %v3001
        %3039 = vmatpush.bf16.msra.mxu0 %v3000
        %3040 = vmatmul.bf16.gmra.mxu0 %v2934
        %v3041 = vpop.f32.mrf.mxu0
        %v3042 = vadd.f32 0.0, %v3041
        %v3043 = vpop.f32.mrf.mxu0
        %3044 = vdwg.mxu0
        %3045 = vmatpush.bf16.msra.mxu0 %v3015
        %3046 = vmatpush.bf16.msra.mxu0 %v3014
        %3047 = vmatpush.bf16.msra.mxu0 %v3013
        %3048 = vmatpush.bf16.msra.mxu0 %v3012
        %3049 = vmatpush.bf16.msra.mxu0 %v3011
        %3050 = vmatpush.bf16.msra.mxu0 %v3010
        %3051 = vmatpush.bf16.msra.mxu0 %v3009
        %3052 = vmatpush.bf16.msra.mxu0 %v3008
        %3053 = vmatmul.bf16.gmra.mxu0 %v2935
        %v3054 = vpop.f32.mrf.mxu0
        %v3055 = vadd.f32 %v3042, %v3054
        %v3056 = vpop.f32.mrf.mxu0
        %3057 = vdwg.mxu0
        %v3058 = vadd.f32 %v1956, %v3055
        %v3059 = vld [vmem:[%s95] sm:$0x1]
        %v3061 = vperm.slane %v3059, 0
        %v3063 = vadd.f32 %v3058, %v3061
        %v3064 = vld [vmem:[%s105] sm:$0x1]
        %v3065 = vld [vmem:[%s103] sm:$0x1]
        %v3066 = vsel %vm1959, %v3063, 0.0
        %3067 = vadd.xlane.f32.xlu0 %v3066
        %v3068 = vpop.xlane.xlu0 %3067
        %v3069 = vmul.f32 %v3068, %v1969
        %v3070 = vsub.f32 %v3063, %v3069
        %v3071 = vmul.f32 %v3070, %v3070
        %v3072 = vsel %vm1959, %v3071, 0.0
        %3073 = vadd.xlane.f32.xlu0 %v3072
        %v3074 = vpop.xlane.xlu0 %3073
        %v3075 = vmul.f32 %v3074, %v1969
        %v3076 = vadd.f32 %v3075, 1e-05
        %v3077 = vrsqrt.pop %v3076
        %v3078 = vmul.f32 %v3077, %v3076
        %v3079 = vmul.f32 %v3078, %v3077
        %v3080 = vmul.f32 0.5, %v3079
        %v3081 = vsub.f32 1.5, %v3080
        %v3082 = vmul.f32 %v3077, %v3081
        %vm3083 = vweird.f32 %v3076
        %vm3084 = vweird.f32 %v3077
        %vm3085 = vmor %vm3083, %vm3084
        %v3086 = vsel %vm3085, %v3077, %v3082
        %v3087 = vmul.f32 %v3070, %v3086
        %v3089 = vperm.slane %v3064, 0
        %v3091 = vmul.f32 %v3087, %v3089
        %v3093 = vperm.slane %v3065, 0
        %v3095 = vadd.f32 %v3091, %v3093
        %v3096 = vld [vmem:[%s107] sm:$0xf]
        %v3097 = vld [vmem:[%s107 + $0x4] sm:$0xf]
        %v3098 = vld [vmem:[%s107 + $0x8] sm:$0xf]
        %v3099 = vld [vmem:[%s107 + $0xc] sm:$0xf]
        %v3100 = vpack.c.bf16 %v3095, %v3095
        %v3101 = vld [vmem:[%s91] sm:$0x1]
        %v3103 = vperm.slane %v3101, 0
        %v3109 = vunpack.c.l.b16 %v3096
        %v3110 = vunpack.c.l.b16 %v3097
        %v3111 = vunpack.c.l.b16 %v3098
        %v3112 = vunpack.c.l.b16 %v3099
        %v3113 = vpack.c.b16 %v3110, %v3109
        %v3114 = vpack.c.b16 %v3112, %v3111
        %v3118 = vsel %vm1959, %v3100, 0
        %3120 = vmatpush.bf16.msra.mxu0 0
        %3121 = vmatpush.bf16.msra.mxu0 0
        %3122 = vmatpush.bf16.msra.mxu0 0
        %3123 = vmatpush.bf16.msra.mxu0 0
        %3124 = vmatpush.bf16.msra.mxu0 0
        %3125 = vmatpush.bf16.msra.mxu0 0
        %3126 = vmatpush.bf16.msra.mxu0 %v3114
        %3127 = vmatpush.bf16.msra.mxu0 %v3113
        %3128 = vmatmul.bf16.gmra.mxu0 %v3118
        %v3129 = vpop.f32.mrf.mxu0
        %v3130 = vadd.f32 %v3103, %v3129
        %v3131 = vpop.f32.mrf.mxu0
        %3132 = vdwg.mxu0
        %v3133 = vmul.f32 %v3130, 0.5
        %v3134 = vmul.f32 %v3130, 0.044715
        %v3135 = vmul.f32 %v3134, %v3130
        %v3136 = vmul.f32 %v3135, %v3130
        %v3137 = vadd.f32 %v3130, %v3136
        %v3138 = vmul.f32 %v3137, 0.7978846
        %v3139 = vtanh.pop %v3138
        %v3140 = vadd.f32 %v3139, 1.0
        %v3141 = vmul.f32 %v3133, %v3140
        %v3142 = vld [vmem:[%s109] sm:$0xf]
        %v3143 = vld [vmem:[%s109 + $0x4] sm:$0xf]
        %v3144 = vld [vmem:[%s109 + $0x8] sm:$0xf]
        %v3145 = vld [vmem:[%s109 + $0xc] sm:$0xf]
        %v3146 = vld [vmem:[%s109 + $0x10] sm:$0xf]
        %v3147 = vld [vmem:[%s109 + $0x14] sm:$0xf]
        %v3148 = vld [vmem:[%s109 + $0x18] sm:$0xf]
        %v3149 = vld [vmem:[%s109 + $0x1c] sm:$0xf]
        %v3150 = vld [vmem:[%s109 + $0x20] sm:$0xf]
        %v3151 = vld [vmem:[%s109 + $0x24] sm:$0xf]
        %v3152 = vld [vmem:[%s109 + $0x28] sm:$0xf]
        %v3153 = vld [vmem:[%s109 + $0x2c] sm:$0xf]
        %v3154 = vld [vmem:[%s109 + $0x30] sm:$0xf]
        %v3155 = vld [vmem:[%s109 + $0x34] sm:$0xf]
        %v3156 = vld [vmem:[%s109 + $0x38] sm:$0xf]
        %v3157 = vld [vmem:[%s109 + $0x3c] sm:$0xf]
        %v3158 = vpack.c.bf16 %v3141, %v3141
        %v3175 = vunpack.c.l.b16 %v3142
        %v3176 = vunpack.c.l.b16 %v3143
        %v3177 = vunpack.c.l.b16 %v3144
        %v3178 = vunpack.c.l.b16 %v3145
        %v3179 = vunpack.c.l.b16 %v3146
        %v3180 = vunpack.c.l.b16 %v3147
        %v3181 = vunpack.c.l.b16 %v3148
        %v3182 = vunpack.c.l.b16 %v3149
        %v3183 = vunpack.c.l.b16 %v3150
        %v3184 = vunpack.c.l.b16 %v3151
        %v3185 = vunpack.c.l.b16 %v3152
        %v3186 = vunpack.c.l.b16 %v3153
        %v3187 = vunpack.c.l.b16 %v3154
        %v3188 = vunpack.c.l.b16 %v3155
        %v3189 = vunpack.c.l.b16 %v3156
        %v3190 = vunpack.c.l.b16 %v3157
        %v3191 = vpack.c.b16 %v3176, %v3175
        %v3192 = vpack.c.b16 %v3178, %v3177
        %v3193 = vpack.c.b16 %v3180, %v3179
        %v3194 = vpack.c.b16 %v3182, %v3181
        %v3195 = vpack.c.b16 %v3184, %v3183
        %v3196 = vpack.c.b16 %v3186, %v3185
        %v3197 = vpack.c.b16 %v3188, %v3187
        %v3198 = vpack.c.b16 %v3190, %v3189
        %3207 = vmatpush.bf16.msra.mxu0 %v3198
        %3208 = vmatpush.bf16.msra.mxu0 %v3197
        %3209 = vmatpush.bf16.msra.mxu0 %v3196
        %3210 = vmatpush.bf16.msra.mxu0 %v3195
        %3211 = vmatpush.bf16.msra.mxu0 %v3194
        %3212 = vmatpush.bf16.msra.mxu0 %v3193
        %3213 = vmatpush.bf16.msra.mxu0 %v3192
        %3214 = vmatpush.bf16.msra.mxu0 %v3191
        %3215 = vmatmul.bf16.gmra.mxu0 %v3158
        %v3216 = vpop.f32.mrf.mxu0
        %v3217 = vadd.f32 0.0, %v3216
        %v3218 = vpop.f32.mrf.mxu0
        %3219 = vdwg.mxu0
        %v3220 = vadd.f32 %v3063, %v3217
        %v3221 = vld [vmem:[%s93] sm:$0x1]
        %v3223 = vperm.slane %v3221, 0
        %v3225 = vadd.f32 %v3220, %v3223
        %s3226 = scalar_lea.vmem %s101, 1
        %v3227 = vld [vmem:[%s3226] sm:$0x1]
        %s3228 = scalar_lea.vmem %s99, 1
        %v3229 = vld [vmem:[%s3228] sm:$0x1]
        %v3230 = vsel %vm1959, %v3225, 0.0
        %3231 = vadd.xlane.f32.xlu0 %v3230
        %v3232 = vpop.xlane.xlu0 %3231
        %v3233 = vmul.f32 %v3232, %v1969
        %v3234 = vsub.f32 %v3225, %v3233
        %v3235 = vmul.f32 %v3234, %v3234
        %v3236 = vsel %vm1959, %v3235, 0.0
        %3237 = vadd.xlane.f32.xlu0 %v3236
        %v3238 = vpop.xlane.xlu0 %3237
        %v3239 = vmul.f32 %v3238, %v1969
        %v3240 = vadd.f32 %v3239, 1e-05
        %v3241 = vrsqrt.pop %v3240
        %v3242 = vmul.f32 %v3241, %v3240
        %v3243 = vmul.f32 %v3242, %v3241
        %v3244 = vmul.f32 0.5, %v3243
        %v3245 = vsub.f32 1.5, %v3244
        %v3246 = vmul.f32 %v3241, %v3245
        %vm3247 = vweird.f32 %v3240
        %vm3248 = vweird.f32 %v3241
        %vm3249 = vmor %vm3247, %vm3248
        %v3250 = vsel %vm3249, %v3241, %v3246
        %v3251 = vmul.f32 %v3234, %v3250
        %v3253 = vperm.slane %v3227, 0
        %v3255 = vmul.f32 %v3251, %v3253
        %v3257 = vperm.slane %v3229, 0
        %v3259 = vadd.f32 %v3255, %v3257
        %s3260 = scalar_lea.vmem %s113, 96
        %v3261 = vld [vmem:[%s3260] sm:$0xff]
        %v3262 = vld [vmem:[%s3260 + $0x8] sm:$0xff]
        %v3263 = vld [vmem:[%s3260 + $0x10] sm:$0xff]
        %v3264 = vld [vmem:[%s3260 + $0x18] sm:$0xff]
        %v3265 = vld [vmem:[%s3260 + $0x20] sm:$0xff]
        %v3266 = vld [vmem:[%s3260 + $0x28] sm:$0xff]
        %v3267 = vld [vmem:[%s3260 + $0x30] sm:$0xff]
        %v3268 = vld [vmem:[%s3260 + $0x38] sm:$0xff]
        %v3269 = vld [vmem:[%s3260 + $0x40] sm:$0xff]
        %v3270 = vld [vmem:[%s3260 + $0x48] sm:$0xff]
        %v3271 = vld [vmem:[%s3260 + $0x50] sm:$0xff]
        %v3272 = vld [vmem:[%s3260 + $0x58] sm:$0xff]
        %v3273 = vpack.c.bf16 %v3259, %v3259
        %s3274 = scalar_lea.vmem %s97, 6
        %v3275 = vld [vmem:[%s3274] sm:$0x3f]
        %v3277 = vperm.slane %v3275, 0
        %v3278 = vperm.slane %v3275, 1
        %v3279 = vperm.slane %v3275, 2
        %v3280 = vperm.slane %v3275, 3
        %v3281 = vperm.slane %v3275, 4
        %v3282 = vperm.slane %v3275, 5
        %v3301 = vunpack.c.l.b16 %v3261
        %v3302 = vunpack.c.h.b16 %v3261
        %v3303 = vunpack.c.l.b16 %v3262
        %v3304 = vunpack.c.h.b16 %v3262
        %v3305 = vunpack.c.l.b16 %v3263
        %v3306 = vunpack.c.h.b16 %v3263
        %v3307 = vunpack.c.l.b16 %v3264
        %v3308 = vunpack.c.h.b16 %v3264
        %v3309 = vunpack.c.l.b16 %v3265
        %v3310 = vunpack.c.h.b16 %v3265
        %v3311 = vunpack.c.l.b16 %v3266
        %v3312 = vunpack.c.h.b16 %v3266
        %v3313 = vunpack.c.l.b16 %v3267
        %v3314 = vunpack.c.h.b16 %v3267
        %v3315 = vunpack.c.l.b16 %v3268
        %v3316 = vunpack.c.h.b16 %v3268
        %v3317 = vunpack.c.l.b16 %v3269
        %v3318 = vunpack.c.h.b16 %v3269
        %v3319 = vunpack.c.l.b16 %v3270
        %v3320 = vunpack.c.h.b16 %v3270
        %v3321 = vunpack.c.l.b16 %v3271
        %v3322 = vunpack.c.h.b16 %v3271
        %v3323 = vunpack.c.l.b16 %v3272
        %v3324 = vunpack.c.h.b16 %v3272
        %v3325 = vpack.c.b16 %v3307, %v3301
        %v3326 = vpack.c.b16 %v3308, %v3302
        %v3327 = vpack.c.b16 %v3309, %v3303
        %v3328 = vpack.c.b16 %v3310, %v3304
        %v3329 = vpack.c.b16 %v3311, %v3305
        %v3330 = vpack.c.b16 %v3312, %v3306
        %v3331 = vpack.c.b16 %v3319, %v3313
        %v3332 = vpack.c.b16 %v3320, %v3314
        %v3333 = vpack.c.b16 %v3321, %v3315
        %v3334 = vpack.c.b16 %v3322, %v3316
        %v3335 = vpack.c.b16 %v3323, %v3317
        %v3336 = vpack.c.b16 %v3324, %v3318
        %v3350 = vsel %vm1959, %v3273, 0
        %3352 = vmatpush.bf16.msra.mxu0 0
        %3353 = vmatpush.bf16.msra.mxu0 0
        %3354 = vmatpush.bf16.msra.mxu0 0
        %3355 = vmatpush.bf16.msra.mxu0 0
        %3356 = vmatpush.bf16.msra.mxu0 0
        %3357 = vmatpush.bf16.msra.mxu0 0
        %3358 = vmatpush.bf16.msra.mxu0 %v3331
        %3359 = vmatpush.bf16.msra.mxu0 %v3325
        %3360 = vmatmul.bf16.gmra.mxu0 %v3350
        %v3361 = vpop.f32.mrf.mxu0
        %v3362 = vadd.f32 %v3277, %v3361
        %v3363 = vpop.f32.mrf.mxu0
        %3364 = vdwg.mxu0
        %3365 = vmatpush.bf16.msra.mxu0 0
        %3366 = vmatpush.bf16.msra.mxu0 0
        %3367 = vmatpush.bf16.msra.mxu0 0
        %3368 = vmatpush.bf16.msra.mxu0 0
        %3369 = vmatpush.bf16.msra.mxu0 0
        %3370 = vmatpush.bf16.msra.mxu0 0
        %3371 = vmatpush.bf16.msra.mxu0 %v3332
        %3372 = vmatpush.bf16.msra.mxu0 %v3326
        %3373 = vmatmul.bf16.gmra.mxu0 %v3350
        %v3374 = vpop.f32.mrf.mxu0
        %v3375 = vadd.f32 %v3278, %v3374
        %v3376 = vpop.f32.mrf.mxu0
        %3377 = vdwg.mxu0
        %3378 = vmatpush.bf16.msra.mxu0 0
        %3379 = vmatpush.bf16.msra.mxu0 0
        %3380 = vmatpush.bf16.msra.mxu0 0
        %3381 = vmatpush.bf16.msra.mxu0 0
        %3382 = vmatpush.bf16.msra.mxu0 0
        %3383 = vmatpush.bf16.msra.mxu0 0
        %3384 = vmatpush.bf16.msra.mxu0 %v3333
        %3385 = vmatpush.bf16.msra.mxu0 %v3327
        %3386 = vmatmul.bf16.gmra.mxu0 %v3350
        %v3387 = vpop.f32.mrf.mxu0
        %v3388 = vadd.f32 %v3279, %v3387
        %v3389 = vpop.f32.mrf.mxu0
        %3390 = vdwg.mxu0
        %3391 = vmatpush.bf16.msra.mxu0 0
        %3392 = vmatpush.bf16.msra.mxu0 0
        %3393 = vmatpush.bf16.msra.mxu0 0
        %3394 = vmatpush.bf16.msra.mxu0 0
        %3395 = vmatpush.bf16.msra.mxu0 0
        %3396 = vmatpush.bf16.msra.mxu0 0
        %3397 = vmatpush.bf16.msra.mxu0 %v3334
        %3398 = vmatpush.bf16.msra.mxu0 %v3328
        %3399 = vmatmul.bf16.gmra.mxu0 %v3350
        %v3400 = vpop.f32.mrf.mxu0
        %v3401 = vadd.f32 %v3280, %v3400
        %v3402 = vpop.f32.mrf.mxu0
        %3403 = vdwg.mxu0
        %3404 = vmatpush.bf16.msra.mxu0 0
        %3405 = vmatpush.bf16.msra.mxu0 0
        %3406 = vmatpush.bf16.msra.mxu0 0
        %3407 = vmatpush.bf16.msra.mxu0 0
        %3408 = vmatpush.bf16.msra.mxu0 0
        %3409 = vmatpush.bf16.msra.mxu0 0
        %3410 = vmatpush.bf16.msra.mxu0 %v3335
        %3411 = vmatpush.bf16.msra.mxu0 %v3329
        %3412 = vmatmul.bf16.gmra.mxu0 %v3350
        %v3413 = vpop.f32.mrf.mxu0
        %v3414 = vadd.f32 %v3281, %v3413
        %v3415 = vpop.f32.mrf.mxu0
        %3416 = vdwg.mxu0
        %3417 = vmatpush.bf16.msra.mxu0 0
        %3418 = vmatpush.bf16.msra.mxu0 0
        %3419 = vmatpush.bf16.msra.mxu0 0
        %3420 = vmatpush.bf16.msra.mxu0 0
        %3421 = vmatpush.bf16.msra.mxu0 0
        %3422 = vmatpush.bf16.msra.mxu0 0
        %3423 = vmatpush.bf16.msra.mxu0 %v3336
        %3424 = vmatpush.bf16.msra.mxu0 %v3330
        %3425 = vmatmul.bf16.gmra.mxu0 %v3350
        %v3426 = vpop.f32.mrf.mxu0
        %v3427 = vadd.f32 %v3282, %v3426
        %v3428 = vpop.f32.mrf.mxu0
        %3429 = vdwg.mxu0
        %v3430 = vpack.c.bf16 %v3375, %v3362
        %v3432 = vrot.slane %v3430, 4
        %3433 = vrot.lane.b32.xlu0 %v3430, 64
        %v3434 = vpop.permute.xlu0 %3433
        %v3435 = vrot.slane %v3434, 4
        %v3438 = vpack.i.b16 %v3434, %v3430
        %v3439 = vshrl.u32 %v3430, 16
        %v3440 = vshrl.u32 %v3434, 16
        %v3441 = vpack.i.b16 %v3440, %v3439
        %v3444 = vpack.i.b16 %v3435, %v3432
        %v3445 = vshrl.u32 %v3432, 16
        %v3446 = vshrl.u32 %v3435, 16
        %v3447 = vpack.i.b16 %v3446, %v3445
        %v3450 = vunpack.c.l.s4 1983009808
        %v3451 = vunpack.c.0.s8 %v3450
        %v3452 = vperm.slane %v3438, %v3451
        %v3455 = vunpack.c.l.s4 1983009808
        %v3456 = vunpack.c.0.s8 %v3455
        %v3457 = vperm.slane %v3444, %v3456
        %v3458 = vrot.slane %v3457, 4
        %v3459 = vsel %vm2194, %v3458, %v3452
        %v3460 = vrot.slane %v3452, 4
        %v3461 = vsel %vm2194, %v3457, %v3460
        %v3463 = vunpack.c.l.s4 1934713408
        %v3464 = vunpack.c.0.s8 %v3463
        %v3465 = vperm.slane %v3459, %v3464
        %v3467 = vunpack.c.l.s4 1934713408
        %v3468 = vunpack.c.0.s8 %v3467
        %v3469 = vperm.slane %v3461, %v3468
        %v3470 = vrot.slane %v3465, 4
        %v3471 = vsel %vm2194, 0, %v3470
        %v3472 = vrot.slane %v3469, 4
        %v3473 = vsel %vm2194, 0, %v3472
        %v3476 = vunpack.c.l.s4 1983009808
        %v3477 = vunpack.c.0.s8 %v3476
        %v3478 = vperm.slane %v3441, %v3477
        %v3481 = vunpack.c.l.s4 1983009808
        %v3482 = vunpack.c.0.s8 %v3481
        %v3483 = vperm.slane %v3447, %v3482
        %v3484 = vrot.slane %v3483, 4
        %v3485 = vsel %vm2194, %v3484, %v3478
        %v3486 = vrot.slane %v3478, 4
        %v3487 = vsel %vm2194, %v3483, %v3486
        %v3489 = vunpack.c.l.s4 1934713408
        %v3490 = vunpack.c.0.s8 %v3489
        %v3491 = vperm.slane %v3485, %v3490
        %v3493 = vunpack.c.l.s4 1934713408
        %v3494 = vunpack.c.0.s8 %v3493
        %v3495 = vperm.slane %v3487, %v3494
        %v3496 = vrot.slane %v3491, 4
        %v3497 = vsel %vm2194, 0, %v3496
        %v3498 = vrot.slane %v3495, 4
        %v3499 = vsel %vm2194, 0, %v3498
        %v3500 = vsel %vm2194, %v3472, %v3465
        %v3502 = vunpack.c.l.s4 1983009808
        %v3503 = vunpack.c.0.s8 %v3502
        %v3504 = vperm.slane %v3500, %v3503
        %v3505 = vrot.slane %v3473, 4
        %v3506 = vsel %vm2194, %v3505, %v3471
        %v3508 = vunpack.c.l.s4 1983009808
        %v3509 = vunpack.c.0.s8 %v3508
        %v3510 = vperm.slane %v3506, %v3509
        %v3511 = vrot.slane %v3510, 4
        %v3512 = vsel %vm2194, %v3511, %v3504
        %v3514 = vunpack.c.l.s4 1934713408
        %v3515 = vunpack.c.0.s8 %v3514
        %v3516 = vperm.slane %v3512, %v3515
        %v3517 = vrot.slane %v3516, 4
        %v3518 = vsel %vm2194, 0, %v3517
        %v3519 = vsel %vm2194, %v3498, %v3491
        %v3521 = vunpack.c.l.s4 1983009808
        %v3522 = vunpack.c.0.s8 %v3521
        %v3523 = vperm.slane %v3519, %v3522
        %v3524 = vrot.slane %v3499, 4
        %v3525 = vsel %vm2194, %v3524, %v3497
        %v3527 = vunpack.c.l.s4 1983009808
        %v3528 = vunpack.c.0.s8 %v3527
        %v3529 = vperm.slane %v3525, %v3528
        %v3530 = vrot.slane %v3529, 4
        %v3531 = vsel %vm2194, %v3530, %v3523
        %v3533 = vunpack.c.l.s4 1934713408
        %v3534 = vunpack.c.0.s8 %v3533
        %v3535 = vperm.slane %v3531, %v3534
        %v3536 = vrot.slane %v3535, 4
        %v3537 = vsel %vm2194, 0, %v3536
        %v3540 = vpack.i.b16 %v3535, %v3516
        %v3541 = vshrl.u32 %v3516, 16
        %v3542 = vshrl.u32 %v3535, 16
        %v3543 = vpack.i.b16 %v3542, %v3541
        %v3546 = vpack.i.b16 %v3537, %v3518
        %v3547 = vshrl.u32 %v3518, 16
        %v3548 = vshrl.u32 %v3537, 16
        %v3549 = vpack.i.b16 %v3548, %v3547
        %v3550 = vpack.c.bf16 %v3401, %v3388
        %v3552 = vrot.slane %v3550, 4
        %3553 = vrot.lane.b32.xlu0 %v3550, 64
        %v3554 = vpop.permute.xlu0 %3553
        %v3555 = vrot.slane %v3554, 4
        %v3558 = vpack.i.b16 %v3554, %v3550
        %v3559 = vshrl.u32 %v3550, 16
        %v3560 = vshrl.u32 %v3554, 16
        %v3561 = vpack.i.b16 %v3560, %v3559
        %v3564 = vpack.i.b16 %v3555, %v3552
        %v3565 = vshrl.u32 %v3552, 16
        %v3566 = vshrl.u32 %v3555, 16
        %v3567 = vpack.i.b16 %v3566, %v3565
        %v3570 = vunpack.c.l.s4 1983009808
        %v3571 = vunpack.c.0.s8 %v3570
        %v3572 = vperm.slane %v3558, %v3571
        %v3575 = vunpack.c.l.s4 1983009808
        %v3576 = vunpack.c.0.s8 %v3575
        %v3577 = vperm.slane %v3564, %v3576
        %v3578 = vrot.slane %v3577, 4
        %v3579 = vsel %vm2194, %v3578, %v3572
        %v3580 = vrot.slane %v3572, 4
        %v3581 = vsel %vm2194, %v3577, %v3580
        %v3583 = vunpack.c.l.s4 1934713408
        %v3584 = vunpack.c.0.s8 %v3583
        %v3585 = vperm.slane %v3579, %v3584
        %v3587 = vunpack.c.l.s4 1934713408
        %v3588 = vunpack.c.0.s8 %v3587
        %v3589 = vperm.slane %v3581, %v3588
        %v3590 = vrot.slane %v3585, 4
        %v3591 = vsel %vm2194, 0, %v3590
        %v3592 = vrot.slane %v3589, 4
        %v3593 = vsel %vm2194, 0, %v3592
        %v3596 = vunpack.c.l.s4 1983009808
        %v3597 = vunpack.c.0.s8 %v3596
        %v3598 = vperm.slane %v3561, %v3597
        %v3601 = vunpack.c.l.s4 1983009808
        %v3602 = vunpack.c.0.s8 %v3601
        %v3603 = vperm.slane %v3567, %v3602
        %v3604 = vrot.slane %v3603, 4
        %v3605 = vsel %vm2194, %v3604, %v3598
        %v3606 = vrot.slane %v3598, 4
        %v3607 = vsel %vm2194, %v3603, %v3606
        %v3609 = vunpack.c.l.s4 1934713408
        %v3610 = vunpack.c.0.s8 %v3609
        %v3611 = vperm.slane %v3605, %v3610
        %v3613 = vunpack.c.l.s4 1934713408
        %v3614 = vunpack.c.0.s8 %v3613
        %v3615 = vperm.slane %v3607, %v3614
        %v3616 = vrot.slane %v3611, 4
        %v3617 = vsel %vm2194, 0, %v3616
        %v3618 = vrot.slane %v3615, 4
        %v3619 = vsel %vm2194, 0, %v3618
        %v3620 = vsel %vm2194, %v3592, %v3585
        %v3622 = vunpack.c.l.s4 1983009808
        %v3623 = vunpack.c.0.s8 %v3622
        %v3624 = vperm.slane %v3620, %v3623
        %v3625 = vrot.slane %v3593, 4
        %v3626 = vsel %vm2194, %v3625, %v3591
        %v3628 = vunpack.c.l.s4 1983009808
        %v3629 = vunpack.c.0.s8 %v3628
        %v3630 = vperm.slane %v3626, %v3629
        %v3631 = vrot.slane %v3630, 4
        %v3632 = vsel %vm2194, %v3631, %v3624
        %v3634 = vunpack.c.l.s4 1934713408
        %v3635 = vunpack.c.0.s8 %v3634
        %v3636 = vperm.slane %v3632, %v3635
        %v3637 = vrot.slane %v3636, 4
        %v3638 = vsel %vm2194, 0, %v3637
        %v3639 = vsel %vm2194, %v3618, %v3611
        %v3641 = vunpack.c.l.s4 1983009808
        %v3642 = vunpack.c.0.s8 %v3641
        %v3643 = vperm.slane %v3639, %v3642
        %v3644 = vrot.slane %v3619, 4
        %v3645 = vsel %vm2194, %v3644, %v3617
        %v3647 = vunpack.c.l.s4 1983009808
        %v3648 = vunpack.c.0.s8 %v3647
        %v3649 = vperm.slane %v3645, %v3648
        %v3650 = vrot.slane %v3649, 4
        %v3651 = vsel %vm2194, %v3650, %v3643
        %v3653 = vunpack.c.l.s4 1934713408
        %v3654 = vunpack.c.0.s8 %v3653
        %v3655 = vperm.slane %v3651, %v3654
        %v3656 = vrot.slane %v3655, 4
        %v3657 = vsel %vm2194, 0, %v3656
        %v3660 = vpack.i.b16 %v3655, %v3636
        %v3661 = vshrl.u32 %v3636, 16
        %v3662 = vshrl.u32 %v3655, 16
        %v3663 = vpack.i.b16 %v3662, %v3661
        %v3666 = vpack.i.b16 %v3657, %v3638
        %v3667 = vshrl.u32 %v3638, 16
        %v3668 = vshrl.u32 %v3657, 16
        %v3669 = vpack.i.b16 %v3668, %v3667
        %v3670 = vpack.c.bf16 %v3427, %v3414
        %v3672 = vrot.slane %v3670, 4
        %3673 = vrot.lane.b32.xlu0 %v3670, 64
        %v3674 = vpop.permute.xlu0 %3673
        %v3675 = vrot.slane %v3674, 4
        %v3678 = vpack.i.b16 %v3674, %v3670
        %v3679 = vshrl.u32 %v3670, 16
        %v3680 = vshrl.u32 %v3674, 16
        %v3681 = vpack.i.b16 %v3680, %v3679
        %v3684 = vpack.i.b16 %v3675, %v3672
        %v3685 = vshrl.u32 %v3672, 16
        %v3686 = vshrl.u32 %v3675, 16
        %v3687 = vpack.i.b16 %v3686, %v3685
        %v3690 = vunpack.c.l.s4 1983009808
        %v3691 = vunpack.c.0.s8 %v3690
        %v3692 = vperm.slane %v3678, %v3691
        %v3695 = vunpack.c.l.s4 1983009808
        %v3696 = vunpack.c.0.s8 %v3695
        %v3697 = vperm.slane %v3684, %v3696
        %v3698 = vrot.slane %v3697, 4
        %v3699 = vsel %vm2194, %v3698, %v3692
        %v3700 = vrot.slane %v3692, 4
        %v3701 = vsel %vm2194, %v3697, %v3700
        %v3703 = vunpack.c.l.s4 1934713408
        %v3704 = vunpack.c.0.s8 %v3703
        %v3705 = vperm.slane %v3699, %v3704
        %v3707 = vunpack.c.l.s4 1934713408
        %v3708 = vunpack.c.0.s8 %v3707
        %v3709 = vperm.slane %v3701, %v3708
        %v3710 = vrot.slane %v3705, 4
        %v3711 = vsel %vm2194, 0, %v3710
        %v3712 = vrot.slane %v3709, 4
        %v3713 = vsel %vm2194, 0, %v3712
        %v3716 = vunpack.c.l.s4 1983009808
        %v3717 = vunpack.c.0.s8 %v3716
        %v3718 = vperm.slane %v3681, %v3717
        %v3721 = vunpack.c.l.s4 1983009808
        %v3722 = vunpack.c.0.s8 %v3721
        %v3723 = vperm.slane %v3687, %v3722
        %v3724 = vrot.slane %v3723, 4
        %v3725 = vsel %vm2194, %v3724, %v3718
        %v3726 = vrot.slane %v3718, 4
        %v3727 = vsel %vm2194, %v3723, %v3726
        %v3729 = vunpack.c.l.s4 1934713408
        %v3730 = vunpack.c.0.s8 %v3729
        %v3731 = vperm.slane %v3725, %v3730
        %v3733 = vunpack.c.l.s4 1934713408
        %v3734 = vunpack.c.0.s8 %v3733
        %v3735 = vperm.slane %v3727, %v3734
        %v3736 = vrot.slane %v3731, 4
        %v3737 = vsel %vm2194, 0, %v3736
        %v3738 = vrot.slane %v3735, 4
        %v3739 = vsel %vm2194, 0, %v3738
        %v3740 = vsel %vm2194, %v3712, %v3705
        %v3742 = vunpack.c.l.s4 1983009808
        %v3743 = vunpack.c.0.s8 %v3742
        %v3744 = vperm.slane %v3740, %v3743
        %v3745 = vrot.slane %v3713, 4
        %v3746 = vsel %vm2194, %v3745, %v3711
        %v3748 = vunpack.c.l.s4 1983009808
        %v3749 = vunpack.c.0.s8 %v3748
        %v3750 = vperm.slane %v3746, %v3749
        %v3751 = vrot.slane %v3750, 4
        %v3752 = vsel %vm2194, %v3751, %v3744
        %v3754 = vunpack.c.l.s4 1934713408
        %v3755 = vunpack.c.0.s8 %v3754
        %v3756 = vperm.slane %v3752, %v3755
        %v3757 = vrot.slane %v3756, 4
        %v3758 = vsel %vm2194, 0, %v3757
        %v3759 = vsel %vm2194, %v3738, %v3731
        %v3761 = vunpack.c.l.s4 1983009808
        %v3762 = vunpack.c.0.s8 %v3761
        %v3763 = vperm.slane %v3759, %v3762
        %v3764 = vrot.slane %v3739, 4
        %v3765 = vsel %vm2194, %v3764, %v3737
        %v3767 = vunpack.c.l.s4 1983009808
        %v3768 = vunpack.c.0.s8 %v3767
        %v3769 = vperm.slane %v3765, %v3768
        %v3770 = vrot.slane %v3769, 4
        %v3771 = vsel %vm2194, %v3770, %v3763
        %v3773 = vunpack.c.l.s4 1934713408
        %v3774 = vunpack.c.0.s8 %v3773
        %v3775 = vperm.slane %v3771, %v3774
        %v3776 = vrot.slane %v3775, 4
        %v3777 = vsel %vm2194, 0, %v3776
        %v3780 = vpack.i.b16 %v3775, %v3756
        %v3781 = vshrl.u32 %v3756, 16
        %v3782 = vshrl.u32 %v3775, 16
        %v3783 = vpack.i.b16 %v3782, %v3781
        %v3786 = vpack.i.b16 %v3777, %v3758
        %v3787 = vshrl.u32 %v3758, 16
        %v3788 = vshrl.u32 %v3777, 16
        %v3789 = vpack.i.b16 %v3788, %v3787
        %v3791 = vsel %vm2526, %v3540, 0
        %v3794 = vsel %vm2526, %v3660, 0
        %3796 = vmatpush.bf16.xpose.msra.mxu0 0
        %3797 = vmatpush.bf16.xpose.msra.mxu0 0
        %3798 = vmatpush.bf16.xpose.msra.mxu0 0
        %3799 = vmatpush.bf16.xpose.msra.mxu0 0
        %3800 = vmatpush.bf16.xpose.msra.mxu0 0
        %3801 = vmatpush.bf16.xpose.msra.mxu0 0
        %3802 = vmatpush.bf16.xpose.msra.mxu0 0
        %3803 = vmatpush.bf16.xpose.msra.mxu0 %v3794
        %3804 = vmatmul.bf16.gmra.mxu0 %v3791
        %v3805 = vpop.f32.mrf.mxu0
        %v3806 = vadd.f32 0.0, %v3805
        %v3807 = vpop.f32.mrf.mxu0
        %3808 = vdwg.mxu0
        %v3810 = vsel %vm2526, %v3543, 0
        %v3813 = vsel %vm2526, %v3663, 0
        %3815 = vmatpush.bf16.xpose.msra.mxu0 0
        %3816 = vmatpush.bf16.xpose.msra.mxu0 0
        %3817 = vmatpush.bf16.xpose.msra.mxu0 0
        %3818 = vmatpush.bf16.xpose.msra.mxu0 0
        %3819 = vmatpush.bf16.xpose.msra.mxu0 0
        %3820 = vmatpush.bf16.xpose.msra.mxu0 0
        %3821 = vmatpush.bf16.xpose.msra.mxu0 0
        %3822 = vmatpush.bf16.xpose.msra.mxu0 %v3813
        %3823 = vmatmul.bf16.gmra.mxu0 %v3810
        %v3824 = vpop.f32.mrf.mxu0
        %v3825 = vadd.f32 0.0, %v3824
        %v3826 = vpop.f32.mrf.mxu0
        %3827 = vdwg.mxu0
        %v3829 = vsel %vm2526, %v3546, 0
        %v3832 = vsel %vm2526, %v3666, 0
        %3834 = vmatpush.bf16.xpose.msra.mxu0 0
        %3835 = vmatpush.bf16.xpose.msra.mxu0 0
        %3836 = vmatpush.bf16.xpose.msra.mxu0 0
        %3837 = vmatpush.bf16.xpose.msra.mxu0 0
        %3838 = vmatpush.bf16.xpose.msra.mxu0 0
        %3839 = vmatpush.bf16.xpose.msra.mxu0 0
        %3840 = vmatpush.bf16.xpose.msra.mxu0 0
        %3841 = vmatpush.bf16.xpose.msra.mxu0 %v3832
        %3842 = vmatmul.bf16.gmra.mxu0 %v3829
        %v3843 = vpop.f32.mrf.mxu0
        %v3844 = vadd.f32 0.0, %v3843
        %v3845 = vpop.f32.mrf.mxu0
        %3846 = vdwg.mxu0
        %v3848 = vsel %vm2526, %v3549, 0
        %v3851 = vsel %vm2526, %v3669, 0
        %3853 = vmatpush.bf16.xpose.msra.mxu0 0
        %3854 = vmatpush.bf16.xpose.msra.mxu0 0
        %3855 = vmatpush.bf16.xpose.msra.mxu0 0
        %3856 = vmatpush.bf16.xpose.msra.mxu0 0
        %3857 = vmatpush.bf16.xpose.msra.mxu0 0
        %3858 = vmatpush.bf16.xpose.msra.mxu0 0
        %3859 = vmatpush.bf16.xpose.msra.mxu0 0
        %3860 = vmatpush.bf16.xpose.msra.mxu0 %v3851
        %3861 = vmatmul.bf16.gmra.mxu0 %v3848
        %v3862 = vpop.f32.mrf.mxu0
        %v3863 = vadd.f32 0.0, %v3862
        %v3864 = vpop.f32.mrf.mxu0
        %3865 = vdwg.mxu0
        %v3866 = vsel %vm2603, %v3806, -inf
        %3867 = vmax.xlane.f32.xlu0 %v3866
        %v3868 = vpop.xlane.xlu0 %3867
        %v3869 = vsel %vm2603, %v3825, -inf
        %3870 = vmax.xlane.f32.xlu0 %v3869
        %v3871 = vpop.xlane.xlu0 %3870
        %v3872 = vsel %vm2603, %v3844, -inf
        %3873 = vmax.xlane.f32.xlu0 %v3872
        %v3874 = vpop.xlane.xlu0 %3873
        %v3875 = vsel %vm2603, %v3863, -inf
        %3876 = vmax.xlane.f32.xlu0 %v3875
        %v3877 = vpop.xlane.xlu0 %3876
        %v3878 = vsub.f32 %v3806, %v3868
        %v3879 = vsub.f32 %v3825, %v3871
        %v3880 = vsub.f32 %v3844, %v3874
        %v3881 = vsub.f32 %v3863, %v3877
        %v3882 = vmul.f32 %v3878, 1.442695
        %v3883 = vpow.pop %v3882
        %v3884 = vmul.f32 %v3879, 1.442695
        %v3885 = vpow.pop %v3884
        %v3886 = vmul.f32 %v3880, 1.442695
        %v3887 = vpow.pop %v3886
        %v3888 = vmul.f32 %v3881, 1.442695
        %v3889 = vpow.pop %v3888
        %v3890 = vsel %vm2603, %v3883, 0.0
        %3891 = vadd.xlane.f32.xlu0 %v3890
        %v3892 = vpop.xlane.xlu0 %3891
        %v3893 = vsel %vm2603, %v3885, 0.0
        %3894 = vadd.xlane.f32.xlu0 %v3893
        %v3895 = vpop.xlane.xlu0 %3894
        %v3896 = vsel %vm2603, %v3887, 0.0
        %3897 = vadd.xlane.f32.xlu0 %v3896
        %v3898 = vpop.xlane.xlu0 %3897
        %v3899 = vsel %vm2603, %v3889, 0.0
        %3900 = vadd.xlane.f32.xlu0 %v3899
        %v3901 = vpop.xlane.xlu0 %3900
        %v3902 = vrcp.pop %v3892
        %v3903 = vmul.f32 %v3892, %v3902
        %v3904 = vsub.f32 1.0, %v3903
        %v3905 = vmul.f32 %v3902, %v3904
        %v3906 = vadd.f32 %v3902, %v3905
        %vm3907 = vweird.f32 %v3892
        %vm3908 = vweird.f32 %v3902
        %vm3909 = vmor %vm3907, %vm3908
        %v3910 = vsel %vm3909, %v3902, %v3906
        %v3911 = vand.u32 2147483647, %v3892
        %vm3912 = vcmp.eq.f32.partialorder %v3911, 8.507059e+37
        %v3913 = vand.u32 %v3892, 2147483648
        %v3914 = vor.u32 1.1754944e-38, %v3913
        %v3915 = vsel %vm3912, %v3914, %v3910
        %v3916 = vmul.f32 %v3883, %v3915
        %v3917 = vrcp.pop %v3895
        %v3918 = vmul.f32 %v3895, %v3917
        %v3919 = vsub.f32 1.0, %v3918
        %v3920 = vmul.f32 %v3917, %v3919
        %v3921 = vadd.f32 %v3917, %v3920
        %vm3922 = vweird.f32 %v3895
        %vm3923 = vweird.f32 %v3917
        %vm3924 = vmor %vm3922, %vm3923
        %v3925 = vsel %vm3924, %v3917, %v3921
        %v3926 = vand.u32 2147483647, %v3895
        %vm3927 = vcmp.eq.f32.partialorder %v3926, 8.507059e+37
        %v3928 = vand.u32 %v3895, 2147483648
        %v3929 = vor.u32 1.1754944e-38, %v3928
        %v3930 = vsel %vm3927, %v3929, %v3925
        %v3931 = vmul.f32 %v3885, %v3930
        %v3932 = vrcp.pop %v3898
        %v3933 = vmul.f32 %v3898, %v3932
        %v3934 = vsub.f32 1.0, %v3933
        %v3935 = vmul.f32 %v3932, %v3934
        %v3936 = vadd.f32 %v3932, %v3935
        %vm3937 = vweird.f32 %v3898
        %vm3938 = vweird.f32 %v3932
        %vm3939 = vmor %vm3937, %vm3938
        %v3940 = vsel %vm3939, %v3932, %v3936
        %v3941 = vand.u32 2147483647, %v3898
        %vm3942 = vcmp.eq.f32.partialorder %v3941, 8.507059e+37
        %v3943 = vand.u32 %v3898, 2147483648
        %v3944 = vor.u32 1.1754944e-38, %v3943
        %v3945 = vsel %vm3942, %v3944, %v3940
        %v3946 = vmul.f32 %v3887, %v3945
        %v3947 = vrcp.pop %v3901
        %v3948 = vmul.f32 %v3901, %v3947
        %v3949 = vsub.f32 1.0, %v3948
        %v3950 = vmul.f32 %v3947, %v3949
        %v3951 = vadd.f32 %v3947, %v3950
        %vm3952 = vweird.f32 %v3901
        %vm3953 = vweird.f32 %v3947
        %vm3954 = vmor %vm3952, %vm3953
        %v3955 = vsel %vm3954, %v3947, %v3951
        %v3956 = vand.u32 2147483647, %v3901
        %vm3957 = vcmp.eq.f32.partialorder %v3956, 8.507059e+37
        %v3958 = vand.u32 %v3901, 2147483648
        %v3959 = vor.u32 1.1754944e-38, %v3958
        %v3960 = vsel %vm3957, %v3959, %v3955
        %v3961 = vmul.f32 %v3889, %v3960
        %v3962 = vpack.c.bf16 %v3916, %v3916
        %v3963 = vpack.c.bf16 %v3931, %v3931
        %v3964 = vpack.c.bf16 %v3946, %v3946
        %v3965 = vpack.c.bf16 %v3961, %v3961
        %v3967 = vsel %vm2603, %v3962, 0
        %v3970 = vsel %vm2707, %v3780, 0
        %3972 = vmatpush.bf16.msra.mxu0 0
        %3973 = vmatpush.bf16.msra.mxu0 0
        %3974 = vmatpush.bf16.msra.mxu0 0
        %3975 = vmatpush.bf16.msra.mxu0 0
        %3976 = vmatpush.bf16.msra.mxu0 0
        %3977 = vmatpush.bf16.msra.mxu0 0
        %3978 = vmatpush.bf16.msra.mxu0 0
        %3979 = vmatpush.bf16.msra.mxu0 %v3970
        %3980 = vmatmul.bf16.gmra.mxu0 %v3967
        %v3981 = vpop.f32.mrf.mxu0
        %v3982 = vadd.f32 0.0, %v3981
        %v3983 = vpop.f32.mrf.mxu0
        %3984 = vdwg.mxu0
        %v3986 = vsel %vm2603, %v3963, 0
        %v3989 = vsel %vm2707, %v3783, 0
        %3991 = vmatpush.bf16.msra.mxu0 0
        %3992 = vmatpush.bf16.msra.mxu0 0
        %3993 = vmatpush.bf16.msra.mxu0 0
        %3994 = vmatpush.bf16.msra.mxu0 0
        %3995 = vmatpush.bf16.msra.mxu0 0
        %3996 = vmatpush.bf16.msra.mxu0 0
        %3997 = vmatpush.bf16.msra.mxu0 0
        %3998 = vmatpush.bf16.msra.mxu0 %v3989
        %3999 = vmatmul.bf16.gmra.mxu0 %v3986
        %v4000 = vpop.f32.mrf.mxu0
        %v4001 = vadd.f32 0.0, %v4000
        %v4002 = vpop.f32.mrf.mxu0
        %4003 = vdwg.mxu0
        %v4005 = vsel %vm2603, %v3964, 0
        %v4008 = vsel %vm2707, %v3786, 0
        %4010 = vmatpush.bf16.msra.mxu0 0
        %4011 = vmatpush.bf16.msra.mxu0 0
        %4012 = vmatpush.bf16.msra.mxu0 0
        %4013 = vmatpush.bf16.msra.mxu0 0
        %4014 = vmatpush.bf16.msra.mxu0 0
        %4015 = vmatpush.bf16.msra.mxu0 0
        %4016 = vmatpush.bf16.msra.mxu0 0
        %4017 = vmatpush.bf16.msra.mxu0 %v4008
        %4018 = vmatmul.bf16.gmra.mxu0 %v4005
        %v4019 = vpop.f32.mrf.mxu0
        %v4020 = vadd.f32 0.0, %v4019
        %v4021 = vpop.f32.mrf.mxu0
        %4022 = vdwg.mxu0
        %v4024 = vsel %vm2603, %v3965, 0
        %v4027 = vsel %vm2707, %v3789, 0
        %4029 = vmatpush.bf16.msra.mxu0 0
        %4030 = vmatpush.bf16.msra.mxu0 0
        %4031 = vmatpush.bf16.msra.mxu0 0
        %4032 = vmatpush.bf16.msra.mxu0 0
        %4033 = vmatpush.bf16.msra.mxu0 0
        %4034 = vmatpush.bf16.msra.mxu0 0
        %4035 = vmatpush.bf16.msra.mxu0 0
        %4036 = vmatpush.bf16.msra.mxu0 %v4027
        %4037 = vmatmul.bf16.gmra.mxu0 %v4024
        %v4038 = vpop.f32.mrf.mxu0
        %v4039 = vadd.f32 0.0, %v4038
        %v4040 = vpop.f32.mrf.mxu0
        %4041 = vdwg.mxu0
        %v4042 = vrot.slane %v4020, 4
        %v4043 = vsel %vm2782, %v4042, %v3982
        %v4044 = vrot.slane %v3982, 4
        %v4045 = vsel %vm2782, %v4020, %v4044
        %v4047 = vunpack.c.l.s4 1983009808
        %v4048 = vunpack.c.0.s8 %v4047
        %v4049 = vperm.slane %v4043, %v4048
        %v4051 = vunpack.c.l.s4 1983009808
        %v4052 = vunpack.c.0.s8 %v4051
        %v4053 = vperm.slane %v4045, %v4052
        %v4054 = vrot.slane %v4039, 4
        %v4055 = vsel %vm2782, %v4054, %v4001
        %v4056 = vrot.slane %v4001, 4
        %v4057 = vsel %vm2782, %v4039, %v4056
        %v4059 = vunpack.c.l.s4 1983009808
        %v4060 = vunpack.c.0.s8 %v4059
        %v4061 = vperm.slane %v4055, %v4060
        %v4063 = vunpack.c.l.s4 1983009808
        %v4064 = vunpack.c.0.s8 %v4063
        %v4065 = vperm.slane %v4057, %v4064
        %v4066 = vrot.slane %v4061, 4
        %v4067 = vsel %vm2782, %v4066, %v4049
        %v4068 = vrot.slane %v4049, 4
        %v4069 = vsel %vm2782, %v4061, %v4068
        %v4071 = vunpack.c.l.s4 1934713408
        %v4072 = vunpack.c.0.s8 %v4071
        %v4073 = vperm.slane %v4067, %v4072
        %v4075 = vunpack.c.l.s4 1934713408
        %v4076 = vunpack.c.0.s8 %v4075
        %v4077 = vperm.slane %v4069, %v4076
        %v4078 = vrot.slane %v4065, 4
        %v4079 = vsel %vm2782, %v4078, %v4053
        %v4080 = vrot.slane %v4053, 4
        %v4081 = vsel %vm2782, %v4065, %v4080
        %v4083 = vunpack.c.l.s4 1934713408
        %v4084 = vunpack.c.0.s8 %v4083
        %v4085 = vperm.slane %v4079, %v4084
        %v4087 = vunpack.c.l.s4 1934713408
        %v4088 = vunpack.c.0.s8 %v4087
        %v4089 = vperm.slane %v4081, %v4088
        %v4090 = vrot.slane %v4073, 4
        %v4091 = vsel %vm2782, 0.0, %v4090
        %v4092 = vrot.slane %v4077, 4
        %v4093 = vsel %vm2782, 0.0, %v4092
        %v4094 = vrot.slane %v4085, 4
        %v4095 = vsel %vm2782, 0.0, %v4094
        %v4096 = vrot.slane %v4089, 4
        %v4097 = vsel %vm2782, 0.0, %v4096
        %v4098 = vsel %vm2782, %v4092, %v4073
        %v4100 = vunpack.c.l.s4 1983009808
        %v4101 = vunpack.c.0.s8 %v4100
        %v4102 = vperm.slane %v4098, %v4101
        %v4103 = vrot.slane %v4093, 4
        %v4104 = vsel %vm2782, %v4103, %v4091
        %v4106 = vunpack.c.l.s4 1983009808
        %v4107 = vunpack.c.0.s8 %v4106
        %v4108 = vperm.slane %v4104, %v4107
        %v4109 = vsel %vm2782, %v4096, %v4085
        %v4111 = vunpack.c.l.s4 1983009808
        %v4112 = vunpack.c.0.s8 %v4111
        %v4113 = vperm.slane %v4109, %v4112
        %v4114 = vrot.slane %v4097, 4
        %v4115 = vsel %vm2782, %v4114, %v4095
        %v4117 = vunpack.c.l.s4 1983009808
        %v4118 = vunpack.c.0.s8 %v4117
        %v4119 = vperm.slane %v4115, %v4118
        %v4120 = vrot.slane %v4108, 4
        %v4121 = vsel %vm2782, %v4120, %v4102
        %v4122 = vrot.slane %v4102, 4
        %v4123 = vsel %vm2782, %v4108, %v4122
        %v4125 = vunpack.c.l.s4 1934713408
        %v4126 = vunpack.c.0.s8 %v4125
        %v4127 = vperm.slane %v4121, %v4126
        %v4129 = vunpack.c.l.s4 1934713408
        %v4130 = vunpack.c.0.s8 %v4129
        %v4131 = vperm.slane %v4123, %v4130
        %v4132 = vrot.slane %v4119, 4
        %v4133 = vsel %vm2782, %v4132, %v4113
        %v4134 = vrot.slane %v4113, 4
        %v4135 = vsel %vm2782, %v4119, %v4134
        %v4137 = vunpack.c.l.s4 1934713408
        %v4138 = vunpack.c.0.s8 %v4137
        %v4139 = vperm.slane %v4133, %v4138
        %v4141 = vunpack.c.l.s4 1934713408
        %v4142 = vunpack.c.0.s8 %v4141
        %v4143 = vperm.slane %v4135, %v4142
        %v4144 = vrot.slane %v4139, 4
        %v4145 = vsel %vm2782, %v4144, %v4127
        %v4146 = vrot.slane %v4127, 4
        %v4147 = vsel %vm2782, %v4139, %v4146
        %v4148 = vrot.slane %v4143, 4
        %v4149 = vsel %vm2782, %v4148, %v4131
        %v4150 = vrot.slane %v4131, 4
        %v4151 = vsel %vm2782, %v4143, %v4150
        %4153 = vrot.lane.b32.xlu0 %v4147, 64
        %v4154 = vpop.permute.xlu0 %4153
        %4157 = vrot.lane.b32.xlu0 %v4151, 64
        %v4158 = vpop.permute.xlu0 %4157
        %v4160 = vsel %vm2526, %v4145, %v4154
        %v4161 = vsel %vm2526, %v4149, %v4158
        %s4162 = scalar_lea.vmem %s111, 128
        %v4163 = vld [vmem:[%s4162] sm:$0xf]
        %v4164 = vld [vmem:[%s4162 + $0x4] sm:$0xf]
        %v4165 = vld [vmem:[%s4162 + $0x8] sm:$0xf]
        %v4166 = vld [vmem:[%s4162 + $0xc] sm:$0xf]
        %v4167 = vld [vmem:[%s4162 + $0x10] sm:$0xf]
        %v4168 = vld [vmem:[%s4162 + $0x14] sm:$0xf]
        %v4169 = vld [vmem:[%s4162 + $0x18] sm:$0xf]
        %v4170 = vld [vmem:[%s4162 + $0x1c] sm:$0xf]
        %v4171 = vld [vmem:[%s4162 + $0x20] sm:$0xf]
        %v4172 = vld [vmem:[%s4162 + $0x24] sm:$0xf]
        %v4173 = vld [vmem:[%s4162 + $0x28] sm:$0xf]
        %v4174 = vld [vmem:[%s4162 + $0x2c] sm:$0xf]
        %v4175 = vld [vmem:[%s4162 + $0x30] sm:$0xf]
        %v4176 = vld [vmem:[%s4162 + $0x34] sm:$0xf]
        %v4177 = vld [vmem:[%s4162 + $0x38] sm:$0xf]
        %v4178 = vld [vmem:[%s4162 + $0x3c] sm:$0xf]
        %v4179 = vld [vmem:[%s4162 + $0x40] sm:$0xf]
        %v4180 = vld [vmem:[%s4162 + $0x44] sm:$0xf]
        %v4181 = vld [vmem:[%s4162 + $0x48] sm:$0xf]
        %v4182 = vld [vmem:[%s4162 + $0x4c] sm:$0xf]
        %v4183 = vld [vmem:[%s4162 + $0x50] sm:$0xf]
        %v4184 = vld [vmem:[%s4162 + $0x54] sm:$0xf]
        %v4185 = vld [vmem:[%s4162 + $0x58] sm:$0xf]
        %v4186 = vld [vmem:[%s4162 + $0x5c] sm:$0xf]
        %v4187 = vld [vmem:[%s4162 + $0x60] sm:$0xf]
        %v4188 = vld [vmem:[%s4162 + $0x64] sm:$0xf]
        %v4189 = vld [vmem:[%s4162 + $0x68] sm:$0xf]
        %v4190 = vld [vmem:[%s4162 + $0x6c] sm:$0xf]
        %v4191 = vld [vmem:[%s4162 + $0x70] sm:$0xf]
        %v4192 = vld [vmem:[%s4162 + $0x74] sm:$0xf]
        %v4193 = vld [vmem:[%s4162 + $0x78] sm:$0xf]
        %v4194 = vld [vmem:[%s4162 + $0x7c] sm:$0xf]
        %v4195 = vpack.c.bf16 %v4160, %v4160
        %v4196 = vpack.c.bf16 %v4161, %v4161
        %v4229 = vunpack.c.l.b16 %v4163
        %v4230 = vunpack.c.l.b16 %v4164
        %v4231 = vunpack.c.l.b16 %v4165
        %v4232 = vunpack.c.l.b16 %v4166
        %v4233 = vunpack.c.l.b16 %v4167
        %v4234 = vunpack.c.l.b16 %v4168
        %v4235 = vunpack.c.l.b16 %v4169
        %v4236 = vunpack.c.l.b16 %v4170
        %v4237 = vunpack.c.l.b16 %v4171
        %v4238 = vunpack.c.l.b16 %v4172
        %v4239 = vunpack.c.l.b16 %v4173
        %v4240 = vunpack.c.l.b16 %v4174
        %v4241 = vunpack.c.l.b16 %v4175
        %v4242 = vunpack.c.l.b16 %v4176
        %v4243 = vunpack.c.l.b16 %v4177
        %v4244 = vunpack.c.l.b16 %v4178
        %v4245 = vunpack.c.l.b16 %v4179
        %v4246 = vunpack.c.l.b16 %v4180
        %v4247 = vunpack.c.l.b16 %v4181
        %v4248 = vunpack.c.l.b16 %v4182
        %v4249 = vunpack.c.l.b16 %v4183
        %v4250 = vunpack.c.l.b16 %v4184
        %v4251 = vunpack.c.l.b16 %v4185
        %v4252 = vunpack.c.l.b16 %v4186
        %v4253 = vunpack.c.l.b16 %v4187
        %v4254 = vunpack.c.l.b16 %v4188
        %v4255 = vunpack.c.l.b16 %v4189
        %v4256 = vunpack.c.l.b16 %v4190
        %v4257 = vunpack.c.l.b16 %v4191
        %v4258 = vunpack.c.l.b16 %v4192
        %v4259 = vunpack.c.l.b16 %v4193
        %v4260 = vunpack.c.l.b16 %v4194
        %v4261 = vpack.c.b16 %v4230, %v4229
        %v4262 = vpack.c.b16 %v4232, %v4231
        %v4263 = vpack.c.b16 %v4234, %v4233
        %v4264 = vpack.c.b16 %v4236, %v4235
        %v4265 = vpack.c.b16 %v4238, %v4237
        %v4266 = vpack.c.b16 %v4240, %v4239
        %v4267 = vpack.c.b16 %v4242, %v4241
        %v4268 = vpack.c.b16 %v4244, %v4243
        %v4269 = vpack.c.b16 %v4246, %v4245
        %v4270 = vpack.c.b16 %v4248, %v4247
        %v4271 = vpack.c.b16 %v4250, %v4249
        %v4272 = vpack.c.b16 %v4252, %v4251
        %v4273 = vpack.c.b16 %v4254, %v4253
        %v4274 = vpack.c.b16 %v4256, %v4255
        %v4275 = vpack.c.b16 %v4258, %v4257
        %v4276 = vpack.c.b16 %v4260, %v4259
        %4293 = vmatpush.bf16.msra.mxu0 %v4268
        %4294 = vmatpush.bf16.msra.mxu0 %v4267
        %4295 = vmatpush.bf16.msra.mxu0 %v4266
        %4296 = vmatpush.bf16.msra.mxu0 %v4265
        %4297 = vmatpush.bf16.msra.mxu0 %v4264
        %4298 = vmatpush.bf16.msra.mxu0 %v4263
        %4299 = vmatpush.bf16.msra.mxu0 %v4262
        %4300 = vmatpush.bf16.msra.mxu0 %v4261
        %4301 = vmatmul.bf16.gmra.mxu0 %v4195
        %v4302 = vpop.f32.mrf.mxu0
        %v4303 = vadd.f32 0.0, %v4302
        %v4304 = vpop.f32.mrf.mxu0
        %4305 = vdwg.mxu0
        %4306 = vmatpush.bf16.msra.mxu0 %v4276
        %4307 = vmatpush.bf16.msra.mxu0 %v4275
        %4308 = vmatpush.bf16.msra.mxu0 %v4274
        %4309 = vmatpush.bf16.msra.mxu0 %v4273
        %4310 = vmatpush.bf16.msra.mxu0 %v4272
        %4311 = vmatpush.bf16.msra.mxu0 %v4271
        %4312 = vmatpush.bf16.msra.mxu0 %v4270
        %4313 = vmatpush.bf16.msra.mxu0 %v4269
        %4314 = vmatmul.bf16.gmra.mxu0 %v4196
        %v4315 = vpop.f32.mrf.mxu0
        %v4316 = vadd.f32 %v4303, %v4315
        %v4317 = vpop.f32.mrf.mxu0
        %4318 = vdwg.mxu0
        %v4319 = vadd.f32 %v3225, %v4316
        %s4320 = scalar_lea.vmem %s95, 1
        %v4321 = vld [vmem:[%s4320] sm:$0x1]
        %v4323 = vperm.slane %v4321, 0
        %v4325 = vadd.f32 %v4319, %v4323
        %s4326 = scalar_lea.vmem %s105, 1
        %v4327 = vld [vmem:[%s4326] sm:$0x1]
        %s4328 = scalar_lea.vmem %s103, 1
        %v4329 = vld [vmem:[%s4328] sm:$0x1]
        %v4330 = vsel %vm1959, %v4325, 0.0
        %4331 = vadd.xlane.f32.xlu0 %v4330
        %v4332 = vpop.xlane.xlu0 %4331
        %v4333 = vmul.f32 %v4332, %v1969
        %v4334 = vsub.f32 %v4325, %v4333
        %v4335 = vmul.f32 %v4334, %v4334
        %v4336 = vsel %vm1959, %v4335, 0.0
        %4337 = vadd.xlane.f32.xlu0 %v4336
        %v4338 = vpop.xlane.xlu0 %4337
        %v4339 = vmul.f32 %v4338, %v1969
        %v4340 = vadd.f32 %v4339, 1e-05
        %v4341 = vrsqrt.pop %v4340
        %v4342 = vmul.f32 %v4341, %v4340
        %v4343 = vmul.f32 %v4342, %v4341
        %v4344 = vmul.f32 0.5, %v4343
        %v4345 = vsub.f32 1.5, %v4344
        %v4346 = vmul.f32 %v4341, %v4345
        %vm4347 = vweird.f32 %v4340
        %vm4348 = vweird.f32 %v4341
        %vm4349 = vmor %vm4347, %vm4348
        %v4350 = vsel %vm4349, %v4341, %v4346
        %v4351 = vmul.f32 %v4334, %v4350
        %v4353 = vperm.slane %v4327, 0
        %v4355 = vmul.f32 %v4351, %v4353
        %v4357 = vperm.slane %v4329, 0
        %v4359 = vadd.f32 %v4355, %v4357
        %s4360 = scalar_lea.vmem %s107, 16
        %v4361 = vld [vmem:[%s4360] sm:$0xf]
        %v4362 = vld [vmem:[%s4360 + $0x4] sm:$0xf]
        %v4363 = vld [vmem:[%s4360 + $0x8] sm:$0xf]
        %v4364 = vld [vmem:[%s4360 + $0xc] sm:$0xf]
        %v4365 = vpack.c.bf16 %v4359, %v4359
        %s4366 = scalar_lea.vmem %s91, 1
        %v4367 = vld [vmem:[%s4366] sm:$0x1]
        %v4369 = vperm.slane %v4367, 0
        %v4375 = vunpack.c.l.b16 %v4361
        %v4376 = vunpack.c.l.b16 %v4362
        %v4377 = vunpack.c.l.b16 %v4363
        %v4378 = vunpack.c.l.b16 %v4364
        %v4379 = vpack.c.b16 %v4376, %v4375
        %v4380 = vpack.c.b16 %v4378, %v4377
        %v4384 = vsel %vm1959, %v4365, 0
        %4386 = vmatpush.bf16.msra.mxu0 0
        %4387 = vmatpush.bf16.msra.mxu0 0
        %4388 = vmatpush.bf16.msra.mxu0 0
        %4389 = vmatpush.bf16.msra.mxu0 0
        %4390 = vmatpush.bf16.msra.mxu0 0
        %4391 = vmatpush.bf16.msra.mxu0 0
        %4392 = vmatpush.bf16.msra.mxu0 %v4380
        %4393 = vmatpush.bf16.msra.mxu0 %v4379
        %4394 = vmatmul.bf16.gmra.mxu0 %v4384
        %v4395 = vpop.f32.mrf.mxu0
        %v4396 = vadd.f32 %v4369, %v4395
        %v4397 = vpop.f32.mrf.mxu0
        %4398 = vdwg.mxu0
        %v4399 = vmul.f32 %v4396, 0.5
        %v4400 = vmul.f32 %v4396, 0.044715
        %v4401 = vmul.f32 %v4400, %v4396
        %v4402 = vmul.f32 %v4401, %v4396
        %v4403 = vadd.f32 %v4396, %v4402
        %v4404 = vmul.f32 %v4403, 0.7978846
        %v4405 = vtanh.pop %v4404
        %v4406 = vadd.f32 %v4405, 1.0
        %v4407 = vmul.f32 %v4399, %v4406
        %s4408 = scalar_lea.vmem %s109, 64
        %v4409 = vld [vmem:[%s4408] sm:$0xf]
        %v4410 = vld [vmem:[%s4408 + $0x4] sm:$0xf]
        %v4411 = vld [vmem:[%s4408 + $0x8] sm:$0xf]
        %v4412 = vld [vmem:[%s4408 + $0xc] sm:$0xf]
        %v4413 = vld [vmem:[%s4408 + $0x10] sm:$0xf]
        %v4414 = vld [vmem:[%s4408 + $0x14] sm:$0xf]
        %v4415 = vld [vmem:[%s4408 + $0x18] sm:$0xf]
        %v4416 = vld [vmem:[%s4408 + $0x1c] sm:$0xf]
        %v4417 = vld [vmem:[%s4408 + $0x20] sm:$0xf]
        %v4418 = vld [vmem:[%s4408 + $0x24] sm:$0xf]
        %v4419 = vld [vmem:[%s4408 + $0x28] sm:$0xf]
        %v4420 = vld [vmem:[%s4408 + $0x2c] sm:$0xf]
        %v4421 = vld [vmem:[%s4408 + $0x30] sm:$0xf]
        %v4422 = vld [vmem:[%s4408 + $0x34] sm:$0xf]
        %v4423 = vld [vmem:[%s4408 + $0x38] sm:$0xf]
        %v4424 = vld [vmem:[%s4408 + $0x3c] sm:$0xf]
        %v4425 = vpack.c.bf16 %v4407, %v4407
        %v4442 = vunpack.c.l.b16 %v4409
        %v4443 = vunpack.c.l.b16 %v4410
        %v4444 = vunpack.c.l.b16 %v4411
        %v4445 = vunpack.c.l.b16 %v4412
        %v4446 = vunpack.c.l.b16 %v4413
        %v4447 = vunpack.c.l.b16 %v4414
        %v4448 = vunpack.c.l.b16 %v4415
        %v4449 = vunpack.c.l.b16 %v4416
        %v4450 = vunpack.c.l.b16 %v4417
        %v4451 = vunpack.c.l.b16 %v4418
        %v4452 = vunpack.c.l.b16 %v4419
        %v4453 = vunpack.c.l.b16 %v4420
        %v4454 = vunpack.c.l.b16 %v4421
        %v4455 = vunpack.c.l.b16 %v4422
        %v4456 = vunpack.c.l.b16 %v4423
        %v4457 = vunpack.c.l.b16 %v4424
        %v4458 = vpack.c.b16 %v4443, %v4442
        %v4459 = vpack.c.b16 %v4445, %v4444
        %v4460 = vpack.c.b16 %v4447, %v4446
        %v4461 = vpack.c.b16 %v4449, %v4448
        %v4462 = vpack.c.b16 %v4451, %v4450
        %v4463 = vpack.c.b16 %v4453, %v4452
        %v4464 = vpack.c.b16 %v4455, %v4454
        %v4465 = vpack.c.b16 %v4457, %v4456
        %4474 = vmatpush.bf16.msra.mxu0 %v4465
        %4475 = vmatpush.bf16.msra.mxu0 %v4464
        %4476 = vmatpush.bf16.msra.mxu0 %v4463
        %4477 = vmatpush.bf16.msra.mxu0 %v4462
        %4478 = vmatpush.bf16.msra.mxu0 %v4461
        %4479 = vmatpush.bf16.msra.mxu0 %v4460
        %4480 = vmatpush.bf16.msra.mxu0 %v4459
        %4481 = vmatpush.bf16.msra.mxu0 %v4458
        %4482 = vmatmul.bf16.gmra.mxu0 %v4425
        %v4483 = vpop.f32.mrf.mxu0
        %v4484 = vadd.f32 0.0, %v4483
        %v4485 = vpop.f32.mrf.mxu0
        %4486 = vdwg.mxu0
        %v4487 = vadd.f32 %v4325, %v4484
        %s4488 = scalar_lea.vmem %s93, 1
        %v4489 = vld [vmem:[%s4488] sm:$0x1]
        %v4491 = vperm.slane %v4489, 0
        %v4493 = vadd.f32 %v4487, %v4491
        %s4494 = scalar_lea.vmem %s101, 2
        %v4495 = vld [vmem:[%s4494] sm:$0x1]
        %s4496 = scalar_lea.vmem %s99, 2
        %v4497 = vld [vmem:[%s4496] sm:$0x1]
        %v4498 = vsel %vm1959, %v4493, 0.0
        %4499 = vadd.xlane.f32.xlu0 %v4498
        %v4500 = vpop.xlane.xlu0 %4499
        %v4501 = vmul.f32 %v4500, %v1969
        %v4502 = vsub.f32 %v4493, %v4501
        %v4503 = vmul.f32 %v4502, %v4502
        %v4504 = vsel %vm1959, %v4503, 0.0
        %4505 = vadd.xlane.f32.xlu0 %v4504
        %v4506 = vpop.xlane.xlu0 %4505
        %v4507 = vmul.f32 %v4506, %v1969
        %v4508 = vadd.f32 %v4507, 1e-05
        %v4509 = vrsqrt.pop %v4508
        %v4510 = vmul.f32 %v4509, %v4508
        %v4511 = vmul.f32 %v4510, %v4509
        %v4512 = vmul.f32 0.5, %v4511
        %v4513 = vsub.f32 1.5, %v4512
        %v4514 = vmul.f32 %v4509, %v4513
        %vm4515 = vweird.f32 %v4508
        %vm4516 = vweird.f32 %v4509
        %vm4517 = vmor %vm4515, %vm4516
        %v4518 = vsel %vm4517, %v4509, %v4514
        %v4519 = vmul.f32 %v4502, %v4518
        %v4521 = vperm.slane %v4495, 0
        %v4523 = vmul.f32 %v4519, %v4521
        %v4525 = vperm.slane %v4497, 0
        %v4527 = vadd.f32 %v4523, %v4525
        %s4528 = scalar_lea.vmem %s113, 192
        %v4529 = vld [vmem:[%s4528] sm:$0xff]
        %v4530 = vld [vmem:[%s4528 + $0x8] sm:$0xff]
        %v4531 = vld [vmem:[%s4528 + $0x10] sm:$0xff]
        %v4532 = vld [vmem:[%s4528 + $0x18] sm:$0xff]
        %v4533 = vld [vmem:[%s4528 + $0x20] sm:$0xff]
        %v4534 = vld [vmem:[%s4528 + $0x28] sm:$0xff]
        %v4535 = vld [vmem:[%s4528 + $0x30] sm:$0xff]
        %v4536 = vld [vmem:[%s4528 + $0x38] sm:$0xff]
        %v4537 = vld [vmem:[%s4528 + $0x40] sm:$0xff]
        %v4538 = vld [vmem:[%s4528 + $0x48] sm:$0xff]
        %v4539 = vld [vmem:[%s4528 + $0x50] sm:$0xff]
        %v4540 = vld [vmem:[%s4528 + $0x58] sm:$0xff]
        %v4541 = vpack.c.bf16 %v4527, %v4527
        %s4542 = scalar_lea.vmem %s97, 12
        %v4543 = vld [vmem:[%s4542] sm:$0x3f]
        %v4545 = vperm.slane %v4543, 0
        %v4546 = vperm.slane %v4543, 1
        %v4547 = vperm.slane %v4543, 2
        %v4548 = vperm.slane %v4543, 3
        %v4549 = vperm.slane %v4543, 4
        %v4550 = vperm.slane %v4543, 5
        %v4569 = vunpack.c.l.b16 %v4529
        %v4570 = vunpack.c.h.b16 %v4529
        %v4571 = vunpack.c.l.b16 %v4530
        %v4572 = vunpack.c.h.b16 %v4530
        %v4573 = vunpack.c.l.b16 %v4531
        %v4574 = vunpack.c.h.b16 %v4531
        %v4575 = vunpack.c.l.b16 %v4532
        %v4576 = vunpack.c.h.b16 %v4532
        %v4577 = vunpack.c.l.b16 %v4533
        %v4578 = vunpack.c.h.b16 %v4533
        %v4579 = vunpack.c.l.b16 %v4534
        %v4580 = vunpack.c.h.b16 %v4534
        %v4581 = vunpack.c.l.b16 %v4535
        %v4582 = vunpack.c.h.b16 %v4535
        %v4583 = vunpack.c.l.b16 %v4536
        %v4584 = vunpack.c.h.b16 %v4536
        %v4585 = vunpack.c.l.b16 %v4537
        %v4586 = vunpack.c.h.b16 %v4537
        %v4587 = vunpack.c.l.b16 %v4538
        %v4588 = vunpack.c.h.b16 %v4538
        %v4589 = vunpack.c.l.b16 %v4539
        %v4590 = vunpack.c.h.b16 %v4539
        %v4591 = vunpack.c.l.b16 %v4540
        %v4592 = vunpack.c.h.b16 %v4540
        %v4593 = vpack.c.b16 %v4575, %v4569
        %v4594 = vpack.c.b16 %v4576, %v4570
        %v4595 = vpack.c.b16 %v4577, %v4571
        %v4596 = vpack.c.b16 %v4578, %v4572
        %v4597 = vpack.c.b16 %v4579, %v4573
        %v4598 = vpack.c.b16 %v4580, %v4574
        %v4599 = vpack.c.b16 %v4587, %v4581
        %v4600 = vpack.c.b16 %v4588, %v4582
        %v4601 = vpack.c.b16 %v4589, %v4583
        %v4602 = vpack.c.b16 %v4590, %v4584
        %v4603 = vpack.c.b16 %v4591, %v4585
        %v4604 = vpack.c.b16 %v4592, %v4586
        %v4618 = vsel %vm1959, %v4541, 0
        %4620 = vmatpush.bf16.msra.mxu0 0
        %4621 = vmatpush.bf16.msra.mxu0 0
        %4622 = vmatpush.bf16.msra.mxu0 0
        %4623 = vmatpush.bf16.msra.mxu0 0
        %4624 = vmatpush.bf16.msra.mxu0 0
        %4625 = vmatpush.bf16.msra.mxu0 0
        %4626 = vmatpush.bf16.msra.mxu0 %v4599
        %4627 = vmatpush.bf16.msra.mxu0 %v4593
        %4628 = vmatmul.bf16.gmra.mxu0 %v4618
        %v4629 = vpop.f32.mrf.mxu0
        %v4630 = vadd.f32 %v4545, %v4629
        %v4631 = vpop.f32.mrf.mxu0
        %4632 = vdwg.mxu0
        %4633 = vmatpush.bf16.msra.mxu0 0
        %4634 = vmatpush.bf16.msra.mxu0 0
        %4635 = vmatpush.bf16.msra.mxu0 0
        %4636 = vmatpush.bf16.msra.mxu0 0
        %4637 = vmatpush.bf16.msra.mxu0 0
        %4638 = vmatpush.bf16.msra.mxu0 0
        %4639 = vmatpush.bf16.msra.mxu0 %v4600
        %4640 = vmatpush.bf16.msra.mxu0 %v4594
        %4641 = vmatmul.bf16.gmra.mxu0 %v4618
        %v4642 = vpop.f32.mrf.mxu0
        %v4643 = vadd.f32 %v4546, %v4642
        %v4644 = vpop.f32.mrf.mxu0
        %4645 = vdwg.mxu0
        %4646 = vmatpush.bf16.msra.mxu0 0
        %4647 = vmatpush.bf16.msra.mxu0 0
        %4648 = vmatpush.bf16.msra.mxu0 0
        %4649 = vmatpush.bf16.msra.mxu0 0
        %4650 = vmatpush.bf16.msra.mxu0 0
        %4651 = vmatpush.bf16.msra.mxu0 0
        %4652 = vmatpush.bf16.msra.mxu0 %v4601
        %4653 = vmatpush.bf16.msra.mxu0 %v4595
        %4654 = vmatmul.bf16.gmra.mxu0 %v4618
        %v4655 = vpop.f32.mrf.mxu0
        %v4656 = vadd.f32 %v4547, %v4655
        %v4657 = vpop.f32.mrf.mxu0
        %4658 = vdwg.mxu0
        %4659 = vmatpush.bf16.msra.mxu0 0
        %4660 = vmatpush.bf16.msra.mxu0 0
        %4661 = vmatpush.bf16.msra.mxu0 0
        %4662 = vmatpush.bf16.msra.mxu0 0
        %4663 = vmatpush.bf16.msra.mxu0 0
        %4664 = vmatpush.bf16.msra.mxu0 0
        %4665 = vmatpush.bf16.msra.mxu0 %v4602
        %4666 = vmatpush.bf16.msra.mxu0 %v4596
        %4667 = vmatmul.bf16.gmra.mxu0 %v4618
        %v4668 = vpop.f32.mrf.mxu0
        %v4669 = vadd.f32 %v4548, %v4668
        %v4670 = vpop.f32.mrf.mxu0
        %4671 = vdwg.mxu0
        %4672 = vmatpush.bf16.msra.mxu0 0
        %4673 = vmatpush.bf16.msra.mxu0 0
        %4674 = vmatpush.bf16.msra.mxu0 0
        %4675 = vmatpush.bf16.msra.mxu0 0
        %4676 = vmatpush.bf16.msra.mxu0 0
        %4677 = vmatpush.bf16.msra.mxu0 0
        %4678 = vmatpush.bf16.msra.mxu0 %v4603
        %4679 = vmatpush.bf16.msra.mxu0 %v4597
        %4680 = vmatmul.bf16.gmra.mxu0 %v4618
        %v4681 = vpop.f32.mrf.mxu0
        %v4682 = vadd.f32 %v4549, %v4681
        %v4683 = vpop.f32.mrf.mxu0
        %4684 = vdwg.mxu0
        %4685 = vmatpush.bf16.msra.mxu0 0
        %4686 = vmatpush.bf16.msra.mxu0 0
        %4687 = vmatpush.bf16.msra.mxu0 0
        %4688 = vmatpush.bf16.msra.mxu0 0
        %4689 = vmatpush.bf16.msra.mxu0 0
        %4690 = vmatpush.bf16.msra.mxu0 0
        %4691 = vmatpush.bf16.msra.mxu0 %v4604
        %4692 = vmatpush.bf16.msra.mxu0 %v4598
        %4693 = vmatmul.bf16.gmra.mxu0 %v4618
        %v4694 = vpop.f32.mrf.mxu0
        %v4695 = vadd.f32 %v4550, %v4694
        %v4696 = vpop.f32.mrf.mxu0
        %4697 = vdwg.mxu0
        %v4698 = vpack.c.bf16 %v4643, %v4630
        %v4700 = vrot.slane %v4698, 4
        %4701 = vrot.lane.b32.xlu0 %v4698, 64
        %v4702 = vpop.permute.xlu0 %4701
        %v4703 = vrot.slane %v4702, 4
        %v4706 = vpack.i.b16 %v4702, %v4698
        %v4707 = vshrl.u32 %v4698, 16
        %v4708 = vshrl.u32 %v4702, 16
        %v4709 = vpack.i.b16 %v4708, %v4707
        %v4712 = vpack.i.b16 %v4703, %v4700
        %v4713 = vshrl.u32 %v4700, 16
        %v4714 = vshrl.u32 %v4703, 16
        %v4715 = vpack.i.b16 %v4714, %v4713
        %v4718 = vunpack.c.l.s4 1983009808
        %v4719 = vunpack.c.0.s8 %v4718
        %v4720 = vperm.slane %v4706, %v4719
        %v4723 = vunpack.c.l.s4 1983009808
        %v4724 = vunpack.c.0.s8 %v4723
        %v4725 = vperm.slane %v4712, %v4724
        %v4726 = vrot.slane %v4725, 4
        %v4727 = vsel %vm2194, %v4726, %v4720
        %v4728 = vrot.slane %v4720, 4
        %v4729 = vsel %vm2194, %v4725, %v4728
        %v4731 = vunpack.c.l.s4 1934713408
        %v4732 = vunpack.c.0.s8 %v4731
        %v4733 = vperm.slane %v4727, %v4732
        %v4735 = vunpack.c.l.s4 1934713408
        %v4736 = vunpack.c.0.s8 %v4735
        %v4737 = vperm.slane %v4729, %v4736
        %v4738 = vrot.slane %v4733, 4
        %v4739 = vsel %vm2194, 0, %v4738
        %v4740 = vrot.slane %v4737, 4
        %v4741 = vsel %vm2194, 0, %v4740
        %v4744 = vunpack.c.l.s4 1983009808
        %v4745 = vunpack.c.0.s8 %v4744
        %v4746 = vperm.slane %v4709, %v4745
        %v4749 = vunpack.c.l.s4 1983009808
        %v4750 = vunpack.c.0.s8 %v4749
        %v4751 = vperm.slane %v4715, %v4750
        %v4752 = vrot.slane %v4751, 4
        %v4753 = vsel %vm2194, %v4752, %v4746
        %v4754 = vrot.slane %v4746, 4
        %v4755 = vsel %vm2194, %v4751, %v4754
        %v4757 = vunpack.c.l.s4 1934713408
        %v4758 = vunpack.c.0.s8 %v4757
        %v4759 = vperm.slane %v4753, %v4758
        %v4761 = vunpack.c.l.s4 1934713408
        %v4762 = vunpack.c.0.s8 %v4761
        %v4763 = vperm.slane %v4755, %v4762
        %v4764 = vrot.slane %v4759, 4
        %v4765 = vsel %vm2194, 0, %v4764
        %v4766 = vrot.slane %v4763, 4
        %v4767 = vsel %vm2194, 0, %v4766
        %v4768 = vsel %vm2194, %v4740, %v4733
        %v4770 = vunpack.c.l.s4 1983009808
        %v4771 = vunpack.c.0.s8 %v4770
        %v4772 = vperm.slane %v4768, %v4771
        %v4773 = vrot.slane %v4741, 4
        %v4774 = vsel %vm2194, %v4773, %v4739
        %v4776 = vunpack.c.l.s4 1983009808
        %v4777 = vunpack.c.0.s8 %v4776
        %v4778 = vperm.slane %v4774, %v4777
        %v4779 = vrot.slane %v4778, 4
        %v4780 = vsel %vm2194, %v4779, %v4772
        %v4782 = vunpack.c.l.s4 1934713408
        %v4783 = vunpack.c.0.s8 %v4782
        %v4784 = vperm.slane %v4780, %v4783
        %v4785 = vrot.slane %v4784, 4
        %v4786 = vsel %vm2194, 0, %v4785
        %v4787 = vsel %vm2194, %v4766, %v4759
        %v4789 = vunpack.c.l.s4 1983009808
        %v4790 = vunpack.c.0.s8 %v4789
        %v4791 = vperm.slane %v4787, %v4790
        %v4792 = vrot.slane %v4767, 4
        %v4793 = vsel %vm2194, %v4792, %v4765
        %v4795 = vunpack.c.l.s4 1983009808
        %v4796 = vunpack.c.0.s8 %v4795
        %v4797 = vperm.slane %v4793, %v4796
        %v4798 = vrot.slane %v4797, 4
        %v4799 = vsel %vm2194, %v4798, %v4791
        %v4801 = vunpack.c.l.s4 1934713408
        %v4802 = vunpack.c.0.s8 %v4801
        %v4803 = vperm.slane %v4799, %v4802
        %v4804 = vrot.slane %v4803, 4
        %v4805 = vsel %vm2194, 0, %v4804
        %v4808 = vpack.i.b16 %v4803, %v4784
        %v4809 = vshrl.u32 %v4784, 16
        %v4810 = vshrl.u32 %v4803, 16
        %v4811 = vpack.i.b16 %v4810, %v4809
        %v4814 = vpack.i.b16 %v4805, %v4786
        %v4815 = vshrl.u32 %v4786, 16
        %v4816 = vshrl.u32 %v4805, 16
        %v4817 = vpack.i.b16 %v4816, %v4815
        %v4818 = vpack.c.bf16 %v4669, %v4656
        %v4820 = vrot.slane %v4818, 4
        %4821 = vrot.lane.b32.xlu0 %v4818, 64
        %v4822 = vpop.permute.xlu0 %4821
        %v4823 = vrot.slane %v4822, 4
        %v4826 = vpack.i.b16 %v4822, %v4818
        %v4827 = vshrl.u32 %v4818, 16
        %v4828 = vshrl.u32 %v4822, 16
        %v4829 = vpack.i.b16 %v4828, %v4827
        %v4832 = vpack.i.b16 %v4823, %v4820
        %v4833 = vshrl.u32 %v4820, 16
        %v4834 = vshrl.u32 %v4823, 16
        %v4835 = vpack.i.b16 %v4834, %v4833
        %v4838 = vunpack.c.l.s4 1983009808
        %v4839 = vunpack.c.0.s8 %v4838
        %v4840 = vperm.slane %v4826, %v4839
        %v4843 = vunpack.c.l.s4 1983009808
        %v4844 = vunpack.c.0.s8 %v4843
        %v4845 = vperm.slane %v4832, %v4844
        %v4846 = vrot.slane %v4845, 4
        %v4847 = vsel %vm2194, %v4846, %v4840
        %v4848 = vrot.slane %v4840, 4
        %v4849 = vsel %vm2194, %v4845, %v4848
        %v4851 = vunpack.c.l.s4 1934713408
        %v4852 = vunpack.c.0.s8 %v4851
        %v4853 = vperm.slane %v4847, %v4852
        %v4855 = vunpack.c.l.s4 1934713408
        %v4856 = vunpack.c.0.s8 %v4855
        %v4857 = vperm.slane %v4849, %v4856
        %v4858 = vrot.slane %v4853, 4
        %v4859 = vsel %vm2194, 0, %v4858
        %v4860 = vrot.slane %v4857, 4
        %v4861 = vsel %vm2194, 0, %v4860
        %v4864 = vunpack.c.l.s4 1983009808
        %v4865 = vunpack.c.0.s8 %v4864
        %v4866 = vperm.slane %v4829, %v4865
        %v4869 = vunpack.c.l.s4 1983009808
        %v4870 = vunpack.c.0.s8 %v4869
        %v4871 = vperm.slane %v4835, %v4870
        %v4872 = vrot.slane %v4871, 4
        %v4873 = vsel %vm2194, %v4872, %v4866
        %v4874 = vrot.slane %v4866, 4
        %v4875 = vsel %vm2194, %v4871, %v4874
        %v4877 = vunpack.c.l.s4 1934713408
        %v4878 = vunpack.c.0.s8 %v4877
        %v4879 = vperm.slane %v4873, %v4878
        %v4881 = vunpack.c.l.s4 1934713408
        %v4882 = vunpack.c.0.s8 %v4881
        %v4883 = vperm.slane %v4875, %v4882
        %v4884 = vrot.slane %v4879, 4
        %v4885 = vsel %vm2194, 0, %v4884
        %v4886 = vrot.slane %v4883, 4
        %v4887 = vsel %vm2194, 0, %v4886
        %v4888 = vsel %vm2194, %v4860, %v4853
        %v4890 = vunpack.c.l.s4 1983009808
        %v4891 = vunpack.c.0.s8 %v4890
        %v4892 = vperm.slane %v4888, %v4891
        %v4893 = vrot.slane %v4861, 4
        %v4894 = vsel %vm2194, %v4893, %v4859
        %v4896 = vunpack.c.l.s4 1983009808
        %v4897 = vunpack.c.0.s8 %v4896
        %v4898 = vperm.slane %v4894, %v4897
        %v4899 = vrot.slane %v4898, 4
        %v4900 = vsel %vm2194, %v4899, %v4892
        %v4902 = vunpack.c.l.s4 1934713408
        %v4903 = vunpack.c.0.s8 %v4902
        %v4904 = vperm.slane %v4900, %v4903
        %v4905 = vrot.slane %v4904, 4
        %v4906 = vsel %vm2194, 0, %v4905
        %v4907 = vsel %vm2194, %v4886, %v4879
        %v4909 = vunpack.c.l.s4 1983009808
        %v4910 = vunpack.c.0.s8 %v4909
        %v4911 = vperm.slane %v4907, %v4910
        %v4912 = vrot.slane %v4887, 4
        %v4913 = vsel %vm2194, %v4912, %v4885
        %v4915 = vunpack.c.l.s4 1983009808
        %v4916 = vunpack.c.0.s8 %v4915
        %v4917 = vperm.slane %v4913, %v4916
        %v4918 = vrot.slane %v4917, 4
        %v4919 = vsel %vm2194, %v4918, %v4911
        %v4921 = vunpack.c.l.s4 1934713408
        %v4922 = vunpack.c.0.s8 %v4921
        %v4923 = vperm.slane %v4919, %v4922
        %v4924 = vrot.slane %v4923, 4
        %v4925 = vsel %vm2194, 0, %v4924
        %v4928 = vpack.i.b16 %v4923, %v4904
        %v4929 = vshrl.u32 %v4904, 16
        %v4930 = vshrl.u32 %v4923, 16
        %v4931 = vpack.i.b16 %v4930, %v4929
        %v4934 = vpack.i.b16 %v4925, %v4906
        %v4935 = vshrl.u32 %v4906, 16
        %v4936 = vshrl.u32 %v4925, 16
        %v4937 = vpack.i.b16 %v4936, %v4935
        %v4938 = vpack.c.bf16 %v4695, %v4682
        %v4940 = vrot.slane %v4938, 4
        %4941 = vrot.lane.b32.xlu0 %v4938, 64
        %v4942 = vpop.permute.xlu0 %4941
        %v4943 = vrot.slane %v4942, 4
        %v4946 = vpack.i.b16 %v4942, %v4938
        %v4947 = vshrl.u32 %v4938, 16
        %v4948 = vshrl.u32 %v4942, 16
        %v4949 = vpack.i.b16 %v4948, %v4947
        %v4952 = vpack.i.b16 %v4943, %v4940
        %v4953 = vshrl.u32 %v4940, 16
        %v4954 = vshrl.u32 %v4943, 16
        %v4955 = vpack.i.b16 %v4954, %v4953
        %v4958 = vunpack.c.l.s4 1983009808
        %v4959 = vunpack.c.0.s8 %v4958
        %v4960 = vperm.slane %v4946, %v4959
        %v4963 = vunpack.c.l.s4 1983009808
        %v4964 = vunpack.c.0.s8 %v4963
        %v4965 = vperm.slane %v4952, %v4964
        %v4966 = vrot.slane %v4965, 4
        %v4967 = vsel %vm2194, %v4966, %v4960
        %v4968 = vrot.slane %v4960, 4
        %v4969 = vsel %vm2194, %v4965, %v4968
        %v4971 = vunpack.c.l.s4 1934713408
        %v4972 = vunpack.c.0.s8 %v4971
        %v4973 = vperm.slane %v4967, %v4972
        %v4975 = vunpack.c.l.s4 1934713408
        %v4976 = vunpack.c.0.s8 %v4975
        %v4977 = vperm.slane %v4969, %v4976
        %v4978 = vrot.slane %v4973, 4
        %v4979 = vsel %vm2194, 0, %v4978
        %v4980 = vrot.slane %v4977, 4
        %v4981 = vsel %vm2194, 0, %v4980
        %v4984 = vunpack.c.l.s4 1983009808
        %v4985 = vunpack.c.0.s8 %v4984
        %v4986 = vperm.slane %v4949, %v4985
        %v4989 = vunpack.c.l.s4 1983009808
        %v4990 = vunpack.c.0.s8 %v4989
        %v4991 = vperm.slane %v4955, %v4990
        %v4992 = vrot.slane %v4991, 4
        %v4993 = vsel %vm2194, %v4992, %v4986
        %v4994 = vrot.slane %v4986, 4
        %v4995 = vsel %vm2194, %v4991, %v4994
        %v4997 = vunpack.c.l.s4 1934713408
        %v4998 = vunpack.c.0.s8 %v4997
        %v4999 = vperm.slane %v4993, %v4998
        %v5001 = vunpack.c.l.s4 1934713408
        %v5002 = vunpack.c.0.s8 %v5001
        %v5003 = vperm.slane %v4995, %v5002
        %v5004 = vrot.slane %v4999, 4
        %v5005 = vsel %vm2194, 0, %v5004
        %v5006 = vrot.slane %v5003, 4
        %v5007 = vsel %vm2194, 0, %v5006
        %v5008 = vsel %vm2194, %v4980, %v4973
        %v5010 = vunpack.c.l.s4 1983009808
        %v5011 = vunpack.c.0.s8 %v5010
        %v5012 = vperm.slane %v5008, %v5011
        %v5013 = vrot.slane %v4981, 4
        %v5014 = vsel %vm2194, %v5013, %v4979
        %v5016 = vunpack.c.l.s4 1983009808
        %v5017 = vunpack.c.0.s8 %v5016
        %v5018 = vperm.slane %v5014, %v5017
        %v5019 = vrot.slane %v5018, 4
        %v5020 = vsel %vm2194, %v5019, %v5012
        %v5022 = vunpack.c.l.s4 1934713408
        %v5023 = vunpack.c.0.s8 %v5022
        %v5024 = vperm.slane %v5020, %v5023
        %v5025 = vrot.slane %v5024, 4
        %v5026 = vsel %vm2194, 0, %v5025
        %v5027 = vsel %vm2194, %v5006, %v4999
        %v5029 = vunpack.c.l.s4 1983009808
        %v5030 = vunpack.c.0.s8 %v5029
        %v5031 = vperm.slane %v5027, %v5030
        %v5032 = vrot.slane %v5007, 4
        %v5033 = vsel %vm2194, %v5032, %v5005
        %v5035 = vunpack.c.l.s4 1983009808
        %v5036 = vunpack.c.0.s8 %v5035
        %v5037 = vperm.slane %v5033, %v5036
        %v5038 = vrot.slane %v5037, 4
        %v5039 = vsel %vm2194, %v5038, %v5031
        %v5041 = vunpack.c.l.s4 1934713408
        %v5042 = vunpack.c.0.s8 %v5041
        %v5043 = vperm.slane %v5039, %v5042
        %v5044 = vrot.slane %v5043, 4
        %v5045 = vsel %vm2194, 0, %v5044
        %v5048 = vpack.i.b16 %v5043, %v5024
        %v5049 = vshrl.u32 %v5024, 16
        %v5050 = vshrl.u32 %v5043, 16
        %v5051 = vpack.i.b16 %v5050, %v5049
        %v5054 = vpack.i.b16 %v5045, %v5026
        %v5055 = vshrl.u32 %v5026, 16
        %v5056 = vshrl.u32 %v5045, 16
        %v5057 = vpack.i.b16 %v5056, %v5055
        %v5059 = vsel %vm2526, %v4808, 0
        %v5062 = vsel %vm2526, %v4928, 0
        %5064 = vmatpush.bf16.xpose.msra.mxu0 0
        %5065 = vmatpush.bf16.xpose.msra.mxu0 0
        %5066 = vmatpush.bf16.xpose.msra.mxu0 0
        %5067 = vmatpush.bf16.xpose.msra.mxu0 0
        %5068 = vmatpush.bf16.xpose.msra.mxu0 0
        %5069 = vmatpush.bf16.xpose.msra.mxu0 0
        %5070 = vmatpush.bf16.xpose.msra.mxu0 0
        %5071 = vmatpush.bf16.xpose.msra.mxu0 %v5062
        %5072 = vmatmul.bf16.gmra.mxu0 %v5059
        %v5073 = vpop.f32.mrf.mxu0
        %v5074 = vadd.f32 0.0, %v5073
        %v5075 = vpop.f32.mrf.mxu0
        %5076 = vdwg.mxu0
        %v5078 = vsel %vm2526, %v4811, 0
        %v5081 = vsel %vm2526, %v4931, 0
        %5083 = vmatpush.bf16.xpose.msra.mxu0 0
        %5084 = vmatpush.bf16.xpose.msra.mxu0 0
        %5085 = vmatpush.bf16.xpose.msra.mxu0 0
        %5086 = vmatpush.bf16.xpose.msra.mxu0 0
        %5087 = vmatpush.bf16.xpose.msra.mxu0 0
        %5088 = vmatpush.bf16.xpose.msra.mxu0 0
        %5089 = vmatpush.bf16.xpose.msra.mxu0 0
        %5090 = vmatpush.bf16.xpose.msra.mxu0 %v5081
        %5091 = vmatmul.bf16.gmra.mxu0 %v5078
        %v5092 = vpop.f32.mrf.mxu0
        %v5093 = vadd.f32 0.0, %v5092
        %v5094 = vpop.f32.mrf.mxu0
        %5095 = vdwg.mxu0
        %v5097 = vsel %vm2526, %v4814, 0
        %v5100 = vsel %vm2526, %v4934, 0
        %5102 = vmatpush.bf16.xpose.msra.mxu0 0
        %5103 = vmatpush.bf16.xpose.msra.mxu0 0
        %5104 = vmatpush.bf16.xpose.msra.mxu0 0
        %5105 = vmatpush.bf16.xpose.msra.mxu0 0
        %5106 = vmatpush.bf16.xpose.msra.mxu0 0
        %5107 = vmatpush.bf16.xpose.msra.mxu0 0
        %5108 = vmatpush.bf16.xpose.msra.mxu0 0
        %5109 = vmatpush.bf16.xpose.msra.mxu0 %v5100
        %5110 = vmatmul.bf16.gmra.mxu0 %v5097
        %v5111 = vpop.f32.mrf.mxu0
        %v5112 = vadd.f32 0.0, %v5111
        %v5113 = vpop.f32.mrf.mxu0
        %5114 = vdwg.mxu0
        %v5116 = vsel %vm2526, %v4817, 0
        %v5119 = vsel %vm2526, %v4937, 0
        %5121 = vmatpush.bf16.xpose.msra.mxu0 0
        %5122 = vmatpush.bf16.xpose.msra.mxu0 0
        %5123 = vmatpush.bf16.xpose.msra.mxu0 0
        %5124 = vmatpush.bf16.xpose.msra.mxu0 0
        %5125 = vmatpush.bf16.xpose.msra.mxu0 0
        %5126 = vmatpush.bf16.xpose.msra.mxu0 0
        %5127 = vmatpush.bf16.xpose.msra.mxu0 0
        %5128 = vmatpush.bf16.xpose.msra.mxu0 %v5119
        %5129 = vmatmul.bf16.gmra.mxu0 %v5116
        %v5130 = vpop.f32.mrf.mxu0
        %v5131 = vadd.f32 0.0, %v5130
        %v5132 = vpop.f32.mrf.mxu0
        %5133 = vdwg.mxu0
        %v5134 = vsel %vm2603, %v5074, -inf
        %5135 = vmax.xlane.f32.xlu0 %v5134
        %v5136 = vpop.xlane.xlu0 %5135
        %v5137 = vsel %vm2603, %v5093, -inf
        %5138 = vmax.xlane.f32.xlu0 %v5137
        %v5139 = vpop.xlane.xlu0 %5138
        %v5140 = vsel %vm2603, %v5112, -inf
        %5141 = vmax.xlane.f32.xlu0 %v5140
        %v5142 = vpop.xlane.xlu0 %5141
        %v5143 = vsel %vm2603, %v5131, -inf
        %5144 = vmax.xlane.f32.xlu0 %v5143
        %v5145 = vpop.xlane.xlu0 %5144
        %v5146 = vsub.f32 %v5074, %v5136
        %v5147 = vsub.f32 %v5093, %v5139
        %v5148 = vsub.f32 %v5112, %v5142
        %v5149 = vsub.f32 %v5131, %v5145
        %v5150 = vmul.f32 %v5146, 1.442695
        %v5151 = vpow.pop %v5150
        %v5152 = vmul.f32 %v5147, 1.442695
        %v5153 = vpow.pop %v5152
        %v5154 = vmul.f32 %v5148, 1.442695
        %v5155 = vpow.pop %v5154
        %v5156 = vmul.f32 %v5149, 1.442695
        %v5157 = vpow.pop %v5156
        %v5158 = vsel %vm2603, %v5151, 0.0
        %5159 = vadd.xlane.f32.xlu0 %v5158
        %v5160 = vpop.xlane.xlu0 %5159
        %v5161 = vsel %vm2603, %v5153, 0.0
        %5162 = vadd.xlane.f32.xlu0 %v5161
        %v5163 = vpop.xlane.xlu0 %5162
        %v5164 = vsel %vm2603, %v5155, 0.0
        %5165 = vadd.xlane.f32.xlu0 %v5164
        %v5166 = vpop.xlane.xlu0 %5165
        %v5167 = vsel %vm2603, %v5157, 0.0
        %5168 = vadd.xlane.f32.xlu0 %v5167
        %v5169 = vpop.xlane.xlu0 %5168
        %v5170 = vrcp.pop %v5160
        %v5171 = vmul.f32 %v5160, %v5170
        %v5172 = vsub.f32 1.0, %v5171
        %v5173 = vmul.f32 %v5170, %v5172
        %v5174 = vadd.f32 %v5170, %v5173
        %vm5175 = vweird.f32 %v5160
        %vm5176 = vweird.f32 %v5170
        %vm5177 = vmor %vm5175, %vm5176
        %v5178 = vsel %vm5177, %v5170, %v5174
        %v5179 = vand.u32 2147483647, %v5160
        %vm5180 = vcmp.eq.f32.partialorder %v5179, 8.507059e+37
        %v5181 = vand.u32 %v5160, 2147483648
        %v5182 = vor.u32 1.1754944e-38, %v5181
        %v5183 = vsel %vm5180, %v5182, %v5178
        %v5184 = vmul.f32 %v5151, %v5183
        %v5185 = vrcp.pop %v5163
        %v5186 = vmul.f32 %v5163, %v5185
        %v5187 = vsub.f32 1.0, %v5186
        %v5188 = vmul.f32 %v5185, %v5187
        %v5189 = vadd.f32 %v5185, %v5188
        %vm5190 = vweird.f32 %v5163
        %vm5191 = vweird.f32 %v5185
        %vm5192 = vmor %vm5190, %vm5191
        %v5193 = vsel %vm5192, %v5185, %v5189
        %v5194 = vand.u32 2147483647, %v5163
        %vm5195 = vcmp.eq.f32.partialorder %v5194, 8.507059e+37
        %v5196 = vand.u32 %v5163, 2147483648
        %v5197 = vor.u32 1.1754944e-38, %v5196
        %v5198 = vsel %vm5195, %v5197, %v5193
        %v5199 = vmul.f32 %v5153, %v5198
        %v5200 = vrcp.pop %v5166
        %v5201 = vmul.f32 %v5166, %v5200
        %v5202 = vsub.f32 1.0, %v5201
        %v5203 = vmul.f32 %v5200, %v5202
        %v5204 = vadd.f32 %v5200, %v5203
        %vm5205 = vweird.f32 %v5166
        %vm5206 = vweird.f32 %v5200
        %vm5207 = vmor %vm5205, %vm5206
        %v5208 = vsel %vm5207, %v5200, %v5204
        %v5209 = vand.u32 2147483647, %v5166
        %vm5210 = vcmp.eq.f32.partialorder %v5209, 8.507059e+37
        %v5211 = vand.u32 %v5166, 2147483648
        %v5212 = vor.u32 1.1754944e-38, %v5211
        %v5213 = vsel %vm5210, %v5212, %v5208
        %v5214 = vmul.f32 %v5155, %v5213
        %v5215 = vrcp.pop %v5169
        %v5216 = vmul.f32 %v5169, %v5215
        %v5217 = vsub.f32 1.0, %v5216
        %v5218 = vmul.f32 %v5215, %v5217
        %v5219 = vadd.f32 %v5215, %v5218
        %vm5220 = vweird.f32 %v5169
        %vm5221 = vweird.f32 %v5215
        %vm5222 = vmor %vm5220, %vm5221
        %v5223 = vsel %vm5222, %v5215, %v5219
        %v5224 = vand.u32 2147483647, %v5169
        %vm5225 = vcmp.eq.f32.partialorder %v5224, 8.507059e+37
        %v5226 = vand.u32 %v5169, 2147483648
        %v5227 = vor.u32 1.1754944e-38, %v5226
        %v5228 = vsel %vm5225, %v5227, %v5223
        %v5229 = vmul.f32 %v5157, %v5228
        %v5230 = vpack.c.bf16 %v5184, %v5184
        %v5231 = vpack.c.bf16 %v5199, %v5199
        %v5232 = vpack.c.bf16 %v5214, %v5214
        %v5233 = vpack.c.bf16 %v5229, %v5229
        %v5235 = vsel %vm2603, %v5230, 0
        %v5238 = vsel %vm2707, %v5048, 0
        %5240 = vmatpush.bf16.msra.mxu0 0
        %5241 = vmatpush.bf16.msra.mxu0 0
        %5242 = vmatpush.bf16.msra.mxu0 0
        %5243 = vmatpush.bf16.msra.mxu0 0
        %5244 = vmatpush.bf16.msra.mxu0 0
        %5245 = vmatpush.bf16.msra.mxu0 0
        %5246 = vmatpush.bf16.msra.mxu0 0
        %5247 = vmatpush.bf16.msra.mxu0 %v5238
        %5248 = vmatmul.bf16.gmra.mxu0 %v5235
        %v5249 = vpop.f32.mrf.mxu0
        %v5250 = vadd.f32 0.0, %v5249
        %v5251 = vpop.f32.mrf.mxu0
        %5252 = vdwg.mxu0
        %v5254 = vsel %vm2603, %v5231, 0
        %v5257 = vsel %vm2707, %v5051, 0
        %5259 = vmatpush.bf16.msra.mxu0 0
        %5260 = vmatpush.bf16.msra.mxu0 0
        %5261 = vmatpush.bf16.msra.mxu0 0
        %5262 = vmatpush.bf16.msra.mxu0 0
        %5263 = vmatpush.bf16.msra.mxu0 0
        %5264 = vmatpush.bf16.msra.mxu0 0
        %5265 = vmatpush.bf16.msra.mxu0 0
        %5266 = vmatpush.bf16.msra.mxu0 %v5257
        %5267 = vmatmul.bf16.gmra.mxu0 %v5254
        %v5268 = vpop.f32.mrf.mxu0
        %v5269 = vadd.f32 0.0, %v5268
        %v5270 = vpop.f32.mrf.mxu0
        %5271 = vdwg.mxu0
        %v5273 = vsel %vm2603, %v5232, 0
        %v5276 = vsel %vm2707, %v5054, 0
        %5278 = vmatpush.bf16.msra.mxu0 0
        %5279 = vmatpush.bf16.msra.mxu0 0
        %5280 = vmatpush.bf16.msra.mxu0 0
        %5281 = vmatpush.bf16.msra.mxu0 0
        %5282 = vmatpush.bf16.msra.mxu0 0
        %5283 = vmatpush.bf16.msra.mxu0 0
        %5284 = vmatpush.bf16.msra.mxu0 0
        %5285 = vmatpush.bf16.msra.mxu0 %v5276
        %5286 = vmatmul.bf16.gmra.mxu0 %v5273
        %v5287 = vpop.f32.mrf.mxu0
        %v5288 = vadd.f32 0.0, %v5287
        %v5289 = vpop.f32.mrf.mxu0
        %5290 = vdwg.mxu0
        %v5292 = vsel %vm2603, %v5233, 0
        %v5295 = vsel %vm2707, %v5057, 0
        %5297 = vmatpush.bf16.msra.mxu0 0
        %5298 = vmatpush.bf16.msra.mxu0 0
        %5299 = vmatpush.bf16.msra.mxu0 0
        %5300 = vmatpush.bf16.msra.mxu0 0
        %5301 = vmatpush.bf16.msra.mxu0 0
        %5302 = vmatpush.bf16.msra.mxu0 0
        %5303 = vmatpush.bf16.msra.mxu0 0
        %5304 = vmatpush.bf16.msra.mxu0 %v5295
        %5305 = vmatmul.bf16.gmra.mxu0 %v5292
        %v5306 = vpop.f32.mrf.mxu0
        %v5307 = vadd.f32 0.0, %v5306
        %v5308 = vpop.f32.mrf.mxu0
        %5309 = vdwg.mxu0
        %v5310 = vrot.slane %v5288, 4
        %v5311 = vsel %vm2782, %v5310, %v5250
        %v5312 = vrot.slane %v5250, 4
        %v5313 = vsel %vm2782, %v5288, %v5312
        %v5315 = vunpack.c.l.s4 1983009808
        %v5316 = vunpack.c.0.s8 %v5315
        %v5317 = vperm.slane %v5311, %v5316
        %v5319 = vunpack.c.l.s4 1983009808
        %v5320 = vunpack.c.0.s8 %v5319
        %v5321 = vperm.slane %v5313, %v5320
        %v5322 = vrot.slane %v5307, 4
        %v5323 = vsel %vm2782, %v5322, %v5269
        %v5324 = vrot.slane %v5269, 4
        %v5325 = vsel %vm2782, %v5307, %v5324
        %v5327 = vunpack.c.l.s4 1983009808
        %v5328 = vunpack.c.0.s8 %v5327
        %v5329 = vperm.slane %v5323, %v5328
        %v5331 = vunpack.c.l.s4 1983009808
        %v5332 = vunpack.c.0.s8 %v5331
        %v5333 = vperm.slane %v5325, %v5332
        %v5334 = vrot.slane %v5329, 4
        %v5335 = vsel %vm2782, %v5334, %v5317
        %v5336 = vrot.slane %v5317, 4
        %v5337 = vsel %vm2782, %v5329, %v5336
        %v5339 = vunpack.c.l.s4 1934713408
        %v5340 = vunpack.c.0.s8 %v5339
        %v5341 = vperm.slane %v5335, %v5340
        %v5343 = vunpack.c.l.s4 1934713408
        %v5344 = vunpack.c.0.s8 %v5343
        %v5345 = vperm.slane %v5337, %v5344
        %v5346 = vrot.slane %v5333, 4
        %v5347 = vsel %vm2782, %v5346, %v5321
        %v5348 = vrot.slane %v5321, 4
        %v5349 = vsel %vm2782, %v5333, %v5348
        %v5351 = vunpack.c.l.s4 1934713408
        %v5352 = vunpack.c.0.s8 %v5351
        %v5353 = vperm.slane %v5347, %v5352
        %v5355 = vunpack.c.l.s4 1934713408
        %v5356 = vunpack.c.0.s8 %v5355
        %v5357 = vperm.slane %v5349, %v5356
        %v5358 = vrot.slane %v5341, 4
        %v5359 = vsel %vm2782, 0.0, %v5358
        %v5360 = vrot.slane %v5345, 4
        %v5361 = vsel %vm2782, 0.0, %v5360
        %v5362 = vrot.slane %v5353, 4
        %v5363 = vsel %vm2782, 0.0, %v5362
        %v5364 = vrot.slane %v5357, 4
        %v5365 = vsel %vm2782, 0.0, %v5364
        %v5366 = vsel %vm2782, %v5360, %v5341
        %v5368 = vunpack.c.l.s4 1983009808
        %v5369 = vunpack.c.0.s8 %v5368
        %v5370 = vperm.slane %v5366, %v5369
        %v5371 = vrot.slane %v5361, 4
        %v5372 = vsel %vm2782, %v5371, %v5359
        %v5374 = vunpack.c.l.s4 1983009808
        %v5375 = vunpack.c.0.s8 %v5374
        %v5376 = vperm.slane %v5372, %v5375
        %v5377 = vsel %vm2782, %v5364, %v5353
        %v5379 = vunpack.c.l.s4 1983009808
        %v5380 = vunpack.c.0.s8 %v5379
        %v5381 = vperm.slane %v5377, %v5380
        %v5382 = vrot.slane %v5365, 4
        %v5383 = vsel %vm2782, %v5382, %v5363
        %v5385 = vunpack.c.l.s4 1983009808
        %v5386 = vunpack.c.0.s8 %v5385
        %v5387 = vperm.slane %v5383, %v5386
        %v5388 = vrot.slane %v5376, 4
        %v5389 = vsel %vm2782, %v5388, %v5370
        %v5390 = vrot.slane %v5370, 4
        %v5391 = vsel %vm2782, %v5376, %v5390
        %v5393 = vunpack.c.l.s4 1934713408
        %v5394 = vunpack.c.0.s8 %v5393
        %v5395 = vperm.slane %v5389, %v5394
        %v5397 = vunpack.c.l.s4 1934713408
        %v5398 = vunpack.c.0.s8 %v5397
        %v5399 = vperm.slane %v5391, %v5398
        %v5400 = vrot.slane %v5387, 4
        %v5401 = vsel %vm2782, %v5400, %v5381
        %v5402 = vrot.slane %v5381, 4
        %v5403 = vsel %vm2782, %v5387, %v5402
        %v5405 = vunpack.c.l.s4 1934713408
        %v5406 = vunpack.c.0.s8 %v5405
        %v5407 = vperm.slane %v5401, %v5406
        %v5409 = vunpack.c.l.s4 1934713408
        %v5410 = vunpack.c.0.s8 %v5409
        %v5411 = vperm.slane %v5403, %v5410
        %v5412 = vrot.slane %v5407, 4
        %v5413 = vsel %vm2782, %v5412, %v5395
        %v5414 = vrot.slane %v5395, 4
        %v5415 = vsel %vm2782, %v5407, %v5414
        %v5416 = vrot.slane %v5411, 4
        %v5417 = vsel %vm2782, %v5416, %v5399
        %v5418 = vrot.slane %v5399, 4
        %v5419 = vsel %vm2782, %v5411, %v5418
        %5421 = vrot.lane.b32.xlu0 %v5415, 64
        %v5422 = vpop.permute.xlu0 %5421
        %5425 = vrot.lane.b32.xlu0 %v5419, 64
        %v5426 = vpop.permute.xlu0 %5425
        %v5428 = vsel %vm2526, %v5413, %v5422
        %v5429 = vsel %vm2526, %v5417, %v5426
        %s5430 = scalar_lea.vmem %s111, 256
        %v5431 = vld [vmem:[%s5430] sm:$0xf]
        %v5432 = vld [vmem:[%s5430 + $0x4] sm:$0xf]
        %v5433 = vld [vmem:[%s5430 + $0x8] sm:$0xf]
        %v5434 = vld [vmem:[%s5430 + $0xc] sm:$0xf]
        %v5435 = vld [vmem:[%s5430 + $0x10] sm:$0xf]
        %v5436 = vld [vmem:[%s5430 + $0x14] sm:$0xf]
        %v5437 = vld [vmem:[%s5430 + $0x18] sm:$0xf]
        %v5438 = vld [vmem:[%s5430 + $0x1c] sm:$0xf]
        %v5439 = vld [vmem:[%s5430 + $0x20] sm:$0xf]
        %v5440 = vld [vmem:[%s5430 + $0x24] sm:$0xf]
        %v5441 = vld [vmem:[%s5430 + $0x28] sm:$0xf]
        %v5442 = vld [vmem:[%s5430 + $0x2c] sm:$0xf]
        %v5443 = vld [vmem:[%s5430 + $0x30] sm:$0xf]
        %v5444 = vld [vmem:[%s5430 + $0x34] sm:$0xf]
        %v5445 = vld [vmem:[%s5430 + $0x38] sm:$0xf]
        %v5446 = vld [vmem:[%s5430 + $0x3c] sm:$0xf]
        %v5447 = vld [vmem:[%s5430 + $0x40] sm:$0xf]
        %v5448 = vld [vmem:[%s5430 + $0x44] sm:$0xf]
        %v5449 = vld [vmem:[%s5430 + $0x48] sm:$0xf]
        %v5450 = vld [vmem:[%s5430 + $0x4c] sm:$0xf]
        %v5451 = vld [vmem:[%s5430 + $0x50] sm:$0xf]
        %v5452 = vld [vmem:[%s5430 + $0x54] sm:$0xf]
        %v5453 = vld [vmem:[%s5430 + $0x58] sm:$0xf]
        %v5454 = vld [vmem:[%s5430 + $0x5c] sm:$0xf]
        %v5455 = vld [vmem:[%s5430 + $0x60] sm:$0xf]
        %v5456 = vld [vmem:[%s5430 + $0x64] sm:$0xf]
        %v5457 = vld [vmem:[%s5430 + $0x68] sm:$0xf]
        %v5458 = vld [vmem:[%s5430 + $0x6c] sm:$0xf]
        %v5459 = vld [vmem:[%s5430 + $0x70] sm:$0xf]
        %v5460 = vld [vmem:[%s5430 + $0x74] sm:$0xf]
        %v5461 = vld [vmem:[%s5430 + $0x78] sm:$0xf]
        %v5462 = vld [vmem:[%s5430 + $0x7c] sm:$0xf]
        %v5463 = vpack.c.bf16 %v5428, %v5428
        %v5464 = vpack.c.bf16 %v5429, %v5429
        %v5497 = vunpack.c.l.b16 %v5431
        %v5498 = vunpack.c.l.b16 %v5432
        %v5499 = vunpack.c.l.b16 %v5433
        %v5500 = vunpack.c.l.b16 %v5434
        %v5501 = vunpack.c.l.b16 %v5435
        %v5502 = vunpack.c.l.b16 %v5436
        %v5503 = vunpack.c.l.b16 %v5437
        %v5504 = vunpack.c.l.b16 %v5438
        %v5505 = vunpack.c.l.b16 %v5439
        %v5506 = vunpack.c.l.b16 %v5440
        %v5507 = vunpack.c.l.b16 %v5441
        %v5508 = vunpack.c.l.b16 %v5442
        %v5509 = vunpack.c.l.b16 %v5443
        %v5510 = vunpack.c.l.b16 %v5444
        %v5511 = vunpack.c.l.b16 %v5445
        %v5512 = vunpack.c.l.b16 %v5446
        %v5513 = vunpack.c.l.b16 %v5447
        %v5514 = vunpack.c.l.b16 %v5448
        %v5515 = vunpack.c.l.b16 %v5449
        %v5516 = vunpack.c.l.b16 %v5450
        %v5517 = vunpack.c.l.b16 %v5451
        %v5518 = vunpack.c.l.b16 %v5452
        %v5519 = vunpack.c.l.b16 %v5453
        %v5520 = vunpack.c.l.b16 %v5454
        %v5521 = vunpack.c.l.b16 %v5455
        %v5522 = vunpack.c.l.b16 %v5456
        %v5523 = vunpack.c.l.b16 %v5457
        %v5524 = vunpack.c.l.b16 %v5458
        %v5525 = vunpack.c.l.b16 %v5459
        %v5526 = vunpack.c.l.b16 %v5460
        %v5527 = vunpack.c.l.b16 %v5461
        %v5528 = vunpack.c.l.b16 %v5462
        %v5529 = vpack.c.b16 %v5498, %v5497
        %v5530 = vpack.c.b16 %v5500, %v5499
        %v5531 = vpack.c.b16 %v5502, %v5501
        %v5532 = vpack.c.b16 %v5504, %v5503
        %v5533 = vpack.c.b16 %v5506, %v5505
        %v5534 = vpack.c.b16 %v5508, %v5507
        %v5535 = vpack.c.b16 %v5510, %v5509
        %v5536 = vpack.c.b16 %v5512, %v5511
        %v5537 = vpack.c.b16 %v5514, %v5513
        %v5538 = vpack.c.b16 %v5516, %v5515
        %v5539 = vpack.c.b16 %v5518, %v5517
        %v5540 = vpack.c.b16 %v5520, %v5519
        %v5541 = vpack.c.b16 %v5522, %v5521
        %v5542 = vpack.c.b16 %v5524, %v5523
        %v5543 = vpack.c.b16 %v5526, %v5525
        %v5544 = vpack.c.b16 %v5528, %v5527
        %5561 = vmatpush.bf16.msra.mxu0 %v5536
        %5562 = vmatpush.bf16.msra.mxu0 %v5535
        %5563 = vmatpush.bf16.msra.mxu0 %v5534
        %5564 = vmatpush.bf16.msra.mxu0 %v5533
        %5565 = vmatpush.bf16.msra.mxu0 %v5532
        %5566 = vmatpush.bf16.msra.mxu0 %v5531
        %5567 = vmatpush.bf16.msra.mxu0 %v5530
        %5568 = vmatpush.bf16.msra.mxu0 %v5529
        %5569 = vmatmul.bf16.gmra.mxu0 %v5463
        %v5570 = vpop.f32.mrf.mxu0
        %v5571 = vadd.f32 0.0, %v5570
        %v5572 = vpop.f32.mrf.mxu0
        %5573 = vdwg.mxu0
        %5574 = vmatpush.bf16.msra.mxu0 %v5544
        %5575 = vmatpush.bf16.msra.mxu0 %v5543
        %5576 = vmatpush.bf16.msra.mxu0 %v5542
        %5577 = vmatpush.bf16.msra.mxu0 %v5541
        %5578 = vmatpush.bf16.msra.mxu0 %v5540
        %5579 = vmatpush.bf16.msra.mxu0 %v5539
        %5580 = vmatpush.bf16.msra.mxu0 %v5538
        %5581 = vmatpush.bf16.msra.mxu0 %v5537
        %5582 = vmatmul.bf16.gmra.mxu0 %v5464
        %v5583 = vpop.f32.mrf.mxu0
        %v5584 = vadd.f32 %v5571, %v5583
        %v5585 = vpop.f32.mrf.mxu0
        %5586 = vdwg.mxu0
        %v5587 = vadd.f32 %v4493, %v5584
        %s5588 = scalar_lea.vmem %s95, 2
        %v5589 = vld [vmem:[%s5588] sm:$0x1]
        %v5591 = vperm.slane %v5589, 0
        %v5593 = vadd.f32 %v5587, %v5591
        %s5594 = scalar_lea.vmem %s105, 2
        %v5595 = vld [vmem:[%s5594] sm:$0x1]
        %s5596 = scalar_lea.vmem %s103, 2
        %v5597 = vld [vmem:[%s5596] sm:$0x1]
        %v5598 = vsel %vm1959, %v5593, 0.0
        %5599 = vadd.xlane.f32.xlu0 %v5598
        %v5600 = vpop.xlane.xlu0 %5599
        %v5601 = vmul.f32 %v5600, %v1969
        %v5602 = vsub.f32 %v5593, %v5601
        %v5603 = vmul.f32 %v5602, %v5602
        %v5604 = vsel %vm1959, %v5603, 0.0
        %5605 = vadd.xlane.f32.xlu0 %v5604
        %v5606 = vpop.xlane.xlu0 %5605
        %v5607 = vmul.f32 %v5606, %v1969
        %v5608 = vadd.f32 %v5607, 1e-05
        %v5609 = vrsqrt.pop %v5608
        %v5610 = vmul.f32 %v5609, %v5608
        %v5611 = vmul.f32 %v5610, %v5609
        %v5612 = vmul.f32 0.5, %v5611
        %v5613 = vsub.f32 1.5, %v5612
        %v5614 = vmul.f32 %v5609, %v5613
        %vm5615 = vweird.f32 %v5608
        %vm5616 = vweird.f32 %v5609
        %vm5617 = vmor %vm5615, %vm5616
        %v5618 = vsel %vm5617, %v5609, %v5614
        %v5619 = vmul.f32 %v5602, %v5618
        %v5621 = vperm.slane %v5595, 0
        %v5623 = vmul.f32 %v5619, %v5621
        %v5625 = vperm.slane %v5597, 0
        %v5627 = vadd.f32 %v5623, %v5625
        %s5628 = scalar_lea.vmem %s107, 32
        %v5629 = vld [vmem:[%s5628] sm:$0xf]
        %v5630 = vld [vmem:[%s5628 + $0x4] sm:$0xf]
        %v5631 = vld [vmem:[%s5628 + $0x8] sm:$0xf]
        %v5632 = vld [vmem:[%s5628 + $0xc] sm:$0xf]
        %v5633 = vpack.c.bf16 %v5627, %v5627
        %s5634 = scalar_lea.vmem %s91, 2
        %v5635 = vld [vmem:[%s5634] sm:$0x1]
        %v5637 = vperm.slane %v5635, 0
        %v5643 = vunpack.c.l.b16 %v5629
        %v5644 = vunpack.c.l.b16 %v5630
        %v5645 = vunpack.c.l.b16 %v5631
        %v5646 = vunpack.c.l.b16 %v5632
        %v5647 = vpack.c.b16 %v5644, %v5643
        %v5648 = vpack.c.b16 %v5646, %v5645
        %v5652 = vsel %vm1959, %v5633, 0
        %5654 = vmatpush.bf16.msra.mxu0 0
        %5655 = vmatpush.bf16.msra.mxu0 0
        %5656 = vmatpush.bf16.msra.mxu0 0
        %5657 = vmatpush.bf16.msra.mxu0 0
        %5658 = vmatpush.bf16.msra.mxu0 0
        %5659 = vmatpush.bf16.msra.mxu0 0
        %5660 = vmatpush.bf16.msra.mxu0 %v5648
        %5661 = vmatpush.bf16.msra.mxu0 %v5647
        %5662 = vmatmul.bf16.gmra.mxu0 %v5652
        %v5663 = vpop.f32.mrf.mxu0
        %v5664 = vadd.f32 %v5637, %v5663
        %v5665 = vpop.f32.mrf.mxu0
        %5666 = vdwg.mxu0
        %v5667 = vmul.f32 %v5664, 0.5
        %v5668 = vmul.f32 %v5664, 0.044715
        %v5669 = vmul.f32 %v5668, %v5664
        %v5670 = vmul.f32 %v5669, %v5664
        %v5671 = vadd.f32 %v5664, %v5670
        %v5672 = vmul.f32 %v5671, 0.7978846
        %v5673 = vtanh.pop %v5672
        %v5674 = vadd.f32 %v5673, 1.0
        %v5675 = vmul.f32 %v5667, %v5674
        %s5676 = scalar_lea.vmem %s109, 128
        %v5677 = vld [vmem:[%s5676] sm:$0xf]
        %v5678 = vld [vmem:[%s5676 + $0x4] sm:$0xf]
        %v5679 = vld [vmem:[%s5676 + $0x8] sm:$0xf]
        %v5680 = vld [vmem:[%s5676 + $0xc] sm:$0xf]
        %v5681 = vld [vmem:[%s5676 + $0x10] sm:$0xf]
        %v5682 = vld [vmem:[%s5676 + $0x14] sm:$0xf]
        %v5683 = vld [vmem:[%s5676 + $0x18] sm:$0xf]
        %v5684 = vld [vmem:[%s5676 + $0x1c] sm:$0xf]
        %v5685 = vld [vmem:[%s5676 + $0x20] sm:$0xf]
        %v5686 = vld [vmem:[%s5676 + $0x24] sm:$0xf]
        %v5687 = vld [vmem:[%s5676 + $0x28] sm:$0xf]
        %v5688 = vld [vmem:[%s5676 + $0x2c] sm:$0xf]
        %v5689 = vld [vmem:[%s5676 + $0x30] sm:$0xf]
        %v5690 = vld [vmem:[%s5676 + $0x34] sm:$0xf]
        %v5691 = vld [vmem:[%s5676 + $0x38] sm:$0xf]
        %v5692 = vld [vmem:[%s5676 + $0x3c] sm:$0xf]
        %v5693 = vpack.c.bf16 %v5675, %v5675
        %v5710 = vunpack.c.l.b16 %v5677
        %v5711 = vunpack.c.l.b16 %v5678
        %v5712 = vunpack.c.l.b16 %v5679
        %v5713 = vunpack.c.l.b16 %v5680
        %v5714 = vunpack.c.l.b16 %v5681
        %v5715 = vunpack.c.l.b16 %v5682
        %v5716 = vunpack.c.l.b16 %v5683
        %v5717 = vunpack.c.l.b16 %v5684
        %v5718 = vunpack.c.l.b16 %v5685
        %v5719 = vunpack.c.l.b16 %v5686
        %v5720 = vunpack.c.l.b16 %v5687
        %v5721 = vunpack.c.l.b16 %v5688
        %v5722 = vunpack.c.l.b16 %v5689
        %v5723 = vunpack.c.l.b16 %v5690
        %v5724 = vunpack.c.l.b16 %v5691
        %v5725 = vunpack.c.l.b16 %v5692
        %v5726 = vpack.c.b16 %v5711, %v5710
        %v5727 = vpack.c.b16 %v5713, %v5712
        %v5728 = vpack.c.b16 %v5715, %v5714
        %v5729 = vpack.c.b16 %v5717, %v5716
        %v5730 = vpack.c.b16 %v5719, %v5718
        %v5731 = vpack.c.b16 %v5721, %v5720
        %v5732 = vpack.c.b16 %v5723, %v5722
        %v5733 = vpack.c.b16 %v5725, %v5724
        %5742 = vmatpush.bf16.msra.mxu0 %v5733
        %5743 = vmatpush.bf16.msra.mxu0 %v5732
        %5744 = vmatpush.bf16.msra.mxu0 %v5731
        %5745 = vmatpush.bf16.msra.mxu0 %v5730
        %5746 = vmatpush.bf16.msra.mxu0 %v5729
        %5747 = vmatpush.bf16.msra.mxu0 %v5728
        %5748 = vmatpush.bf16.msra.mxu0 %v5727
        %5749 = vmatpush.bf16.msra.mxu0 %v5726
        %5750 = vmatmul.bf16.gmra.mxu0 %v5693
        %v5751 = vpop.f32.mrf.mxu0
        %v5752 = vadd.f32 0.0, %v5751
        %v5753 = vpop.f32.mrf.mxu0
        %5754 = vdwg.mxu0
        %v5755 = vadd.f32 %v5593, %v5752
        %s5756 = scalar_lea.vmem %s93, 2
        %v5757 = vld [vmem:[%s5756] sm:$0x1]
        %v5759 = vperm.slane %v5757, 0
        %v5761 = vadd.f32 %v5755, %v5759
        %s5762 = scalar_lea.vmem %s101, 3
        %v5763 = vld [vmem:[%s5762] sm:$0x1]
        %s5764 = scalar_lea.vmem %s99, 3
        %v5765 = vld [vmem:[%s5764] sm:$0x1]
        %v5766 = vsel %vm1959, %v5761, 0.0
        %5767 = vadd.xlane.f32.xlu0 %v5766
        %v5768 = vpop.xlane.xlu0 %5767
        %v5769 = vmul.f32 %v5768, %v1969
        %v5770 = vsub.f32 %v5761, %v5769
        %v5771 = vmul.f32 %v5770, %v5770
        %v5772 = vsel %vm1959, %v5771, 0.0
        %5773 = vadd.xlane.f32.xlu0 %v5772
        %v5774 = vpop.xlane.xlu0 %5773
        %v5775 = vmul.f32 %v5774, %v1969
        %v5776 = vadd.f32 %v5775, 1e-05
        %v5777 = vrsqrt.pop %v5776
        %v5778 = vmul.f32 %v5777, %v5776
        %v5779 = vmul.f32 %v5778, %v5777
        %v5780 = vmul.f32 0.5, %v5779
        %v5781 = vsub.f32 1.5, %v5780
        %v5782 = vmul.f32 %v5777, %v5781
        %vm5783 = vweird.f32 %v5776
        %vm5784 = vweird.f32 %v5777
        %vm5785 = vmor %vm5783, %vm5784
        %v5786 = vsel %vm5785, %v5777, %v5782
        %v5787 = vmul.f32 %v5770, %v5786
        %v5789 = vperm.slane %v5763, 0
        %v5791 = vmul.f32 %v5787, %v5789
        %v5793 = vperm.slane %v5765, 0
        %v5795 = vadd.f32 %v5791, %v5793
        %s5796 = scalar_lea.vmem %s113, 288
        %v5797 = vld [vmem:[%s5796] sm:$0xff]
        %v5798 = vld [vmem:[%s5796 + $0x8] sm:$0xff]
        %v5799 = vld [vmem:[%s5796 + $0x10] sm:$0xff]
        %v5800 = vld [vmem:[%s5796 + $0x18] sm:$0xff]
        %v5801 = vld [vmem:[%s5796 + $0x20] sm:$0xff]
        %v5802 = vld [vmem:[%s5796 + $0x28] sm:$0xff]
        %v5803 = vld [vmem:[%s5796 + $0x30] sm:$0xff]
        %v5804 = vld [vmem:[%s5796 + $0x38] sm:$0xff]
        %v5805 = vld [vmem:[%s5796 + $0x40] sm:$0xff]
        %v5806 = vld [vmem:[%s5796 + $0x48] sm:$0xff]
        %v5807 = vld [vmem:[%s5796 + $0x50] sm:$0xff]
        %v5808 = vld [vmem:[%s5796 + $0x58] sm:$0xff]
        %v5809 = vpack.c.bf16 %v5795, %v5795
        %s5810 = scalar_lea.vmem %s97, 18
        %v5811 = vld [vmem:[%s5810] sm:$0x3f]
        %v5813 = vperm.slane %v5811, 0
        %v5814 = vperm.slane %v5811, 1
        %v5815 = vperm.slane %v5811, 2
        %v5816 = vperm.slane %v5811, 3
        %v5817 = vperm.slane %v5811, 4
        %v5818 = vperm.slane %v5811, 5
        %v5837 = vunpack.c.l.b16 %v5797
        %v5838 = vunpack.c.h.b16 %v5797
        %v5839 = vunpack.c.l.b16 %v5798
        %v5840 = vunpack.c.h.b16 %v5798
        %v5841 = vunpack.c.l.b16 %v5799
        %v5842 = vunpack.c.h.b16 %v5799
        %v5843 = vunpack.c.l.b16 %v5800
        %v5844 = vunpack.c.h.b16 %v5800
        %v5845 = vunpack.c.l.b16 %v5801
        %v5846 = vunpack.c.h.b16 %v5801
        %v5847 = vunpack.c.l.b16 %v5802
        %v5848 = vunpack.c.h.b16 %v5802
        %v5849 = vunpack.c.l.b16 %v5803
        %v5850 = vunpack.c.h.b16 %v5803
        %v5851 = vunpack.c.l.b16 %v5804
        %v5852 = vunpack.c.h.b16 %v5804
        %v5853 = vunpack.c.l.b16 %v5805
        %v5854 = vunpack.c.h.b16 %v5805
        %v5855 = vunpack.c.l.b16 %v5806
        %v5856 = vunpack.c.h.b16 %v5806
        %v5857 = vunpack.c.l.b16 %v5807
        %v5858 = vunpack.c.h.b16 %v5807
        %v5859 = vunpack.c.l.b16 %v5808
        %v5860 = vunpack.c.h.b16 %v5808
        %v5861 = vpack.c.b16 %v5843, %v5837
        %v5862 = vpack.c.b16 %v5844, %v5838
        %v5863 = vpack.c.b16 %v5845, %v5839
        %v5864 = vpack.c.b16 %v5846, %v5840
        %v5865 = vpack.c.b16 %v5847, %v5841
        %v5866 = vpack.c.b16 %v5848, %v5842
        %v5867 = vpack.c.b16 %v5855, %v5849
        %v5868 = vpack.c.b16 %v5856, %v5850
        %v5869 = vpack.c.b16 %v5857, %v5851
        %v5870 = vpack.c.b16 %v5858, %v5852
        %v5871 = vpack.c.b16 %v5859, %v5853
        %v5872 = vpack.c.b16 %v5860, %v5854
        %v5886 = vsel %vm1959, %v5809, 0
        %5888 = vmatpush.bf16.msra.mxu0 0
        %5889 = vmatpush.bf16.msra.mxu0 0
        %5890 = vmatpush.bf16.msra.mxu0 0
        %5891 = vmatpush.bf16.msra.mxu0 0
        %5892 = vmatpush.bf16.msra.mxu0 0
        %5893 = vmatpush.bf16.msra.mxu0 0
        %5894 = vmatpush.bf16.msra.mxu0 %v5867
        %5895 = vmatpush.bf16.msra.mxu0 %v5861
        %5896 = vmatmul.bf16.gmra.mxu0 %v5886
        %v5897 = vpop.f32.mrf.mxu0
        %v5898 = vadd.f32 %v5813, %v5897
        %v5899 = vpop.f32.mrf.mxu0
        %5900 = vdwg.mxu0
        %5901 = vmatpush.bf16.msra.mxu0 0
        %5902 = vmatpush.bf16.msra.mxu0 0
        %5903 = vmatpush.bf16.msra.mxu0 0
        %5904 = vmatpush.bf16.msra.mxu0 0
        %5905 = vmatpush.bf16.msra.mxu0 0
        %5906 = vmatpush.bf16.msra.mxu0 0
        %5907 = vmatpush.bf16.msra.mxu0 %v5868
        %5908 = vmatpush.bf16.msra.mxu0 %v5862
        %5909 = vmatmul.bf16.gmra.mxu0 %v5886
        %v5910 = vpop.f32.mrf.mxu0
        %v5911 = vadd.f32 %v5814, %v5910
        %v5912 = vpop.f32.mrf.mxu0
        %5913 = vdwg.mxu0
        %5914 = vmatpush.bf16.msra.mxu0 0
        %5915 = vmatpush.bf16.msra.mxu0 0
        %5916 = vmatpush.bf16.msra.mxu0 0
        %5917 = vmatpush.bf16.msra.mxu0 0
        %5918 = vmatpush.bf16.msra.mxu0 0
        %5919 = vmatpush.bf16.msra.mxu0 0
        %5920 = vmatpush.bf16.msra.mxu0 %v5869
        %5921 = vmatpush.bf16.msra.mxu0 %v5863
        %5922 = vmatmul.bf16.gmra.mxu0 %v5886
        %v5923 = vpop.f32.mrf.mxu0
        %v5924 = vadd.f32 %v5815, %v5923
        %v5925 = vpop.f32.mrf.mxu0
        %5926 = vdwg.mxu0
        %5927 = vmatpush.bf16.msra.mxu0 0
        %5928 = vmatpush.bf16.msra.mxu0 0
        %5929 = vmatpush.bf16.msra.mxu0 0
        %5930 = vmatpush.bf16.msra.mxu0 0
        %5931 = vmatpush.bf16.msra.mxu0 0
        %5932 = vmatpush.bf16.msra.mxu0 0
        %5933 = vmatpush.bf16.msra.mxu0 %v5870
        %5934 = vmatpush.bf16.msra.mxu0 %v5864
        %5935 = vmatmul.bf16.gmra.mxu0 %v5886
        %v5936 = vpop.f32.mrf.mxu0
        %v5937 = vadd.f32 %v5816, %v5936
        %v5938 = vpop.f32.mrf.mxu0
        %5939 = vdwg.mxu0
        %5940 = vmatpush.bf16.msra.mxu0 0
        %5941 = vmatpush.bf16.msra.mxu0 0
        %5942 = vmatpush.bf16.msra.mxu0 0
        %5943 = vmatpush.bf16.msra.mxu0 0
        %5944 = vmatpush.bf16.msra.mxu0 0
        %5945 = vmatpush.bf16.msra.mxu0 0
        %5946 = vmatpush.bf16.msra.mxu0 %v5871
        %5947 = vmatpush.bf16.msra.mxu0 %v5865
        %5948 = vmatmul.bf16.gmra.mxu0 %v5886
        %v5949 = vpop.f32.mrf.mxu0
        %v5950 = vadd.f32 %v5817, %v5949
        %v5951 = vpop.f32.mrf.mxu0
        %5952 = vdwg.mxu0
        %5953 = vmatpush.bf16.msra.mxu0 0
        %5954 = vmatpush.bf16.msra.mxu0 0
        %5955 = vmatpush.bf16.msra.mxu0 0
        %5956 = vmatpush.bf16.msra.mxu0 0
        %5957 = vmatpush.bf16.msra.mxu0 0
        %5958 = vmatpush.bf16.msra.mxu0 0
        %5959 = vmatpush.bf16.msra.mxu0 %v5872
        %5960 = vmatpush.bf16.msra.mxu0 %v5866
        %5961 = vmatmul.bf16.gmra.mxu0 %v5886
        %v5962 = vpop.f32.mrf.mxu0
        %v5963 = vadd.f32 %v5818, %v5962
        %v5964 = vpop.f32.mrf.mxu0
        %5965 = vdwg.mxu0
        %v5966 = vpack.c.bf16 %v5911, %v5898
        %v5968 = vrot.slane %v5966, 4
        %5969 = vrot.lane.b32.xlu0 %v5966, 64
        %v5970 = vpop.permute.xlu0 %5969
        %v5971 = vrot.slane %v5970, 4
        %v5974 = vpack.i.b16 %v5970, %v5966
        %v5975 = vshrl.u32 %v5966, 16
        %v5976 = vshrl.u32 %v5970, 16
        %v5977 = vpack.i.b16 %v5976, %v5975
        %v5980 = vpack.i.b16 %v5971, %v5968
        %v5981 = vshrl.u32 %v5968, 16
        %v5982 = vshrl.u32 %v5971, 16
        %v5983 = vpack.i.b16 %v5982, %v5981
        %v5986 = vunpack.c.l.s4 1983009808
        %v5987 = vunpack.c.0.s8 %v5986
        %v5988 = vperm.slane %v5974, %v5987
        %v5991 = vunpack.c.l.s4 1983009808
        %v5992 = vunpack.c.0.s8 %v5991
        %v5993 = vperm.slane %v5980, %v5992
        %v5994 = vrot.slane %v5993, 4
        %v5995 = vsel %vm2194, %v5994, %v5988
        %v5996 = vrot.slane %v5988, 4
        %v5997 = vsel %vm2194, %v5993, %v5996
        %v5999 = vunpack.c.l.s4 1934713408
        %v6000 = vunpack.c.0.s8 %v5999
        %v6001 = vperm.slane %v5995, %v6000
        %v6003 = vunpack.c.l.s4 1934713408
        %v6004 = vunpack.c.0.s8 %v6003
        %v6005 = vperm.slane %v5997, %v6004
        %v6006 = vrot.slane %v6001, 4
        %v6007 = vsel %vm2194, 0, %v6006
        %v6008 = vrot.slane %v6005, 4
        %v6009 = vsel %vm2194, 0, %v6008
        %v6012 = vunpack.c.l.s4 1983009808
        %v6013 = vunpack.c.0.s8 %v6012
        %v6014 = vperm.slane %v5977, %v6013
        %v6017 = vunpack.c.l.s4 1983009808
        %v6018 = vunpack.c.0.s8 %v6017
        %v6019 = vperm.slane %v5983, %v6018
        %v6020 = vrot.slane %v6019, 4
        %v6021 = vsel %vm2194, %v6020, %v6014
        %v6022 = vrot.slane %v6014, 4
        %v6023 = vsel %vm2194, %v6019, %v6022
        %v6025 = vunpack.c.l.s4 1934713408
        %v6026 = vunpack.c.0.s8 %v6025
        %v6027 = vperm.slane %v6021, %v6026
        %v6029 = vunpack.c.l.s4 1934713408
        %v6030 = vunpack.c.0.s8 %v6029
        %v6031 = vperm.slane %v6023, %v6030
        %v6032 = vrot.slane %v6027, 4
        %v6033 = vsel %vm2194, 0, %v6032
        %v6034 = vrot.slane %v6031, 4
        %v6035 = vsel %vm2194, 0, %v6034
        %v6036 = vsel %vm2194, %v6008, %v6001
        %v6038 = vunpack.c.l.s4 1983009808
        %v6039 = vunpack.c.0.s8 %v6038
        %v6040 = vperm.slane %v6036, %v6039
        %v6041 = vrot.slane %v6009, 4
        %v6042 = vsel %vm2194, %v6041, %v6007
        %v6044 = vunpack.c.l.s4 1983009808
        %v6045 = vunpack.c.0.s8 %v6044
        %v6046 = vperm.slane %v6042, %v6045
        %v6047 = vrot.slane %v6046, 4
        %v6048 = vsel %vm2194, %v6047, %v6040
        %v6050 = vunpack.c.l.s4 1934713408
        %v6051 = vunpack.c.0.s8 %v6050
        %v6052 = vperm.slane %v6048, %v6051
        %v6053 = vrot.slane %v6052, 4
        %v6054 = vsel %vm2194, 0, %v6053
        %v6055 = vsel %vm2194, %v6034, %v6027
        %v6057 = vunpack.c.l.s4 1983009808
        %v6058 = vunpack.c.0.s8 %v6057
        %v6059 = vperm.slane %v6055, %v6058
        %v6060 = vrot.slane %v6035, 4
        %v6061 = vsel %vm2194, %v6060, %v6033
        %v6063 = vunpack.c.l.s4 1983009808
        %v6064 = vunpack.c.0.s8 %v6063
        %v6065 = vperm.slane %v6061, %v6064
        %v6066 = vrot.slane %v6065, 4
        %v6067 = vsel %vm2194, %v6066, %v6059
        %v6069 = vunpack.c.l.s4 1934713408
        %v6070 = vunpack.c.0.s8 %v6069
        %v6071 = vperm.slane %v6067, %v6070
        %v6072 = vrot.slane %v6071, 4
        %v6073 = vsel %vm2194, 0, %v6072
        %v6076 = vpack.i.b16 %v6071, %v6052
        %v6077 = vshrl.u32 %v6052, 16
        %v6078 = vshrl.u32 %v6071, 16
        %v6079 = vpack.i.b16 %v6078, %v6077
        %v6082 = vpack.i.b16 %v6073, %v6054
        %v6083 = vshrl.u32 %v6054, 16
        %v6084 = vshrl.u32 %v6073, 16
        %v6085 = vpack.i.b16 %v6084, %v6083
        %v6086 = vpack.c.bf16 %v5937, %v5924
        %v6088 = vrot.slane %v6086, 4
        %6089 = vrot.lane.b32.xlu0 %v6086, 64
        %v6090 = vpop.permute.xlu0 %6089
        %v6091 = vrot.slane %v6090, 4
        %v6094 = vpack.i.b16 %v6090, %v6086
        %v6095 = vshrl.u32 %v6086, 16
        %v6096 = vshrl.u32 %v6090, 16
        %v6097 = vpack.i.b16 %v6096, %v6095
        %v6100 = vpack.i.b16 %v6091, %v6088
        %v6101 = vshrl.u32 %v6088, 16
        %v6102 = vshrl.u32 %v6091, 16
        %v6103 = vpack.i.b16 %v6102, %v6101
        %v6106 = vunpack.c.l.s4 1983009808
        %v6107 = vunpack.c.0.s8 %v6106
        %v6108 = vperm.slane %v6094, %v6107
        %v6111 = vunpack.c.l.s4 1983009808
        %v6112 = vunpack.c.0.s8 %v6111
        %v6113 = vperm.slane %v6100, %v6112
        %v6114 = vrot.slane %v6113, 4
        %v6115 = vsel %vm2194, %v6114, %v6108
        %v6116 = vrot.slane %v6108, 4
        %v6117 = vsel %vm2194, %v6113, %v6116
        %v6119 = vunpack.c.l.s4 1934713408
        %v6120 = vunpack.c.0.s8 %v6119
        %v6121 = vperm.slane %v6115, %v6120
        %v6123 = vunpack.c.l.s4 1934713408
        %v6124 = vunpack.c.0.s8 %v6123
        %v6125 = vperm.slane %v6117, %v6124
        %v6126 = vrot.slane %v6121, 4
        %v6127 = vsel %vm2194, 0, %v6126
        %v6128 = vrot.slane %v6125, 4
        %v6129 = vsel %vm2194, 0, %v6128
        %v6132 = vunpack.c.l.s4 1983009808
        %v6133 = vunpack.c.0.s8 %v6132
        %v6134 = vperm.slane %v6097, %v6133
        %v6137 = vunpack.c.l.s4 1983009808
        %v6138 = vunpack.c.0.s8 %v6137
        %v6139 = vperm.slane %v6103, %v6138
        %v6140 = vrot.slane %v6139, 4
        %v6141 = vsel %vm2194, %v6140, %v6134
        %v6142 = vrot.slane %v6134, 4
        %v6143 = vsel %vm2194, %v6139, %v6142
        %v6145 = vunpack.c.l.s4 1934713408
        %v6146 = vunpack.c.0.s8 %v6145
        %v6147 = vperm.slane %v6141, %v6146
        %v6149 = vunpack.c.l.s4 1934713408
        %v6150 = vunpack.c.0.s8 %v6149
        %v6151 = vperm.slane %v6143, %v6150
        %v6152 = vrot.slane %v6147, 4
        %v6153 = vsel %vm2194, 0, %v6152
        %v6154 = vrot.slane %v6151, 4
        %v6155 = vsel %vm2194, 0, %v6154
        %v6156 = vsel %vm2194, %v6128, %v6121
        %v6158 = vunpack.c.l.s4 1983009808
        %v6159 = vunpack.c.0.s8 %v6158
        %v6160 = vperm.slane %v6156, %v6159
        %v6161 = vrot.slane %v6129, 4
        %v6162 = vsel %vm2194, %v6161, %v6127
        %v6164 = vunpack.c.l.s4 1983009808
        %v6165 = vunpack.c.0.s8 %v6164
        %v6166 = vperm.slane %v6162, %v6165
        %v6167 = vrot.slane %v6166, 4
        %v6168 = vsel %vm2194, %v6167, %v6160
        %v6170 = vunpack.c.l.s4 1934713408
        %v6171 = vunpack.c.0.s8 %v6170
        %v6172 = vperm.slane %v6168, %v6171
        %v6173 = vrot.slane %v6172, 4
        %v6174 = vsel %vm2194, 0, %v6173
        %v6175 = vsel %vm2194, %v6154, %v6147
        %v6177 = vunpack.c.l.s4 1983009808
        %v6178 = vunpack.c.0.s8 %v6177
        %v6179 = vperm.slane %v6175, %v6178
        %v6180 = vrot.slane %v6155, 4
        %v6181 = vsel %vm2194, %v6180, %v6153
        %v6183 = vunpack.c.l.s4 1983009808
        %v6184 = vunpack.c.0.s8 %v6183
        %v6185 = vperm.slane %v6181, %v6184
        %v6186 = vrot.slane %v6185, 4
        %v6187 = vsel %vm2194, %v6186, %v6179
        %v6189 = vunpack.c.l.s4 1934713408
        %v6190 = vunpack.c.0.s8 %v6189
        %v6191 = vperm.slane %v6187, %v6190
        %v6192 = vrot.slane %v6191, 4
        %v6193 = vsel %vm2194, 0, %v6192
        %v6196 = vpack.i.b16 %v6191, %v6172
        %v6197 = vshrl.u32 %v6172, 16
        %v6198 = vshrl.u32 %v6191, 16
        %v6199 = vpack.i.b16 %v6198, %v6197
        %v6202 = vpack.i.b16 %v6193, %v6174
        %v6203 = vshrl.u32 %v6174, 16
        %v6204 = vshrl.u32 %v6193, 16
        %v6205 = vpack.i.b16 %v6204, %v6203
        %v6206 = vpack.c.bf16 %v5963, %v5950
        %v6208 = vrot.slane %v6206, 4
        %6209 = vrot.lane.b32.xlu0 %v6206, 64
        %v6210 = vpop.permute.xlu0 %6209
        %v6211 = vrot.slane %v6210, 4
        %v6214 = vpack.i.b16 %v6210, %v6206
        %v6215 = vshrl.u32 %v6206, 16
        %v6216 = vshrl.u32 %v6210, 16
        %v6217 = vpack.i.b16 %v6216, %v6215
        %v6220 = vpack.i.b16 %v6211, %v6208
        %v6221 = vshrl.u32 %v6208, 16
        %v6222 = vshrl.u32 %v6211, 16
        %v6223 = vpack.i.b16 %v6222, %v6221
        %v6226 = vunpack.c.l.s4 1983009808
        %v6227 = vunpack.c.0.s8 %v6226
        %v6228 = vperm.slane %v6214, %v6227
        %v6231 = vunpack.c.l.s4 1983009808
        %v6232 = vunpack.c.0.s8 %v6231
        %v6233 = vperm.slane %v6220, %v6232
        %v6234 = vrot.slane %v6233, 4
        %v6235 = vsel %vm2194, %v6234, %v6228
        %v6236 = vrot.slane %v6228, 4
        %v6237 = vsel %vm2194, %v6233, %v6236
        %v6239 = vunpack.c.l.s4 1934713408
        %v6240 = vunpack.c.0.s8 %v6239
        %v6241 = vperm.slane %v6235, %v6240
        %v6243 = vunpack.c.l.s4 1934713408
        %v6244 = vunpack.c.0.s8 %v6243
        %v6245 = vperm.slane %v6237, %v6244
        %v6246 = vrot.slane %v6241, 4
        %v6247 = vsel %vm2194, 0, %v6246
        %v6248 = vrot.slane %v6245, 4
        %v6249 = vsel %vm2194, 0, %v6248
        %v6252 = vunpack.c.l.s4 1983009808
        %v6253 = vunpack.c.0.s8 %v6252
        %v6254 = vperm.slane %v6217, %v6253
        %v6257 = vunpack.c.l.s4 1983009808
        %v6258 = vunpack.c.0.s8 %v6257
        %v6259 = vperm.slane %v6223, %v6258
        %v6260 = vrot.slane %v6259, 4
        %v6261 = vsel %vm2194, %v6260, %v6254
        %v6262 = vrot.slane %v6254, 4
        %v6263 = vsel %vm2194, %v6259, %v6262
        %v6265 = vunpack.c.l.s4 1934713408
        %v6266 = vunpack.c.0.s8 %v6265
        %v6267 = vperm.slane %v6261, %v6266
        %v6269 = vunpack.c.l.s4 1934713408
        %v6270 = vunpack.c.0.s8 %v6269
        %v6271 = vperm.slane %v6263, %v6270
        %v6272 = vrot.slane %v6267, 4
        %v6273 = vsel %vm2194, 0, %v6272
        %v6274 = vrot.slane %v6271, 4
        %v6275 = vsel %vm2194, 0, %v6274
        %v6276 = vsel %vm2194, %v6248, %v6241
        %v6278 = vunpack.c.l.s4 1983009808
        %v6279 = vunpack.c.0.s8 %v6278
        %v6280 = vperm.slane %v6276, %v6279
        %v6281 = vrot.slane %v6249, 4
        %v6282 = vsel %vm2194, %v6281, %v6247
        %v6284 = vunpack.c.l.s4 1983009808
        %v6285 = vunpack.c.0.s8 %v6284
        %v6286 = vperm.slane %v6282, %v6285
        %v6287 = vrot.slane %v6286, 4
        %v6288 = vsel %vm2194, %v6287, %v6280
        %v6290 = vunpack.c.l.s4 1934713408
        %v6291 = vunpack.c.0.s8 %v6290
        %v6292 = vperm.slane %v6288, %v6291
        %v6293 = vrot.slane %v6292, 4
        %v6294 = vsel %vm2194, 0, %v6293
        %v6295 = vsel %vm2194, %v6274, %v6267
        %v6297 = vunpack.c.l.s4 1983009808
        %v6298 = vunpack.c.0.s8 %v6297
        %v6299 = vperm.slane %v6295, %v6298
        %v6300 = vrot.slane %v6275, 4
        %v6301 = vsel %vm2194, %v6300, %v6273
        %v6303 = vunpack.c.l.s4 1983009808
        %v6304 = vunpack.c.0.s8 %v6303
        %v6305 = vperm.slane %v6301, %v6304
        %v6306 = vrot.slane %v6305, 4
        %v6307 = vsel %vm2194, %v6306, %v6299
        %v6309 = vunpack.c.l.s4 1934713408
        %v6310 = vunpack.c.0.s8 %v6309
        %v6311 = vperm.slane %v6307, %v6310
        %v6312 = vrot.slane %v6311, 4
        %v6313 = vsel %vm2194, 0, %v6312
        %v6316 = vpack.i.b16 %v6311, %v6292
        %v6317 = vshrl.u32 %v6292, 16
        %v6318 = vshrl.u32 %v6311, 16
        %v6319 = vpack.i.b16 %v6318, %v6317
        %v6322 = vpack.i.b16 %v6313, %v6294
        %v6323 = vshrl.u32 %v6294, 16
        %v6324 = vshrl.u32 %v6313, 16
        %v6325 = vpack.i.b16 %v6324, %v6323
        %v6327 = vsel %vm2526, %v6076, 0
        %v6330 = vsel %vm2526, %v6196, 0
        %6332 = vmatpush.bf16.xpose.msra.mxu0 0
        %6333 = vmatpush.bf16.xpose.msra.mxu0 0
        %6334 = vmatpush.bf16.xpose.msra.mxu0 0
        %6335 = vmatpush.bf16.xpose.msra.mxu0 0
        %6336 = vmatpush.bf16.xpose.msra.mxu0 0
        %6337 = vmatpush.bf16.xpose.msra.mxu0 0
        %6338 = vmatpush.bf16.xpose.msra.mxu0 0
        %6339 = vmatpush.bf16.xpose.msra.mxu0 %v6330
        %6340 = vmatmul.bf16.gmra.mxu0 %v6327
        %v6341 = vpop.f32.mrf.mxu0
        %v6342 = vadd.f32 0.0, %v6341
        %v6343 = vpop.f32.mrf.mxu0
        %6344 = vdwg.mxu0
        %v6346 = vsel %vm2526, %v6079, 0
        %v6349 = vsel %vm2526, %v6199, 0
        %6351 = vmatpush.bf16.xpose.msra.mxu0 0
        %6352 = vmatpush.bf16.xpose.msra.mxu0 0
        %6353 = vmatpush.bf16.xpose.msra.mxu0 0
        %6354 = vmatpush.bf16.xpose.msra.mxu0 0
        %6355 = vmatpush.bf16.xpose.msra.mxu0 0
        %6356 = vmatpush.bf16.xpose.msra.mxu0 0
        %6357 = vmatpush.bf16.xpose.msra.mxu0 0
        %6358 = vmatpush.bf16.xpose.msra.mxu0 %v6349
        %6359 = vmatmul.bf16.gmra.mxu0 %v6346
        %v6360 = vpop.f32.mrf.mxu0
        %v6361 = vadd.f32 0.0, %v6360
        %v6362 = vpop.f32.mrf.mxu0
        %6363 = vdwg.mxu0
        %v6365 = vsel %vm2526, %v6082, 0
        %v6368 = vsel %vm2526, %v6202, 0
        %6370 = vmatpush.bf16.xpose.msra.mxu0 0
        %6371 = vmatpush.bf16.xpose.msra.mxu0 0
        %6372 = vmatpush.bf16.xpose.msra.mxu0 0
        %6373 = vmatpush.bf16.xpose.msra.mxu0 0
        %6374 = vmatpush.bf16.xpose.msra.mxu0 0
        %6375 = vmatpush.bf16.xpose.msra.mxu0 0
        %6376 = vmatpush.bf16.xpose.msra.mxu0 0
        %6377 = vmatpush.bf16.xpose.msra.mxu0 %v6368
        %6378 = vmatmul.bf16.gmra.mxu0 %v6365
        %v6379 = vpop.f32.mrf.mxu0
        %v6380 = vadd.f32 0.0, %v6379
        %v6381 = vpop.f32.mrf.mxu0
        %6382 = vdwg.mxu0
        %v6384 = vsel %vm2526, %v6085, 0
        %v6387 = vsel %vm2526, %v6205, 0
        %6389 = vmatpush.bf16.xpose.msra.mxu0 0
        %6390 = vmatpush.bf16.xpose.msra.mxu0 0
        %6391 = vmatpush.bf16.xpose.msra.mxu0 0
        %6392 = vmatpush.bf16.xpose.msra.mxu0 0
        %6393 = vmatpush.bf16.xpose.msra.mxu0 0
        %6394 = vmatpush.bf16.xpose.msra.mxu0 0
        %6395 = vmatpush.bf16.xpose.msra.mxu0 0
        %6396 = vmatpush.bf16.xpose.msra.mxu0 %v6387
        %6397 = vmatmul.bf16.gmra.mxu0 %v6384
        %v6398 = vpop.f32.mrf.mxu0
        %v6399 = vadd.f32 0.0, %v6398
        %v6400 = vpop.f32.mrf.mxu0
        %6401 = vdwg.mxu0
        %v6402 = vsel %vm2603, %v6342, -inf
        %6403 = vmax.xlane.f32.xlu0 %v6402
        %v6404 = vpop.xlane.xlu0 %6403
        %v6405 = vsel %vm2603, %v6361, -inf
        %6406 = vmax.xlane.f32.xlu0 %v6405
        %v6407 = vpop.xlane.xlu0 %6406
        %v6408 = vsel %vm2603, %v6380, -inf
        %6409 = vmax.xlane.f32.xlu0 %v6408
        %v6410 = vpop.xlane.xlu0 %6409
        %v6411 = vsel %vm2603, %v6399, -inf
        %6412 = vmax.xlane.f32.xlu0 %v6411
        %v6413 = vpop.xlane.xlu0 %6412
        %v6414 = vsub.f32 %v6342, %v6404
        %v6415 = vsub.f32 %v6361, %v6407
        %v6416 = vsub.f32 %v6380, %v6410
        %v6417 = vsub.f32 %v6399, %v6413
        %v6418 = vmul.f32 %v6414, 1.442695
        %v6419 = vpow.pop %v6418
        %v6420 = vmul.f32 %v6415, 1.442695
        %v6421 = vpow.pop %v6420
        %v6422 = vmul.f32 %v6416, 1.442695
        %v6423 = vpow.pop %v6422
        %v6424 = vmul.f32 %v6417, 1.442695
        %v6425 = vpow.pop %v6424
        %v6426 = vsel %vm2603, %v6419, 0.0
        %6427 = vadd.xlane.f32.xlu0 %v6426
        %v6428 = vpop.xlane.xlu0 %6427
        %v6429 = vsel %vm2603, %v6421, 0.0
        %6430 = vadd.xlane.f32.xlu0 %v6429
        %v6431 = vpop.xlane.xlu0 %6430
        %v6432 = vsel %vm2603, %v6423, 0.0
        %6433 = vadd.xlane.f32.xlu0 %v6432
        %v6434 = vpop.xlane.xlu0 %6433
        %v6435 = vsel %vm2603, %v6425, 0.0
        %6436 = vadd.xlane.f32.xlu0 %v6435
        %v6437 = vpop.xlane.xlu0 %6436
        %v6438 = vrcp.pop %v6428
        %v6439 = vmul.f32 %v6428, %v6438
        %v6440 = vsub.f32 1.0, %v6439
        %v6441 = vmul.f32 %v6438, %v6440
        %v6442 = vadd.f32 %v6438, %v6441
        %vm6443 = vweird.f32 %v6428
        %vm6444 = vweird.f32 %v6438
        %vm6445 = vmor %vm6443, %vm6444
        %v6446 = vsel %vm6445, %v6438, %v6442
        %v6447 = vand.u32 2147483647, %v6428
        %vm6448 = vcmp.eq.f32.partialorder %v6447, 8.507059e+37
        %v6449 = vand.u32 %v6428, 2147483648
        %v6450 = vor.u32 1.1754944e-38, %v6449
        %v6451 = vsel %vm6448, %v6450, %v6446
        %v6452 = vmul.f32 %v6419, %v6451
        %v6453 = vrcp.pop %v6431
        %v6454 = vmul.f32 %v6431, %v6453
        %v6455 = vsub.f32 1.0, %v6454
        %v6456 = vmul.f32 %v6453, %v6455
        %v6457 = vadd.f32 %v6453, %v6456
        %vm6458 = vweird.f32 %v6431
        %vm6459 = vweird.f32 %v6453
        %vm6460 = vmor %vm6458, %vm6459
        %v6461 = vsel %vm6460, %v6453, %v6457
        %v6462 = vand.u32 2147483647, %v6431
        %vm6463 = vcmp.eq.f32.partialorder %v6462, 8.507059e+37
        %v6464 = vand.u32 %v6431, 2147483648
        %v6465 = vor.u32 1.1754944e-38, %v6464
        %v6466 = vsel %vm6463, %v6465, %v6461
        %v6467 = vmul.f32 %v6421, %v6466
        %v6468 = vrcp.pop %v6434
        %v6469 = vmul.f32 %v6434, %v6468
        %v6470 = vsub.f32 1.0, %v6469
        %v6471 = vmul.f32 %v6468, %v6470
        %v6472 = vadd.f32 %v6468, %v6471
        %vm6473 = vweird.f32 %v6434
        %vm6474 = vweird.f32 %v6468
        %vm6475 = vmor %vm6473, %vm6474
        %v6476 = vsel %vm6475, %v6468, %v6472
        %v6477 = vand.u32 2147483647, %v6434
        %vm6478 = vcmp.eq.f32.partialorder %v6477, 8.507059e+37
        %v6479 = vand.u32 %v6434, 2147483648
        %v6480 = vor.u32 1.1754944e-38, %v6479
        %v6481 = vsel %vm6478, %v6480, %v6476
        %v6482 = vmul.f32 %v6423, %v6481
        %v6483 = vrcp.pop %v6437
        %v6484 = vmul.f32 %v6437, %v6483
        %v6485 = vsub.f32 1.0, %v6484
        %v6486 = vmul.f32 %v6483, %v6485
        %v6487 = vadd.f32 %v6483, %v6486
        %vm6488 = vweird.f32 %v6437
        %vm6489 = vweird.f32 %v6483
        %vm6490 = vmor %vm6488, %vm6489
        %v6491 = vsel %vm6490, %v6483, %v6487
        %v6492 = vand.u32 2147483647, %v6437
        %vm6493 = vcmp.eq.f32.partialorder %v6492, 8.507059e+37
        %v6494 = vand.u32 %v6437, 2147483648
        %v6495 = vor.u32 1.1754944e-38, %v6494
        %v6496 = vsel %vm6493, %v6495, %v6491
        %v6497 = vmul.f32 %v6425, %v6496
        %v6498 = vpack.c.bf16 %v6452, %v6452
        %v6499 = vpack.c.bf16 %v6467, %v6467
        %v6500 = vpack.c.bf16 %v6482, %v6482
        %v6501 = vpack.c.bf16 %v6497, %v6497
        %v6503 = vsel %vm2603, %v6498, 0
        %v6506 = vsel %vm2707, %v6316, 0
        %6508 = vmatpush.bf16.msra.mxu0 0
        %6509 = vmatpush.bf16.msra.mxu0 0
        %6510 = vmatpush.bf16.msra.mxu0 0
        %6511 = vmatpush.bf16.msra.mxu0 0
        %6512 = vmatpush.bf16.msra.mxu0 0
        %6513 = vmatpush.bf16.msra.mxu0 0
        %6514 = vmatpush.bf16.msra.mxu0 0
        %6515 = vmatpush.bf16.msra.mxu0 %v6506
        %6516 = vmatmul.bf16.gmra.mxu0 %v6503
        %v6517 = vpop.f32.mrf.mxu0
        %v6518 = vadd.f32 0.0, %v6517
        %v6519 = vpop.f32.mrf.mxu0
        %6520 = vdwg.mxu0
        %v6522 = vsel %vm2603, %v6499, 0
        %v6525 = vsel %vm2707, %v6319, 0
        %6527 = vmatpush.bf16.msra.mxu0 0
        %6528 = vmatpush.bf16.msra.mxu0 0
        %6529 = vmatpush.bf16.msra.mxu0 0
        %6530 = vmatpush.bf16.msra.mxu0 0
        %6531 = vmatpush.bf16.msra.mxu0 0
        %6532 = vmatpush.bf16.msra.mxu0 0
        %6533 = vmatpush.bf16.msra.mxu0 0
        %6534 = vmatpush.bf16.msra.mxu0 %v6525
        %6535 = vmatmul.bf16.gmra.mxu0 %v6522
        %v6536 = vpop.f32.mrf.mxu0
        %v6537 = vadd.f32 0.0, %v6536
        %v6538 = vpop.f32.mrf.mxu0
        %6539 = vdwg.mxu0
        %v6541 = vsel %vm2603, %v6500, 0
        %v6544 = vsel %vm2707, %v6322, 0
        %6546 = vmatpush.bf16.msra.mxu0 0
        %6547 = vmatpush.bf16.msra.mxu0 0
        %6548 = vmatpush.bf16.msra.mxu0 0
        %6549 = vmatpush.bf16.msra.mxu0 0
        %6550 = vmatpush.bf16.msra.mxu0 0
        %6551 = vmatpush.bf16.msra.mxu0 0
        %6552 = vmatpush.bf16.msra.mxu0 0
        %6553 = vmatpush.bf16.msra.mxu0 %v6544
        %6554 = vmatmul.bf16.gmra.mxu0 %v6541
        %v6555 = vpop.f32.mrf.mxu0
        %v6556 = vadd.f32 0.0, %v6555
        %v6557 = vpop.f32.mrf.mxu0
        %6558 = vdwg.mxu0
        %v6560 = vsel %vm2603, %v6501, 0
        %v6563 = vsel %vm2707, %v6325, 0
        %6565 = vmatpush.bf16.msra.mxu0 0
        %6566 = vmatpush.bf16.msra.mxu0 0
        %6567 = vmatpush.bf16.msra.mxu0 0
        %6568 = vmatpush.bf16.msra.mxu0 0
        %6569 = vmatpush.bf16.msra.mxu0 0
        %6570 = vmatpush.bf16.msra.mxu0 0
        %6571 = vmatpush.bf16.msra.mxu0 0
        %6572 = vmatpush.bf16.msra.mxu0 %v6563
        %6573 = vmatmul.bf16.gmra.mxu0 %v6560
        %v6574 = vpop.f32.mrf.mxu0
        %v6575 = vadd.f32 0.0, %v6574
        %v6576 = vpop.f32.mrf.mxu0
        %6577 = vdwg.mxu0
        %v6578 = vrot.slane %v6556, 4
        %v6579 = vsel %vm2782, %v6578, %v6518
        %v6580 = vrot.slane %v6518, 4
        %v6581 = vsel %vm2782, %v6556, %v6580
        %v6583 = vunpack.c.l.s4 1983009808
        %v6584 = vunpack.c.0.s8 %v6583
        %v6585 = vperm.slane %v6579, %v6584
        %v6587 = vunpack.c.l.s4 1983009808
        %v6588 = vunpack.c.0.s8 %v6587
        %v6589 = vperm.slane %v6581, %v6588
        %v6590 = vrot.slane %v6575, 4
        %v6591 = vsel %vm2782, %v6590, %v6537
        %v6592 = vrot.slane %v6537, 4
        %v6593 = vsel %vm2782, %v6575, %v6592
        %v6595 = vunpack.c.l.s4 1983009808
        %v6596 = vunpack.c.0.s8 %v6595
        %v6597 = vperm.slane %v6591, %v6596
        %v6599 = vunpack.c.l.s4 1983009808
        %v6600 = vunpack.c.0.s8 %v6599
        %v6601 = vperm.slane %v6593, %v6600
        %v6602 = vrot.slane %v6597, 4
        %v6603 = vsel %vm2782, %v6602, %v6585
        %v6604 = vrot.slane %v6585, 4
        %v6605 = vsel %vm2782, %v6597, %v6604
        %v6607 = vunpack.c.l.s4 1934713408
        %v6608 = vunpack.c.0.s8 %v6607
        %v6609 = vperm.slane %v6603, %v6608
        %v6611 = vunpack.c.l.s4 1934713408
        %v6612 = vunpack.c.0.s8 %v6611
        %v6613 = vperm.slane %v6605, %v6612
        %v6614 = vrot.slane %v6601, 4
        %v6615 = vsel %vm2782, %v6614, %v6589
        %v6616 = vrot.slane %v6589, 4
        %v6617 = vsel %vm2782, %v6601, %v6616
        %v6619 = vunpack.c.l.s4 1934713408
        %v6620 = vunpack.c.0.s8 %v6619
        %v6621 = vperm.slane %v6615, %v6620
        %v6623 = vunpack.c.l.s4 1934713408
        %v6624 = vunpack.c.0.s8 %v6623
        %v6625 = vperm.slane %v6617, %v6624
        %v6626 = vrot.slane %v6609, 4
        %v6627 = vsel %vm2782, 0.0, %v6626
        %v6628 = vrot.slane %v6613, 4
        %v6629 = vsel %vm2782, 0.0, %v6628
        %v6630 = vrot.slane %v6621, 4
        %v6631 = vsel %vm2782, 0.0, %v6630
        %v6632 = vrot.slane %v6625, 4
        %v6633 = vsel %vm2782, 0.0, %v6632
        %v6634 = vsel %vm2782, %v6628, %v6609
        %v6636 = vunpack.c.l.s4 1983009808
        %v6637 = vunpack.c.0.s8 %v6636
        %v6638 = vperm.slane %v6634, %v6637
        %v6639 = vrot.slane %v6629, 4
        %v6640 = vsel %vm2782, %v6639, %v6627
        %v6642 = vunpack.c.l.s4 1983009808
        %v6643 = vunpack.c.0.s8 %v6642
        %v6644 = vperm.slane %v6640, %v6643
        %v6645 = vsel %vm2782, %v6632, %v6621
        %v6647 = vunpack.c.l.s4 1983009808
        %v6648 = vunpack.c.0.s8 %v6647
        %v6649 = vperm.slane %v6645, %v6648
        %v6650 = vrot.slane %v6633, 4
        %v6651 = vsel %vm2782, %v6650, %v6631
        %v6653 = vunpack.c.l.s4 1983009808
        %v6654 = vunpack.c.0.s8 %v6653
        %v6655 = vperm.slane %v6651, %v6654
        %v6656 = vrot.slane %v6644, 4
        %v6657 = vsel %vm2782, %v6656, %v6638
        %v6658 = vrot.slane %v6638, 4
        %v6659 = vsel %vm2782, %v6644, %v6658
        %v6661 = vunpack.c.l.s4 1934713408
        %v6662 = vunpack.c.0.s8 %v6661
        %v6663 = vperm.slane %v6657, %v6662
        %v6665 = vunpack.c.l.s4 1934713408
        %v6666 = vunpack.c.0.s8 %v6665
        %v6667 = vperm.slane %v6659, %v6666
        %v6668 = vrot.slane %v6655, 4
        %v6669 = vsel %vm2782, %v6668, %v6649
        %v6670 = vrot.slane %v6649, 4
        %v6671 = vsel %vm2782, %v6655, %v6670
        %v6673 = vunpack.c.l.s4 1934713408
        %v6674 = vunpack.c.0.s8 %v6673
        %v6675 = vperm.slane %v6669, %v6674
        %v6677 = vunpack.c.l.s4 1934713408
        %v6678 = vunpack.c.0.s8 %v6677
        %v6679 = vperm.slane %v6671, %v6678
        %v6680 = vrot.slane %v6675, 4
        %v6681 = vsel %vm2782, %v6680, %v6663
        %v6682 = vrot.slane %v6663, 4
        %v6683 = vsel %vm2782, %v6675, %v6682
        %v6684 = vrot.slane %v6679, 4
        %v6685 = vsel %vm2782, %v6684, %v6667
        %v6686 = vrot.slane %v6667, 4
        %v6687 = vsel %vm2782, %v6679, %v6686
        %6689 = vrot.lane.b32.xlu0 %v6683, 64
        %v6690 = vpop.permute.xlu0 %6689
        %6693 = vrot.lane.b32.xlu0 %v6687, 64
        %v6694 = vpop.permute.xlu0 %6693
        %v6696 = vsel %vm2526, %v6681, %v6690
        %v6697 = vsel %vm2526, %v6685, %v6694
        %s6698 = scalar_lea.vmem %s111, 384
        %v6699 = vld [vmem:[%s6698] sm:$0xf]
        %v6700 = vld [vmem:[%s6698 + $0x4] sm:$0xf]
        %v6701 = vld [vmem:[%s6698 + $0x8] sm:$0xf]
        %v6702 = vld [vmem:[%s6698 + $0xc] sm:$0xf]
        %v6703 = vld [vmem:[%s6698 + $0x10] sm:$0xf]
        %v6704 = vld [vmem:[%s6698 + $0x14] sm:$0xf]
        %v6705 = vld [vmem:[%s6698 + $0x18] sm:$0xf]
        %v6706 = vld [vmem:[%s6698 + $0x1c] sm:$0xf]
        %v6707 = vld [vmem:[%s6698 + $0x20] sm:$0xf]
        %v6708 = vld [vmem:[%s6698 + $0x24] sm:$0xf]
        %v6709 = vld [vmem:[%s6698 + $0x28] sm:$0xf]
        %v6710 = vld [vmem:[%s6698 + $0x2c] sm:$0xf]
        %v6711 = vld [vmem:[%s6698 + $0x30] sm:$0xf]
        %v6712 = vld [vmem:[%s6698 + $0x34] sm:$0xf]
        %v6713 = vld [vmem:[%s6698 + $0x38] sm:$0xf]
        %v6714 = vld [vmem:[%s6698 + $0x3c] sm:$0xf]
        %v6715 = vld [vmem:[%s6698 + $0x40] sm:$0xf]
        %v6716 = vld [vmem:[%s6698 + $0x44] sm:$0xf]
        %v6717 = vld [vmem:[%s6698 + $0x48] sm:$0xf]
        %v6718 = vld [vmem:[%s6698 + $0x4c] sm:$0xf]
        %v6719 = vld [vmem:[%s6698 + $0x50] sm:$0xf]
        %v6720 = vld [vmem:[%s6698 + $0x54] sm:$0xf]
        %v6721 = vld [vmem:[%s6698 + $0x58] sm:$0xf]
        %v6722 = vld [vmem:[%s6698 + $0x5c] sm:$0xf]
        %v6723 = vld [vmem:[%s6698 + $0x60] sm:$0xf]
        %v6724 = vld [vmem:[%s6698 + $0x64] sm:$0xf]
        %v6725 = vld [vmem:[%s6698 + $0x68] sm:$0xf]
        %v6726 = vld [vmem:[%s6698 + $0x6c] sm:$0xf]
        %v6727 = vld [vmem:[%s6698 + $0x70] sm:$0xf]
        %v6728 = vld [vmem:[%s6698 + $0x74] sm:$0xf]
        %v6729 = vld [vmem:[%s6698 + $0x78] sm:$0xf]
        %v6730 = vld [vmem:[%s6698 + $0x7c] sm:$0xf]
        %v6731 = vpack.c.bf16 %v6696, %v6696
        %v6732 = vpack.c.bf16 %v6697, %v6697
        %v6765 = vunpack.c.l.b16 %v6699
        %v6766 = vunpack.c.l.b16 %v6700
        %v6767 = vunpack.c.l.b16 %v6701
        %v6768 = vunpack.c.l.b16 %v6702
        %v6769 = vunpack.c.l.b16 %v6703
        %v6770 = vunpack.c.l.b16 %v6704
        %v6771 = vunpack.c.l.b16 %v6705
        %v6772 = vunpack.c.l.b16 %v6706
        %v6773 = vunpack.c.l.b16 %v6707
        %v6774 = vunpack.c.l.b16 %v6708
        %v6775 = vunpack.c.l.b16 %v6709
        %v6776 = vunpack.c.l.b16 %v6710
        %v6777 = vunpack.c.l.b16 %v6711
        %v6778 = vunpack.c.l.b16 %v6712
        %v6779 = vunpack.c.l.b16 %v6713
        %v6780 = vunpack.c.l.b16 %v6714
        %v6781 = vunpack.c.l.b16 %v6715
        %v6782 = vunpack.c.l.b16 %v6716
        %v6783 = vunpack.c.l.b16 %v6717
        %v6784 = vunpack.c.l.b16 %v6718
        %v6785 = vunpack.c.l.b16 %v6719
        %v6786 = vunpack.c.l.b16 %v6720
        %v6787 = vunpack.c.l.b16 %v6721
        %v6788 = vunpack.c.l.b16 %v6722
        %v6789 = vunpack.c.l.b16 %v6723
        %v6790 = vunpack.c.l.b16 %v6724
        %v6791 = vunpack.c.l.b16 %v6725
        %v6792 = vunpack.c.l.b16 %v6726
        %v6793 = vunpack.c.l.b16 %v6727
        %v6794 = vunpack.c.l.b16 %v6728
        %v6795 = vunpack.c.l.b16 %v6729
        %v6796 = vunpack.c.l.b16 %v6730
        %v6797 = vpack.c.b16 %v6766, %v6765
        %v6798 = vpack.c.b16 %v6768, %v6767
        %v6799 = vpack.c.b16 %v6770, %v6769
        %v6800 = vpack.c.b16 %v6772, %v6771
        %v6801 = vpack.c.b16 %v6774, %v6773
        %v6802 = vpack.c.b16 %v6776, %v6775
        %v6803 = vpack.c.b16 %v6778, %v6777
        %v6804 = vpack.c.b16 %v6780, %v6779
        %v6805 = vpack.c.b16 %v6782, %v6781
        %v6806 = vpack.c.b16 %v6784, %v6783
        %v6807 = vpack.c.b16 %v6786, %v6785
        %v6808 = vpack.c.b16 %v6788, %v6787
        %v6809 = vpack.c.b16 %v6790, %v6789
        %v6810 = vpack.c.b16 %v6792, %v6791
        %v6811 = vpack.c.b16 %v6794, %v6793
        %v6812 = vpack.c.b16 %v6796, %v6795
        %6829 = vmatpush.bf16.msra.mxu0 %v6804
        %6830 = vmatpush.bf16.msra.mxu0 %v6803
        %6831 = vmatpush.bf16.msra.mxu0 %v6802
        %6832 = vmatpush.bf16.msra.mxu0 %v6801
        %6833 = vmatpush.bf16.msra.mxu0 %v6800
        %6834 = vmatpush.bf16.msra.mxu0 %v6799
        %6835 = vmatpush.bf16.msra.mxu0 %v6798
        %6836 = vmatpush.bf16.msra.mxu0 %v6797
        %6837 = vmatmul.bf16.gmra.mxu0 %v6731
        %v6838 = vpop.f32.mrf.mxu0
        %v6839 = vadd.f32 0.0, %v6838
        %v6840 = vpop.f32.mrf.mxu0
        %6841 = vdwg.mxu0
        %6842 = vmatpush.bf16.msra.mxu0 %v6812
        %6843 = vmatpush.bf16.msra.mxu0 %v6811
        %6844 = vmatpush.bf16.msra.mxu0 %v6810
        %6845 = vmatpush.bf16.msra.mxu0 %v6809
        %6846 = vmatpush.bf16.msra.mxu0 %v6808
        %6847 = vmatpush.bf16.msra.mxu0 %v6807
        %6848 = vmatpush.bf16.msra.mxu0 %v6806
        %6849 = vmatpush.bf16.msra.mxu0 %v6805
        %6850 = vmatmul.bf16.gmra.mxu0 %v6732
        %v6851 = vpop.f32.mrf.mxu0
        %v6852 = vadd.f32 %v6839, %v6851
        %v6853 = vpop.f32.mrf.mxu0
        %6854 = vdwg.mxu0
        %v6855 = vadd.f32 %v5761, %v6852
        %s6856 = scalar_lea.vmem %s95, 3
        %v6857 = vld [vmem:[%s6856] sm:$0x1]
        %v6859 = vperm.slane %v6857, 0
        %v6861 = vadd.f32 %v6855, %v6859
        %s6862 = scalar_lea.vmem %s105, 3
        %v6863 = vld [vmem:[%s6862] sm:$0x1]
        %s6864 = scalar_lea.vmem %s103, 3
        %v6865 = vld [vmem:[%s6864] sm:$0x1]
        %v6866 = vsel %vm1959, %v6861, 0.0
        %6867 = vadd.xlane.f32.xlu0 %v6866
        %v6868 = vpop.xlane.xlu0 %6867
        %v6869 = vmul.f32 %v6868, %v1969
        %v6870 = vsub.f32 %v6861, %v6869
        %v6871 = vmul.f32 %v6870, %v6870
        %v6872 = vsel %vm1959, %v6871, 0.0
        %6873 = vadd.xlane.f32.xlu0 %v6872
        %v6874 = vpop.xlane.xlu0 %6873
        %v6875 = vmul.f32 %v6874, %v1969
        %v6876 = vadd.f32 %v6875, 1e-05
        %v6877 = vrsqrt.pop %v6876
        %v6878 = vmul.f32 %v6877, %v6876
        %v6879 = vmul.f32 %v6878, %v6877
        %v6880 = vmul.f32 0.5, %v6879
        %v6881 = vsub.f32 1.5, %v6880
        %v6882 = vmul.f32 %v6877, %v6881
        %vm6883 = vweird.f32 %v6876
        %vm6884 = vweird.f32 %v6877
        %vm6885 = vmor %vm6883, %vm6884
        %v6886 = vsel %vm6885, %v6877, %v6882
        %v6887 = vmul.f32 %v6870, %v6886
        %v6889 = vperm.slane %v6863, 0
        %v6891 = vmul.f32 %v6887, %v6889
        %v6893 = vperm.slane %v6865, 0
        %v6895 = vadd.f32 %v6891, %v6893
        %s6896 = scalar_lea.vmem %s107, 48
        %v6897 = vld [vmem:[%s6896] sm:$0xf]
        %v6898 = vld [vmem:[%s6896 + $0x4] sm:$0xf]
        %v6899 = vld [vmem:[%s6896 + $0x8] sm:$0xf]
        %v6900 = vld [vmem:[%s6896 + $0xc] sm:$0xf]
        %v6901 = vpack.c.bf16 %v6895, %v6895
        %s6902 = scalar_lea.vmem %s91, 3
        %v6903 = vld [vmem:[%s6902] sm:$0x1]
        %v6905 = vperm.slane %v6903, 0
        %v6911 = vunpack.c.l.b16 %v6897
        %v6912 = vunpack.c.l.b16 %v6898
        %v6913 = vunpack.c.l.b16 %v6899
        %v6914 = vunpack.c.l.b16 %v6900
        %v6915 = vpack.c.b16 %v6912, %v6911
        %v6916 = vpack.c.b16 %v6914, %v6913
        %v6920 = vsel %vm1959, %v6901, 0
        %6922 = vmatpush.bf16.msra.mxu0 0
        %6923 = vmatpush.bf16.msra.mxu0 0
        %6924 = vmatpush.bf16.msra.mxu0 0
        %6925 = vmatpush.bf16.msra.mxu0 0
        %6926 = vmatpush.bf16.msra.mxu0 0
        %6927 = vmatpush.bf16.msra.mxu0 0
        %6928 = vmatpush.bf16.msra.mxu0 %v6916
        %6929 = vmatpush.bf16.msra.mxu0 %v6915
        %6930 = vmatmul.bf16.gmra.mxu0 %v6920
        %v6931 = vpop.f32.mrf.mxu0
        %v6932 = vadd.f32 %v6905, %v6931
        %v6933 = vpop.f32.mrf.mxu0
        %6934 = vdwg.mxu0
        %v6935 = vmul.f32 %v6932, 0.5
        %v6936 = vmul.f32 %v6932, 0.044715
        %v6937 = vmul.f32 %v6936, %v6932
        %v6938 = vmul.f32 %v6937, %v6932
        %v6939 = vadd.f32 %v6932, %v6938
        %v6940 = vmul.f32 %v6939, 0.7978846
        %v6941 = vtanh.pop %v6940
        %v6942 = vadd.f32 %v6941, 1.0
        %v6943 = vmul.f32 %v6935, %v6942
        %s6944 = scalar_lea.vmem %s109, 192
        %v6945 = vld [vmem:[%s6944] sm:$0xf]
        %v6946 = vld [vmem:[%s6944 + $0x4] sm:$0xf]
        %v6947 = vld [vmem:[%s6944 + $0x8] sm:$0xf]
        %v6948 = vld [vmem:[%s6944 + $0xc] sm:$0xf]
        %v6949 = vld [vmem:[%s6944 + $0x10] sm:$0xf]
        %v6950 = vld [vmem:[%s6944 + $0x14] sm:$0xf]
        %v6951 = vld [vmem:[%s6944 + $0x18] sm:$0xf]
        %v6952 = vld [vmem:[%s6944 + $0x1c] sm:$0xf]
        %v6953 = vld [vmem:[%s6944 + $0x20] sm:$0xf]
        %v6954 = vld [vmem:[%s6944 + $0x24] sm:$0xf]
        %v6955 = vld [vmem:[%s6944 + $0x28] sm:$0xf]
        %v6956 = vld [vmem:[%s6944 + $0x2c] sm:$0xf]
        %v6957 = vld [vmem:[%s6944 + $0x30] sm:$0xf]
        %v6958 = vld [vmem:[%s6944 + $0x34] sm:$0xf]
        %v6959 = vld [vmem:[%s6944 + $0x38] sm:$0xf]
        %v6960 = vld [vmem:[%s6944 + $0x3c] sm:$0xf]
        %v6961 = vpack.c.bf16 %v6943, %v6943
        %v6978 = vunpack.c.l.b16 %v6945
        %v6979 = vunpack.c.l.b16 %v6946
        %v6980 = vunpack.c.l.b16 %v6947
        %v6981 = vunpack.c.l.b16 %v6948
        %v6982 = vunpack.c.l.b16 %v6949
        %v6983 = vunpack.c.l.b16 %v6950
        %v6984 = vunpack.c.l.b16 %v6951
        %v6985 = vunpack.c.l.b16 %v6952
        %v6986 = vunpack.c.l.b16 %v6953
        %v6987 = vunpack.c.l.b16 %v6954
        %v6988 = vunpack.c.l.b16 %v6955
        %v6989 = vunpack.c.l.b16 %v6956
        %v6990 = vunpack.c.l.b16 %v6957
        %v6991 = vunpack.c.l.b16 %v6958
        %v6992 = vunpack.c.l.b16 %v6959
        %v6993 = vunpack.c.l.b16 %v6960
        %v6994 = vpack.c.b16 %v6979, %v6978
        %v6995 = vpack.c.b16 %v6981, %v6980
        %v6996 = vpack.c.b16 %v6983, %v6982
        %v6997 = vpack.c.b16 %v6985, %v6984
        %v6998 = vpack.c.b16 %v6987, %v6986
        %v6999 = vpack.c.b16 %v6989, %v6988
        %v7000 = vpack.c.b16 %v6991, %v6990
        %v7001 = vpack.c.b16 %v6993, %v6992
        %7010 = vmatpush.bf16.msra.mxu0 %v7001
        %7011 = vmatpush.bf16.msra.mxu0 %v7000
        %7012 = vmatpush.bf16.msra.mxu0 %v6999
        %7013 = vmatpush.bf16.msra.mxu0 %v6998
        %7014 = vmatpush.bf16.msra.mxu0 %v6997
        %7015 = vmatpush.bf16.msra.mxu0 %v6996
        %7016 = vmatpush.bf16.msra.mxu0 %v6995
        %7017 = vmatpush.bf16.msra.mxu0 %v6994
        %7018 = vmatmul.bf16.gmra.mxu0 %v6961
        %v7019 = vpop.f32.mrf.mxu0
        %v7020 = vadd.f32 0.0, %v7019
        %v7021 = vpop.f32.mrf.mxu0
        %7022 = vdwg.mxu0
        %v7023 = vadd.f32 %v6861, %v7020
        %s7024 = scalar_lea.vmem %s93, 3
        %v7025 = vld [vmem:[%s7024] sm:$0x1]
        %v7027 = vperm.slane %v7025, 0
        %v7029 = vadd.f32 %v7023, %v7027
        %v7030 = vld [vmem:[%s27] sm:$0x1]
        %v7031 = vld [vmem:[%s25] sm:$0x1]
        %v7032 = vsel %vm1959, %v7029, 0.0
        %7033 = vadd.xlane.f32.xlu0 %v7032
        %v7034 = vpop.xlane.xlu0 %7033
        %v7035 = vmul.f32 %v7034, %v1969
        %v7036 = vsub.f32 %v7029, %v7035
        %v7037 = vmul.f32 %v7036, %v7036
        %v7038 = vsel %vm1959, %v7037, 0.0
        %7039 = vadd.xlane.f32.xlu0 %v7038
        %v7040 = vpop.xlane.xlu0 %7039
        %v7041 = vmul.f32 %v7040, %v1969
        %v7042 = vadd.f32 %v7041, 1e-05
        %v7043 = vrsqrt.pop %v7042
        %v7044 = vmul.f32 %v7043, %v7042
        %v7045 = vmul.f32 %v7044, %v7043
        %v7046 = vmul.f32 0.5, %v7045
        %v7047 = vsub.f32 1.5, %v7046
        %v7048 = vmul.f32 %v7043, %v7047
        %vm7049 = vweird.f32 %v7042
        %vm7050 = vweird.f32 %v7043
        %vm7051 = vmor %vm7049, %vm7050
        %v7052 = vsel %vm7051, %v7043, %v7048
        %v7053 = vmul.f32 %v7036, %v7052
        %v7055 = vperm.slane %v7030, 0
        %v7057 = vmul.f32 %v7053, %v7055
        %v7059 = vperm.slane %v7031, 0
        %v7061 = vadd.f32 %v7057, %v7059
        %v7062 = vld [vmem:[%s19] sm:$0x1]
        %v7063 = vld [vmem:[%s17] sm:$0x1]
        %v7064 = vsel %vm1959, %v1953, 0.0
        %7065 = vadd.xlane.f32.xlu0 %v7064
        %v7066 = vpop.xlane.xlu0 %7065
        %v7067 = vmul.f32 %v7066, %v1969
        %v7068 = vsub.f32 %v1953, %v7067
        %v7069 = vmul.f32 %v7068, %v7068
        %v7070 = vsel %vm1959, %v7069, 0.0
        %7071 = vadd.xlane.f32.xlu0 %v7070
        %v7072 = vpop.xlane.xlu0 %7071
        %v7073 = vmul.f32 %v7072, %v1969
        %v7074 = vadd.f32 %v7073, 1e-05
        %v7075 = vrsqrt.pop %v7074
        %v7076 = vmul.f32 %v7075, %v7074
        %v7077 = vmul.f32 %v7076, %v7075
        %v7078 = vmul.f32 0.5, %v7077
        %v7079 = vsub.f32 1.5, %v7078
        %v7080 = vmul.f32 %v7075, %v7079
        %vm7081 = vweird.f32 %v7074
        %vm7082 = vweird.f32 %v7075
        %vm7083 = vmor %vm7081, %vm7082
        %v7084 = vsel %vm7083, %v7075, %v7080
        %v7085 = vmul.f32 %v7068, %v7084
        %v7087 = vperm.slane %v7062, 0
        %v7089 = vmul.f32 %v7085, %v7087
        %v7091 = vperm.slane %v7063, 0
        %v7093 = vadd.f32 %v7089, %v7091
        %v7094 = vld [vmem:[%s37] sm:$0xf]
        %v7095 = vld [vmem:[%s37 + $0x4] sm:$0xf]
        %v7096 = vld [vmem:[%s37 + $0x8] sm:$0xf]
        %v7097 = vld [vmem:[%s37 + $0xc] sm:$0xf]
        %v7098 = vpack.c.bf16 %v7061, %v7061
        %v7099 = vld [vmem:[%s13] sm:$0x1]
        %v7101 = vperm.slane %v7099, 0
        %v7107 = vunpack.c.l.b16 %v7094
        %v7108 = vunpack.c.l.b16 %v7095
        %v7109 = vunpack.c.l.b16 %v7096
        %v7110 = vunpack.c.l.b16 %v7097
        %v7111 = vpack.c.b16 %v7108, %v7107
        %v7112 = vpack.c.b16 %v7110, %v7109
        %v7116 = vsel %vm1959, %v7098, 0
        %7118 = vmatpush.bf16.msra.mxu0 0
        %7119 = vmatpush.bf16.msra.mxu0 0
        %7120 = vmatpush.bf16.msra.mxu0 0
        %7121 = vmatpush.bf16.msra.mxu0 0
        %7122 = vmatpush.bf16.msra.mxu0 0
        %7123 = vmatpush.bf16.msra.mxu0 0
        %7124 = vmatpush.bf16.msra.mxu0 %v7112
        %7125 = vmatpush.bf16.msra.mxu0 %v7111
        %7126 = vmatmul.bf16.gmra.mxu0 %v7116
        %v7127 = vpop.f32.mrf.mxu0
        %v7128 = vadd.f32 %v7101, %v7127
        %v7129 = vpop.f32.mrf.mxu0
        %7130 = vdwg.mxu0
        %v7131 = vld [vmem:[%s33] sm:$0xf]
        %v7132 = vld [vmem:[%s33 + $0x4] sm:$0xf]
        %v7133 = vld [vmem:[%s33 + $0x8] sm:$0xf]
        %v7134 = vld [vmem:[%s33 + $0xc] sm:$0xf]
        %v7135 = vpack.c.bf16 %v7093, %v7093
        %v7136 = vld [vmem:[%s9] sm:$0x1]
        %v7138 = vperm.slane %v7136, 0
        %v7144 = vunpack.c.l.b16 %v7131
        %v7145 = vunpack.c.l.b16 %v7132
        %v7146 = vunpack.c.l.b16 %v7133
        %v7147 = vunpack.c.l.b16 %v7134
        %v7148 = vpack.c.b16 %v7145, %v7144
        %v7149 = vpack.c.b16 %v7147, %v7146
        %v7153 = vsel %vm1959, %v7135, 0
        %7155 = vmatpush.bf16.msra.mxu0 0
        %7156 = vmatpush.bf16.msra.mxu0 0
        %7157 = vmatpush.bf16.msra.mxu0 0
        %7158 = vmatpush.bf16.msra.mxu0 0
        %7159 = vmatpush.bf16.msra.mxu0 0
        %7160 = vmatpush.bf16.msra.mxu0 0
        %7161 = vmatpush.bf16.msra.mxu0 %v7149
        %7162 = vmatpush.bf16.msra.mxu0 %v7148
        %7163 = vmatmul.bf16.gmra.mxu0 %v7153
        %v7164 = vpop.f32.mrf.mxu0
        %v7165 = vadd.f32 %v7138, %v7164
        %v7166 = vpop.f32.mrf.mxu0
        %7167 = vdwg.mxu0
        %v7168 = vld [vmem:[%s39] sm:$0xf]
        %v7169 = vld [vmem:[%s39 + $0x4] sm:$0xf]
        %v7170 = vld [vmem:[%s39 + $0x8] sm:$0xf]
        %v7171 = vld [vmem:[%s39 + $0xc] sm:$0xf]
        %v7172 = vld [vmem:[%s15] sm:$0x1]
        %v7174 = vperm.slane %v7172, 0
        %v7180 = vunpack.c.l.b16 %v7168
        %v7181 = vunpack.c.l.b16 %v7169
        %v7182 = vunpack.c.l.b16 %v7170
        %v7183 = vunpack.c.l.b16 %v7171
        %v7184 = vpack.c.b16 %v7181, %v7180
        %v7185 = vpack.c.b16 %v7183, %v7182
        %7188 = vmatpush.bf16.msra.mxu0 0
        %7189 = vmatpush.bf16.msra.mxu0 0
        %7190 = vmatpush.bf16.msra.mxu0 0
        %7191 = vmatpush.bf16.msra.mxu0 0
        %7192 = vmatpush.bf16.msra.mxu0 0
        %7193 = vmatpush.bf16.msra.mxu0 0
        %7194 = vmatpush.bf16.msra.mxu0 %v7185
        %7195 = vmatpush.bf16.msra.mxu0 %v7184
        %7196 = vmatmul.bf16.gmra.mxu0 %v7153
        %v7197 = vpop.f32.mrf.mxu0
        %v7198 = vadd.f32 %v7174, %v7197
        %v7199 = vpop.f32.mrf.mxu0
        %7200 = vdwg.mxu0
        %v7201 = vpack.c.bf16 %v7128, %v7128
        %v7202 = vpack.c.bf16 %v7165, %v7165
        %v7204 = vsel %vm2526, %v7201, 0
        %v7207 = vsel %vm2526, %v7202, 0
        %7209 = vmatpush.bf16.xpose.msra.mxu0 0
        %7210 = vmatpush.bf16.xpose.msra.mxu0 0
        %7211 = vmatpush.bf16.xpose.msra.mxu0 0
        %7212 = vmatpush.bf16.xpose.msra.mxu0 0
        %7213 = vmatpush.bf16.xpose.msra.mxu0 0
        %7214 = vmatpush.bf16.xpose.msra.mxu0 0
        %7215 = vmatpush.bf16.xpose.msra.mxu0 0
        %7216 = vmatpush.bf16.xpose.msra.mxu0 %v7207
        %7217 = vmatmul.bf16.gmra.mxu0 %v7204
        %v7218 = vpop.f32.mrf.mxu0
        %v7219 = vadd.f32 0.0, %v7218
        %v7220 = vpop.f32.mrf.mxu0
        %7221 = vdwg.mxu0
        %v7222 = vsel %vm2603, %v7219, -inf
        %7223 = vmax.xlane.f32.xlu0 %v7222
        %v7224 = vpop.xlane.xlu0 %7223
        %v7225 = vsub.f32 %v7219, %v7224
        %v7226 = vmul.f32 %v7225, 1.442695
        %v7227 = vpow.pop %v7226
        %v7228 = vsel %vm2603, %v7227, 0.0
        %7229 = vadd.xlane.f32.xlu0 %v7228
        %v7230 = vpop.xlane.xlu0 %7229
        %v7231 = vrcp.pop %v7230
        %v7232 = vmul.f32 %v7230, %v7231
        %v7233 = vsub.f32 1.0, %v7232
        %v7234 = vmul.f32 %v7231, %v7233
        %v7235 = vadd.f32 %v7231, %v7234
        %vm7236 = vweird.f32 %v7230
        %vm7237 = vweird.f32 %v7231
        %vm7238 = vmor %vm7236, %vm7237
        %v7239 = vsel %vm7238, %v7231, %v7235
        %v7240 = vand.u32 2147483647, %v7230
        %vm7241 = vcmp.eq.f32.partialorder %v7240, 8.507059e+37
        %v7242 = vand.u32 %v7230, 2147483648
        %v7243 = vor.u32 1.1754944e-38, %v7242
        %v7244 = vsel %vm7241, %v7243, %v7239
        %v7245 = vmul.f32 %v7227, %v7244
        %v7246 = vpack.c.bf16 %v7245, %v7245
        %v7247 = vpack.c.bf16 %v7198, %v7198
        %v7249 = vsel %vm2603, %v7246, 0
        %v7252 = vsel %vm2707, %v7247, 0
        %7254 = vmatpush.bf16.msra.mxu0 0
        %7255 = vmatpush.bf16.msra.mxu0 0
        %7256 = vmatpush.bf16.msra.mxu0 0
        %7257 = vmatpush.bf16.msra.mxu0 0
        %7258 = vmatpush.bf16.msra.mxu0 0
        %7259 = vmatpush.bf16.msra.mxu0 0
        %7260 = vmatpush.bf16.msra.mxu0 0
        %7261 = vmatpush.bf16.msra.mxu0 %v7252
        %7262 = vmatmul.bf16.gmra.mxu0 %v7249
        %v7263 = vpop.f32.mrf.mxu0
        %v7264 = vadd.f32 0.0, %v7263
        %v7265 = vpop.f32.mrf.mxu0
        %7266 = vdwg.mxu0
        %v7267 = vld [vmem:[%s35] sm:$0xf]
        %v7268 = vld [vmem:[%s35 + $0x4] sm:$0xf]
        %v7269 = vld [vmem:[%s35 + $0x8] sm:$0xf]
        %v7270 = vld [vmem:[%s35 + $0xc] sm:$0xf]
        %v7271 = vld [vmem:[%s35 + $0x10] sm:$0xf]
        %v7272 = vld [vmem:[%s35 + $0x14] sm:$0xf]
        %v7273 = vld [vmem:[%s35 + $0x18] sm:$0xf]
        %v7274 = vld [vmem:[%s35 + $0x1c] sm:$0xf]
        %v7275 = vpack.c.bf16 %v7264, %v7264
        %v7284 = vunpack.c.l.b16 %v7267
        %v7285 = vunpack.c.l.b16 %v7268
        %v7286 = vunpack.c.l.b16 %v7269
        %v7287 = vunpack.c.l.b16 %v7270
        %v7288 = vunpack.c.l.b16 %v7271
        %v7289 = vunpack.c.l.b16 %v7272
        %v7290 = vunpack.c.l.b16 %v7273
        %v7291 = vunpack.c.l.b16 %v7274
        %v7292 = vpack.c.b16 %v7285, %v7284
        %v7293 = vpack.c.b16 %v7287, %v7286
        %v7294 = vpack.c.b16 %v7289, %v7288
        %v7295 = vpack.c.b16 %v7291, %v7290
        %v7301 = vsel %vm2526, %v7275, 0
        %7303 = vmatpush.bf16.msra.mxu0 0
        %7304 = vmatpush.bf16.msra.mxu0 0
        %7305 = vmatpush.bf16.msra.mxu0 0
        %7306 = vmatpush.bf16.msra.mxu0 0
        %7307 = vmatpush.bf16.msra.mxu0 %v7295
        %7308 = vmatpush.bf16.msra.mxu0 %v7294
        %7309 = vmatpush.bf16.msra.mxu0 %v7293
        %7310 = vmatpush.bf16.msra.mxu0 %v7292
        %7311 = vmatmul.bf16.gmra.mxu0 %v7301
        %v7312 = vpop.f32.mrf.mxu0
        %v7313 = vadd.f32 0.0, %v7312
        %v7314 = vpop.f32.mrf.mxu0
        %7315 = vdwg.mxu0
        %v7316 = vadd.f32 %v7029, %v7313
        %v7317 = vld [vmem:[%s11] sm:$0x1]
        %v7319 = vperm.slane %v7317, 0
        %v7321 = vadd.f32 %v7316, %v7319
        %v7322 = vld [vmem:[%s23] sm:$0x1]
        %v7323 = vld [vmem:[%s21] sm:$0x1]
        %v7324 = vsel %vm1959, %v7321, 0.0
        %7325 = vadd.xlane.f32.xlu0 %v7324
        %v7326 = vpop.xlane.xlu0 %7325
        %v7327 = vmul.f32 %v7326, %v1969
        %v7328 = vsub.f32 %v7321, %v7327
        %v7329 = vmul.f32 %v7328, %v7328
        %v7330 = vsel %vm1959, %v7329, 0.0
        %7331 = vadd.xlane.f32.xlu0 %v7330
        %v7332 = vpop.xlane.xlu0 %7331
        %v7333 = vmul.f32 %v7332, %v1969
        %v7334 = vadd.f32 %v7333, 1e-05
        %v7335 = vrsqrt.pop %v7334
        %v7336 = vmul.f32 %v7335, %v7334
        %v7337 = vmul.f32 %v7336, %v7335
        %v7338 = vmul.f32 0.5, %v7337
        %v7339 = vsub.f32 1.5, %v7338
        %v7340 = vmul.f32 %v7335, %v7339
        %vm7341 = vweird.f32 %v7334
        %vm7342 = vweird.f32 %v7335
        %vm7343 = vmor %vm7341, %vm7342
        %v7344 = vsel %vm7343, %v7335, %v7340
        %v7345 = vmul.f32 %v7328, %v7344
        %v7347 = vperm.slane %v7322, 0
        %v7349 = vmul.f32 %v7345, %v7347
        %v7351 = vperm.slane %v7323, 0
        %v7353 = vadd.f32 %v7349, %v7351
        %v7354 = vld [vmem:[%s29] sm:$0xf]
        %v7355 = vld [vmem:[%s29 + $0x4] sm:$0xf]
        %v7356 = vld [vmem:[%s29 + $0x8] sm:$0xf]
        %v7357 = vld [vmem:[%s29 + $0xc] sm:$0xf]
        %v7358 = vpack.c.bf16 %v7353, %v7353
        %v7359 = vld [vmem:[%s5] sm:$0x1]
        %v7361 = vperm.slane %v7359, 0
        %v7367 = vunpack.c.l.b16 %v7354
        %v7368 = vunpack.c.l.b16 %v7355
        %v7369 = vunpack.c.l.b16 %v7356
        %v7370 = vunpack.c.l.b16 %v7357
        %v7371 = vpack.c.b16 %v7368, %v7367
        %v7372 = vpack.c.b16 %v7370, %v7369
        %v7376 = vsel %vm1959, %v7358, 0
        %7378 = vmatpush.bf16.msra.mxu0 0
        %7379 = vmatpush.bf16.msra.mxu0 0
        %7380 = vmatpush.bf16.msra.mxu0 0
        %7381 = vmatpush.bf16.msra.mxu0 0
        %7382 = vmatpush.bf16.msra.mxu0 0
        %7383 = vmatpush.bf16.msra.mxu0 0
        %7384 = vmatpush.bf16.msra.mxu0 %v7372
        %7385 = vmatpush.bf16.msra.mxu0 %v7371
        %7386 = vmatmul.bf16.gmra.mxu0 %v7376
        %v7387 = vpop.f32.mrf.mxu0
        %v7388 = vadd.f32 %v7361, %v7387
        %v7389 = vpop.f32.mrf.mxu0
        %7390 = vdwg.mxu0
        %v7391 = vmul.f32 %v7388, 0.5
        %v7392 = vmul.f32 %v7388, 0.044715
        %v7393 = vmul.f32 %v7392, %v7388
        %v7394 = vmul.f32 %v7393, %v7388
        %v7395 = vadd.f32 %v7388, %v7394
        %v7396 = vmul.f32 %v7395, 0.7978846
        %v7397 = vtanh.pop %v7396
        %v7398 = vadd.f32 %v7397, 1.0
        %v7399 = vmul.f32 %v7391, %v7398
        %v7400 = vld [vmem:[%s31] sm:$0xf]
        %v7401 = vld [vmem:[%s31 + $0x4] sm:$0xf]
        %v7402 = vld [vmem:[%s31 + $0x8] sm:$0xf]
        %v7403 = vld [vmem:[%s31 + $0xc] sm:$0xf]
        %v7404 = vld [vmem:[%s31 + $0x10] sm:$0xf]
        %v7405 = vld [vmem:[%s31 + $0x14] sm:$0xf]
        %v7406 = vld [vmem:[%s31 + $0x18] sm:$0xf]
        %v7407 = vld [vmem:[%s31 + $0x1c] sm:$0xf]
        %v7408 = vld [vmem:[%s31 + $0x20] sm:$0xf]
        %v7409 = vld [vmem:[%s31 + $0x24] sm:$0xf]
        %v7410 = vld [vmem:[%s31 + $0x28] sm:$0xf]
        %v7411 = vld [vmem:[%s31 + $0x2c] sm:$0xf]
        %v7412 = vld [vmem:[%s31 + $0x30] sm:$0xf]
        %v7413 = vld [vmem:[%s31 + $0x34] sm:$0xf]
        %v7414 = vld [vmem:[%s31 + $0x38] sm:$0xf]
        %v7415 = vld [vmem:[%s31 + $0x3c] sm:$0xf]
        %v7416 = vpack.c.bf16 %v7399, %v7399
        %v7433 = vunpack.c.l.b16 %v7400
        %v7434 = vunpack.c.l.b16 %v7401
        %v7435 = vunpack.c.l.b16 %v7402
        %v7436 = vunpack.c.l.b16 %v7403
        %v7437 = vunpack.c.l.b16 %v7404
        %v7438 = vunpack.c.l.b16 %v7405
        %v7439 = vunpack.c.l.b16 %v7406
        %v7440 = vunpack.c.l.b16 %v7407
        %v7441 = vunpack.c.l.b16 %v7408
        %v7442 = vunpack.c.l.b16 %v7409
        %v7443 = vunpack.c.l.b16 %v7410
        %v7444 = vunpack.c.l.b16 %v7411
        %v7445 = vunpack.c.l.b16 %v7412
        %v7446 = vunpack.c.l.b16 %v7413
        %v7447 = vunpack.c.l.b16 %v7414
        %v7448 = vunpack.c.l.b16 %v7415
        %v7449 = vpack.c.b16 %v7434, %v7433
        %v7450 = vpack.c.b16 %v7436, %v7435
        %v7451 = vpack.c.b16 %v7438, %v7437
        %v7452 = vpack.c.b16 %v7440, %v7439
        %v7453 = vpack.c.b16 %v7442, %v7441
        %v7454 = vpack.c.b16 %v7444, %v7443
        %v7455 = vpack.c.b16 %v7446, %v7445
        %v7456 = vpack.c.b16 %v7448, %v7447
        %7465 = vmatpush.bf16.msra.mxu0 %v7456
        %7466 = vmatpush.bf16.msra.mxu0 %v7455
        %7467 = vmatpush.bf16.msra.mxu0 %v7454
        %7468 = vmatpush.bf16.msra.mxu0 %v7453
        %7469 = vmatpush.bf16.msra.mxu0 %v7452
        %7470 = vmatpush.bf16.msra.mxu0 %v7451
        %7471 = vmatpush.bf16.msra.mxu0 %v7450
        %7472 = vmatpush.bf16.msra.mxu0 %v7449
        %7473 = vmatmul.bf16.gmra.mxu0 %v7416
        %v7474 = vpop.f32.mrf.mxu0
        %v7475 = vadd.f32 0.0, %v7474
        %v7476 = vpop.f32.mrf.mxu0
        %7477 = vdwg.mxu0
        %v7478 = vadd.f32 %v7321, %v7475
        %v7479 = vld [vmem:[%s7] sm:$0x1]
        %v7481 = vperm.slane %v7479, 0
        %v7483 = vadd.f32 %v7478, %v7481
        %s7484 = scalar_lea.vmem %s27, 1
        %v7485 = vld [vmem:[%s7484] sm:$0x1]
        %s7486 = scalar_lea.vmem %s25, 1
        %v7487 = vld [vmem:[%s7486] sm:$0x1]
        %v7488 = vsel %vm1959, %v7483, 0.0
        %7489 = vadd.xlane.f32.xlu0 %v7488
        %v7490 = vpop.xlane.xlu0 %7489
        %v7491 = vmul.f32 %v7490, %v1969
        %v7492 = vsub.f32 %v7483, %v7491
        %v7493 = vmul.f32 %v7492, %v7492
        %v7494 = vsel %vm1959, %v7493, 0.0
        %7495 = vadd.xlane.f32.xlu0 %v7494
        %v7496 = vpop.xlane.xlu0 %7495
        %v7497 = vmul.f32 %v7496, %v1969
        %v7498 = vadd.f32 %v7497, 1e-05
        %v7499 = vrsqrt.pop %v7498
        %v7500 = vmul.f32 %v7499, %v7498
        %v7501 = vmul.f32 %v7500, %v7499
        %v7502 = vmul.f32 0.5, %v7501
        %v7503 = vsub.f32 1.5, %v7502
        %v7504 = vmul.f32 %v7499, %v7503
        %vm7505 = vweird.f32 %v7498
        %vm7506 = vweird.f32 %v7499
        %vm7507 = vmor %vm7505, %vm7506
        %v7508 = vsel %vm7507, %v7499, %v7504
        %v7509 = vmul.f32 %v7492, %v7508
        %v7511 = vperm.slane %v7485, 0
        %v7513 = vmul.f32 %v7509, %v7511
        %v7515 = vperm.slane %v7487, 0
        %v7517 = vadd.f32 %v7513, %v7515
        %s7518 = scalar_lea.vmem %s19, 1
        %v7519 = vld [vmem:[%s7518] sm:$0x1]
        %s7520 = scalar_lea.vmem %s17, 1
        %v7521 = vld [vmem:[%s7520] sm:$0x1]
        %v7523 = vperm.slane %v7519, 0
        %v7525 = vmul.f32 %v7085, %v7523
        %v7527 = vperm.slane %v7521, 0
        %v7529 = vadd.f32 %v7525, %v7527
        %s7530 = scalar_lea.vmem %s37, 16
        %v7531 = vld [vmem:[%s7530] sm:$0xf]
        %v7532 = vld [vmem:[%s7530 + $0x4] sm:$0xf]
        %v7533 = vld [vmem:[%s7530 + $0x8] sm:$0xf]
        %v7534 = vld [vmem:[%s7530 + $0xc] sm:$0xf]
        %v7535 = vpack.c.bf16 %v7517, %v7517
        %s7536 = scalar_lea.vmem %s13, 1
        %v7537 = vld [vmem:[%s7536] sm:$0x1]
        %v7539 = vperm.slane %v7537, 0
        %v7545 = vunpack.c.l.b16 %v7531
        %v7546 = vunpack.c.l.b16 %v7532
        %v7547 = vunpack.c.l.b16 %v7533
        %v7548 = vunpack.c.l.b16 %v7534
        %v7549 = vpack.c.b16 %v7546, %v7545
        %v7550 = vpack.c.b16 %v7548, %v7547
        %v7554 = vsel %vm1959, %v7535, 0
        %7556 = vmatpush.bf16.msra.mxu0 0
        %7557 = vmatpush.bf16.msra.mxu0 0
        %7558 = vmatpush.bf16.msra.mxu0 0
        %7559 = vmatpush.bf16.msra.mxu0 0
        %7560 = vmatpush.bf16.msra.mxu0 0
        %7561 = vmatpush.bf16.msra.mxu0 0
        %7562 = vmatpush.bf16.msra.mxu0 %v7550
        %7563 = vmatpush.bf16.msra.mxu0 %v7549
        %7564 = vmatmul.bf16.gmra.mxu0 %v7554
        %v7565 = vpop.f32.mrf.mxu0
        %v7566 = vadd.f32 %v7539, %v7565
        %v7567 = vpop.f32.mrf.mxu0
        %7568 = vdwg.mxu0
        %s7569 = scalar_lea.vmem %s33, 16
        %v7570 = vld [vmem:[%s7569] sm:$0xf]
        %v7571 = vld [vmem:[%s7569 + $0x4] sm:$0xf]
        %v7572 = vld [vmem:[%s7569 + $0x8] sm:$0xf]
        %v7573 = vld [vmem:[%s7569 + $0xc] sm:$0xf]
        %v7574 = vpack.c.bf16 %v7529, %v7529
        %s7575 = scalar_lea.vmem %s9, 1
        %v7576 = vld [vmem:[%s7575] sm:$0x1]
        %v7578 = vperm.slane %v7576, 0
        %v7584 = vunpack.c.l.b16 %v7570
        %v7585 = vunpack.c.l.b16 %v7571
        %v7586 = vunpack.c.l.b16 %v7572
        %v7587 = vunpack.c.l.b16 %v7573
        %v7588 = vpack.c.b16 %v7585, %v7584
        %v7589 = vpack.c.b16 %v7587, %v7586
        %v7593 = vsel %vm1959, %v7574, 0
        %7595 = vmatpush.bf16.msra.mxu0 0
        %7596 = vmatpush.bf16.msra.mxu0 0
        %7597 = vmatpush.bf16.msra.mxu0 0
        %7598 = vmatpush.bf16.msra.mxu0 0
        %7599 = vmatpush.bf16.msra.mxu0 0
        %7600 = vmatpush.bf16.msra.mxu0 0
        %7601 = vmatpush.bf16.msra.mxu0 %v7589
        %7602 = vmatpush.bf16.msra.mxu0 %v7588
        %7603 = vmatmul.bf16.gmra.mxu0 %v7593
        %v7604 = vpop.f32.mrf.mxu0
        %v7605 = vadd.f32 %v7578, %v7604
        %v7606 = vpop.f32.mrf.mxu0
        %7607 = vdwg.mxu0
        %s7608 = scalar_lea.vmem %s39, 16
        %v7609 = vld [vmem:[%s7608] sm:$0xf]
        %v7610 = vld [vmem:[%s7608 + $0x4] sm:$0xf]
        %v7611 = vld [vmem:[%s7608 + $0x8] sm:$0xf]
        %v7612 = vld [vmem:[%s7608 + $0xc] sm:$0xf]
        %s7613 = scalar_lea.vmem %s15, 1
        %v7614 = vld [vmem:[%s7613] sm:$0x1]
        %v7616 = vperm.slane %v7614, 0
        %v7622 = vunpack.c.l.b16 %v7609
        %v7623 = vunpack.c.l.b16 %v7610
        %v7624 = vunpack.c.l.b16 %v7611
        %v7625 = vunpack.c.l.b16 %v7612
        %v7626 = vpack.c.b16 %v7623, %v7622
        %v7627 = vpack.c.b16 %v7625, %v7624
        %7630 = vmatpush.bf16.msra.mxu0 0
        %7631 = vmatpush.bf16.msra.mxu0 0
        %7632 = vmatpush.bf16.msra.mxu0 0
        %7633 = vmatpush.bf16.msra.mxu0 0
        %7634 = vmatpush.bf16.msra.mxu0 0
        %7635 = vmatpush.bf16.msra.mxu0 0
        %7636 = vmatpush.bf16.msra.mxu0 %v7627
        %7637 = vmatpush.bf16.msra.mxu0 %v7626
        %7638 = vmatmul.bf16.gmra.mxu0 %v7593
        %v7639 = vpop.f32.mrf.mxu0
        %v7640 = vadd.f32 %v7616, %v7639
        %v7641 = vpop.f32.mrf.mxu0
        %7642 = vdwg.mxu0
        %v7643 = vpack.c.bf16 %v7566, %v7566
        %v7644 = vpack.c.bf16 %v7605, %v7605
        %v7646 = vsel %vm2526, %v7643, 0
        %v7649 = vsel %vm2526, %v7644, 0
        %7651 = vmatpush.bf16.xpose.msra.mxu0 0
        %7652 = vmatpush.bf16.xpose.msra.mxu0 0
        %7653 = vmatpush.bf16.xpose.msra.mxu0 0
        %7654 = vmatpush.bf16.xpose.msra.mxu0 0
        %7655 = vmatpush.bf16.xpose.msra.mxu0 0
        %7656 = vmatpush.bf16.xpose.msra.mxu0 0
        %7657 = vmatpush.bf16.xpose.msra.mxu0 0
        %7658 = vmatpush.bf16.xpose.msra.mxu0 %v7649
        %7659 = vmatmul.bf16.gmra.mxu0 %v7646
        %v7660 = vpop.f32.mrf.mxu0
        %v7661 = vadd.f32 0.0, %v7660
        %v7662 = vpop.f32.mrf.mxu0
        %7663 = vdwg.mxu0
        %v7664 = vsel %vm2603, %v7661, -inf
        %7665 = vmax.xlane.f32.xlu0 %v7664
        %v7666 = vpop.xlane.xlu0 %7665
        %v7667 = vsub.f32 %v7661, %v7666
        %v7668 = vmul.f32 %v7667, 1.442695
        %v7669 = vpow.pop %v7668
        %v7670 = vsel %vm2603, %v7669, 0.0
        %7671 = vadd.xlane.f32.xlu0 %v7670
        %v7672 = vpop.xlane.xlu0 %7671
        %v7673 = vrcp.pop %v7672
        %v7674 = vmul.f32 %v7672, %v7673
        %v7675 = vsub.f32 1.0, %v7674
        %v7676 = vmul.f32 %v7673, %v7675
        %v7677 = vadd.f32 %v7673, %v7676
        %vm7678 = vweird.f32 %v7672
        %vm7679 = vweird.f32 %v7673
        %vm7680 = vmor %vm7678, %vm7679
        %v7681 = vsel %vm7680, %v7673, %v7677
        %v7682 = vand.u32 2147483647, %v7672
        %vm7683 = vcmp.eq.f32.partialorder %v7682, 8.507059e+37
        %v7684 = vand.u32 %v7672, 2147483648
        %v7685 = vor.u32 1.1754944e-38, %v7684
        %v7686 = vsel %vm7683, %v7685, %v7681
        %v7687 = vmul.f32 %v7669, %v7686
        %v7688 = vpack.c.bf16 %v7687, %v7687
        %v7689 = vpack.c.bf16 %v7640, %v7640
        %v7691 = vsel %vm2603, %v7688, 0
        %v7694 = vsel %vm2707, %v7689, 0
        %7696 = vmatpush.bf16.msra.mxu0 0
        %7697 = vmatpush.bf16.msra.mxu0 0
        %7698 = vmatpush.bf16.msra.mxu0 0
        %7699 = vmatpush.bf16.msra.mxu0 0
        %7700 = vmatpush.bf16.msra.mxu0 0
        %7701 = vmatpush.bf16.msra.mxu0 0
        %7702 = vmatpush.bf16.msra.mxu0 0
        %7703 = vmatpush.bf16.msra.mxu0 %v7694
        %7704 = vmatmul.bf16.gmra.mxu0 %v7691
        %v7705 = vpop.f32.mrf.mxu0
        %v7706 = vadd.f32 0.0, %v7705
        %v7707 = vpop.f32.mrf.mxu0
        %7708 = vdwg.mxu0
        %s7709 = scalar_lea.vmem %s35, 32
        %v7710 = vld [vmem:[%s7709] sm:$0xf]
        %v7711 = vld [vmem:[%s7709 + $0x4] sm:$0xf]
        %v7712 = vld [vmem:[%s7709 + $0x8] sm:$0xf]
        %v7713 = vld [vmem:[%s7709 + $0xc] sm:$0xf]
        %v7714 = vld [vmem:[%s7709 + $0x10] sm:$0xf]
        %v7715 = vld [vmem:[%s7709 + $0x14] sm:$0xf]
        %v7716 = vld [vmem:[%s7709 + $0x18] sm:$0xf]
        %v7717 = vld [vmem:[%s7709 + $0x1c] sm:$0xf]
        %v7718 = vpack.c.bf16 %v7706, %v7706
        %v7727 = vunpack.c.l.b16 %v7710
        %v7728 = vunpack.c.l.b16 %v7711
        %v7729 = vunpack.c.l.b16 %v7712
        %v7730 = vunpack.c.l.b16 %v7713
        %v7731 = vunpack.c.l.b16 %v7714
        %v7732 = vunpack.c.l.b16 %v7715
        %v7733 = vunpack.c.l.b16 %v7716
        %v7734 = vunpack.c.l.b16 %v7717
        %v7735 = vpack.c.b16 %v7728, %v7727
        %v7736 = vpack.c.b16 %v7730, %v7729
        %v7737 = vpack.c.b16 %v7732, %v7731
        %v7738 = vpack.c.b16 %v7734, %v7733
        %v7744 = vsel %vm2526, %v7718, 0
        %7746 = vmatpush.bf16.msra.mxu0 0
        %7747 = vmatpush.bf16.msra.mxu0 0
        %7748 = vmatpush.bf16.msra.mxu0 0
        %7749 = vmatpush.bf16.msra.mxu0 0
        %7750 = vmatpush.bf16.msra.mxu0 %v7738
        %7751 = vmatpush.bf16.msra.mxu0 %v7737
        %7752 = vmatpush.bf16.msra.mxu0 %v7736
        %7753 = vmatpush.bf16.msra.mxu0 %v7735
        %7754 = vmatmul.bf16.gmra.mxu0 %v7744
        %v7755 = vpop.f32.mrf.mxu0
        %v7756 = vadd.f32 0.0, %v7755
        %v7757 = vpop.f32.mrf.mxu0
        %7758 = vdwg.mxu0
        %v7759 = vadd.f32 %v7483, %v7756
        %s7760 = scalar_lea.vmem %s11, 1
        %v7761 = vld [vmem:[%s7760] sm:$0x1]
        %v7763 = vperm.slane %v7761, 0
        %v7765 = vadd.f32 %v7759, %v7763
        %s7766 = scalar_lea.vmem %s23, 1
        %v7767 = vld [vmem:[%s7766] sm:$0x1]
        %s7768 = scalar_lea.vmem %s21, 1
        %v7769 = vld [vmem:[%s7768] sm:$0x1]
        %v7770 = vsel %vm1959, %v7765, 0.0
        %7771 = vadd.xlane.f32.xlu0 %v7770
        %v7772 = vpop.xlane.xlu0 %7771
        %v7773 = vmul.f32 %v7772, %v1969
        %v7774 = vsub.f32 %v7765, %v7773
        %v7775 = vmul.f32 %v7774, %v7774
        %v7776 = vsel %vm1959, %v7775, 0.0
        %7777 = vadd.xlane.f32.xlu0 %v7776
        %v7778 = vpop.xlane.xlu0 %7777
        %v7779 = vmul.f32 %v7778, %v1969
        %v7780 = vadd.f32 %v7779, 1e-05
        %v7781 = vrsqrt.pop %v7780
        %v7782 = vmul.f32 %v7781, %v7780
        %v7783 = vmul.f32 %v7782, %v7781
        %v7784 = vmul.f32 0.5, %v7783
        %v7785 = vsub.f32 1.5, %v7784
        %v7786 = vmul.f32 %v7781, %v7785
        %vm7787 = vweird.f32 %v7780
        %vm7788 = vweird.f32 %v7781
        %vm7789 = vmor %vm7787, %vm7788
        %v7790 = vsel %vm7789, %v7781, %v7786
        %v7791 = vmul.f32 %v7774, %v7790
        %v7793 = vperm.slane %v7767, 0
        %v7795 = vmul.f32 %v7791, %v7793
        %v7797 = vperm.slane %v7769, 0
        %v7799 = vadd.f32 %v7795, %v7797
        %s7800 = scalar_lea.vmem %s29, 16
        %v7801 = vld [vmem:[%s7800] sm:$0xf]
        %v7802 = vld [vmem:[%s7800 + $0x4] sm:$0xf]
        %v7803 = vld [vmem:[%s7800 + $0x8] sm:$0xf]
        %v7804 = vld [vmem:[%s7800 + $0xc] sm:$0xf]
        %v7805 = vpack.c.bf16 %v7799, %v7799
        %s7806 = scalar_lea.vmem %s5, 1
        %v7807 = vld [vmem:[%s7806] sm:$0x1]
        %v7809 = vperm.slane %v7807, 0
        %v7815 = vunpack.c.l.b16 %v7801
        %v7816 = vunpack.c.l.b16 %v7802
        %v7817 = vunpack.c.l.b16 %v7803
        %v7818 = vunpack.c.l.b16 %v7804
        %v7819 = vpack.c.b16 %v7816, %v7815
        %v7820 = vpack.c.b16 %v7818, %v7817
        %v7824 = vsel %vm1959, %v7805, 0
        %7826 = vmatpush.bf16.msra.mxu0 0
        %7827 = vmatpush.bf16.msra.mxu0 0
        %7828 = vmatpush.bf16.msra.mxu0 0
        %7829 = vmatpush.bf16.msra.mxu0 0
        %7830 = vmatpush.bf16.msra.mxu0 0
        %7831 = vmatpush.bf16.msra.mxu0 0
        %7832 = vmatpush.bf16.msra.mxu0 %v7820
        %7833 = vmatpush.bf16.msra.mxu0 %v7819
        %7834 = vmatmul.bf16.gmra.mxu0 %v7824
        %v7835 = vpop.f32.mrf.mxu0
        %v7836 = vadd.f32 %v7809, %v7835
        %v7837 = vpop.f32.mrf.mxu0
        %7838 = vdwg.mxu0
        %v7839 = vmul.f32 %v7836, 0.5
        %v7840 = vmul.f32 %v7836, 0.044715
        %v7841 = vmul.f32 %v7840, %v7836
        %v7842 = vmul.f32 %v7841, %v7836
        %v7843 = vadd.f32 %v7836, %v7842
        %v7844 = vmul.f32 %v7843, 0.7978846
        %v7845 = vtanh.pop %v7844
        %v7846 = vadd.f32 %v7845, 1.0
        %v7847 = vmul.f32 %v7839, %v7846
        %s7848 = scalar_lea.vmem %s31, 64
        %v7849 = vld [vmem:[%s7848] sm:$0xf]
        %v7850 = vld [vmem:[%s7848 + $0x4] sm:$0xf]
        %v7851 = vld [vmem:[%s7848 + $0x8] sm:$0xf]
        %v7852 = vld [vmem:[%s7848 + $0xc] sm:$0xf]
        %v7853 = vld [vmem:[%s7848 + $0x10] sm:$0xf]
        %v7854 = vld [vmem:[%s7848 + $0x14] sm:$0xf]
        %v7855 = vld [vmem:[%s7848 + $0x18] sm:$0xf]
        %v7856 = vld [vmem:[%s7848 + $0x1c] sm:$0xf]
        %v7857 = vld [vmem:[%s7848 + $0x20] sm:$0xf]
        %v7858 = vld [vmem:[%s7848 + $0x24] sm:$0xf]
        %v7859 = vld [vmem:[%s7848 + $0x28] sm:$0xf]
        %v7860 = vld [vmem:[%s7848 + $0x2c] sm:$0xf]
        %v7861 = vld [vmem:[%s7848 + $0x30] sm:$0xf]
        %v7862 = vld [vmem:[%s7848 + $0x34] sm:$0xf]
        %v7863 = vld [vmem:[%s7848 + $0x38] sm:$0xf]
        %v7864 = vld [vmem:[%s7848 + $0x3c] sm:$0xf]
        %v7865 = vpack.c.bf16 %v7847, %v7847
        %v7882 = vunpack.c.l.b16 %v7849
        %v7883 = vunpack.c.l.b16 %v7850
        %v7884 = vunpack.c.l.b16 %v7851
        %v7885 = vunpack.c.l.b16 %v7852
        %v7886 = vunpack.c.l.b16 %v7853
        %v7887 = vunpack.c.l.b16 %v7854
        %v7888 = vunpack.c.l.b16 %v7855
        %v7889 = vunpack.c.l.b16 %v7856
        %v7890 = vunpack.c.l.b16 %v7857
        %v7891 = vunpack.c.l.b16 %v7858
        %v7892 = vunpack.c.l.b16 %v7859
        %v7893 = vunpack.c.l.b16 %v7860
        %v7894 = vunpack.c.l.b16 %v7861
        %v7895 = vunpack.c.l.b16 %v7862
        %v7896 = vunpack.c.l.b16 %v7863
        %v7897 = vunpack.c.l.b16 %v7864
        %v7898 = vpack.c.b16 %v7883, %v7882
        %v7899 = vpack.c.b16 %v7885, %v7884
        %v7900 = vpack.c.b16 %v7887, %v7886
        %v7901 = vpack.c.b16 %v7889, %v7888
        %v7902 = vpack.c.b16 %v7891, %v7890
        %v7903 = vpack.c.b16 %v7893, %v7892
        %v7904 = vpack.c.b16 %v7895, %v7894
        %v7905 = vpack.c.b16 %v7897, %v7896
        %7914 = vmatpush.bf16.msra.mxu0 %v7905
        %7915 = vmatpush.bf16.msra.mxu0 %v7904
        %7916 = vmatpush.bf16.msra.mxu0 %v7903
        %7917 = vmatpush.bf16.msra.mxu0 %v7902
        %7918 = vmatpush.bf16.msra.mxu0 %v7901
        %7919 = vmatpush.bf16.msra.mxu0 %v7900
        %7920 = vmatpush.bf16.msra.mxu0 %v7899
        %7921 = vmatpush.bf16.msra.mxu0 %v7898
        %7922 = vmatmul.bf16.gmra.mxu0 %v7865
        %v7923 = vpop.f32.mrf.mxu0
        %v7924 = vadd.f32 0.0, %v7923
        %v7925 = vpop.f32.mrf.mxu0
        %7926 = vdwg.mxu0
        %v7927 = vadd.f32 %v7765, %v7924
        %s7928 = scalar_lea.vmem %s7, 1
        %v7929 = vld [vmem:[%s7928] sm:$0x1]
        %v7931 = vperm.slane %v7929, 0
        %v7933 = vadd.f32 %v7927, %v7931
        %v7934 = vld [vmem:[#allocation19] sm:$0x1]
        %v7935 = vld [vmem:[#allocation18] sm:$0x1]
        %v7937 = vperm.slane %v7934, 0
        %v7939 = vmul.f32 %v7085, %v7937
        %v7941 = vperm.slane %v7935, 0
        %v7943 = vadd.f32 %v7939, %v7941
        %v7944 = vld [vmem:[#allocation13] sm:$0x1]
        %v7945 = vld [vmem:[#allocation12] sm:$0x1]
        %v7946 = vsel %vm1959, %v7933, 0.0
        %7947 = vadd.xlane.f32.xlu0 %v7946
        %v7948 = vpop.xlane.xlu0 %7947
        %v7949 = vmul.f32 %v7948, %v1969
        %v7950 = vsub.f32 %v7933, %v7949
        %v7951 = vmul.f32 %v7950, %v7950
        %v7952 = vsel %vm1959, %v7951, 0.0
        %7953 = vadd.xlane.f32.xlu0 %v7952
        %v7954 = vpop.xlane.xlu0 %7953
        %v7955 = vmul.f32 %v7954, %v1969
        %v7956 = vadd.f32 %v7955, 1e-05
        %v7957 = vrsqrt.pop %v7956
        %v7958 = vmul.f32 %v7957, %v7956
        %v7959 = vmul.f32 %v7958, %v7957
        %v7960 = vmul.f32 0.5, %v7959
        %v7961 = vsub.f32 1.5, %v7960
        %v7962 = vmul.f32 %v7957, %v7961
        %vm7963 = vweird.f32 %v7956
        %vm7964 = vweird.f32 %v7957
        %vm7965 = vmor %vm7963, %vm7964
        %v7966 = vsel %vm7965, %v7957, %v7962
        %v7967 = vmul.f32 %v7950, %v7966
        %v7969 = vperm.slane %v7944, 0
        %v7971 = vmul.f32 %v7967, %v7969
        %v7973 = vperm.slane %v7945, 0
        %v7975 = vadd.f32 %v7971, %v7973
        %v7976 = vld [vmem:[%s83] sm:$0xf]
        %v7977 = vld [vmem:[%s83 + $0x4] sm:$0xf]
        %v7978 = vld [vmem:[%s83 + $0x8] sm:$0xf]
        %v7979 = vld [vmem:[%s83 + $0xc] sm:$0xf]
        %v7980 = vpack.c.bf16 %v7943, %v7943
        %v7981 = vld [vmem:[#allocation9] sm:$0x1]
        %v7983 = vperm.slane %v7981, 0
        %v7989 = vunpack.c.l.b16 %v7976
        %v7990 = vunpack.c.l.b16 %v7977
        %v7991 = vunpack.c.l.b16 %v7978
        %v7992 = vunpack.c.l.b16 %v7979
        %v7993 = vpack.c.b16 %v7990, %v7989
        %v7994 = vpack.c.b16 %v7992, %v7991
        %v7998 = vsel %vm1959, %v7980, 0
        %8000 = vmatpush.bf16.msra.mxu0 0
        %8001 = vmatpush.bf16.msra.mxu0 0
        %8002 = vmatpush.bf16.msra.mxu0 0
        %8003 = vmatpush.bf16.msra.mxu0 0
        %8004 = vmatpush.bf16.msra.mxu0 0
        %8005 = vmatpush.bf16.msra.mxu0 0
        %8006 = vmatpush.bf16.msra.mxu0 %v7994
        %8007 = vmatpush.bf16.msra.mxu0 %v7993
        %8008 = vmatmul.bf16.gmra.mxu0 %v7998
        %v8009 = vpop.f32.mrf.mxu0
        %v8010 = vadd.f32 %v7983, %v8009
        %v8011 = vpop.f32.mrf.mxu0
        %8012 = vdwg.mxu0
        %v8013 = vld [vmem:[%s79] sm:$0xf]
        %v8014 = vld [vmem:[%s79 + $0x4] sm:$0xf]
        %v8015 = vld [vmem:[%s79 + $0x8] sm:$0xf]
        %v8016 = vld [vmem:[%s79 + $0xc] sm:$0xf]
        %v8017 = vpack.c.bf16 %v7975, %v7975
        %v8018 = vld [vmem:[#allocation6] sm:$0x1]
        %v8020 = vperm.slane %v8018, 0
        %v8026 = vunpack.c.l.b16 %v8013
        %v8027 = vunpack.c.l.b16 %v8014
        %v8028 = vunpack.c.l.b16 %v8015
        %v8029 = vunpack.c.l.b16 %v8016
        %v8030 = vpack.c.b16 %v8027, %v8026
        %v8031 = vpack.c.b16 %v8029, %v8028
        %v8035 = vsel %vm1959, %v8017, 0
        %8037 = vmatpush.bf16.msra.mxu0 0
        %8038 = vmatpush.bf16.msra.mxu0 0
        %8039 = vmatpush.bf16.msra.mxu0 0
        %8040 = vmatpush.bf16.msra.mxu0 0
        %8041 = vmatpush.bf16.msra.mxu0 0
        %8042 = vmatpush.bf16.msra.mxu0 0
        %8043 = vmatpush.bf16.msra.mxu0 %v8031
        %8044 = vmatpush.bf16.msra.mxu0 %v8030
        %8045 = vmatmul.bf16.gmra.mxu0 %v8035
        %v8046 = vpop.f32.mrf.mxu0
        %v8047 = vadd.f32 %v8020, %v8046
        %v8048 = vpop.f32.mrf.mxu0
        %8049 = vdwg.mxu0
        %v8050 = vld [vmem:[%s85] sm:$0xf]
        %v8051 = vld [vmem:[%s85 + $0x4] sm:$0xf]
        %v8052 = vld [vmem:[%s85 + $0x8] sm:$0xf]
        %v8053 = vld [vmem:[%s85 + $0xc] sm:$0xf]
        %v8054 = vld [vmem:[#allocation10] sm:$0x1]
        %v8056 = vperm.slane %v8054, 0
        %v8062 = vunpack.c.l.b16 %v8050
        %v8063 = vunpack.c.l.b16 %v8051
        %v8064 = vunpack.c.l.b16 %v8052
        %v8065 = vunpack.c.l.b16 %v8053
        %v8066 = vpack.c.b16 %v8063, %v8062
        %v8067 = vpack.c.b16 %v8065, %v8064
        %8070 = vmatpush.bf16.msra.mxu0 0
        %8071 = vmatpush.bf16.msra.mxu0 0
        %8072 = vmatpush.bf16.msra.mxu0 0
        %8073 = vmatpush.bf16.msra.mxu0 0
        %8074 = vmatpush.bf16.msra.mxu0 0
        %8075 = vmatpush.bf16.msra.mxu0 0
        %8076 = vmatpush.bf16.msra.mxu0 %v8067
        %8077 = vmatpush.bf16.msra.mxu0 %v8066
        %8078 = vmatmul.bf16.gmra.mxu0 %v8035
        %v8079 = vpop.f32.mrf.mxu0
        %v8080 = vadd.f32 %v8056, %v8079
        %v8081 = vpop.f32.mrf.mxu0
        %8082 = vdwg.mxu0
        %v8083 = vpack.c.bf16 %v8010, %v8010
        %v8084 = vpack.c.bf16 %v8047, %v8047
        %v8086 = vsel %vm2526, %v8083, 0
        %v8089 = vsel %vm2526, %v8084, 0
        %8091 = vmatpush.bf16.xpose.msra.mxu0 0
        %8092 = vmatpush.bf16.xpose.msra.mxu0 0
        %8093 = vmatpush.bf16.xpose.msra.mxu0 0
        %8094 = vmatpush.bf16.xpose.msra.mxu0 0
        %8095 = vmatpush.bf16.xpose.msra.mxu0 0
        %8096 = vmatpush.bf16.xpose.msra.mxu0 0
        %8097 = vmatpush.bf16.xpose.msra.mxu0 0
        %8098 = vmatpush.bf16.xpose.msra.mxu0 %v8089
        %8099 = vmatmul.bf16.gmra.mxu0 %v8086
        %v8100 = vpop.f32.mrf.mxu0
        %v8101 = vadd.f32 0.0, %v8100
        %v8102 = vpop.f32.mrf.mxu0
        %8103 = vdwg.mxu0
        %v8104 = vsel %vm2603, %v8101, -inf
        %8105 = vmax.xlane.f32.xlu0 %v8104
        %v8106 = vpop.xlane.xlu0 %8105
        %v8107 = vsub.f32 %v8101, %v8106
        %v8108 = vmul.f32 %v8107, 1.442695
        %v8109 = vpow.pop %v8108
        %v8110 = vsel %vm2603, %v8109, 0.0
        %8111 = vadd.xlane.f32.xlu0 %v8110
        %v8112 = vpop.xlane.xlu0 %8111
        %v8113 = vrcp.pop %v8112
        %v8114 = vmul.f32 %v8112, %v8113
        %v8115 = vsub.f32 1.0, %v8114
        %v8116 = vmul.f32 %v8113, %v8115
        %v8117 = vadd.f32 %v8113, %v8116
        %vm8118 = vweird.f32 %v8112
        %vm8119 = vweird.f32 %v8113
        %vm8120 = vmor %vm8118, %vm8119
        %v8121 = vsel %vm8120, %v8113, %v8117
        %v8122 = vand.u32 2147483647, %v8112
        %vm8123 = vcmp.eq.f32.partialorder %v8122, 8.507059e+37
        %v8124 = vand.u32 %v8112, 2147483648
        %v8125 = vor.u32 1.1754944e-38, %v8124
        %v8126 = vsel %vm8123, %v8125, %v8121
        %v8127 = vmul.f32 %v8109, %v8126
        %v8128 = vpack.c.bf16 %v8127, %v8127
        %v8129 = vpack.c.bf16 %v8080, %v8080
        %v8131 = vsel %vm2603, %v8128, 0
        %v8134 = vsel %vm2707, %v8129, 0
        %8136 = vmatpush.bf16.msra.mxu0 0
        %8137 = vmatpush.bf16.msra.mxu0 0
        %8138 = vmatpush.bf16.msra.mxu0 0
        %8139 = vmatpush.bf16.msra.mxu0 0
        %8140 = vmatpush.bf16.msra.mxu0 0
        %8141 = vmatpush.bf16.msra.mxu0 0
        %8142 = vmatpush.bf16.msra.mxu0 0
        %8143 = vmatpush.bf16.msra.mxu0 %v8134
        %8144 = vmatmul.bf16.gmra.mxu0 %v8131
        %v8145 = vpop.f32.mrf.mxu0
        %v8146 = vadd.f32 0.0, %v8145
        %v8147 = vpop.f32.mrf.mxu0
        %8148 = vdwg.mxu0
        %v8149 = vld [vmem:[%s81] sm:$0xf]
        %v8150 = vld [vmem:[%s81 + $0x4] sm:$0xf]
        %v8151 = vld [vmem:[%s81 + $0x8] sm:$0xf]
        %v8152 = vld [vmem:[%s81 + $0xc] sm:$0xf]
        %v8153 = vld [vmem:[%s81 + $0x10] sm:$0xf]
        %v8154 = vld [vmem:[%s81 + $0x14] sm:$0xf]
        %v8155 = vld [vmem:[%s81 + $0x18] sm:$0xf]
        %v8156 = vld [vmem:[%s81 + $0x1c] sm:$0xf]
        %v8157 = vpack.c.bf16 %v8146, %v8146
        %v8166 = vunpack.c.l.b16 %v8149
        %v8167 = vunpack.c.l.b16 %v8150
        %v8168 = vunpack.c.l.b16 %v8151
        %v8169 = vunpack.c.l.b16 %v8152
        %v8170 = vunpack.c.l.b16 %v8153
        %v8171 = vunpack.c.l.b16 %v8154
        %v8172 = vunpack.c.l.b16 %v8155
        %v8173 = vunpack.c.l.b16 %v8156
        %v8174 = vpack.c.b16 %v8167, %v8166
        %v8175 = vpack.c.b16 %v8169, %v8168
        %v8176 = vpack.c.b16 %v8171, %v8170
        %v8177 = vpack.c.b16 %v8173, %v8172
        %v8183 = vsel %vm2526, %v8157, 0
        %8185 = vmatpush.bf16.msra.mxu0 0
        %8186 = vmatpush.bf16.msra.mxu0 0
        %8187 = vmatpush.bf16.msra.mxu0 0
        %8188 = vmatpush.bf16.msra.mxu0 0
        %8189 = vmatpush.bf16.msra.mxu0 %v8177
        %8190 = vmatpush.bf16.msra.mxu0 %v8176
        %8191 = vmatpush.bf16.msra.mxu0 %v8175
        %8192 = vmatpush.bf16.msra.mxu0 %v8174
        %8193 = vmatmul.bf16.gmra.mxu0 %v8183
        %v8194 = vpop.f32.mrf.mxu0
        %v8195 = vadd.f32 0.0, %v8194
        %v8196 = vpop.f32.mrf.mxu0
        %8197 = vdwg.mxu0
        %v8198 = vadd.f32 %v1953, %v8195
        %v8199 = vld [vmem:[#allocation7] sm:$0x1]
        %v8201 = vperm.slane %v8199, 0
        %v8203 = vadd.f32 %v8198, %v8201
        %v8204 = vld [vmem:[#allocation16] sm:$0x1]
        %v8205 = vld [vmem:[#allocation15] sm:$0x1]
        %v8206 = vsel %vm1959, %v8203, 0.0
        %8207 = vadd.xlane.f32.xlu0 %v8206
        %v8208 = vpop.xlane.xlu0 %8207
        %v8209 = vmul.f32 %v8208, %v1969
        %v8210 = vsub.f32 %v8203, %v8209
        %v8211 = vmul.f32 %v8210, %v8210
        %v8212 = vsel %vm1959, %v8211, 0.0
        %8213 = vadd.xlane.f32.xlu0 %v8212
        %v8214 = vpop.xlane.xlu0 %8213
        %v8215 = vmul.f32 %v8214, %v1969
        %v8216 = vadd.f32 %v8215, 1e-05
        %v8217 = vrsqrt.pop %v8216
        %v8218 = vmul.f32 %v8217, %v8216
        %v8219 = vmul.f32 %v8218, %v8217
        %v8220 = vmul.f32 0.5, %v8219
        %v8221 = vsub.f32 1.5, %v8220
        %v8222 = vmul.f32 %v8217, %v8221
        %vm8223 = vweird.f32 %v8216
        %vm8224 = vweird.f32 %v8217
        %vm8225 = vmor %vm8223, %vm8224
        %v8226 = vsel %vm8225, %v8217, %v8222
        %v8227 = vmul.f32 %v8210, %v8226
        %v8229 = vperm.slane %v8204, 0
        %v8231 = vmul.f32 %v8227, %v8229
        %v8233 = vperm.slane %v8205, 0
        %v8235 = vadd.f32 %v8231, %v8233
        %v8236 = vld [vmem:[%s75] sm:$0xf]
        %v8237 = vld [vmem:[%s75 + $0x4] sm:$0xf]
        %v8238 = vld [vmem:[%s75 + $0x8] sm:$0xf]
        %v8239 = vld [vmem:[%s75 + $0xc] sm:$0xf]
        %v8240 = vpack.c.bf16 %v8235, %v8235
        %v8241 = vld [vmem:[#allocation2] sm:$0x1]
        %v8243 = vperm.slane %v8241, 0
        %v8249 = vunpack.c.l.b16 %v8236
        %v8250 = vunpack.c.l.b16 %v8237
        %v8251 = vunpack.c.l.b16 %v8238
        %v8252 = vunpack.c.l.b16 %v8239
        %v8253 = vpack.c.b16 %v8250, %v8249
        %v8254 = vpack.c.b16 %v8252, %v8251
        %v8258 = vsel %vm1959, %v8240, 0
        %8260 = vmatpush.bf16.msra.mxu0 0
        %8261 = vmatpush.bf16.msra.mxu0 0
        %8262 = vmatpush.bf16.msra.mxu0 0
        %8263 = vmatpush.bf16.msra.mxu0 0
        %8264 = vmatpush.bf16.msra.mxu0 0
        %8265 = vmatpush.bf16.msra.mxu0 0
        %8266 = vmatpush.bf16.msra.mxu0 %v8254
        %8267 = vmatpush.bf16.msra.mxu0 %v8253
        %8268 = vmatmul.bf16.gmra.mxu0 %v8258
        %v8269 = vpop.f32.mrf.mxu0
        %v8270 = vadd.f32 %v8243, %v8269
        %v8271 = vpop.f32.mrf.mxu0
        %8272 = vdwg.mxu0
        %v8273 = vmul.f32 %v8270, 0.5
        %v8274 = vmul.f32 %v8270, 0.044715
        %v8275 = vmul.f32 %v8274, %v8270
        %v8276 = vmul.f32 %v8275, %v8270
        %v8277 = vadd.f32 %v8270, %v8276
        %v8278 = vmul.f32 %v8277, 0.7978846
        %v8279 = vtanh.pop %v8278
        %v8280 = vadd.f32 %v8279, 1.0
        %v8281 = vmul.f32 %v8273, %v8280
        %v8282 = vld [vmem:[%s77] sm:$0xf]
        %v8283 = vld [vmem:[%s77 + $0x4] sm:$0xf]
        %v8284 = vld [vmem:[%s77 + $0x8] sm:$0xf]
        %v8285 = vld [vmem:[%s77 + $0xc] sm:$0xf]
        %v8286 = vld [vmem:[%s77 + $0x10] sm:$0xf]
        %v8287 = vld [vmem:[%s77 + $0x14] sm:$0xf]
        %v8288 = vld [vmem:[%s77 + $0x18] sm:$0xf]
        %v8289 = vld [vmem:[%s77 + $0x1c] sm:$0xf]
        %v8290 = vld [vmem:[%s77 + $0x20] sm:$0xf]
        %v8291 = vld [vmem:[%s77 + $0x24] sm:$0xf]
        %v8292 = vld [vmem:[%s77 + $0x28] sm:$0xf]
        %v8293 = vld [vmem:[%s77 + $0x2c] sm:$0xf]
        %v8294 = vld [vmem:[%s77 + $0x30] sm:$0xf]
        %v8295 = vld [vmem:[%s77 + $0x34] sm:$0xf]
        %v8296 = vld [vmem:[%s77 + $0x38] sm:$0xf]
        %v8297 = vld [vmem:[%s77 + $0x3c] sm:$0xf]
        %v8298 = vpack.c.bf16 %v8281, %v8281
        %v8315 = vunpack.c.l.b16 %v8282
        %v8316 = vunpack.c.l.b16 %v8283
        %v8317 = vunpack.c.l.b16 %v8284
        %v8318 = vunpack.c.l.b16 %v8285
        %v8319 = vunpack.c.l.b16 %v8286
        %v8320 = vunpack.c.l.b16 %v8287
        %v8321 = vunpack.c.l.b16 %v8288
        %v8322 = vunpack.c.l.b16 %v8289
        %v8323 = vunpack.c.l.b16 %v8290
        %v8324 = vunpack.c.l.b16 %v8291
        %v8325 = vunpack.c.l.b16 %v8292
        %v8326 = vunpack.c.l.b16 %v8293
        %v8327 = vunpack.c.l.b16 %v8294
        %v8328 = vunpack.c.l.b16 %v8295
        %v8329 = vunpack.c.l.b16 %v8296
        %v8330 = vunpack.c.l.b16 %v8297
        %v8331 = vpack.c.b16 %v8316, %v8315
        %v8332 = vpack.c.b16 %v8318, %v8317
        %v8333 = vpack.c.b16 %v8320, %v8319
        %v8334 = vpack.c.b16 %v8322, %v8321
        %v8335 = vpack.c.b16 %v8324, %v8323
        %v8336 = vpack.c.b16 %v8326, %v8325
        %v8337 = vpack.c.b16 %v8328, %v8327
        %v8338 = vpack.c.b16 %v8330, %v8329
        %8347 = vmatpush.bf16.msra.mxu0 %v8338
        %8348 = vmatpush.bf16.msra.mxu0 %v8337
        %8349 = vmatpush.bf16.msra.mxu0 %v8336
        %8350 = vmatpush.bf16.msra.mxu0 %v8335
        %8351 = vmatpush.bf16.msra.mxu0 %v8334
        %8352 = vmatpush.bf16.msra.mxu0 %v8333
        %8353 = vmatpush.bf16.msra.mxu0 %v8332
        %8354 = vmatpush.bf16.msra.mxu0 %v8331
        %8355 = vmatmul.bf16.gmra.mxu0 %v8298
        %v8356 = vpop.f32.mrf.mxu0
        %v8357 = vadd.f32 0.0, %v8356
        %v8358 = vpop.f32.mrf.mxu0
        %8359 = vdwg.mxu0
        %v8360 = vadd.f32 %v8203, %v8357
        %v8361 = vld [vmem:[#allocation4] sm:$0x1]
        %v8363 = vperm.slane %v8361, 0
        %v8365 = vadd.f32 %v8360, %v8363
        %v8366 = vld [vmem:[%s47] sm:$0xf]
        %v8367 = vld [vmem:[%s47 + $0x4] sm:$0xf]
        %v8368 = vld [vmem:[%s47 + $0x8] sm:$0xf]
        %v8369 = vld [vmem:[%s47 + $0xc] sm:$0xf]
        %v8370 = vpack.c.bf16 %v8365, %v8365
        %v8371 = vld [vmem:[%s43] sm:$0x1]
        %v8373 = vperm.slane %v8371, 0
        %v8379 = vunpack.c.l.b16 %v8366
        %v8380 = vunpack.c.l.b16 %v8367
        %v8381 = vunpack.c.l.b16 %v8368
        %v8382 = vunpack.c.l.b16 %v8369
        %v8383 = vpack.c.b16 %v8380, %v8379
        %v8384 = vpack.c.b16 %v8382, %v8381
        %v8388 = vsel %vm1959, %v8370, 0
        %8390 = vmatpush.bf16.msra.mxu0 0
        %8391 = vmatpush.bf16.msra.mxu0 0
        %8392 = vmatpush.bf16.msra.mxu0 0
        %8393 = vmatpush.bf16.msra.mxu0 0
        %8394 = vmatpush.bf16.msra.mxu0 0
        %8395 = vmatpush.bf16.msra.mxu0 0
        %8396 = vmatpush.bf16.msra.mxu0 %v8384
        %8397 = vmatpush.bf16.msra.mxu0 %v8383
        %8398 = vmatmul.bf16.gmra.mxu0 %v8388
        %v8399 = vpop.f32.mrf.mxu0
        %v8400 = vadd.f32 %v8373, %v8399
        %v8401 = vpop.f32.mrf.mxu0
        %8402 = vdwg.mxu0
        %v8403 = vmul.f32 %v8400, 0.5
        %v8404 = vmul.f32 %v8400, 0.044715
        %v8405 = vmul.f32 %v8404, %v8400
        %v8406 = vmul.f32 %v8405, %v8400
        %v8407 = vadd.f32 %v8400, %v8406
        %v8408 = vmul.f32 %v8407, 0.7978846
        %v8409 = vtanh.pop %v8408
        %v8410 = vadd.f32 %v8409, 1.0
        %v8411 = vmul.f32 %v8403, %v8410
        %v8412 = vld [vmem:[%s49] sm:$0xf]
        %v8413 = vld [vmem:[%s49 + $0x4] sm:$0xf]
        %v8414 = vld [vmem:[%s49 + $0x8] sm:$0xf]
        %v8415 = vld [vmem:[%s49 + $0xc] sm:$0xf]
        %v8416 = vld [vmem:[%s49 + $0x10] sm:$0xf]
        %v8417 = vld [vmem:[%s49 + $0x14] sm:$0xf]
        %v8418 = vld [vmem:[%s49 + $0x18] sm:$0xf]
        %v8419 = vld [vmem:[%s49 + $0x1c] sm:$0xf]
        %v8420 = vpack.c.bf16 %v8411, %v8411
        %v8421 = vld [vmem:[%s45] sm:$0x1]
        %v8423 = vperm.slane %v8421, 0
        %v8433 = vunpack.c.l.b16 %v8412
        %v8434 = vunpack.c.l.b16 %v8413
        %v8435 = vunpack.c.l.b16 %v8414
        %v8436 = vunpack.c.l.b16 %v8415
        %v8437 = vunpack.c.l.b16 %v8416
        %v8438 = vunpack.c.l.b16 %v8417
        %v8439 = vunpack.c.l.b16 %v8418
        %v8440 = vunpack.c.l.b16 %v8419
        %v8441 = vpack.c.b16 %v8434, %v8433
        %v8442 = vpack.c.b16 %v8436, %v8435
        %v8443 = vpack.c.b16 %v8438, %v8437
        %v8444 = vpack.c.b16 %v8440, %v8439
        %v8450 = vsel %vm2526, %v8420, 0
        %8452 = vmatpush.bf16.msra.mxu0 0
        %8453 = vmatpush.bf16.msra.mxu0 0
        %8454 = vmatpush.bf16.msra.mxu0 0
        %8455 = vmatpush.bf16.msra.mxu0 0
        %8456 = vmatpush.bf16.msra.mxu0 %v8444
        %8457 = vmatpush.bf16.msra.mxu0 %v8443
        %8458 = vmatpush.bf16.msra.mxu0 %v8442
        %8459 = vmatpush.bf16.msra.mxu0 %v8441
        %8460 = vmatmul.bf16.gmra.mxu0 %v8450
        %v8461 = vpop.f32.mrf.mxu0
        %v8462 = vadd.f32 %v8423, %v8461
        %v8463 = vpop.f32.mrf.mxu0
        %8464 = vdwg.mxu0
        %8465 = vst [vmem:[%s1887] sm:$0xff] %v8462
        %p8466 = scmp.lt.s32.totalorder %s133, 1
        %s8467 = scalar_select %p8466, %s133, 1
        %s8468 = smul.addr %s8467, 8
        %s8469 = scalar_lea.vmem %s115, %s8468
        // Predicated region
        $region301: #{decoder_forward.1} parent=247 // pred_check
          %p8470 = pneg %p1358
        $region302: #{decoder_forward.1} parent=247 // pred_check_branch
          %8472 = sbr.rel (%p8470) target = $region304
        $region303: #{decoder_forward.1} parent=247 // pred_region
          _
        $region304: #{decoder_forward.1} parent=247 // pred_fallthru
          _
      $region248: #{decoder_forward.1} parent=5 // pred_fallthru
        _
      %p8473 = scmp.le.s32.totalorder 2, %s128
      // Predicated region
      $region305: #{decoder_forward.1} parent=5 // pred_check
        %p8474 = pneg %p8473
      $region306: #{decoder_forward.1} parent=5 // pred_check_branch
        %8476 = sbr.rel (%p8474) target = $region308
      $region307: #{decoder_forward.1} parent=5 // pred_region
        %s8477 = ssub.s32 %s128, 2
        // Predicated region
        $region309: #{decoder_forward.1} parent=307 // pred_check
          %p8478 = pneg %p1364
        $region310: #{decoder_forward.1} parent=307 // pred_check_branch
          %8480 = sbr.rel (%p8478) target = $region312
        $region311: #{decoder_forward.1} parent=307 // pred_region
          %p8481 = scmp.lt.s32.totalorder %s134, 1
          %s8482 = scalar_select %p8481, %s134, 1
          %s8483 = smul.addr %s8482, 8
          %s8484 = scalar_lea.vmem %s115, %s8483
        $region312: #{decoder_forward.1} parent=307 // pred_fallthru
          _
      $region308: #{decoder_forward.1} parent=5 // pred_fallthru
        _
    $region6: #{decoder_forward.1} parent=1 // loop_footer
      %s132 = sadd.s32 1, %s128
    $region7: #{decoder_forward.1} parent=1 // loop_footer_branch
      %127 = sbr.rel target = $region3
    $region8: #{decoder_forward.1} parent=1 // loop_exit
      _
    %8485 = vsyncpa [#allocation3], 1
    %s8486 = scalar_lea.sflag [#allocation3], 1
    %8487 = vsyncpa %s8486, 1
    %8488 = vsyncpa [#allocation5], 1
    %8489 = vsyncpa [#allocation8], 1
    %8490 = vsyncpa [#allocation11], 1
    %8491 = vsyncpa [#allocation14], 1
    %8492 = vsyncpa [#allocation17], 1
    %8493 = vsyncpa [#allocation20], 1

</llo_original>
